<compile_context>
chip_gen: v6e
topology: v6e:2x2x1
jax: 0.10.0
libtpu: 0.0.40
codegen_flags: <defaults>
</compile_context>

<pallas_src>
import functools

import jax
import jax.numpy as jnp
from jax.experimental import pallas as pl
from jax.experimental.pallas import tpu as pltpu


def _round_up(x, m):
    return (x + m - 1) // m * m


# ----------------------------------------------------------------------------
# Pallas kernel: o = x @ w + b   (single K block, fused f32 bias epilogue)
# ----------------------------------------------------------------------------
def _matmul_bias_kernel(x_ref, w_ref, b_ref, o_ref):
    acc = jnp.dot(x_ref[...], w_ref[...], preferred_element_type=jnp.float32)
    o_ref[...] = (acc + b_ref[...]).astype(o_ref.dtype)


def _pick_tn(n):
    # Lane-dense N tiles; prefer >= 2 tiles so v7x can split across cores.
    for cand in (1024, 512, 256, 128):
        if n % cand == 0 and n // cand >= 2:
            return cand
    return n


def _pick_tm(m):
    mp = _round_up(m, 8)
    if mp >= 4096:
        tm = 2048
    elif mp >= 2048:
        tm = 1024
    else:
        tm = mp                      # single full-M block
    return tm, _round_up(mp, tm)


def matmul_bias(x, w, b, out_dtype=jnp.bfloat16):
    """o[Mp, N] = x[M, K] @ w[K, N] + b[1, N].  K, N already padded; bf16 MXU."""
    m, k = x.shape
    k2, n = w.shape
    assert k == k2 and b.shape == (1, n)

    tn = _pick_tn(n)
    tm, mp = _pick_tm(m)
    if mp != m:
        x = jnp.pad(x, ((0, mp - m), (0, 0)))

    return pl.pallas_call(
        _matmul_bias_kernel,
        out_shape=jax.ShapeDtypeStruct((mp, n), out_dtype),
        grid_spec=pltpu.PrefetchScalarGridSpec(
            num_scalar_prefetch=0,
            grid=(mp // tm, n // tn),
            in_specs=[
                pl.BlockSpec((tm, k), lambda i, j: (i, 0)),
                pl.BlockSpec((k, tn), lambda i, j: (0, j)),
                pl.BlockSpec((1, tn), lambda i, j: (0, j)),
            ],
            out_specs=pl.BlockSpec((tm, tn), lambda i, j: (i, j)),
        ),
        compiler_params=pltpu.CompilerParams(
            dimension_semantics=("parallel", "parallel")),
    )(x, w, b)


# ----------------------------------------------------------------------------
# ConvTranspose2d(kernel=4, stride=2, padding=1) as GEMM + shift-add combine
# ----------------------------------------------------------------------------
def conv_transpose2d_4s2p1(x, wmat, brow, cout, act, out_dtype):
    """x: [B, H, W, Cin] NHWC -> [B, 2H, 2W, cout] NHWC.

    wmat: [Kp, Np] bf16 with wmat[ci, (kh*4+kw)*cout + co] = w[ci, co, kh, kw]
    brow: [1, Np] f32, bias replicated on the central taps (kh, kw in {1, 2}).
    PyTorch semantics: y[oh, ow] += x[ih, iw] * w[:, :, kh, kw] where
    oh = 2*ih - 1 + kh, ow = 2*iw - 1 + kw.
    """
    B, H, W, cin = x.shape
    kp = wmat.shape[0]
    n = 16 * cout
    m = B * H * W

    xm = x.reshape(m, cin).astype(jnp.bfloat16)
    if kp != cin:
        xm = jnp.pad(xm, ((0, 0), (0, kp - cin)))

    t = matmul_bias(xm, wmat, brow)[:m, :n]            # [M, 16*cout] bf16
    t = t.reshape(B, H, W, 4, 4, cout)
    tp = jnp.pad(t, ((0, 0), (1, 1), (1, 1), (0, 0), (0, 0), (0, 0)))

    # Output pixel (2m+ph, 2n+pw) sums: parity -> ((tap index, slice start), ...)
    taps = {0: ((1, 1), (3, 0)), 1: ((2, 1), (0, 2))}
    planes = []
    for ph in (0, 1):
        for pw in (0, 1):
            acc = None
            for kh, hs in taps[ph]:
                for kw, ws in taps[pw]:
                    term = tp[:, hs:hs + H, ws:ws + W, kh, kw, :].astype(jnp.float32)
                    acc = term if acc is None else acc + term
            planes.append(acc)

    y = jnp.stack(planes, axis=0).reshape(2, 2, B, H, W, cout)
    y = jnp.maximum(y, 0.0) if act == "relu" else jax.nn.sigmoid(y)
    # Interleave parity planes back into the spatial grid.
    y = y.transpose(2, 3, 0, 4, 1, 5).reshape(B, 2 * H, 2 * W, cout)
    return y.astype(out_dtype)


# ----------------------------------------------------------------------------
# TextureGenerator parameters, packing, forward
# ----------------------------------------------------------------------------
def init_texture_generator_params(key, z_dim=16):
    """Deterministic synthetic parameters (same shapes as the PyTorch module)."""
    chans = [(z_dim, 256), (256, 128), (128, 64), (64, 3), (3, 3)]
    params = []
    for i, (cin, cout) in enumerate(chans):
        kw_, kb_ = jax.random.split(jax.random.fold_in(key, i))
        w = 0.02 * jax.random.normal(kw_, (cin, cout, 4, 4), jnp.float32)
        b = 0.01 * jax.random.normal(kb_, (cout,), jnp.float32)
        params.append((w, b))
    return params


def prepare_params(params):
    """Pre-pack weights/bias for the GEMM kernel (once, outside the jitted fwd)."""
    wmats, brows, meta = [], [], []
    n_layers = len(params)
    for i, (w, b) in enumerate(params):
        cin, cout = w.shape[0], w.shape[1]
        k, n = cin, 16 * cout
        kp, npad = _round_up(k, 16), _round_up(n, 128)
        # Wmat[ci, (kh*4+kw)*cout + co] = w[ci, co, kh, kw]
        wmat = jnp.transpose(w, (0, 2, 3, 1)).reshape(k, n)
        wmat = jnp.pad(wmat, ((0, kp - k), (0, npad - n))).astype(jnp.bfloat16)
        # Bias only on the 4 central taps -> added exactly once per output pixel.
        bcols = jnp.zeros((4, 4, cout), jnp.float32).at[1:3, 1:3, :].set(b)
        brow = jnp.pad(bcols.reshape(1, n), ((0, 0), (0, npad - n)))
        wmats.append(wmat)
        brows.append(brow)
        meta.append((cout, "sigmoid" if i == n_layers - 1 else "relu"))
    return tuple(wmats), tuple(brows), tuple(meta)


@functools.partial(jax.jit, static_argnums=(0,))
def texture_generator_forward(meta, wmats, brows, z):
    """z: [B, z_dim, 4, 4] NCHW -> [B, 3, 128, 128] NCHW f32 (PyTorch layout)."""
    x = z.transpose(0, 2, 3, 1)                       # NHWC internally
    n_layers = len(meta)
    for i, (cout, act) in enumerate(meta):
        out_dtype = jnp.float32 if i == n_layers - 1 else jnp.bfloat16
        x = conv_transpose2d_4s2p1(x, wmats[i], brows[i], cout, act, out_dtype)
    return x.transpose(0, 3, 1, 2)                    # back to NCHW


def reference_forward(params, z):
    """Pure-JAX f32 reference with exact PyTorch ConvTranspose2d semantics."""
    x = z
    n_layers = len(params)
    for i, (w, b) in enumerate(params):
        wref = jnp.transpose(w[:, :, ::-1, ::-1], (1, 0, 2, 3))  # OIHW, flipped
        x = jax.lax.conv_general_dilated(
            x, wref, window_strides=(1, 1), padding=((2, 2), (2, 2)),
            lhs_dilation=(2, 2), dimension_numbers=("NCHW", "OIHW", "NCHW"))
        x = x + b.reshape(1, -1, 1, 1)
        x = jax.nn.relu(x) if i < n_layers - 1 else jax.nn.sigmoid(x)
    return x


if __name__ == "__main__":
    key = jax.random.PRNGKey(0)
    k_param, k_input = jax.random.split(key)

    z_dim, batch = 16, 2
    params = init_texture_generator_params(k_param, z_dim=z_dim)
    wmats, brows, meta = prepare_params(params)
    z = jax.random.normal(k_input, (batch, z_dim, 4, 4), jnp.float32)

    out = texture_generator_forward(meta, wmats, brows, z)
    out = jax.block_until_ready(out)

    assert out.shape == (batch, 3, 128, 128), out.shape
    assert bool(jnp.all(jnp.isfinite(out)))
    assert bool(jnp.all((out >= 0.0) & (out <= 1.0)))   # sigmoid output range

    ref = reference_forward(params, z)
    max_err = float(jnp.max(jnp.abs(out - ref)))
    assert max_err < 2e-2, f"mismatch vs f32 reference: {max_err}"

    print("KERNEL_OK")
</pallas_src>

<mosaic_0001>
module attributes {stable_mosaic.version = 11 : i64} {
  func.func @_matmul_bias_kernel(%arg0: i32, %arg1: i32, %arg2: memref<32x16xbf16, #tpu.memory_space<vmem>>, %arg3: memref<16x1024xbf16, #tpu.memory_space<vmem>>, %arg4: memref<1x1024xf32, #tpu.memory_space<vmem>>, %arg5: memref<32x1024xbf16, #tpu.memory_space<vmem>>) attributes {dimension_semantics = [#tpu.dimension_semantics<parallel>, #tpu.dimension_semantics<parallel>], iteration_bounds = array<i64: 1, 4>, scalar_prefetch = 0 : i64, scratch_operands = 0 : i64, tpu.core_type = #tpu.core_type<tc>, window_params = [{transform_indices = @transform_0, window_bounds = array<i64: 32, 16>}, {transform_indices = @transform_1, window_bounds = array<i64: 16, 1024>}, {transform_indices = @transform_2, window_bounds = array<i64: 1, 1024>}, {transform_indices = @transform_3, window_bounds = array<i64: 32, 1024>}]} {
    %c0 = arith.constant 0 : index
    %c0_0 = arith.constant 0 : index
    %0 = vector.load %arg2[%c0, %c0_0] : memref<32x16xbf16, #tpu.memory_space<vmem>>, vector<32x16xbf16>
    %c0_1 = arith.constant 0 : index
    %c0_2 = arith.constant 0 : index
    %1 = vector.load %arg3[%c0_1, %c0_2] : memref<16x1024xbf16, #tpu.memory_space<vmem>>, vector<16x1024xbf16>
    %cst = arith.constant dense<0.000000e+00> : vector<32x1024xf32>
    %2 = tpu.matmul %0, %1, %cst {dimension_numbers = #tpu.dot_dimension_numbers<[1], [0], [0], [1], [0, 0, 1, 1], [], []>} : vector<32x16xbf16>, vector<16x1024xbf16>, vector<32x1024xf32> -> vector<32x1024xf32>
    %c0_3 = arith.constant 0 : index
    %c0_4 = arith.constant 0 : index
    %3 = vector.load %arg4[%c0_3, %c0_4] : memref<1x1024xf32, #tpu.memory_space<vmem>>, vector<1x1024xf32>
    %4 = vector.broadcast %3 : vector<1x1024xf32> to vector<32x1024xf32>
    %5 = arith.addf %2, %4 : vector<32x1024xf32>
    %6 = arith.truncf %5 : vector<32x1024xf32> to vector<32x1024xbf16>
    %c0_5 = arith.constant 0 : index
    %c0_6 = arith.constant 0 : index
    %7 = vector.load %arg5[%c0_5, %c0_6] : memref<32x1024xbf16, #tpu.memory_space<vmem>>, vector<32x1024xbf16>
    tpu.vector_store %arg5[%c0_5, %c0_6], %6 {strides = array<i32>} : memref<32x1024xbf16, #tpu.memory_space<vmem>>, vector<32x1024xbf16>,
    return
  }
  func.func @transform_0(%arg0: i32, %arg1: i32) -> (i32, i32) {
    %c0_i32 = arith.constant 0 : i32
    %c0_i32_0 = arith.constant 0 : i32
    return %arg0, %c0_i32 : i32, i32
  }
  func.func @transform_1(%arg0: i32, %arg1: i32) -> (i32, i32) {
    %c0_i32 = arith.constant 0 : i32
    %c0_i32_0 = arith.constant 0 : i32
    return %c0_i32, %arg1 : i32, i32
  }
  func.func @transform_2(%arg0: i32, %arg1: i32) -> (i32, i32) {
    %c0_i32 = arith.constant 0 : i32
    %c0_i32_0 = arith.constant 0 : i32
    return %c0_i32, %arg1 : i32, i32
  }
  func.func @transform_3(%arg0: i32, %arg1: i32) -> (i32, i32) {
    %c0_i32 = arith.constant 0 : i32
    return %arg0, %arg1 : i32, i32
  }
}

module attributes {stable_mosaic.version = 11 : i64} {
  func.func @_matmul_bias_kernel(%arg0: i32, %arg1: i32, %arg2: memref<128x256xbf16, #tpu.memory_space<vmem>>, %arg3: memref<256x1024xbf16, #tpu.memory_space<vmem>>, %arg4: memref<1x1024xf32, #tpu.memory_space<vmem>>, %arg5: memref<128x1024xbf16, #tpu.memory_space<vmem>>) attributes {dimension_semantics = [#tpu.dimension_semantics<parallel>, #tpu.dimension_semantics<parallel>], iteration_bounds = array<i64: 1, 2>, scalar_prefetch = 0 : i64, scratch_operands = 0 : i64, tpu.core_type = #tpu.core_type<tc>, window_params = [{transform_indices = @transform_0, window_bounds = array<i64: 128, 256>}, {transform_indices = @transform_1, window_bounds = array<i64: 256, 1024>}, {transform_indices = @transform_2, window_bounds = array<i64: 1, 1024>}, {transform_indices = @transform_3, window_bounds = array<i64: 128, 1024>}]} {
    %c0 = arith.constant 0 : index
    %c0_0 = arith.constant 0 : index
    %0 = vector.load %arg2[%c0, %c0_0] : memref<128x256xbf16, #tpu.memory_space<vmem>>, vector<128x256xbf16>
    %c0_1 = arith.constant 0 : index
    %c0_2 = arith.constant 0 : index
    %1 = vector.load %arg3[%c0_1, %c0_2] : memref<256x1024xbf16, #tpu.memory_space<vmem>>, vector<256x1024xbf16>
    %cst = arith.constant dense<0.000000e+00> : vector<128x1024xf32>
    %2 = tpu.matmul %0, %1, %cst {dimension_numbers = #tpu.dot_dimension_numbers<[1], [0], [0], [1], [0, 0, 1, 1], [], []>} : vector<128x256xbf16>, vector<256x1024xbf16>, vector<128x1024xf32> -> vector<128x1024xf32>
    %c0_3 = arith.constant 0 : index
    %c0_4 = arith.constant 0 : index
    %3 = vector.load %arg4[%c0_3, %c0_4] : memref<1x1024xf32, #tpu.memory_space<vmem>>, vector<1x1024xf32>
    %4 = vector.broadcast %3 : vector<1x1024xf32> to vector<128x1024xf32>
    %5 = arith.addf %2, %4 : vector<128x1024xf32>
    %6 = arith.truncf %5 : vector<128x1024xf32> to vector<128x1024xbf16>
    %c0_5 = arith.constant 0 : index
    %c0_6 = arith.constant 0 : index
    %7 = vector.load %arg5[%c0_5, %c0_6] : memref<128x1024xbf16, #tpu.memory_space<vmem>>, vector<128x1024xbf16>
    tpu.vector_store %arg5[%c0_5, %c0_6], %6 {strides = array<i32>} : memref<128x1024xbf16, #tpu.memory_space<vmem>>, vector<128x1024xbf16>,
    return
  }
  func.func @transform_0(%arg0: i32, %arg1: i32) -> (i32, i32) {
    %c0_i32 = arith.constant 0 : i32
    %c0_i32_0 = arith.constant 0 : i32
    return %arg0, %c0_i32 : i32, i32
  }
  func.func @transform_1(%arg0: i32, %arg1: i32) -> (i32, i32) {
    %c0_i32 = arith.constant 0 : i32
    %c0_i32_0 = arith.constant 0 : i32
    return %c0_i32, %arg1 : i32, i32
  }
  func.func @transform_2(%arg0: i32, %arg1: i32) -> (i32, i32) {
    %c0_i32 = arith.constant 0 : i32
    %c0_i32_0 = arith.constant 0 : i32
    return %c0_i32, %arg1 : i32, i32
  }
  func.func @transform_3(%arg0: i32, %arg1: i32) -> (i32, i32) {
    %c0_i32 = arith.constant 0 : i32
    return %arg0, %arg1 : i32, i32
  }
}

module attributes {stable_mosaic.version = 11 : i64} {
  func.func @_matmul_bias_kernel(%arg0: i32, %arg1: i32, %arg2: memref<512x128xbf16, #tpu.memory_space<vmem>>, %arg3: memref<128x512xbf16, #tpu.memory_space<vmem>>, %arg4: memref<1x512xf32, #tpu.memory_space<vmem>>, %arg5: memref<512x512xbf16, #tpu.memory_space<vmem>>) attributes {dimension_semantics = [#tpu.dimension_semantics<parallel>, #tpu.dimension_semantics<parallel>], iteration_bounds = array<i64: 1, 2>, scalar_prefetch = 0 : i64, scratch_operands = 0 : i64, tpu.core_type = #tpu.core_type<tc>, window_params = [{transform_indices = @transform_0, window_bounds = array<i64: 512, 128>}, {transform_indices = @transform_1, window_bounds = array<i64: 128, 512>}, {transform_indices = @transform_2, window_bounds = array<i64: 1, 512>}, {transform_indices = @transform_3, window_bounds = array<i64: 512, 512>}]} {
    %c0 = arith.constant 0 : index
    %c0_0 = arith.constant 0 : index
    %0 = vector.load %arg2[%c0, %c0_0] : memref<512x128xbf16, #tpu.memory_space<vmem>>, vector<512x128xbf16>
    %c0_1 = arith.constant 0 : index
    %c0_2 = arith.constant 0 : index
    %1 = vector.load %arg3[%c0_1, %c0_2] : memref<128x512xbf16, #tpu.memory_space<vmem>>, vector<128x512xbf16>
    %cst = arith.constant dense<0.000000e+00> : vector<512x512xf32>
    %2 = tpu.matmul %0, %1, %cst {dimension_numbers = #tpu.dot_dimension_numbers<[1], [0], [0], [1], [0, 0, 1, 1], [], []>} : vector<512x128xbf16>, vector<128x512xbf16>, vector<512x512xf32> -> vector<512x512xf32>
    %c0_3 = arith.constant 0 : index
    %c0_4 = arith.constant 0 : index
    %3 = vector.load %arg4[%c0_3, %c0_4] : memref<1x512xf32, #tpu.memory_space<vmem>>, vector<1x512xf32>
    %4 = vector.broadcast %3 : vector<1x512xf32> to vector<512x512xf32>
    %5 = arith.addf %2, %4 : vector<512x512xf32>
    %6 = arith.truncf %5 : vector<512x512xf32> to vector<512x512xbf16>
    %c0_5 = arith.constant 0 : index
    %c0_6 = arith.constant 0 : index
    %7 = vector.load %arg5[%c0_5, %c0_6] : memref<512x512xbf16, #tpu.memory_space<vmem>>, vector<512x512xbf16>
    tpu.vector_store %arg5[%c0_5, %c0_6], %6 {strides = array<i32>} : memref<512x512xbf16, #tpu.memory_space<vmem>>, vector<512x512xbf16>,
    return
  }
  func.func @transform_0(%arg0: i32, %arg1: i32) -> (i32, i32) {
    %c0_i32 = arith.constant 0 : i32
    %c0_i32_0 = arith.constant 0 : i32
    return %arg0, %c0_i32 : i32, i32
  }
  func.func @transform_1(%arg0: i32, %arg1: i32) -> (i32, i32) {
    %c0_i32 = arith.constant 0 : i32
    %c0_i32_0 = arith.constant 0 : i32
    return %c0_i32, %arg1 : i32, i32
  }
  func.func @transform_2(%arg0: i32, %arg1: i32) -> (i32, i32) {
    %c0_i32 = arith.constant 0 : i32
    %c0_i32_0 = arith.constant 0 : i32
    return %c0_i32, %arg1 : i32, i32
  }
  func.func @transform_3(%arg0: i32, %arg1: i32) -> (i32, i32) {
    %c0_i32 = arith.constant 0 : i32
    return %arg0, %arg1 : i32, i32
  }
}

module attributes {stable_mosaic.version = 11 : i64} {
  func.func @_matmul_bias_kernel(%arg0: i32, %arg1: i32, %arg2: memref<1024x64xbf16, #tpu.memory_space<vmem>>, %arg3: memref<64x128xbf16, #tpu.memory_space<vmem>>, %arg4: memref<1x128xf32, #tpu.memory_space<vmem>>, %arg5: memref<1024x128xbf16, #tpu.memory_space<vmem>>) attributes {dimension_semantics = [#tpu.dimension_semantics<parallel>, #tpu.dimension_semantics<parallel>], iteration_bounds = array<i64: 2, 1>, scalar_prefetch = 0 : i64, scratch_operands = 0 : i64, tpu.core_type = #tpu.core_type<tc>, window_params = [{transform_indices = @transform_0, window_bounds = array<i64: 1024, 64>}, {transform_indices = @transform_1, window_bounds = array<i64: 64, 128>}, {transform_indices = @transform_2, window_bounds = array<i64: 1, 128>}, {transform_indices = @transform_3, window_bounds = array<i64: 1024, 128>}]} {
    %c0 = arith.constant 0 : index
    %c0_0 = arith.constant 0 : index
    %0 = vector.load %arg2[%c0, %c0_0] : memref<1024x64xbf16, #tpu.memory_space<vmem>>, vector<1024x64xbf16>
    %c0_1 = arith.constant 0 : index
    %c0_2 = arith.constant 0 : index
    %1 = vector.load %arg3[%c0_1, %c0_2] : memref<64x128xbf16, #tpu.memory_space<vmem>>, vector<64x128xbf16>
    %cst = arith.constant dense<0.000000e+00> : vector<1024x128xf32>
    %2 = tpu.matmul %0, %1, %cst {dimension_numbers = #tpu.dot_dimension_numbers<[1], [0], [0], [1], [0, 0, 1, 1], [], []>} : vector<1024x64xbf16>, vector<64x128xbf16>, vector<1024x128xf32> -> vector<1024x128xf32>
    %c0_3 = arith.constant 0 : index
    %c0_4 = arith.constant 0 : index
    %3 = vector.load %arg4[%c0_3, %c0_4] : memref<1x128xf32, #tpu.memory_space<vmem>>, vector<1x128xf32>
    %4 = vector.broadcast %3 : vector<1x128xf32> to vector<1024x128xf32>
    %5 = arith.addf %2, %4 : vector<1024x128xf32>
    %6 = arith.truncf %5 : vector<1024x128xf32> to vector<1024x128xbf16>
    %c0_5 = arith.constant 0 : index
    %c0_6 = arith.constant 0 : index
    %7 = vector.load %arg5[%c0_5, %c0_6] : memref<1024x128xbf16, #tpu.memory_space<vmem>>, vector<1024x128xbf16>
    tpu.vector_store %arg5[%c0_5, %c0_6], %6 {strides = array<i32>} : memref<1024x128xbf16, #tpu.memory_space<vmem>>, vector<1024x128xbf16>,
    return
  }
  func.func @transform_0(%arg0: i32, %arg1: i32) -> (i32, i32) {
    %c0_i32 = arith.constant 0 : i32
    %c0_i32_0 = arith.constant 0 : i32
    return %arg0, %c0_i32 : i32, i32
  }
  func.func @transform_1(%arg0: i32, %arg1: i32) -> (i32, i32) {
    %c0_i32 = arith.constant 0 : i32
    %c0_i32_0 = arith.constant 0 : i32
    return %c0_i32, %arg1 : i32, i32
  }
  func.func @transform_2(%arg0: i32, %arg1: i32) -> (i32, i32) {
    %c0_i32 = arith.constant 0 : i32
    %c0_i32_0 = arith.constant 0 : i32
    return %c0_i32, %arg1 : i32, i32
  }
  func.func @transform_3(%arg0: i32, %arg1: i32) -> (i32, i32) {
    %c0_i32 = arith.constant 0 : i32
    return %arg0, %arg1 : i32, i32
  }
}

module attributes {stable_mosaic.version = 11 : i64} {
  func.func @_matmul_bias_kernel(%arg0: i32, %arg1: i32, %arg2: memref<2048x16xbf16, #tpu.memory_space<vmem>>, %arg3: memref<16x128xbf16, #tpu.memory_space<vmem>>, %arg4: memref<1x128xf32, #tpu.memory_space<vmem>>, %arg5: memref<2048x128xbf16, #tpu.memory_space<vmem>>) attributes {dimension_semantics = [#tpu.dimension_semantics<parallel>, #tpu.dimension_semantics<parallel>], iteration_bounds = array<i64: 4, 1>, scalar_prefetch = 0 : i64, scratch_operands = 0 : i64, tpu.core_type = #tpu.core_type<tc>, window_params = [{transform_indices = @transform_0, window_bounds = array<i64: 2048, 16>}, {transform_indices = @transform_1, window_bounds = array<i64: 16, 128>}, {transform_indices = @transform_2, window_bounds = array<i64: 1, 128>}, {transform_indices = @transform_3, window_bounds = array<i64: 2048, 128>}]} {
    %c0 = arith.constant 0 : index
    %c0_0 = arith.constant 0 : index
    %0 = vector.load %arg2[%c0, %c0_0] : memref<2048x16xbf16, #tpu.memory_space<vmem>>, vector<2048x16xbf16>
    %c0_1 = arith.constant 0 : index
    %c0_2 = arith.constant 0 : index
    %1 = vector.load %arg3[%c0_1, %c0_2] : memref<16x128xbf16, #tpu.memory_space<vmem>>, vector<16x128xbf16>
    %cst = arith.constant dense<0.000000e+00> : vector<2048x128xf32>
    %2 = tpu.matmul %0, %1, %cst {dimension_numbers = #tpu.dot_dimension_numbers<[1], [0], [0], [1], [0, 0, 1, 1], [], []>} : vector<2048x16xbf16>, vector<16x128xbf16>, vector<2048x128xf32> -> vector<2048x128xf32>
    %c0_3 = arith.constant 0 : index
    %c0_4 = arith.constant 0 : index
    %3 = vector.load %arg4[%c0_3, %c0_4] : memref<1x128xf32, #tpu.memory_space<vmem>>, vector<1x128xf32>
    %4 = vector.broadcast %3 : vector<1x128xf32> to vector<2048x128xf32>
    %5 = arith.addf %2, %4 : vector<2048x128xf32>
    %6 = arith.truncf %5 : vector<2048x128xf32> to vector<2048x128xbf16>
    %c0_5 = arith.constant 0 : index
    %c0_6 = arith.constant 0 : index
    %7 = vector.load %arg5[%c0_5, %c0_6] : memref<2048x128xbf16, #tpu.memory_space<vmem>>, vector<2048x128xbf16>
    tpu.vector_store %arg5[%c0_5, %c0_6], %6 {strides = array<i32>} : memref<2048x128xbf16, #tpu.memory_space<vmem>>, vector<2048x128xbf16>,
    return
  }
  func.func @transform_0(%arg0: i32, %arg1: i32) -> (i32, i32) {
    %c0_i32 = arith.constant 0 : i32
    %c0_i32_0 = arith.constant 0 : i32
    return %arg0, %c0_i32 : i32, i32
  }
  func.func @transform_1(%arg0: i32, %arg1: i32) -> (i32, i32) {
    %c0_i32 = arith.constant 0 : i32
    %c0_i32_0 = arith.constant 0 : i32
    return %c0_i32, %arg1 : i32, i32
  }
  func.func @transform_2(%arg0: i32, %arg1: i32) -> (i32, i32) {
    %c0_i32 = arith.constant 0 : i32
    %c0_i32_0 = arith.constant 0 : i32
    return %c0_i32, %arg1 : i32, i32
  }
  func.func @transform_3(%arg0: i32, %arg1: i32) -> (i32, i32) {
    %c0_i32 = arith.constant 0 : i32
    return %arg0, %arg1 : i32, i32
  }
}

</mosaic_0001>

<llo_original>
// kernel: texture_generator_forward.5
$region0: #{texture_generator_forward.5}
  #allocation0 [shape = 'u32[]', space=smem, size = 0x4, offset = 0x4, fixed_abs, tag = 'smem constant byte address 0x4 - core index']
  #allocation1 [shape = 'u32[144,128]{1,0:T(1,128)}', space=vmem, size = 0x12000, scoped, tag = 'internal scratch']
  %s0 = inlined_call_operand.vmem [shape: bf16[32,16], index: 0, kind: input, shape index: {}]
  %s1 = inlined_call_operand.hbm [shape: bf16[16,4096], index: 1, kind: input, shape index: {}]
  %s2 = inlined_call_operand.hbm [shape: f32[1,4096], index: 2, kind: input, shape index: {}]
  %s3 = inlined_call_operand.vmem [shape: bf16[32,4096], index: 3, kind: output, shape index: {}]
  %s4 = sld [smem:[#allocation0]]
  $region72: #{texture_generator_forward.5} parent=0
    _
  %s6 = ssub.s32 1, %s4
  %s7 = scalar_select 0, %s6, %s4
  $region1: #{texture_generator_forward.5} parent=0
    #allocation2 [shape = 'u8[65536]{0}', space=vmem, size = 0x10000, scoped, tag = 'input window, operand 1']
    #allocation3 [shape = 's32[2]{0}', space=sflag, size = 0x8, scoped, tag = 'scoped memory for texture_generator_forward.5']
    #allocation4 [shape = 'u8[8192]{0}', space=vmem, size = 0x2000, scoped, tag = 'input window, operand 2']
    #allocation5 [shape = 's32[2]{0}', space=sflag, size = 0x8, scoped, tag = 'scoped memory for texture_generator_forward.5']
    #allocation6 [shape = 'u8[131072]{0}', space=vmem, size = 0x20000, scoped, tag = 'output window, operand 0']
    %8 = vsyncpa [#allocation3], 0
    %s9 = scalar_lea.sflag [#allocation3], 1
    %10 = vsyncpa %s9, 0
    %11 = vsyncpa [#allocation5], 0
    %s12 = scalar_lea.sflag [#allocation5], 1
    %13 = vsyncpa %s12, 0
    loop: start=0, step=1, limit=6
    $region2: #{texture_generator_forward.5} parent=1 // loop_pre_header
      _
    $region3: #{texture_generator_forward.5} parent=1 // loop_header
      %s15 = sphi 0, %s19
      %p16 = scmp.ge.s32.totalorder %s15, 6
      %s22 = sphi 0, %s34
      %s23 = sphi 0, %s30
      %s24 = sphi 0, %s22
      %s25 = sphi 0, %s23
      %s26 = sphi 0, %s24
      %s27 = sphi 0, %s25
      %s37 = sphi 0, %s39
      %s40 = sphi 0, %s37
      %s41 = sphi 0, %s40
      %s57 = sphi 0, %s41
      %s63 = sphi 0, %s65
      %s66 = sphi 0, %s63
      %s67 = sphi 0, %s66
      %s83 = sphi 0, %s67
      %s89 = sphi 0, %s91
      %s92 = sphi 0, %s89
      %s93 = sphi 0, %s92
      %s109 = sphi 0, %s93
      %s117 = sphi 0, %s119
      %s120 = sphi 0, %s117
      %s121 = sphi 0, %s120
      %s137 = sphi 0, %s121
    $region4: #{texture_generator_forward.5} parent=1 // loop_header_branch
      %18 = sbr.rel (%p16) target = $region8
    $region5: #{texture_generator_forward.5} parent=1 // loop_body
      %s20 = ssub.s32 %s15, 1
      %s21 = ssub.s32 %s15, 2
      %s28 = sadd.s32 1, %s23
      %p29 = scmp.ge.s32.totalorder %s28, 4
      %s30 = scalar_select %p29, 0, %s28
      %s31 = sadd.s32 1, %s22
      %s32 = scalar_select %p29, %s31, %s22
      %p33 = scmp.ge.s32.totalorder %s32, 1
      %s34 = scalar_select %p33, 0, %s32
      %s35 = ssub.s32 %s22, %s34
      %p36 = scmp.eq.s32.totalorder %s35, 0
      %s38 = sadd.s32 %s37, 1
      %s39 = scalar_select %p36, %s37, %s38
      %p42 = pneg %p36
      %p43 = scmp.eq.s32.totalorder %s15, 3
      %p44 = por %p42, %p43
      %p45 = scmp.ne.s32.totalorder %s37, %s40
      %p46 = scmp.eq.s32.totalorder %s15, 0
      %p47 = por %p45, %p46
      %p48 = scmp.ne.s32.totalorder %s37, %s40
      %p49 = scmp.eq.s32.totalorder %s20, 3
      %p50 = por %p48, %p49
      %p51 = scmp.ne.s32.totalorder %s40, %s41
      %p52 = scmp.eq.s32.totalorder %s20, 0
      %p53 = por %p51, %p52
      %p54 = scmp.ne.s32.totalorder %s40, %s41
      %p55 = scmp.eq.s32.totalorder %s21, 3
      %p56 = por %p54, %p55
      %p58 = scmp.ne.s32.totalorder %s41, %s57
      %p59 = scmp.eq.s32.totalorder %s21, 0
      %p60 = por %p58, %p59
      %s61 = ssub.s32 %s23, %s30
      %p62 = scmp.eq.s32.totalorder %s61, 0
      %s64 = sadd.s32 %s63, 1
      %s65 = scalar_select %p62, %s63, %s64
      %p68 = pneg %p62
      %p69 = scmp.eq.s32.totalorder %s15, 3
      %p70 = por %p68, %p69
      %p71 = scmp.ne.s32.totalorder %s63, %s66
      %p72 = scmp.eq.s32.totalorder %s15, 0
      %p73 = por %p71, %p72
      %p74 = scmp.ne.s32.totalorder %s63, %s66
      %p75 = scmp.eq.s32.totalorder %s20, 3
      %p76 = por %p74, %p75
      %p77 = scmp.ne.s32.totalorder %s66, %s67
      %p78 = scmp.eq.s32.totalorder %s20, 0
      %p79 = por %p77, %p78
      %p80 = scmp.ne.s32.totalorder %s66, %s67
      %p81 = scmp.eq.s32.totalorder %s21, 3
      %p82 = por %p80, %p81
      %p84 = scmp.ne.s32.totalorder %s67, %s83
      %p85 = scmp.eq.s32.totalorder %s21, 0
      %p86 = por %p84, %p85
      %s87 = ssub.s32 %s23, %s30
      %p88 = scmp.eq.s32.totalorder %s87, 0
      %s90 = sadd.s32 %s89, 1
      %s91 = scalar_select %p88, %s89, %s90
      %p94 = pneg %p88
      %p95 = scmp.eq.s32.totalorder %s15, 3
      %p96 = por %p94, %p95
      %p97 = scmp.ne.s32.totalorder %s89, %s92
      %p98 = scmp.eq.s32.totalorder %s15, 0
      %p99 = por %p97, %p98
      %p100 = scmp.ne.s32.totalorder %s89, %s92
      %p101 = scmp.eq.s32.totalorder %s20, 3
      %p102 = por %p100, %p101
      %p103 = scmp.ne.s32.totalorder %s92, %s93
      %p104 = scmp.eq.s32.totalorder %s20, 0
      %p105 = por %p103, %p104
      %p106 = scmp.ne.s32.totalorder %s92, %s93
      %p107 = scmp.eq.s32.totalorder %s21, 3
      %p108 = por %p106, %p107
      %p110 = scmp.ne.s32.totalorder %s93, %s109
      %p111 = scmp.eq.s32.totalorder %s21, 0
      %p112 = por %p110, %p111
      %s113 = ssub.s32 %s22, %s34
      %s114 = ssub.s32 %s23, %s30
      %s115 = sor.u32 %s113, %s114
      %p116 = scmp.eq.s32.totalorder %s115, 0
      %s118 = sadd.s32 %s117, 1
      %s119 = scalar_select %p116, %s117, %s118
      %p122 = pneg %p116
      %p123 = scmp.eq.s32.totalorder %s15, 3
      %p124 = por %p122, %p123
      %p125 = scmp.ne.s32.totalorder %s117, %s120
      %p126 = scmp.eq.s32.totalorder %s15, 0
      %p127 = por %p125, %p126
      %p128 = scmp.ne.s32.totalorder %s117, %s120
      %p129 = scmp.eq.s32.totalorder %s20, 3
      %p130 = por %p128, %p129
      %p131 = scmp.ne.s32.totalorder %s120, %s121
      %p132 = scmp.eq.s32.totalorder %s20, 0
      %p133 = por %p131, %p132
      %p134 = scmp.ne.s32.totalorder %s120, %s121
      %p135 = scmp.eq.s32.totalorder %s21, 3
      %p136 = por %p134, %p135
      %p138 = scmp.ne.s32.totalorder %s121, %s137
      %p139 = scmp.eq.s32.totalorder %s21, 0
      %p140 = por %p138, %p139
      %p141 = scmp.le.s32.totalorder 1, %s15
      %p142 = scmp.lt.s32.totalorder %s15, 5
      %p143 = pnand %p141, %p142
      %p144 = pneg %p143
      // Predicated region
      $region9: #{texture_generator_forward.5} parent=5 // pred_check
        _
      $region10: #{texture_generator_forward.5} parent=5 // pred_check_branch
        %146 = sbr.rel (%p143) target = $region12
      $region11: #{texture_generator_forward.5} parent=5 // pred_region
        %s147 = ssub.s32 %s15, 1
        // Predicated region
        $region13: #{texture_generator_forward.5} parent=11 // pred_check
          %p148 = pneg %p53
        $region14: #{texture_generator_forward.5} parent=11 // pred_check_branch
          %150 = sbr.rel (%p148) target = $region16
        $region15: #{texture_generator_forward.5} parent=11 // pred_region
          %s151 = smul.u32 4, %s24
          %p152 = scmp.lt.s32.totalorder %s151, 3
          %s153 = scalar_select %p152, %s151, 3
          %s154 = smul.addr %s153, 4
          %s155 = scalar_lea.vmem %s0, %s154
          %s156 = smul.u32 4, %s24
        $region16: #{texture_generator_forward.5} parent=11 // pred_fallthru
          _
      $region12: #{texture_generator_forward.5} parent=5 // pred_fallthru
        _
      %p157 = scmp.lt.s32.totalorder %s15, 4
      // Predicated region
      $region17: #{texture_generator_forward.5} parent=5 // pred_check
        %p158 = pneg %p157
      $region18: #{texture_generator_forward.5} parent=5 // pred_check_branch
        %160 = sbr.rel (%p158) target = $region20
      $region19: #{texture_generator_forward.5} parent=5 // pred_region
        // Predicated region
        $region21: #{texture_generator_forward.5} parent=19 // pred_check
          %p161 = pneg %p73
        $region22: #{texture_generator_forward.5} parent=19 // pred_check_branch
          %163 = sbr.rel (%p161) target = $region24
        $region23: #{texture_generator_forward.5} parent=19 // pred_region
          %s164 = sand.u32 %s63, 1
          %s165 = scalar_lea.sflag [#allocation3], %s164
          %s166 = sand.u32 %s63, 1
          %s167 = smul.addr %s166, 64
          %s168 = scalar_lea.vmem [#allocation2], %s167
          %s169 = smul.u32 8, %s23
          %s171 = ssub.s32 1024, 1024
          %172 = vsyncadd %s165, %s171
          %s173 = smul.addr %s169, 64
          %s174 = scalar_lea.hbm %s1, %s173
          %s175 = sshll.u32 %s168, 4
          %s176 = int_to_ptr.vmem [resolvable:$true] %s175
          %181 = dma.hbm_to_vmem [thread:$0]  %s174, 1024, %s176, %s165, 2048, 512, 32
        $region24: #{texture_generator_forward.5} parent=19 // pred_fallthru
          _
        // Predicated region
        $region25: #{texture_generator_forward.5} parent=19 // pred_check
          %p182 = pneg %p99
        $region26: #{texture_generator_forward.5} parent=19 // pred_check_branch
          %184 = sbr.rel (%p182) target = $region28
        $region27: #{texture_generator_forward.5} parent=19 // pred_region
          %s185 = sand.u32 %s89, 1
          %s186 = scalar_lea.sflag [#allocation5], %s185
          %s187 = sand.u32 %s89, 1
          %s188 = smul.addr %s187, 8
          %s189 = scalar_lea.vmem [#allocation4], %s188
          %s190 = smul.u32 8, %s23
          %s192 = ssub.s32 128, 128
          %193 = vsyncadd %s186, %s192
          %s194 = smul.addr %s190, 16
          %s195 = scalar_lea.hbm %s2, %s194
          %s197 = sshll.u32 %s189, 4
          %s198 = int_to_ptr.vmem [resolvable:$true] %s197
          %200 = dma.hbm_to_vmem [thread:$0]  %s195, 128, %s198, %s186
        $region28: #{texture_generator_forward.5} parent=19 // pred_fallthru
          _
      $region20: #{texture_generator_forward.5} parent=5 // pred_fallthru
        _
      %p201 = scmp.le.s32.totalorder 1, %s15
      %p202 = scmp.lt.s32.totalorder %s15, 5
      %p203 = pnand %p201, %p202
      %p204 = pneg %p203
      // Predicated region
      $region29: #{texture_generator_forward.5} parent=5 // pred_check
        _
      $region30: #{texture_generator_forward.5} parent=5 // pred_check_branch
        %206 = sbr.rel (%p203) target = $region32
      $region31: #{texture_generator_forward.5} parent=5 // pred_region
        %s207 = ssub.s32 %s15, 1
        %s208 = sand.u32 %s66, 1
        %s209 = scalar_lea.sflag [#allocation3], %s208
        %s210 = sand.u32 %s66, 1
        %s211 = smul.addr %s210, 64
        %s212 = scalar_lea.vmem [#allocation2], %s211
        // Predicated region
        $region33: #{texture_generator_forward.5} parent=31 // pred_check
          %p213 = pneg %p79
        $region34: #{texture_generator_forward.5} parent=31 // pred_check_branch
          %215 = sbr.rel (%p213) target = $region36
        $region35: #{texture_generator_forward.5} parent=31 // pred_region
          %216 = dma.done %s209, 1024
        $region36: #{texture_generator_forward.5} parent=31 // pred_fallthru
          _
        %s217 = sand.u32 %s92, 1
        %s218 = scalar_lea.sflag [#allocation5], %s217
        %s219 = sand.u32 %s92, 1
        %s220 = smul.addr %s219, 8
        %s221 = scalar_lea.vmem [#allocation4], %s220
        // Predicated region
        $region37: #{texture_generator_forward.5} parent=31 // pred_check
          %p222 = pneg %p105
        $region38: #{texture_generator_forward.5} parent=31 // pred_check_branch
          %224 = sbr.rel (%p222) target = $region40
        $region39: #{texture_generator_forward.5} parent=31 // pred_region
          %225 = dma.done %s218, 128
        $region40: #{texture_generator_forward.5} parent=31 // pred_fallthru
          _
        %s226 = smul.u32 4, %s24
        %p227 = scmp.lt.s32.totalorder %s226, 3
        %s228 = scalar_select %p227, %s226, 3
        %s229 = smul.addr %s228, 4
        %s230 = scalar_lea.vmem %s0, %s229
        %p231 = pneg %p53
        %p232 = pneg %p50
        %s233 = sand.u32 %s66, 1
        %s234 = scalar_lea.sflag [#allocation3], %s233
        %s235 = sand.u32 %s66, 1
        %s236 = smul.addr %s235, 64
        %s237 = scalar_lea.vmem [#allocation2], %s236
        %p238 = pneg %p79
        %p239 = pneg %p76
        %s240 = sand.u32 %s92, 1
        %s241 = scalar_lea.sflag [#allocation5], %s240
        %s242 = sand.u32 %s92, 1
        %s243 = smul.addr %s242, 8
        %s244 = scalar_lea.vmem [#allocation4], %s243
        %p245 = pneg %p105
        %p246 = pneg %p102
        %p247 = pneg %p133
        %p248 = pneg %p130
        %s249 = sand.u32 %s120, 1
        %s250 = sand.u32 %s120, 1
        %s251 = smul.addr %s250, 128
        %s252 = scalar_lea.vmem [#allocation6], %s251
        %s253 = smul.u32 4, %s24
        %p254 = scmp.lt.s32.totalorder %s253, 3
        %s255 = scalar_select %p254, %s253, 3
        %s256 = smul.addr %s255, 4
        %s257 = scalar_lea.vmem %s0, %s256
        %s258 = smul.u32 4, %s24
        %s259 = smul.u32 8, %s25
        %s260 = smul.u32 8, %s25
        %s261 = smul.u32 4, %s24
        %s262 = smul.u32 8, %s25
        %v264 = vld [vmem:[%s257] sm:$0xf]
        %v265 = vld [vmem:[%s257 + $0x4] sm:$0xf]
        %v266 = vld [vmem:[%s257 + $0x8] sm:$0xf]
        %v267 = vld [vmem:[%s257 + $0xc] sm:$0xf]
        %v268 = vld [vmem:[%s212] sm:$0xff]
        %v269 = vld [vmem:[%s212 + $0x8] sm:$0xff]
        %v270 = vld [vmem:[%s212 + $0x10] sm:$0xff]
        %v271 = vld [vmem:[%s212 + $0x18] sm:$0xff]
        %v272 = vld [vmem:[%s212 + $0x20] sm:$0xff]
        %v273 = vld [vmem:[%s212 + $0x28] sm:$0xff]
        %v274 = vld [vmem:[%s212 + $0x30] sm:$0xff]
        %v275 = vld [vmem:[%s212 + $0x38] sm:$0xff]
        %v276 = vld [vmem:[%s221] sm:$0xff]
        %v278 = vlaneseq
        %v279 = vshrl.u32 %v278, 7
        %v280 = vsub.s32 0, %v279
        %v281 = vrot.slane %v276, %v280
        %v282 = vlaneseq
        %v283 = vshrl.u32 %v282, 7
        %v284 = vsub.s32 1, %v283
        %v285 = vrot.slane %v276, %v284
        %v286 = vlaneseq
        %v287 = vshrl.u32 %v286, 7
        %v288 = vsub.s32 2, %v287
        %v289 = vrot.slane %v276, %v288
        %v290 = vlaneseq
        %v291 = vshrl.u32 %v290, 7
        %v292 = vsub.s32 3, %v291
        %v293 = vrot.slane %v276, %v292
        %v294 = vlaneseq
        %v295 = vshrl.u32 %v294, 7
        %v296 = vsub.s32 4, %v295
        %v297 = vrot.slane %v276, %v296
        %v298 = vlaneseq
        %v299 = vshrl.u32 %v298, 7
        %v300 = vsub.s32 5, %v299
        %v301 = vrot.slane %v276, %v300
        %v302 = vlaneseq
        %v303 = vshrl.u32 %v302, 7
        %v304 = vsub.s32 6, %v303
        %v305 = vrot.slane %v276, %v304
        %v306 = vlaneseq
        %v307 = vshrl.u32 %v306, 7
        %v308 = vsub.s32 7, %v307
        %v309 = vrot.slane %v276, %v308
        %v322 = vunpack.c.l.b16 %v264
        %v323 = vunpack.c.l.b16 %v265
        %v324 = vunpack.c.l.b16 %v266
        %v325 = vunpack.c.l.b16 %v267
        %v326 = vpack.c.b16 %v323, %v322
        %v327 = vpack.c.b16 %v325, %v324
        %v336 = vunpack.c.l.b16 %v268
        %v337 = vunpack.c.h.b16 %v268
        %v338 = vunpack.c.l.b16 %v269
        %v339 = vunpack.c.h.b16 %v269
        %v340 = vunpack.c.l.b16 %v270
        %v341 = vunpack.c.h.b16 %v270
        %v342 = vunpack.c.l.b16 %v271
        %v343 = vunpack.c.h.b16 %v271
        %v344 = vunpack.c.l.b16 %v272
        %v345 = vunpack.c.h.b16 %v272
        %v346 = vunpack.c.l.b16 %v273
        %v347 = vunpack.c.h.b16 %v273
        %v348 = vunpack.c.l.b16 %v274
        %v349 = vunpack.c.h.b16 %v274
        %v350 = vunpack.c.l.b16 %v275
        %v351 = vunpack.c.h.b16 %v275
        %v352 = vpack.c.b16 %v344, %v336
        %v353 = vpack.c.b16 %v345, %v337
        %v354 = vpack.c.b16 %v346, %v338
        %v355 = vpack.c.b16 %v347, %v339
        %v356 = vpack.c.b16 %v348, %v340
        %v357 = vpack.c.b16 %v349, %v341
        %v358 = vpack.c.b16 %v350, %v342
        %v359 = vpack.c.b16 %v351, %v343
        %vm368 = vcmask 130048
        %v370 = vsel %vm368, %v326, 0
        %v373 = vsel %vm368, %v327, 0
        %375 = vmatprep.subr.bf16.mxu0 0
        %376 = vmatpush1.bf16.msra.mxu0 0
        %377 = vmatprep.subr.bf16.mxu0 0
        %378 = vmatpush1.bf16.msra.mxu0 0
        %379 = vmatprep.subr.bf16.mxu0 0
        %380 = vmatpush1.bf16.msra.mxu0 0
        %381 = vmatprep.subr.bf16.mxu0 0
        %382 = vmatpush1.bf16.msra.mxu0 0
        %383 = vmatprep.subr.bf16.mxu0 0
        %384 = vmatpush1.bf16.msra.mxu0 0
        %385 = vmatprep.subr.bf16.mxu0 0
        %386 = vmatpush1.bf16.msra.mxu0 0
        %387 = vmatprep.subr.bf16.mxu0 0
        %388 = vmatpush1.bf16.msra.mxu0 0
        %389 = vmatprep.subr.bf16.mxu0 %v353
        %390 = vmatpush1.bf16.msra.mxu0 %v352
        %391 = vmatprep.subr.bf16.mxu0 0
        %392 = vmatpush2.bf16.msra.mxu0 0
        %393 = vmatprep.subr.bf16.mxu0 0
        %394 = vmatpush2.bf16.msra.mxu0 0
        %395 = vmatprep.subr.bf16.mxu0 0
        %396 = vmatpush2.bf16.msra.mxu0 0
        %397 = vmatprep.subr.bf16.mxu0 0
        %398 = vmatpush2.bf16.msra.mxu0 0
        %399 = vmatprep.subr.bf16.mxu0 0
        %400 = vmatpush2.bf16.msra.mxu0 0
        %401 = vmatprep.subr.bf16.mxu0 0
        %402 = vmatpush2.bf16.msra.mxu0 0
        %403 = vmatprep.subr.bf16.mxu0 0
        %404 = vmatpush2.bf16.msra.mxu0 0
        %405 = vmatprep.subr.bf16.mxu0 0
        %406 = vmatpush2.bf16.msra.mxu0 0
        %407 = vmatprep.mubr.bf16.mxu0 0
        %408 = vmatmul.mubr.bf16.gmra.mxu0 %v370
        %v409 = vpop.f32.mrf.mxu0
        %v410 = vadd.f32 %v281, %v409
        %v411 = vpop.f32.mrf.mxu0
        %v412 = vadd.f32 %v285, %v411
        %v413 = vpop.f32.mrf.mxu0
        %v414 = vadd.f32 %v281, %v413
        %v415 = vpop.f32.mrf.mxu0
        %v416 = vadd.f32 %v285, %v415
        %417 = vmatprep.mubr.bf16.mxu0 0
        %418 = vmatmul.mubr.bf16.gmra.mxu0 %v373
        %v419 = vpop.f32.mrf.mxu0
        %v420 = vadd.f32 %v281, %v419
        %v421 = vpop.f32.mrf.mxu0
        %v422 = vadd.f32 %v285, %v421
        %v423 = vpop.f32.mrf.mxu0
        %v424 = vadd.f32 %v281, %v423
        %v425 = vpop.f32.mrf.mxu0
        %v426 = vadd.f32 %v285, %v425
        %427 = vdwg.mxu0
        %428 = vmatprep.subr.bf16.mxu0 0
        %429 = vmatpush1.bf16.msra.mxu0 0
        %430 = vmatprep.subr.bf16.mxu0 0
        %431 = vmatpush1.bf16.msra.mxu0 0
        %432 = vmatprep.subr.bf16.mxu0 0
        %433 = vmatpush1.bf16.msra.mxu0 0
        %434 = vmatprep.subr.bf16.mxu0 0
        %435 = vmatpush1.bf16.msra.mxu0 0
        %436 = vmatprep.subr.bf16.mxu0 0
        %437 = vmatpush1.bf16.msra.mxu0 0
        %438 = vmatprep.subr.bf16.mxu0 0
        %439 = vmatpush1.bf16.msra.mxu0 0
        %440 = vmatprep.subr.bf16.mxu0 0
        %441 = vmatpush1.bf16.msra.mxu0 0
        %442 = vmatprep.subr.bf16.mxu0 %v355
        %443 = vmatpush1.bf16.msra.mxu0 %v354
        %444 = vmatprep.subr.bf16.mxu0 0
        %445 = vmatpush2.bf16.msra.mxu0 0
        %446 = vmatprep.subr.bf16.mxu0 0
        %447 = vmatpush2.bf16.msra.mxu0 0
        %448 = vmatprep.subr.bf16.mxu0 0
        %449 = vmatpush2.bf16.msra.mxu0 0
        %450 = vmatprep.subr.bf16.mxu0 0
        %451 = vmatpush2.bf16.msra.mxu0 0
        %452 = vmatprep.subr.bf16.mxu0 0
        %453 = vmatpush2.bf16.msra.mxu0 0
        %454 = vmatprep.subr.bf16.mxu0 0
        %455 = vmatpush2.bf16.msra.mxu0 0
        %456 = vmatprep.subr.bf16.mxu0 0
        %457 = vmatpush2.bf16.msra.mxu0 0
        %458 = vmatprep.subr.bf16.mxu0 0
        %459 = vmatpush2.bf16.msra.mxu0 0
        %460 = vmatprep.mubr.bf16.mxu0 0
        %461 = vmatmul.mubr.bf16.gmra.mxu0 %v370
        %v462 = vpop.f32.mrf.mxu0
        %v463 = vadd.f32 %v289, %v462
        %v464 = vpop.f32.mrf.mxu0
        %v465 = vadd.f32 %v293, %v464
        %v466 = vpop.f32.mrf.mxu0
        %v467 = vadd.f32 %v289, %v466
        %v468 = vpop.f32.mrf.mxu0
        %v469 = vadd.f32 %v293, %v468
        %470 = vmatprep.mubr.bf16.mxu0 0
        %471 = vmatmul.mubr.bf16.gmra.mxu0 %v373
        %v472 = vpop.f32.mrf.mxu0
        %v473 = vadd.f32 %v289, %v472
        %v474 = vpop.f32.mrf.mxu0
        %v475 = vadd.f32 %v293, %v474
        %v476 = vpop.f32.mrf.mxu0
        %v477 = vadd.f32 %v289, %v476
        %v478 = vpop.f32.mrf.mxu0
        %v479 = vadd.f32 %v293, %v478
        %480 = vdwg.mxu0
        %481 = vmatprep.subr.bf16.mxu0 0
        %482 = vmatpush1.bf16.msra.mxu0 0
        %483 = vmatprep.subr.bf16.mxu0 0
        %484 = vmatpush1.bf16.msra.mxu0 0
        %485 = vmatprep.subr.bf16.mxu0 0
        %486 = vmatpush1.bf16.msra.mxu0 0
        %487 = vmatprep.subr.bf16.mxu0 0
        %488 = vmatpush1.bf16.msra.mxu0 0
        %489 = vmatprep.subr.bf16.mxu0 0
        %490 = vmatpush1.bf16.msra.mxu0 0
        %491 = vmatprep.subr.bf16.mxu0 0
        %492 = vmatpush1.bf16.msra.mxu0 0
        %493 = vmatprep.subr.bf16.mxu0 0
        %494 = vmatpush1.bf16.msra.mxu0 0
        %495 = vmatprep.subr.bf16.mxu0 %v357
        %496 = vmatpush1.bf16.msra.mxu0 %v356
        %497 = vmatprep.subr.bf16.mxu0 0
        %498 = vmatpush2.bf16.msra.mxu0 0
        %499 = vmatprep.subr.bf16.mxu0 0
        %500 = vmatpush2.bf16.msra.mxu0 0
        %501 = vmatprep.subr.bf16.mxu0 0
        %502 = vmatpush2.bf16.msra.mxu0 0
        %503 = vmatprep.subr.bf16.mxu0 0
        %504 = vmatpush2.bf16.msra.mxu0 0
        %505 = vmatprep.subr.bf16.mxu0 0
        %506 = vmatpush2.bf16.msra.mxu0 0
        %507 = vmatprep.subr.bf16.mxu0 0
        %508 = vmatpush2.bf16.msra.mxu0 0
        %509 = vmatprep.subr.bf16.mxu0 0
        %510 = vmatpush2.bf16.msra.mxu0 0
        %511 = vmatprep.subr.bf16.mxu0 0
        %512 = vmatpush2.bf16.msra.mxu0 0
        %513 = vmatprep.mubr.bf16.mxu0 0
        %514 = vmatmul.mubr.bf16.gmra.mxu0 %v370
        %v515 = vpop.f32.mrf.mxu0
        %v516 = vadd.f32 %v297, %v515
        %v517 = vpop.f32.mrf.mxu0
        %v518 = vadd.f32 %v301, %v517
        %v519 = vpop.f32.mrf.mxu0
        %v520 = vadd.f32 %v297, %v519
        %v521 = vpop.f32.mrf.mxu0
        %v522 = vadd.f32 %v301, %v521
        %523 = vmatprep.mubr.bf16.mxu0 0
        %524 = vmatmul.mubr.bf16.gmra.mxu0 %v373
        %v525 = vpop.f32.mrf.mxu0
        %v526 = vadd.f32 %v297, %v525
        %v527 = vpop.f32.mrf.mxu0
        %v528 = vadd.f32 %v301, %v527
        %v529 = vpop.f32.mrf.mxu0
        %v530 = vadd.f32 %v297, %v529
        %v531 = vpop.f32.mrf.mxu0
        %v532 = vadd.f32 %v301, %v531
        %533 = vdwg.mxu0
        %534 = vmatprep.subr.bf16.mxu0 0
        %535 = vmatpush1.bf16.msra.mxu0 0
        %536 = vmatprep.subr.bf16.mxu0 0
        %537 = vmatpush1.bf16.msra.mxu0 0
        %538 = vmatprep.subr.bf16.mxu0 0
        %539 = vmatpush1.bf16.msra.mxu0 0
        %540 = vmatprep.subr.bf16.mxu0 0
        %541 = vmatpush1.bf16.msra.mxu0 0
        %542 = vmatprep.subr.bf16.mxu0 0
        %543 = vmatpush1.bf16.msra.mxu0 0
        %544 = vmatprep.subr.bf16.mxu0 0
        %545 = vmatpush1.bf16.msra.mxu0 0
        %546 = vmatprep.subr.bf16.mxu0 0
        %547 = vmatpush1.bf16.msra.mxu0 0
        %548 = vmatprep.subr.bf16.mxu0 %v359
        %549 = vmatpush1.bf16.msra.mxu0 %v358
        %550 = vmatprep.subr.bf16.mxu0 0
        %551 = vmatpush2.bf16.msra.mxu0 0
        %552 = vmatprep.subr.bf16.mxu0 0
        %553 = vmatpush2.bf16.msra.mxu0 0
        %554 = vmatprep.subr.bf16.mxu0 0
        %555 = vmatpush2.bf16.msra.mxu0 0
        %556 = vmatprep.subr.bf16.mxu0 0
        %557 = vmatpush2.bf16.msra.mxu0 0
        %558 = vmatprep.subr.bf16.mxu0 0
        %559 = vmatpush2.bf16.msra.mxu0 0
        %560 = vmatprep.subr.bf16.mxu0 0
        %561 = vmatpush2.bf16.msra.mxu0 0
        %562 = vmatprep.subr.bf16.mxu0 0
        %563 = vmatpush2.bf16.msra.mxu0 0
        %564 = vmatprep.subr.bf16.mxu0 0
        %565 = vmatpush2.bf16.msra.mxu0 0
        %566 = vmatprep.mubr.bf16.mxu0 0
        %567 = vmatmul.mubr.bf16.gmra.mxu0 %v370
        %v568 = vpop.f32.mrf.mxu0
        %v569 = vadd.f32 %v305, %v568
        %v570 = vpop.f32.mrf.mxu0
        %v571 = vadd.f32 %v309, %v570
        %v572 = vpop.f32.mrf.mxu0
        %v573 = vadd.f32 %v305, %v572
        %v574 = vpop.f32.mrf.mxu0
        %v575 = vadd.f32 %v309, %v574
        %576 = vmatprep.mubr.bf16.mxu0 0
        %577 = vmatmul.mubr.bf16.gmra.mxu0 %v373
        %v578 = vpop.f32.mrf.mxu0
        %v579 = vadd.f32 %v305, %v578
        %v580 = vpop.f32.mrf.mxu0
        %v581 = vadd.f32 %v309, %v580
        %v582 = vpop.f32.mrf.mxu0
        %v583 = vadd.f32 %v305, %v582
        %v584 = vpop.f32.mrf.mxu0
        %v585 = vadd.f32 %v309, %v584
        %586 = vdwg.mxu0
        %v587 = vpack.c.bf16 %v414, %v410
        %v588 = vpack.c.bf16 %v416, %v412
        %v589 = vpack.c.bf16 %v467, %v463
        %v590 = vpack.c.bf16 %v469, %v465
        %v591 = vpack.c.bf16 %v520, %v516
        %v592 = vpack.c.bf16 %v522, %v518
        %v593 = vpack.c.bf16 %v573, %v569
        %v594 = vpack.c.bf16 %v575, %v571
        %v595 = vpack.c.bf16 %v424, %v420
        %v596 = vpack.c.bf16 %v426, %v422
        %v597 = vpack.c.bf16 %v477, %v473
        %v598 = vpack.c.bf16 %v479, %v475
        %v599 = vpack.c.bf16 %v530, %v526
        %v600 = vpack.c.bf16 %v532, %v528
        %v601 = vpack.c.bf16 %v583, %v579
        %v602 = vpack.c.bf16 %v585, %v581
        %v619 = vunpack.c.l.b16 %v587
        %v620 = vunpack.c.l.b16 %v588
        %v621 = vunpack.c.l.b16 %v589
        %v622 = vunpack.c.l.b16 %v590
        %v623 = vunpack.c.l.b16 %v591
        %v624 = vunpack.c.l.b16 %v592
        %v625 = vunpack.c.l.b16 %v593
        %v626 = vunpack.c.l.b16 %v594
        %v627 = vunpack.c.h.b16 %v587
        %v628 = vunpack.c.h.b16 %v588
        %v629 = vunpack.c.h.b16 %v589
        %v630 = vunpack.c.h.b16 %v590
        %v631 = vunpack.c.h.b16 %v591
        %v632 = vunpack.c.h.b16 %v592
        %v633 = vunpack.c.h.b16 %v593
        %v634 = vunpack.c.h.b16 %v594
        %v635 = vunpack.c.l.b16 %v595
        %v636 = vunpack.c.l.b16 %v596
        %v637 = vunpack.c.l.b16 %v597
        %v638 = vunpack.c.l.b16 %v598
        %v639 = vunpack.c.l.b16 %v599
        %v640 = vunpack.c.l.b16 %v600
        %v641 = vunpack.c.l.b16 %v601
        %v642 = vunpack.c.l.b16 %v602
        %v643 = vunpack.c.h.b16 %v595
        %v644 = vunpack.c.h.b16 %v596
        %v645 = vunpack.c.h.b16 %v597
        %v646 = vunpack.c.h.b16 %v598
        %v647 = vunpack.c.h.b16 %v599
        %v648 = vunpack.c.h.b16 %v600
        %v649 = vunpack.c.h.b16 %v601
        %v650 = vunpack.c.h.b16 %v602
        %v651 = vpack.c.b16 %v620, %v619
        %v652 = vpack.c.b16 %v622, %v621
        %v653 = vpack.c.b16 %v624, %v623
        %v654 = vpack.c.b16 %v626, %v625
        %v655 = vpack.c.b16 %v628, %v627
        %v656 = vpack.c.b16 %v630, %v629
        %v657 = vpack.c.b16 %v632, %v631
        %v658 = vpack.c.b16 %v634, %v633
        %v659 = vpack.c.b16 %v636, %v635
        %v660 = vpack.c.b16 %v638, %v637
        %v661 = vpack.c.b16 %v640, %v639
        %v662 = vpack.c.b16 %v642, %v641
        %v663 = vpack.c.b16 %v644, %v643
        %v664 = vpack.c.b16 %v646, %v645
        %v665 = vpack.c.b16 %v648, %v647
        %v666 = vpack.c.b16 %v650, %v649
        %683 = vst [vmem:[%s252] sm:$0xff] %v651
        %684 = vst [vmem:[%s252 + $0x8] sm:$0xff] %v652
        %685 = vst [vmem:[%s252 + $0x10] sm:$0xff] %v653
        %686 = vst [vmem:[%s252 + $0x18] sm:$0xff] %v654
        %687 = vst [vmem:[%s252 + $0x20] sm:$0xff] %v655
        %688 = vst [vmem:[%s252 + $0x28] sm:$0xff] %v656
        %689 = vst [vmem:[%s252 + $0x30] sm:$0xff] %v657
        %690 = vst [vmem:[%s252 + $0x38] sm:$0xff] %v658
        %691 = vst [vmem:[%s252 + $0x40] sm:$0xff] %v659
        %692 = vst [vmem:[%s252 + $0x48] sm:$0xff] %v660
        %693 = vst [vmem:[%s252 + $0x50] sm:$0xff] %v661
        %694 = vst [vmem:[%s252 + $0x58] sm:$0xff] %v662
        %695 = vst [vmem:[%s252 + $0x60] sm:$0xff] %v663
        %696 = vst [vmem:[%s252 + $0x68] sm:$0xff] %v664
        %697 = vst [vmem:[%s252 + $0x70] sm:$0xff] %v665
        %698 = vst [vmem:[%s252 + $0x78] sm:$0xff] %v666
        %s699 = sand.u32 %s120, 1
        %s700 = sand.u32 %s120, 1
        %s701 = smul.addr %s700, 128
        %s702 = scalar_lea.vmem [#allocation6], %s701
        // Predicated region
        $region41: #{texture_generator_forward.5} parent=31 // pred_check
          %p703 = pneg %p130
        $region42: #{texture_generator_forward.5} parent=31 // pred_check_branch
          %705 = sbr.rel (%p703) target = $region44
        $region43: #{texture_generator_forward.5} parent=31 // pred_region
          %s706 = smul.u32 4, %s24
          %s707 = smul.u32 8, %s25
          %s708 = smul.addr %s706, 32
          %s709 = sadd.s32 %s707, %s708
          %s710 = smul.addr %s709, 4
          %s711 = scalar_lea.vmem %s3, %s710
          // Predicated region
          $region45: #{texture_generator_forward.5} parent=43 // pred_check
            _
          $region46: #{texture_generator_forward.5} parent=43 // pred_check_branch
            %713 = sbr.rel (0) target = $region48
          $region47: #{texture_generator_forward.5} parent=43 // pred_region
            // Predicated region
            $region49: #{texture_generator_forward.5} parent=47 // pred_check
              _
            $region50: #{texture_generator_forward.5} parent=47 // pred_check_branch
              %715 = sbr.rel (0) target = $region52
            $region51: #{texture_generator_forward.5} parent=47 // pred_region
              loop: start=0, step=1, limit=1
              $region53: #{texture_generator_forward.5} parent=51 // loop_pre_header
                _
              $region54: #{texture_generator_forward.5} parent=51 // loop_header
                %s717 = sphi 0, %s721
                %p718 = scmp.ge.s32.totalorder %s717, 1
                %s722 = sphi %s702, %s702
                %s723 = sphi %s711, %s711
              $region55: #{texture_generator_forward.5} parent=51 // loop_header_branch
                %720 = sbr.rel (%p718) target = $region59
              $region56: #{texture_generator_forward.5} parent=51 // loop_body
                %v724 = vld [vmem:[%s722] sm:$0xff]
                %725 = vst [vmem:[%s723] sm:$0xff] %v724
                %v726 = vld [vmem:[%s722 + $0x8] sm:$0xff]
                %727 = vst [vmem:[%s723 + $0x8] sm:$0xff] %v726
                %v728 = vld [vmem:[%s722 + $0x10] sm:$0xff]
                %729 = vst [vmem:[%s723 + $0x10] sm:$0xff] %v728
                %v730 = vld [vmem:[%s722 + $0x18] sm:$0xff]
                %731 = vst [vmem:[%s723 + $0x18] sm:$0xff] %v730
                %v732 = vld [vmem:[%s722 + $0x20] sm:$0xff]
                %733 = vst [vmem:[%s723 + $0x80] sm:$0xff] %v732
                %v734 = vld [vmem:[%s722 + $0x28] sm:$0xff]
                %735 = vst [vmem:[%s723 + $0x88] sm:$0xff] %v734
                %v736 = vld [vmem:[%s722 + $0x30] sm:$0xff]
                %737 = vst [vmem:[%s723 + $0x90] sm:$0xff] %v736
                %v738 = vld [vmem:[%s722 + $0x38] sm:$0xff]
                %739 = vst [vmem:[%s723 + $0x98] sm:$0xff] %v738
                %v740 = vld [vmem:[%s722 + $0x40] sm:$0xff]
                %741 = vst [vmem:[%s723 + $0x100] sm:$0xff] %v740
                %v742 = vld [vmem:[%s722 + $0x48] sm:$0xff]
                %743 = vst [vmem:[%s723 + $0x108] sm:$0xff] %v742
                %v744 = vld [vmem:[%s722 + $0x50] sm:$0xff]
                %745 = vst [vmem:[%s723 + $0x110] sm:$0xff] %v744
                %v746 = vld [vmem:[%s722 + $0x58] sm:$0xff]
                %747 = vst [vmem:[%s723 + $0x118] sm:$0xff] %v746
                %v748 = vld [vmem:[%s722 + $0x60] sm:$0xff]
                %749 = vst [vmem:[%s723 + $0x180] sm:$0xff] %v748
                %v750 = vld [vmem:[%s722 + $0x68] sm:$0xff]
                %751 = vst [vmem:[%s723 + $0x188] sm:$0xff] %v750
                %v752 = vld [vmem:[%s722 + $0x70] sm:$0xff]
                %753 = vst [vmem:[%s723 + $0x190] sm:$0xff] %v752
                %v754 = vld [vmem:[%s722 + $0x78] sm:$0xff]
                %755 = vst [vmem:[%s723 + $0x198] sm:$0xff] %v754
              $region57: #{texture_generator_forward.5} parent=51 // loop_footer
                %s721 = sadd.s32 1, %s717
              $region58: #{texture_generator_forward.5} parent=51 // loop_footer_branch
                %716 = sbr.rel target = $region54
              $region59: #{texture_generator_forward.5} parent=51 // loop_exit
                _
            $region52: #{texture_generator_forward.5} parent=47 // pred_fallthru
              _
            // Predicated region
            $region60: #{texture_generator_forward.5} parent=47 // pred_check
              _
            $region61: #{texture_generator_forward.5} parent=47 // pred_check_branch
              %757 = sbr.rel target = $region63
            $region62: #{texture_generator_forward.5} parent=47 // pred_region
              _
            $region63: #{texture_generator_forward.5} parent=47 // pred_fallthru
              _
          $region48: #{texture_generator_forward.5} parent=43 // pred_fallthru
            _
          %758 = vnop
        $region44: #{texture_generator_forward.5} parent=31 // pred_fallthru
          _
      $region32: #{texture_generator_forward.5} parent=5 // pred_fallthru
        _
      %p759 = scmp.le.s32.totalorder 2, %s15
      // Predicated region
      $region64: #{texture_generator_forward.5} parent=5 // pred_check
        %p760 = pneg %p759
      $region65: #{texture_generator_forward.5} parent=5 // pred_check_branch
        %762 = sbr.rel (%p760) target = $region67
      $region66: #{texture_generator_forward.5} parent=5 // pred_region
        %s763 = ssub.s32 %s15, 2
        // Predicated region
        $region68: #{texture_generator_forward.5} parent=66 // pred_check
          %p764 = pneg %p136
        $region69: #{texture_generator_forward.5} parent=66 // pred_check_branch
          %766 = sbr.rel (%p764) target = $region71
        $region70: #{texture_generator_forward.5} parent=66 // pred_region
          %s767 = sand.u32 %s121, 1
          %s768 = sand.u32 %s121, 1
          %s769 = smul.addr %s768, 128
          %s770 = scalar_lea.vmem [#allocation6], %s769
        $region71: #{texture_generator_forward.5} parent=66 // pred_fallthru
          _
      $region67: #{texture_generator_forward.5} parent=5 // pred_fallthru
        _
    $region6: #{texture_generator_forward.5} parent=1 // loop_footer
      %s19 = sadd.s32 1, %s15
    $region7: #{texture_generator_forward.5} parent=1 // loop_footer_branch
      %14 = sbr.rel target = $region3
    $region8: #{texture_generator_forward.5} parent=1 // loop_exit
      _
    %771 = vsyncpa [#allocation3], 1
    %s772 = scalar_lea.sflag [#allocation3], 1
    %773 = vsyncpa %s772, 1
    %774 = vsyncpa [#allocation5], 1
    %s775 = scalar_lea.sflag [#allocation5], 1
    %776 = vsyncpa %s775, 1

// kernel: texture_generator_forward.6
$region0: #{texture_generator_forward.6}
  #allocation0 [shape = 'u32[]', space=smem, size = 0x4, offset = 0x4, fixed_abs, tag = 'smem constant byte address 0x4 - core index']
  #allocation1 [shape = 'u32[144,128]{1,0:T(1,128)}', space=vmem, size = 0x12000, scoped, tag = 'internal scratch']
  %s0 = inlined_call_operand.vmem [shape: bf16[128,256], index: 0, kind: input, shape index: {}]
  %s1 = inlined_call_operand.vmem [shape: bf16[256,2048], index: 1, kind: input, shape index: {}]
  %s2 = inlined_call_operand.vmem [shape: f32[1,2048], index: 2, kind: input, shape index: {}]
  %s3 = inlined_call_operand.vmem [shape: bf16[128,2048], index: 3, kind: output, shape index: {}]
  %s4 = sld [smem:[#allocation0]]
  $region87: #{texture_generator_forward.6} parent=0
    _
  %s6 = ssub.s32 1, %s4
  %s7 = scalar_select 0, %s6, %s4
  $region1: #{texture_generator_forward.6} parent=0
    #allocation2 [shape = 'u8[1048576]{0}', space=vmem, size = 0x100000, scoped, tag = 'input window, operand 1']
    #allocation3 [shape = 'u8[524288]{0}', space=vmem, size = 0x80000, scoped, tag = 'output window, operand 0']
    loop: start=0, step=1, limit=4
    $region2: #{texture_generator_forward.6} parent=1 // loop_pre_header
      _
    $region3: #{texture_generator_forward.6} parent=1 // loop_header
      %s9 = sphi 0, %s13
      %p10 = scmp.ge.s32.totalorder %s9, 4
      %s16 = sphi 0, %s28
      %s17 = sphi 0, %s24
      %s18 = sphi 0, %s16
      %s19 = sphi 0, %s17
      %s20 = sphi 0, %s18
      %s21 = sphi 0, %s19
      %s31 = sphi 0, %s33
      %s34 = sphi 0, %s31
      %s35 = sphi 0, %s34
      %s51 = sphi 0, %s35
      %s57 = sphi 0, %s59
      %s60 = sphi 0, %s57
      %s61 = sphi 0, %s60
      %s77 = sphi 0, %s61
      %s83 = sphi 0, %s85
      %s86 = sphi 0, %s83
      %s87 = sphi 0, %s86
      %s103 = sphi 0, %s87
      %s111 = sphi 0, %s113
      %s114 = sphi 0, %s111
      %s115 = sphi 0, %s114
      %s131 = sphi 0, %s115
    $region4: #{texture_generator_forward.6} parent=1 // loop_header_branch
      %12 = sbr.rel (%p10) target = $region8
    $region5: #{texture_generator_forward.6} parent=1 // loop_body
      %s14 = ssub.s32 %s9, 1
      %s15 = ssub.s32 %s9, 2
      %s22 = sadd.s32 1, %s17
      %p23 = scmp.ge.s32.totalorder %s22, 2
      %s24 = scalar_select %p23, 0, %s22
      %s25 = sadd.s32 1, %s16
      %s26 = scalar_select %p23, %s25, %s16
      %p27 = scmp.ge.s32.totalorder %s26, 1
      %s28 = scalar_select %p27, 0, %s26
      %s29 = ssub.s32 %s16, %s28
      %p30 = scmp.eq.s32.totalorder %s29, 0
      %s32 = sadd.s32 %s31, 1
      %s33 = scalar_select %p30, %s31, %s32
      %p36 = pneg %p30
      %p37 = scmp.eq.s32.totalorder %s9, 1
      %p38 = por %p36, %p37
      %p39 = scmp.ne.s32.totalorder %s31, %s34
      %p40 = scmp.eq.s32.totalorder %s9, 0
      %p41 = por %p39, %p40
      %p42 = scmp.ne.s32.totalorder %s31, %s34
      %p43 = scmp.eq.s32.totalorder %s14, 1
      %p44 = por %p42, %p43
      %p45 = scmp.ne.s32.totalorder %s34, %s35
      %p46 = scmp.eq.s32.totalorder %s14, 0
      %p47 = por %p45, %p46
      %p48 = scmp.ne.s32.totalorder %s34, %s35
      %p49 = scmp.eq.s32.totalorder %s15, 1
      %p50 = por %p48, %p49
      %p52 = scmp.ne.s32.totalorder %s35, %s51
      %p53 = scmp.eq.s32.totalorder %s15, 0
      %p54 = por %p52, %p53
      %s55 = ssub.s32 %s17, %s24
      %p56 = scmp.eq.s32.totalorder %s55, 0
      %s58 = sadd.s32 %s57, 1
      %s59 = scalar_select %p56, %s57, %s58
      %p62 = pneg %p56
      %p63 = scmp.eq.s32.totalorder %s9, 1
      %p64 = por %p62, %p63
      %p65 = scmp.ne.s32.totalorder %s57, %s60
      %p66 = scmp.eq.s32.totalorder %s9, 0
      %p67 = por %p65, %p66
      %p68 = scmp.ne.s32.totalorder %s57, %s60
      %p69 = scmp.eq.s32.totalorder %s14, 1
      %p70 = por %p68, %p69
      %p71 = scmp.ne.s32.totalorder %s60, %s61
      %p72 = scmp.eq.s32.totalorder %s14, 0
      %p73 = por %p71, %p72
      %p74 = scmp.ne.s32.totalorder %s60, %s61
      %p75 = scmp.eq.s32.totalorder %s15, 1
      %p76 = por %p74, %p75
      %p78 = scmp.ne.s32.totalorder %s61, %s77
      %p79 = scmp.eq.s32.totalorder %s15, 0
      %p80 = por %p78, %p79
      %s81 = ssub.s32 %s17, %s24
      %p82 = scmp.eq.s32.totalorder %s81, 0
      %s84 = sadd.s32 %s83, 1
      %s85 = scalar_select %p82, %s83, %s84
      %p88 = pneg %p82
      %p89 = scmp.eq.s32.totalorder %s9, 1
      %p90 = por %p88, %p89
      %p91 = scmp.ne.s32.totalorder %s83, %s86
      %p92 = scmp.eq.s32.totalorder %s9, 0
      %p93 = por %p91, %p92
      %p94 = scmp.ne.s32.totalorder %s83, %s86
      %p95 = scmp.eq.s32.totalorder %s14, 1
      %p96 = por %p94, %p95
      %p97 = scmp.ne.s32.totalorder %s86, %s87
      %p98 = scmp.eq.s32.totalorder %s14, 0
      %p99 = por %p97, %p98
      %p100 = scmp.ne.s32.totalorder %s86, %s87
      %p101 = scmp.eq.s32.totalorder %s15, 1
      %p102 = por %p100, %p101
      %p104 = scmp.ne.s32.totalorder %s87, %s103
      %p105 = scmp.eq.s32.totalorder %s15, 0
      %p106 = por %p104, %p105
      %s107 = ssub.s32 %s16, %s28
      %s108 = ssub.s32 %s17, %s24
      %s109 = sor.u32 %s107, %s108
      %p110 = scmp.eq.s32.totalorder %s109, 0
      %s112 = sadd.s32 %s111, 1
      %s113 = scalar_select %p110, %s111, %s112
      %p116 = pneg %p110
      %p117 = scmp.eq.s32.totalorder %s9, 1
      %p118 = por %p116, %p117
      %p119 = scmp.ne.s32.totalorder %s111, %s114
      %p120 = scmp.eq.s32.totalorder %s9, 0
      %p121 = por %p119, %p120
      %p122 = scmp.ne.s32.totalorder %s111, %s114
      %p123 = scmp.eq.s32.totalorder %s14, 1
      %p124 = por %p122, %p123
      %p125 = scmp.ne.s32.totalorder %s114, %s115
      %p126 = scmp.eq.s32.totalorder %s14, 0
      %p127 = por %p125, %p126
      %p128 = scmp.ne.s32.totalorder %s114, %s115
      %p129 = scmp.eq.s32.totalorder %s15, 1
      %p130 = por %p128, %p129
      %p132 = scmp.ne.s32.totalorder %s115, %s131
      %p133 = scmp.eq.s32.totalorder %s15, 0
      %p134 = por %p132, %p133
      %p135 = scmp.le.s32.totalorder 1, %s9
      %p136 = scmp.lt.s32.totalorder %s9, 3
      %p137 = pnand %p135, %p136
      %p138 = pneg %p137
      // Predicated region
      $region9: #{texture_generator_forward.6} parent=5 // pred_check
        _
      $region10: #{texture_generator_forward.6} parent=5 // pred_check_branch
        %140 = sbr.rel (%p137) target = $region12
      $region11: #{texture_generator_forward.6} parent=5 // pred_region
        %s141 = ssub.s32 %s9, 1
        // Predicated region
        $region13: #{texture_generator_forward.6} parent=11 // pred_check
          %p142 = pneg %p47
        $region14: #{texture_generator_forward.6} parent=11 // pred_check_branch
          %144 = sbr.rel (%p142) target = $region16
        $region15: #{texture_generator_forward.6} parent=11 // pred_region
          %s145 = smul.u32 16, %s18
          %p146 = scmp.lt.s32.totalorder %s145, 15
          %s147 = scalar_select %p146, %s145, 15
          %s148 = smul.addr %s147, 2
          %s149 = smul.addr %s148, 4
          %s150 = scalar_lea.vmem %s0, %s149
          %s151 = smul.u32 16, %s18
        $region16: #{texture_generator_forward.6} parent=11 // pred_fallthru
          _
      $region12: #{texture_generator_forward.6} parent=5 // pred_fallthru
        _
      %p152 = scmp.lt.s32.totalorder %s9, 2
      // Predicated region
      $region17: #{texture_generator_forward.6} parent=5 // pred_check
        %p153 = pneg %p152
      $region18: #{texture_generator_forward.6} parent=5 // pred_check_branch
        %155 = sbr.rel (%p153) target = $region20
      $region19: #{texture_generator_forward.6} parent=5 // pred_region
        // Predicated region
        $region21: #{texture_generator_forward.6} parent=19 // pred_check
          %p156 = pneg %p67
        $region22: #{texture_generator_forward.6} parent=19 // pred_check_branch
          %158 = sbr.rel (%p156) target = $region24
        $region23: #{texture_generator_forward.6} parent=19 // pred_region
          %s159 = sand.u32 %s57, 1
          %s160 = sand.u32 %s57, 1
          %s161 = smul.addr %s160, 1024
          %s162 = scalar_lea.vmem [#allocation2], %s161
          %s163 = smul.u32 8, %s17
          %s164 = smul.addr %s163, 4
          %s165 = scalar_lea.vmem %s1, %s164
          // Predicated region
          $region25: #{texture_generator_forward.6} parent=23 // pred_check
            _
          $region26: #{texture_generator_forward.6} parent=23 // pred_check_branch
            %167 = sbr.rel (0) target = $region28
          $region27: #{texture_generator_forward.6} parent=23 // pred_region
            // Predicated region
            $region29: #{texture_generator_forward.6} parent=27 // pred_check
              _
            $region30: #{texture_generator_forward.6} parent=27 // pred_check_branch
              %169 = sbr.rel (0) target = $region32
            $region31: #{texture_generator_forward.6} parent=27 // pred_region
              loop: start=0, step=1, limit=1
              $region33: #{texture_generator_forward.6} parent=31 // loop_pre_header
                _
              $region34: #{texture_generator_forward.6} parent=31 // loop_header
                %s171 = sphi 0, %s175
                %p172 = scmp.ge.s32.totalorder %s171, 1
                %s176 = sphi %s165, %s165
                %s177 = sphi %s162, %s162
              $region35: #{texture_generator_forward.6} parent=31 // loop_header_branch
                %174 = sbr.rel (%p172) target = $region39
              $region36: #{texture_generator_forward.6} parent=31 // loop_body
                %v178 = vld [vmem:[%s176] sm:$0xff]
                %179 = vst [vmem:[%s177] sm:$0xff] %v178
                %v180 = vld [vmem:[%s176 + $0x8] sm:$0xff]
                %181 = vst [vmem:[%s177 + $0x8] sm:$0xff] %v180
                %v182 = vld [vmem:[%s176 + $0x10] sm:$0xff]
                %183 = vst [vmem:[%s177 + $0x10] sm:$0xff] %v182
                %v184 = vld [vmem:[%s176 + $0x18] sm:$0xff]
                %185 = vst [vmem:[%s177 + $0x18] sm:$0xff] %v184
                %v186 = vld [vmem:[%s176 + $0x40] sm:$0xff]
                %187 = vst [vmem:[%s177 + $0x20] sm:$0xff] %v186
                %v188 = vld [vmem:[%s176 + $0x48] sm:$0xff]
                %189 = vst [vmem:[%s177 + $0x28] sm:$0xff] %v188
                %v190 = vld [vmem:[%s176 + $0x50] sm:$0xff]
                %191 = vst [vmem:[%s177 + $0x30] sm:$0xff] %v190
                %v192 = vld [vmem:[%s176 + $0x58] sm:$0xff]
                %193 = vst [vmem:[%s177 + $0x38] sm:$0xff] %v192
                %v194 = vld [vmem:[%s176 + $0x80] sm:$0xff]
                %195 = vst [vmem:[%s177 + $0x40] sm:$0xff] %v194
                %v196 = vld [vmem:[%s176 + $0x88] sm:$0xff]
                %197 = vst [vmem:[%s177 + $0x48] sm:$0xff] %v196
                %v198 = vld [vmem:[%s176 + $0x90] sm:$0xff]
                %199 = vst [vmem:[%s177 + $0x50] sm:$0xff] %v198
                %v200 = vld [vmem:[%s176 + $0x98] sm:$0xff]
                %201 = vst [vmem:[%s177 + $0x58] sm:$0xff] %v200
                %v202 = vld [vmem:[%s176 + $0xc0] sm:$0xff]
                %203 = vst [vmem:[%s177 + $0x60] sm:$0xff] %v202
                %v204 = vld [vmem:[%s176 + $0xc8] sm:$0xff]
                %205 = vst [vmem:[%s177 + $0x68] sm:$0xff] %v204
                %v206 = vld [vmem:[%s176 + $0xd0] sm:$0xff]
                %207 = vst [vmem:[%s177 + $0x70] sm:$0xff] %v206
                %v208 = vld [vmem:[%s176 + $0xd8] sm:$0xff]
                %209 = vst [vmem:[%s177 + $0x78] sm:$0xff] %v208
                %v210 = vld [vmem:[%s176 + $0x100] sm:$0xff]
                %211 = vst [vmem:[%s177 + $0x80] sm:$0xff] %v210
                %v212 = vld [vmem:[%s176 + $0x108] sm:$0xff]
                %213 = vst [vmem:[%s177 + $0x88] sm:$0xff] %v212
                %v214 = vld [vmem:[%s176 + $0x110] sm:$0xff]
                %215 = vst [vmem:[%s177 + $0x90] sm:$0xff] %v214
                %v216 = vld [vmem:[%s176 + $0x118] sm:$0xff]
                %217 = vst [vmem:[%s177 + $0x98] sm:$0xff] %v216
                %v218 = vld [vmem:[%s176 + $0x140] sm:$0xff]
                %219 = vst [vmem:[%s177 + $0xa0] sm:$0xff] %v218
                %v220 = vld [vmem:[%s176 + $0x148] sm:$0xff]
                %221 = vst [vmem:[%s177 + $0xa8] sm:$0xff] %v220
                %v222 = vld [vmem:[%s176 + $0x150] sm:$0xff]
                %223 = vst [vmem:[%s177 + $0xb0] sm:$0xff] %v222
                %v224 = vld [vmem:[%s176 + $0x158] sm:$0xff]
                %225 = vst [vmem:[%s177 + $0xb8] sm:$0xff] %v224
                %v226 = vld [vmem:[%s176 + $0x180] sm:$0xff]
                %227 = vst [vmem:[%s177 + $0xc0] sm:$0xff] %v226
                %v228 = vld [vmem:[%s176 + $0x188] sm:$0xff]
                %229 = vst [vmem:[%s177 + $0xc8] sm:$0xff] %v228
                %v230 = vld [vmem:[%s176 + $0x190] sm:$0xff]
                %231 = vst [vmem:[%s177 + $0xd0] sm:$0xff] %v230
                %v232 = vld [vmem:[%s176 + $0x198] sm:$0xff]
                %233 = vst [vmem:[%s177 + $0xd8] sm:$0xff] %v232
                %v234 = vld [vmem:[%s176 + $0x1c0] sm:$0xff]
                %235 = vst [vmem:[%s177 + $0xe0] sm:$0xff] %v234
                %v236 = vld [vmem:[%s176 + $0x1c8] sm:$0xff]
                %237 = vst [vmem:[%s177 + $0xe8] sm:$0xff] %v236
                %v238 = vld [vmem:[%s176 + $0x1d0] sm:$0xff]
                %239 = vst [vmem:[%s177 + $0xf0] sm:$0xff] %v238
                %v240 = vld [vmem:[%s176 + $0x1d8] sm:$0xff]
                %241 = vst [vmem:[%s177 + $0xf8] sm:$0xff] %v240
                %v242 = vld [vmem:[%s176 + $0x200] sm:$0xff]
                %243 = vst [vmem:[%s177 + $0x100] sm:$0xff] %v242
                %v244 = vld [vmem:[%s176 + $0x208] sm:$0xff]
                %245 = vst [vmem:[%s177 + $0x108] sm:$0xff] %v244
                %v246 = vld [vmem:[%s176 + $0x210] sm:$0xff]
                %247 = vst [vmem:[%s177 + $0x110] sm:$0xff] %v246
                %v248 = vld [vmem:[%s176 + $0x218] sm:$0xff]
                %249 = vst [vmem:[%s177 + $0x118] sm:$0xff] %v248
                %v250 = vld [vmem:[%s176 + $0x240] sm:$0xff]
                %251 = vst [vmem:[%s177 + $0x120] sm:$0xff] %v250
                %v252 = vld [vmem:[%s176 + $0x248] sm:$0xff]
                %253 = vst [vmem:[%s177 + $0x128] sm:$0xff] %v252
                %v254 = vld [vmem:[%s176 + $0x250] sm:$0xff]
                %255 = vst [vmem:[%s177 + $0x130] sm:$0xff] %v254
                %v256 = vld [vmem:[%s176 + $0x258] sm:$0xff]
                %257 = vst [vmem:[%s177 + $0x138] sm:$0xff] %v256
                %v258 = vld [vmem:[%s176 + $0x280] sm:$0xff]
                %259 = vst [vmem:[%s177 + $0x140] sm:$0xff] %v258
                %v260 = vld [vmem:[%s176 + $0x288] sm:$0xff]
                %261 = vst [vmem:[%s177 + $0x148] sm:$0xff] %v260
                %v262 = vld [vmem:[%s176 + $0x290] sm:$0xff]
                %263 = vst [vmem:[%s177 + $0x150] sm:$0xff] %v262
                %v264 = vld [vmem:[%s176 + $0x298] sm:$0xff]
                %265 = vst [vmem:[%s177 + $0x158] sm:$0xff] %v264
                %v266 = vld [vmem:[%s176 + $0x2c0] sm:$0xff]
                %267 = vst [vmem:[%s177 + $0x160] sm:$0xff] %v266
                %v268 = vld [vmem:[%s176 + $0x2c8] sm:$0xff]
                %269 = vst [vmem:[%s177 + $0x168] sm:$0xff] %v268
                %v270 = vld [vmem:[%s176 + $0x2d0] sm:$0xff]
                %271 = vst [vmem:[%s177 + $0x170] sm:$0xff] %v270
                %v272 = vld [vmem:[%s176 + $0x2d8] sm:$0xff]
                %273 = vst [vmem:[%s177 + $0x178] sm:$0xff] %v272
                %v274 = vld [vmem:[%s176 + $0x300] sm:$0xff]
                %275 = vst [vmem:[%s177 + $0x180] sm:$0xff] %v274
                %v276 = vld [vmem:[%s176 + $0x308] sm:$0xff]
                %277 = vst [vmem:[%s177 + $0x188] sm:$0xff] %v276
                %v278 = vld [vmem:[%s176 + $0x310] sm:$0xff]
                %279 = vst [vmem:[%s177 + $0x190] sm:$0xff] %v278
                %v280 = vld [vmem:[%s176 + $0x318] sm:$0xff]
                %281 = vst [vmem:[%s177 + $0x198] sm:$0xff] %v280
                %v282 = vld [vmem:[%s176 + $0x340] sm:$0xff]
                %283 = vst [vmem:[%s177 + $0x1a0] sm:$0xff] %v282
                %v284 = vld [vmem:[%s176 + $0x348] sm:$0xff]
                %285 = vst [vmem:[%s177 + $0x1a8] sm:$0xff] %v284
                %v286 = vld [vmem:[%s176 + $0x350] sm:$0xff]
                %287 = vst [vmem:[%s177 + $0x1b0] sm:$0xff] %v286
                %v288 = vld [vmem:[%s176 + $0x358] sm:$0xff]
                %289 = vst [vmem:[%s177 + $0x1b8] sm:$0xff] %v288
                %v290 = vld [vmem:[%s176 + $0x380] sm:$0xff]
                %291 = vst [vmem:[%s177 + $0x1c0] sm:$0xff] %v290
                %v292 = vld [vmem:[%s176 + $0x388] sm:$0xff]
                %293 = vst [vmem:[%s177 + $0x1c8] sm:$0xff] %v292
                %v294 = vld [vmem:[%s176 + $0x390] sm:$0xff]
                %295 = vst [vmem:[%s177 + $0x1d0] sm:$0xff] %v294
                %v296 = vld [vmem:[%s176 + $0x398] sm:$0xff]
                %297 = vst [vmem:[%s177 + $0x1d8] sm:$0xff] %v296
                %v298 = vld [vmem:[%s176 + $0x3c0] sm:$0xff]
                %299 = vst [vmem:[%s177 + $0x1e0] sm:$0xff] %v298
                %v300 = vld [vmem:[%s176 + $0x3c8] sm:$0xff]
                %301 = vst [vmem:[%s177 + $0x1e8] sm:$0xff] %v300
                %v302 = vld [vmem:[%s176 + $0x3d0] sm:$0xff]
                %303 = vst [vmem:[%s177 + $0x1f0] sm:$0xff] %v302
                %v304 = vld [vmem:[%s176 + $0x3d8] sm:$0xff]
                %305 = vst [vmem:[%s177 + $0x1f8] sm:$0xff] %v304
                %v306 = vld [vmem:[%s176 + $0x400] sm:$0xff]
                %307 = vst [vmem:[%s177 + $0x200] sm:$0xff] %v306
                %v308 = vld [vmem:[%s176 + $0x408] sm:$0xff]
                %309 = vst [vmem:[%s177 + $0x208] sm:$0xff] %v308
                %v310 = vld [vmem:[%s176 + $0x410] sm:$0xff]
                %311 = vst [vmem:[%s177 + $0x210] sm:$0xff] %v310
                %v312 = vld [vmem:[%s176 + $0x418] sm:$0xff]
                %313 = vst [vmem:[%s177 + $0x218] sm:$0xff] %v312
                %v314 = vld [vmem:[%s176 + $0x440] sm:$0xff]
                %315 = vst [vmem:[%s177 + $0x220] sm:$0xff] %v314
                %v316 = vld [vmem:[%s176 + $0x448] sm:$0xff]
                %317 = vst [vmem:[%s177 + $0x228] sm:$0xff] %v316
                %v318 = vld [vmem:[%s176 + $0x450] sm:$0xff]
                %319 = vst [vmem:[%s177 + $0x230] sm:$0xff] %v318
                %v320 = vld [vmem:[%s176 + $0x458] sm:$0xff]
                %321 = vst [vmem:[%s177 + $0x238] sm:$0xff] %v320
                %v322 = vld [vmem:[%s176 + $0x480] sm:$0xff]
                %323 = vst [vmem:[%s177 + $0x240] sm:$0xff] %v322
                %v324 = vld [vmem:[%s176 + $0x488] sm:$0xff]
                %325 = vst [vmem:[%s177 + $0x248] sm:$0xff] %v324
                %v326 = vld [vmem:[%s176 + $0x490] sm:$0xff]
                %327 = vst [vmem:[%s177 + $0x250] sm:$0xff] %v326
                %v328 = vld [vmem:[%s176 + $0x498] sm:$0xff]
                %329 = vst [vmem:[%s177 + $0x258] sm:$0xff] %v328
                %v330 = vld [vmem:[%s176 + $0x4c0] sm:$0xff]
                %331 = vst [vmem:[%s177 + $0x260] sm:$0xff] %v330
                %v332 = vld [vmem:[%s176 + $0x4c8] sm:$0xff]
                %333 = vst [vmem:[%s177 + $0x268] sm:$0xff] %v332
                %v334 = vld [vmem:[%s176 + $0x4d0] sm:$0xff]
                %335 = vst [vmem:[%s177 + $0x270] sm:$0xff] %v334
                %v336 = vld [vmem:[%s176 + $0x4d8] sm:$0xff]
                %337 = vst [vmem:[%s177 + $0x278] sm:$0xff] %v336
                %v338 = vld [vmem:[%s176 + $0x500] sm:$0xff]
                %339 = vst [vmem:[%s177 + $0x280] sm:$0xff] %v338
                %v340 = vld [vmem:[%s176 + $0x508] sm:$0xff]
                %341 = vst [vmem:[%s177 + $0x288] sm:$0xff] %v340
                %v342 = vld [vmem:[%s176 + $0x510] sm:$0xff]
                %343 = vst [vmem:[%s177 + $0x290] sm:$0xff] %v342
                %v344 = vld [vmem:[%s176 + $0x518] sm:$0xff]
                %345 = vst [vmem:[%s177 + $0x298] sm:$0xff] %v344
                %v346 = vld [vmem:[%s176 + $0x540] sm:$0xff]
                %347 = vst [vmem:[%s177 + $0x2a0] sm:$0xff] %v346
                %v348 = vld [vmem:[%s176 + $0x548] sm:$0xff]
                %349 = vst [vmem:[%s177 + $0x2a8] sm:$0xff] %v348
                %v350 = vld [vmem:[%s176 + $0x550] sm:$0xff]
                %351 = vst [vmem:[%s177 + $0x2b0] sm:$0xff] %v350
                %v352 = vld [vmem:[%s176 + $0x558] sm:$0xff]
                %353 = vst [vmem:[%s177 + $0x2b8] sm:$0xff] %v352
                %v354 = vld [vmem:[%s176 + $0x580] sm:$0xff]
                %355 = vst [vmem:[%s177 + $0x2c0] sm:$0xff] %v354
                %v356 = vld [vmem:[%s176 + $0x588] sm:$0xff]
                %357 = vst [vmem:[%s177 + $0x2c8] sm:$0xff] %v356
                %v358 = vld [vmem:[%s176 + $0x590] sm:$0xff]
                %359 = vst [vmem:[%s177 + $0x2d0] sm:$0xff] %v358
                %v360 = vld [vmem:[%s176 + $0x598] sm:$0xff]
                %361 = vst [vmem:[%s177 + $0x2d8] sm:$0xff] %v360
                %v362 = vld [vmem:[%s176 + $0x5c0] sm:$0xff]
                %363 = vst [vmem:[%s177 + $0x2e0] sm:$0xff] %v362
                %v364 = vld [vmem:[%s176 + $0x5c8] sm:$0xff]
                %365 = vst [vmem:[%s177 + $0x2e8] sm:$0xff] %v364
                %v366 = vld [vmem:[%s176 + $0x5d0] sm:$0xff]
                %367 = vst [vmem:[%s177 + $0x2f0] sm:$0xff] %v366
                %v368 = vld [vmem:[%s176 + $0x5d8] sm:$0xff]
                %369 = vst [vmem:[%s177 + $0x2f8] sm:$0xff] %v368
                %v370 = vld [vmem:[%s176 + $0x600] sm:$0xff]
                %371 = vst [vmem:[%s177 + $0x300] sm:$0xff] %v370
                %v372 = vld [vmem:[%s176 + $0x608] sm:$0xff]
                %373 = vst [vmem:[%s177 + $0x308] sm:$0xff] %v372
                %v374 = vld [vmem:[%s176 + $0x610] sm:$0xff]
                %375 = vst [vmem:[%s177 + $0x310] sm:$0xff] %v374
                %v376 = vld [vmem:[%s176 + $0x618] sm:$0xff]
                %377 = vst [vmem:[%s177 + $0x318] sm:$0xff] %v376
                %v378 = vld [vmem:[%s176 + $0x640] sm:$0xff]
                %379 = vst [vmem:[%s177 + $0x320] sm:$0xff] %v378
                %v380 = vld [vmem:[%s176 + $0x648] sm:$0xff]
                %381 = vst [vmem:[%s177 + $0x328] sm:$0xff] %v380
                %v382 = vld [vmem:[%s176 + $0x650] sm:$0xff]
                %383 = vst [vmem:[%s177 + $0x330] sm:$0xff] %v382
                %v384 = vld [vmem:[%s176 + $0x658] sm:$0xff]
                %385 = vst [vmem:[%s177 + $0x338] sm:$0xff] %v384
                %v386 = vld [vmem:[%s176 + $0x680] sm:$0xff]
                %387 = vst [vmem:[%s177 + $0x340] sm:$0xff] %v386
                %v388 = vld [vmem:[%s176 + $0x688] sm:$0xff]
                %389 = vst [vmem:[%s177 + $0x348] sm:$0xff] %v388
                %v390 = vld [vmem:[%s176 + $0x690] sm:$0xff]
                %391 = vst [vmem:[%s177 + $0x350] sm:$0xff] %v390
                %v392 = vld [vmem:[%s176 + $0x698] sm:$0xff]
                %393 = vst [vmem:[%s177 + $0x358] sm:$0xff] %v392
                %v394 = vld [vmem:[%s176 + $0x6c0] sm:$0xff]
                %395 = vst [vmem:[%s177 + $0x360] sm:$0xff] %v394
                %v396 = vld [vmem:[%s176 + $0x6c8] sm:$0xff]
                %397 = vst [vmem:[%s177 + $0x368] sm:$0xff] %v396
                %v398 = vld [vmem:[%s176 + $0x6d0] sm:$0xff]
                %399 = vst [vmem:[%s177 + $0x370] sm:$0xff] %v398
                %v400 = vld [vmem:[%s176 + $0x6d8] sm:$0xff]
                %401 = vst [vmem:[%s177 + $0x378] sm:$0xff] %v400
                %v402 = vld [vmem:[%s176 + $0x700] sm:$0xff]
                %403 = vst [vmem:[%s177 + $0x380] sm:$0xff] %v402
                %v404 = vld [vmem:[%s176 + $0x708] sm:$0xff]
                %405 = vst [vmem:[%s177 + $0x388] sm:$0xff] %v404
                %v406 = vld [vmem:[%s176 + $0x710] sm:$0xff]
                %407 = vst [vmem:[%s177 + $0x390] sm:$0xff] %v406
                %v408 = vld [vmem:[%s176 + $0x718] sm:$0xff]
                %409 = vst [vmem:[%s177 + $0x398] sm:$0xff] %v408
                %v410 = vld [vmem:[%s176 + $0x740] sm:$0xff]
                %411 = vst [vmem:[%s177 + $0x3a0] sm:$0xff] %v410
                %v412 = vld [vmem:[%s176 + $0x748] sm:$0xff]
                %413 = vst [vmem:[%s177 + $0x3a8] sm:$0xff] %v412
                %v414 = vld [vmem:[%s176 + $0x750] sm:$0xff]
                %415 = vst [vmem:[%s177 + $0x3b0] sm:$0xff] %v414
                %v416 = vld [vmem:[%s176 + $0x758] sm:$0xff]
                %417 = vst [vmem:[%s177 + $0x3b8] sm:$0xff] %v416
                %v418 = vld [vmem:[%s176 + $0x780] sm:$0xff]
                %419 = vst [vmem:[%s177 + $0x3c0] sm:$0xff] %v418
                %v420 = vld [vmem:[%s176 + $0x788] sm:$0xff]
                %421 = vst [vmem:[%s177 + $0x3c8] sm:$0xff] %v420
                %v422 = vld [vmem:[%s176 + $0x790] sm:$0xff]
                %423 = vst [vmem:[%s177 + $0x3d0] sm:$0xff] %v422
                %v424 = vld [vmem:[%s176 + $0x798] sm:$0xff]
                %425 = vst [vmem:[%s177 + $0x3d8] sm:$0xff] %v424
                %v426 = vld [vmem:[%s176 + $0x7c0] sm:$0xff]
                %427 = vst [vmem:[%s177 + $0x3e0] sm:$0xff] %v426
                %v428 = vld [vmem:[%s176 + $0x7c8] sm:$0xff]
                %429 = vst [vmem:[%s177 + $0x3e8] sm:$0xff] %v428
                %v430 = vld [vmem:[%s176 + $0x7d0] sm:$0xff]
                %431 = vst [vmem:[%s177 + $0x3f0] sm:$0xff] %v430
                %v432 = vld [vmem:[%s176 + $0x7d8] sm:$0xff]
                %433 = vst [vmem:[%s177 + $0x3f8] sm:$0xff] %v432
              $region37: #{texture_generator_forward.6} parent=31 // loop_footer
                %s175 = sadd.s32 1, %s171
              $region38: #{texture_generator_forward.6} parent=31 // loop_footer_branch
                %170 = sbr.rel target = $region34
              $region39: #{texture_generator_forward.6} parent=31 // loop_exit
                _
            $region32: #{texture_generator_forward.6} parent=27 // pred_fallthru
              _
            // Predicated region
            $region40: #{texture_generator_forward.6} parent=27 // pred_check
              _
            $region41: #{texture_generator_forward.6} parent=27 // pred_check_branch
              %435 = sbr.rel target = $region43
            $region42: #{texture_generator_forward.6} parent=27 // pred_region
              _
            $region43: #{texture_generator_forward.6} parent=27 // pred_fallthru
              _
          $region28: #{texture_generator_forward.6} parent=23 // pred_fallthru
            _
          %436 = vnop
        $region24: #{texture_generator_forward.6} parent=19 // pred_fallthru
          _
        // Predicated region
        $region44: #{texture_generator_forward.6} parent=19 // pred_check
          %p437 = pneg %p93
        $region45: #{texture_generator_forward.6} parent=19 // pred_check_branch
          %439 = sbr.rel (%p437) target = $region47
        $region46: #{texture_generator_forward.6} parent=19 // pred_region
          %s440 = smul.u32 8, %s17
          %p441 = scmp.lt.s32.totalorder %s440, 15
          %s442 = scalar_select %p441, %s440, 15
          %s443 = scalar_lea.vmem %s2, %s442
          %s444 = smul.u32 8, %s17
        $region47: #{texture_generator_forward.6} parent=19 // pred_fallthru
          _
      $region20: #{texture_generator_forward.6} parent=5 // pred_fallthru
        _
      %p445 = scmp.le.s32.totalorder 1, %s9
      %p446 = scmp.lt.s32.totalorder %s9, 3
      %p447 = pnand %p445, %p446
      %p448 = pneg %p447
      // Predicated region
      $region48: #{texture_generator_forward.6} parent=5 // pred_check
        _
      $region49: #{texture_generator_forward.6} parent=5 // pred_check_branch
        %450 = sbr.rel (%p447) target = $region51
      $region50: #{texture_generator_forward.6} parent=5 // pred_region
        %s451 = ssub.s32 %s9, 1
        %s452 = sand.u32 %s60, 1
        %s453 = sand.u32 %s60, 1
        %s454 = smul.addr %s453, 1024
        %s455 = scalar_lea.vmem [#allocation2], %s454
        // Predicated region
        $region52: #{texture_generator_forward.6} parent=50 // pred_check
          %p456 = pneg %p73
        $region53: #{texture_generator_forward.6} parent=50 // pred_check_branch
          %458 = sbr.rel (%p456) target = $region55
        $region54: #{texture_generator_forward.6} parent=50 // pred_region
          _
        $region55: #{texture_generator_forward.6} parent=50 // pred_fallthru
          _
        %s459 = smul.u32 16, %s18
        %p460 = scmp.lt.s32.totalorder %s459, 15
        %s461 = scalar_select %p460, %s459, 15
        %s462 = smul.addr %s461, 2
        %s463 = smul.addr %s462, 4
        %s464 = scalar_lea.vmem %s0, %s463
        %p465 = pneg %p47
        %p466 = pneg %p44
        %s467 = sand.u32 %s60, 1
        %s468 = sand.u32 %s60, 1
        %s469 = smul.addr %s468, 1024
        %s470 = scalar_lea.vmem [#allocation2], %s469
        %p471 = pneg %p73
        %p472 = pneg %p70
        %s473 = smul.u32 8, %s19
        %p474 = scmp.lt.s32.totalorder %s473, 15
        %s475 = scalar_select %p474, %s473, 15
        %s476 = scalar_lea.vmem %s2, %s475
        %p477 = pneg %p99
        %p478 = pneg %p96
        %p479 = pneg %p127
        %p480 = pneg %p124
        %s481 = sand.u32 %s114, 1
        %s482 = sand.u32 %s114, 1
        %s483 = smul.addr %s482, 512
        %s484 = scalar_lea.vmem [#allocation3], %s483
        %s485 = smul.u32 16, %s18
        %p486 = scmp.lt.s32.totalorder %s485, 15
        %s487 = scalar_select %p486, %s485, 15
        %s488 = smul.addr %s487, 2
        %s489 = smul.addr %s488, 4
        %s490 = scalar_lea.vmem %s0, %s489
        %s491 = smul.u32 16, %s18
        %s492 = smul.u32 8, %s19
        %s493 = smul.u32 8, %s19
        %p494 = scmp.lt.s32.totalorder %s493, 15
        %s495 = scalar_select %p494, %s493, 15
        %s496 = scalar_lea.vmem %s2, %s495
        %s497 = smul.u32 8, %s19
        %s498 = smul.u32 16, %s18
        %s499 = smul.u32 8, %s19
        %v500 = vld [vmem:[%s490] sm:$0xff]
        %v501 = vld [vmem:[%s490 + $0x8] sm:$0xff]
        %v502 = vld [vmem:[%s490 + $0x10] sm:$0xff]
        %v503 = vld [vmem:[%s490 + $0x18] sm:$0xff]
        %v504 = vld [vmem:[%s490 + $0x20] sm:$0xff]
        %v505 = vld [vmem:[%s490 + $0x28] sm:$0xff]
        %v506 = vld [vmem:[%s490 + $0x30] sm:$0xff]
        %v507 = vld [vmem:[%s490 + $0x38] sm:$0xff]
        %v508 = vld [vmem:[%s490 + $0x40] sm:$0xff]
        %v509 = vld [vmem:[%s490 + $0x48] sm:$0xff]
        %v510 = vld [vmem:[%s490 + $0x50] sm:$0xff]
        %v511 = vld [vmem:[%s490 + $0x58] sm:$0xff]
        %v512 = vld [vmem:[%s490 + $0x60] sm:$0xff]
        %v513 = vld [vmem:[%s490 + $0x68] sm:$0xff]
        %v514 = vld [vmem:[%s490 + $0x70] sm:$0xff]
        %v515 = vld [vmem:[%s490 + $0x78] sm:$0xff]
        %v516 = vld [vmem:[%s455] sm:$0xff]
        %v517 = vld [vmem:[%s455 + $0x8] sm:$0xff]
        %v518 = vld [vmem:[%s455 + $0x10] sm:$0xff]
        %v519 = vld [vmem:[%s455 + $0x18] sm:$0xff]
        %v520 = vld [vmem:[%s455 + $0x20] sm:$0xff]
        %v521 = vld [vmem:[%s455 + $0x28] sm:$0xff]
        %v522 = vld [vmem:[%s455 + $0x30] sm:$0xff]
        %v523 = vld [vmem:[%s455 + $0x38] sm:$0xff]
        %v524 = vld [vmem:[%s455 + $0x40] sm:$0xff]
        %v525 = vld [vmem:[%s455 + $0x48] sm:$0xff]
        %v526 = vld [vmem:[%s455 + $0x50] sm:$0xff]
        %v527 = vld [vmem:[%s455 + $0x58] sm:$0xff]
        %v528 = vld [vmem:[%s455 + $0x60] sm:$0xff]
        %v529 = vld [vmem:[%s455 + $0x68] sm:$0xff]
        %v530 = vld [vmem:[%s455 + $0x70] sm:$0xff]
        %v531 = vld [vmem:[%s455 + $0x78] sm:$0xff]
        %v532 = vld [vmem:[%s455 + $0x80] sm:$0xff]
        %v533 = vld [vmem:[%s455 + $0x88] sm:$0xff]
        %v534 = vld [vmem:[%s455 + $0x90] sm:$0xff]
        %v535 = vld [vmem:[%s455 + $0x98] sm:$0xff]
        %v536 = vld [vmem:[%s455 + $0xa0] sm:$0xff]
        %v537 = vld [vmem:[%s455 + $0xa8] sm:$0xff]
        %v538 = vld [vmem:[%s455 + $0xb0] sm:$0xff]
        %v539 = vld [vmem:[%s455 + $0xb8] sm:$0xff]
        %v540 = vld [vmem:[%s455 + $0xc0] sm:$0xff]
        %v541 = vld [vmem:[%s455 + $0xc8] sm:$0xff]
        %v542 = vld [vmem:[%s455 + $0xd0] sm:$0xff]
        %v543 = vld [vmem:[%s455 + $0xd8] sm:$0xff]
        %v544 = vld [vmem:[%s455 + $0xe0] sm:$0xff]
        %v545 = vld [vmem:[%s455 + $0xe8] sm:$0xff]
        %v546 = vld [vmem:[%s455 + $0xf0] sm:$0xff]
        %v547 = vld [vmem:[%s455 + $0xf8] sm:$0xff]
        %v548 = vld [vmem:[%s455 + $0x100] sm:$0xff]
        %v549 = vld [vmem:[%s455 + $0x108] sm:$0xff]
        %v550 = vld [vmem:[%s455 + $0x110] sm:$0xff]
        %v551 = vld [vmem:[%s455 + $0x118] sm:$0xff]
        %v552 = vld [vmem:[%s455 + $0x120] sm:$0xff]
        %v553 = vld [vmem:[%s455 + $0x128] sm:$0xff]
        %v554 = vld [vmem:[%s455 + $0x130] sm:$0xff]
        %v555 = vld [vmem:[%s455 + $0x138] sm:$0xff]
        %v556 = vld [vmem:[%s455 + $0x140] sm:$0xff]
        %v557 = vld [vmem:[%s455 + $0x148] sm:$0xff]
        %v558 = vld [vmem:[%s455 + $0x150] sm:$0xff]
        %v559 = vld [vmem:[%s455 + $0x158] sm:$0xff]
        %v560 = vld [vmem:[%s455 + $0x160] sm:$0xff]
        %v561 = vld [vmem:[%s455 + $0x168] sm:$0xff]
        %v562 = vld [vmem:[%s455 + $0x170] sm:$0xff]
        %v563 = vld [vmem:[%s455 + $0x178] sm:$0xff]
        %v564 = vld [vmem:[%s455 + $0x180] sm:$0xff]
        %v565 = vld [vmem:[%s455 + $0x188] sm:$0xff]
        %v566 = vld [vmem:[%s455 + $0x190] sm:$0xff]
        %v567 = vld [vmem:[%s455 + $0x198] sm:$0xff]
        %v568 = vld [vmem:[%s455 + $0x1a0] sm:$0xff]
        %v569 = vld [vmem:[%s455 + $0x1a8] sm:$0xff]
        %v570 = vld [vmem:[%s455 + $0x1b0] sm:$0xff]
        %v571 = vld [vmem:[%s455 + $0x1b8] sm:$0xff]
        %v572 = vld [vmem:[%s455 + $0x1c0] sm:$0xff]
        %v573 = vld [vmem:[%s455 + $0x1c8] sm:$0xff]
        %v574 = vld [vmem:[%s455 + $0x1d0] sm:$0xff]
        %v575 = vld [vmem:[%s455 + $0x1d8] sm:$0xff]
        %v576 = vld [vmem:[%s455 + $0x1e0] sm:$0xff]
        %v577 = vld [vmem:[%s455 + $0x1e8] sm:$0xff]
        %v578 = vld [vmem:[%s455 + $0x1f0] sm:$0xff]
        %v579 = vld [vmem:[%s455 + $0x1f8] sm:$0xff]
        %v580 = vld [vmem:[%s455 + $0x200] sm:$0xff]
        %v581 = vld [vmem:[%s455 + $0x208] sm:$0xff]
        %v582 = vld [vmem:[%s455 + $0x210] sm:$0xff]
        %v583 = vld [vmem:[%s455 + $0x218] sm:$0xff]
        %v584 = vld [vmem:[%s455 + $0x220] sm:$0xff]
        %v585 = vld [vmem:[%s455 + $0x228] sm:$0xff]
        %v586 = vld [vmem:[%s455 + $0x230] sm:$0xff]
        %v587 = vld [vmem:[%s455 + $0x238] sm:$0xff]
        %v588 = vld [vmem:[%s455 + $0x240] sm:$0xff]
        %v589 = vld [vmem:[%s455 + $0x248] sm:$0xff]
        %v590 = vld [vmem:[%s455 + $0x250] sm:$0xff]
        %v591 = vld [vmem:[%s455 + $0x258] sm:$0xff]
        %v592 = vld [vmem:[%s455 + $0x260] sm:$0xff]
        %v593 = vld [vmem:[%s455 + $0x268] sm:$0xff]
        %v594 = vld [vmem:[%s455 + $0x270] sm:$0xff]
        %v595 = vld [vmem:[%s455 + $0x278] sm:$0xff]
        %v596 = vld [vmem:[%s455 + $0x280] sm:$0xff]
        %v597 = vld [vmem:[%s455 + $0x288] sm:$0xff]
        %v598 = vld [vmem:[%s455 + $0x290] sm:$0xff]
        %v599 = vld [vmem:[%s455 + $0x298] sm:$0xff]
        %v600 = vld [vmem:[%s455 + $0x2a0] sm:$0xff]
        %v601 = vld [vmem:[%s455 + $0x2a8] sm:$0xff]
        %v602 = vld [vmem:[%s455 + $0x2b0] sm:$0xff]
        %v603 = vld [vmem:[%s455 + $0x2b8] sm:$0xff]
        %v604 = vld [vmem:[%s455 + $0x2c0] sm:$0xff]
        %v605 = vld [vmem:[%s455 + $0x2c8] sm:$0xff]
        %v606 = vld [vmem:[%s455 + $0x2d0] sm:$0xff]
        %v607 = vld [vmem:[%s455 + $0x2d8] sm:$0xff]
        %v608 = vld [vmem:[%s455 + $0x2e0] sm:$0xff]
        %v609 = vld [vmem:[%s455 + $0x2e8] sm:$0xff]
        %v610 = vld [vmem:[%s455 + $0x2f0] sm:$0xff]
        %v611 = vld [vmem:[%s455 + $0x2f8] sm:$0xff]
        %v612 = vld [vmem:[%s455 + $0x300] sm:$0xff]
        %v613 = vld [vmem:[%s455 + $0x308] sm:$0xff]
        %v614 = vld [vmem:[%s455 + $0x310] sm:$0xff]
        %v615 = vld [vmem:[%s455 + $0x318] sm:$0xff]
        %v616 = vld [vmem:[%s455 + $0x320] sm:$0xff]
        %v617 = vld [vmem:[%s455 + $0x328] sm:$0xff]
        %v618 = vld [vmem:[%s455 + $0x330] sm:$0xff]
        %v619 = vld [vmem:[%s455 + $0x338] sm:$0xff]
        %v620 = vld [vmem:[%s455 + $0x340] sm:$0xff]
        %v621 = vld [vmem:[%s455 + $0x348] sm:$0xff]
        %v622 = vld [vmem:[%s455 + $0x350] sm:$0xff]
        %v623 = vld [vmem:[%s455 + $0x358] sm:$0xff]
        %v624 = vld [vmem:[%s455 + $0x360] sm:$0xff]
        %v625 = vld [vmem:[%s455 + $0x368] sm:$0xff]
        %v626 = vld [vmem:[%s455 + $0x370] sm:$0xff]
        %v627 = vld [vmem:[%s455 + $0x378] sm:$0xff]
        %v628 = vld [vmem:[%s455 + $0x380] sm:$0xff]
        %v629 = vld [vmem:[%s455 + $0x388] sm:$0xff]
        %v630 = vld [vmem:[%s455 + $0x390] sm:$0xff]
        %v631 = vld [vmem:[%s455 + $0x398] sm:$0xff]
        %v632 = vld [vmem:[%s455 + $0x3a0] sm:$0xff]
        %v633 = vld [vmem:[%s455 + $0x3a8] sm:$0xff]
        %v634 = vld [vmem:[%s455 + $0x3b0] sm:$0xff]
        %v635 = vld [vmem:[%s455 + $0x3b8] sm:$0xff]
        %v636 = vld [vmem:[%s455 + $0x3c0] sm:$0xff]
        %v637 = vld [vmem:[%s455 + $0x3c8] sm:$0xff]
        %v638 = vld [vmem:[%s455 + $0x3d0] sm:$0xff]
        %v639 = vld [vmem:[%s455 + $0x3d8] sm:$0xff]
        %v640 = vld [vmem:[%s455 + $0x3e0] sm:$0xff]
        %v641 = vld [vmem:[%s455 + $0x3e8] sm:$0xff]
        %v642 = vld [vmem:[%s455 + $0x3f0] sm:$0xff]
        %v643 = vld [vmem:[%s455 + $0x3f8] sm:$0xff]
        %v644 = vld [vmem:[%s496] sm:$0xff]
        %v646 = vlaneseq
        %v647 = vshrl.u32 %v646, 7
        %v648 = vsub.s32 0, %v647
        %v649 = vrot.slane %v644, %v648
        %v650 = vlaneseq
        %v651 = vshrl.u32 %v650, 7
        %v652 = vsub.s32 1, %v651
        %v653 = vrot.slane %v644, %v652
        %v654 = vlaneseq
        %v655 = vshrl.u32 %v654, 7
        %v656 = vsub.s32 2, %v655
        %v657 = vrot.slane %v644, %v656
        %v658 = vlaneseq
        %v659 = vshrl.u32 %v658, 7
        %v660 = vsub.s32 3, %v659
        %v661 = vrot.slane %v644, %v660
        %v662 = vlaneseq
        %v663 = vshrl.u32 %v662, 7
        %v664 = vsub.s32 4, %v663
        %v665 = vrot.slane %v644, %v664
        %v666 = vlaneseq
        %v667 = vshrl.u32 %v666, 7
        %v668 = vsub.s32 5, %v667
        %v669 = vrot.slane %v644, %v668
        %v670 = vlaneseq
        %v671 = vshrl.u32 %v670, 7
        %v672 = vsub.s32 6, %v671
        %v673 = vrot.slane %v644, %v672
        %v674 = vlaneseq
        %v675 = vshrl.u32 %v674, 7
        %v676 = vsub.s32 7, %v675
        %v677 = vrot.slane %v644, %v676
        %v702 = vunpack.c.l.b16 %v500
        %v703 = vunpack.c.h.b16 %v500
        %v704 = vunpack.c.l.b16 %v501
        %v705 = vunpack.c.h.b16 %v501
        %v706 = vunpack.c.l.b16 %v502
        %v707 = vunpack.c.h.b16 %v502
        %v708 = vunpack.c.l.b16 %v503
        %v709 = vunpack.c.h.b16 %v503
        %v710 = vunpack.c.l.b16 %v504
        %v711 = vunpack.c.h.b16 %v504
        %v712 = vunpack.c.l.b16 %v505
        %v713 = vunpack.c.h.b16 %v505
        %v714 = vunpack.c.l.b16 %v506
        %v715 = vunpack.c.h.b16 %v506
        %v716 = vunpack.c.l.b16 %v507
        %v717 = vunpack.c.h.b16 %v507
        %v718 = vunpack.c.l.b16 %v508
        %v719 = vunpack.c.h.b16 %v508
        %v720 = vunpack.c.l.b16 %v509
        %v721 = vunpack.c.h.b16 %v509
        %v722 = vunpack.c.l.b16 %v510
        %v723 = vunpack.c.h.b16 %v510
        %v724 = vunpack.c.l.b16 %v511
        %v725 = vunpack.c.h.b16 %v511
        %v726 = vunpack.c.l.b16 %v512
        %v727 = vunpack.c.h.b16 %v512
        %v728 = vunpack.c.l.b16 %v513
        %v729 = vunpack.c.h.b16 %v513
        %v730 = vunpack.c.l.b16 %v514
        %v731 = vunpack.c.h.b16 %v514
        %v732 = vunpack.c.l.b16 %v515
        %v733 = vunpack.c.h.b16 %v515
        %v734 = vpack.c.b16 %v704, %v702
        %v735 = vpack.c.b16 %v705, %v703
        %v736 = vpack.c.b16 %v708, %v706
        %v737 = vpack.c.b16 %v709, %v707
        %v738 = vpack.c.b16 %v712, %v710
        %v739 = vpack.c.b16 %v713, %v711
        %v740 = vpack.c.b16 %v716, %v714
        %v741 = vpack.c.b16 %v717, %v715
        %v742 = vpack.c.b16 %v720, %v718
        %v743 = vpack.c.b16 %v721, %v719
        %v744 = vpack.c.b16 %v724, %v722
        %v745 = vpack.c.b16 %v725, %v723
        %v746 = vpack.c.b16 %v728, %v726
        %v747 = vpack.c.b16 %v729, %v727
        %v748 = vpack.c.b16 %v732, %v730
        %v749 = vpack.c.b16 %v733, %v731
        %v894 = vunpack.c.l.b16 %v516
        %v895 = vunpack.c.h.b16 %v516
        %v896 = vunpack.c.l.b16 %v517
        %v897 = vunpack.c.h.b16 %v517
        %v898 = vunpack.c.l.b16 %v518
        %v899 = vunpack.c.h.b16 %v518
        %v900 = vunpack.c.l.b16 %v519
        %v901 = vunpack.c.h.b16 %v519
        %v902 = vunpack.c.l.b16 %v520
        %v903 = vunpack.c.h.b16 %v520
        %v904 = vunpack.c.l.b16 %v521
        %v905 = vunpack.c.h.b16 %v521
        %v906 = vunpack.c.l.b16 %v522
        %v907 = vunpack.c.h.b16 %v522
        %v908 = vunpack.c.l.b16 %v523
        %v909 = vunpack.c.h.b16 %v523
        %v910 = vunpack.c.l.b16 %v524
        %v911 = vunpack.c.h.b16 %v524
        %v912 = vunpack.c.l.b16 %v525
        %v913 = vunpack.c.h.b16 %v525
        %v914 = vunpack.c.l.b16 %v526
        %v915 = vunpack.c.h.b16 %v526
        %v916 = vunpack.c.l.b16 %v527
        %v917 = vunpack.c.h.b16 %v527
        %v918 = vunpack.c.l.b16 %v528
        %v919 = vunpack.c.h.b16 %v528
        %v920 = vunpack.c.l.b16 %v529
        %v921 = vunpack.c.h.b16 %v529
        %v922 = vunpack.c.l.b16 %v530
        %v923 = vunpack.c.h.b16 %v530
        %v924 = vunpack.c.l.b16 %v531
        %v925 = vunpack.c.h.b16 %v531
        %v926 = vunpack.c.l.b16 %v532
        %v927 = vunpack.c.h.b16 %v532
        %v928 = vunpack.c.l.b16 %v533
        %v929 = vunpack.c.h.b16 %v533
        %v930 = vunpack.c.l.b16 %v534
        %v931 = vunpack.c.h.b16 %v534
        %v932 = vunpack.c.l.b16 %v535
        %v933 = vunpack.c.h.b16 %v535
        %v934 = vunpack.c.l.b16 %v536
        %v935 = vunpack.c.h.b16 %v536
        %v936 = vunpack.c.l.b16 %v537
        %v937 = vunpack.c.h.b16 %v537
        %v938 = vunpack.c.l.b16 %v538
        %v939 = vunpack.c.h.b16 %v538
        %v940 = vunpack.c.l.b16 %v539
        %v941 = vunpack.c.h.b16 %v539
        %v942 = vunpack.c.l.b16 %v540
        %v943 = vunpack.c.h.b16 %v540
        %v944 = vunpack.c.l.b16 %v541
        %v945 = vunpack.c.h.b16 %v541
        %v946 = vunpack.c.l.b16 %v542
        %v947 = vunpack.c.h.b16 %v542
        %v948 = vunpack.c.l.b16 %v543
        %v949 = vunpack.c.h.b16 %v543
        %v950 = vunpack.c.l.b16 %v544
        %v951 = vunpack.c.h.b16 %v544
        %v952 = vunpack.c.l.b16 %v545
        %v953 = vunpack.c.h.b16 %v545
        %v954 = vunpack.c.l.b16 %v546
        %v955 = vunpack.c.h.b16 %v546
        %v956 = vunpack.c.l.b16 %v547
        %v957 = vunpack.c.h.b16 %v547
        %v958 = vunpack.c.l.b16 %v548
        %v959 = vunpack.c.h.b16 %v548
        %v960 = vunpack.c.l.b16 %v549
        %v961 = vunpack.c.h.b16 %v549
        %v962 = vunpack.c.l.b16 %v550
        %v963 = vunpack.c.h.b16 %v550
        %v964 = vunpack.c.l.b16 %v551
        %v965 = vunpack.c.h.b16 %v551
        %v966 = vunpack.c.l.b16 %v552
        %v967 = vunpack.c.h.b16 %v552
        %v968 = vunpack.c.l.b16 %v553
        %v969 = vunpack.c.h.b16 %v553
        %v970 = vunpack.c.l.b16 %v554
        %v971 = vunpack.c.h.b16 %v554
        %v972 = vunpack.c.l.b16 %v555
        %v973 = vunpack.c.h.b16 %v555
        %v974 = vunpack.c.l.b16 %v556
        %v975 = vunpack.c.h.b16 %v556
        %v976 = vunpack.c.l.b16 %v557
        %v977 = vunpack.c.h.b16 %v557
        %v978 = vunpack.c.l.b16 %v558
        %v979 = vunpack.c.h.b16 %v558
        %v980 = vunpack.c.l.b16 %v559
        %v981 = vunpack.c.h.b16 %v559
        %v982 = vunpack.c.l.b16 %v560
        %v983 = vunpack.c.h.b16 %v560
        %v984 = vunpack.c.l.b16 %v561
        %v985 = vunpack.c.h.b16 %v561
        %v986 = vunpack.c.l.b16 %v562
        %v987 = vunpack.c.h.b16 %v562
        %v988 = vunpack.c.l.b16 %v563
        %v989 = vunpack.c.h.b16 %v563
        %v990 = vunpack.c.l.b16 %v564
        %v991 = vunpack.c.h.b16 %v564
        %v992 = vunpack.c.l.b16 %v565
        %v993 = vunpack.c.h.b16 %v565
        %v994 = vunpack.c.l.b16 %v566
        %v995 = vunpack.c.h.b16 %v566
        %v996 = vunpack.c.l.b16 %v567
        %v997 = vunpack.c.h.b16 %v567
        %v998 = vunpack.c.l.b16 %v568
        %v999 = vunpack.c.h.b16 %v568
        %v1000 = vunpack.c.l.b16 %v569
        %v1001 = vunpack.c.h.b16 %v569
        %v1002 = vunpack.c.l.b16 %v570
        %v1003 = vunpack.c.h.b16 %v570
        %v1004 = vunpack.c.l.b16 %v571
        %v1005 = vunpack.c.h.b16 %v571
        %v1006 = vunpack.c.l.b16 %v572
        %v1007 = vunpack.c.h.b16 %v572
        %v1008 = vunpack.c.l.b16 %v573
        %v1009 = vunpack.c.h.b16 %v573
        %v1010 = vunpack.c.l.b16 %v574
        %v1011 = vunpack.c.h.b16 %v574
        %v1012 = vunpack.c.l.b16 %v575
        %v1013 = vunpack.c.h.b16 %v575
        %v1014 = vunpack.c.l.b16 %v576
        %v1015 = vunpack.c.h.b16 %v576
        %v1016 = vunpack.c.l.b16 %v577
        %v1017 = vunpack.c.h.b16 %v577
        %v1018 = vunpack.c.l.b16 %v578
        %v1019 = vunpack.c.h.b16 %v578
        %v1020 = vunpack.c.l.b16 %v579
        %v1021 = vunpack.c.h.b16 %v579
        %v1022 = vunpack.c.l.b16 %v580
        %v1023 = vunpack.c.h.b16 %v580
        %v1024 = vunpack.c.l.b16 %v581
        %v1025 = vunpack.c.h.b16 %v581
        %v1026 = vunpack.c.l.b16 %v582
        %v1027 = vunpack.c.h.b16 %v582
        %v1028 = vunpack.c.l.b16 %v583
        %v1029 = vunpack.c.h.b16 %v583
        %v1030 = vunpack.c.l.b16 %v584
        %v1031 = vunpack.c.h.b16 %v584
        %v1032 = vunpack.c.l.b16 %v585
        %v1033 = vunpack.c.h.b16 %v585
        %v1034 = vunpack.c.l.b16 %v586
        %v1035 = vunpack.c.h.b16 %v586
        %v1036 = vunpack.c.l.b16 %v587
        %v1037 = vunpack.c.h.b16 %v587
        %v1038 = vunpack.c.l.b16 %v588
        %v1039 = vunpack.c.h.b16 %v588
        %v1040 = vunpack.c.l.b16 %v589
        %v1041 = vunpack.c.h.b16 %v589
        %v1042 = vunpack.c.l.b16 %v590
        %v1043 = vunpack.c.h.b16 %v590
        %v1044 = vunpack.c.l.b16 %v591
        %v1045 = vunpack.c.h.b16 %v591
        %v1046 = vunpack.c.l.b16 %v592
        %v1047 = vunpack.c.h.b16 %v592
        %v1048 = vunpack.c.l.b16 %v593
        %v1049 = vunpack.c.h.b16 %v593
        %v1050 = vunpack.c.l.b16 %v594
        %v1051 = vunpack.c.h.b16 %v594
        %v1052 = vunpack.c.l.b16 %v595
        %v1053 = vunpack.c.h.b16 %v595
        %v1054 = vunpack.c.l.b16 %v596
        %v1055 = vunpack.c.h.b16 %v596
        %v1056 = vunpack.c.l.b16 %v597
        %v1057 = vunpack.c.h.b16 %v597
        %v1058 = vunpack.c.l.b16 %v598
        %v1059 = vunpack.c.h.b16 %v598
        %v1060 = vunpack.c.l.b16 %v599
        %v1061 = vunpack.c.h.b16 %v599
        %v1062 = vunpack.c.l.b16 %v600
        %v1063 = vunpack.c.h.b16 %v600
        %v1064 = vunpack.c.l.b16 %v601
        %v1065 = vunpack.c.h.b16 %v601
        %v1066 = vunpack.c.l.b16 %v602
        %v1067 = vunpack.c.h.b16 %v602
        %v1068 = vunpack.c.l.b16 %v603
        %v1069 = vunpack.c.h.b16 %v603
        %v1070 = vunpack.c.l.b16 %v604
        %v1071 = vunpack.c.h.b16 %v604
        %v1072 = vunpack.c.l.b16 %v605
        %v1073 = vunpack.c.h.b16 %v605
        %v1074 = vunpack.c.l.b16 %v606
        %v1075 = vunpack.c.h.b16 %v606
        %v1076 = vunpack.c.l.b16 %v607
        %v1077 = vunpack.c.h.b16 %v607
        %v1078 = vunpack.c.l.b16 %v608
        %v1079 = vunpack.c.h.b16 %v608
        %v1080 = vunpack.c.l.b16 %v609
        %v1081 = vunpack.c.h.b16 %v609
        %v1082 = vunpack.c.l.b16 %v610
        %v1083 = vunpack.c.h.b16 %v610
        %v1084 = vunpack.c.l.b16 %v611
        %v1085 = vunpack.c.h.b16 %v611
        %v1086 = vunpack.c.l.b16 %v612
        %v1087 = vunpack.c.h.b16 %v612
        %v1088 = vunpack.c.l.b16 %v613
        %v1089 = vunpack.c.h.b16 %v613
        %v1090 = vunpack.c.l.b16 %v614
        %v1091 = vunpack.c.h.b16 %v614
        %v1092 = vunpack.c.l.b16 %v615
        %v1093 = vunpack.c.h.b16 %v615
        %v1094 = vunpack.c.l.b16 %v616
        %v1095 = vunpack.c.h.b16 %v616
        %v1096 = vunpack.c.l.b16 %v617
        %v1097 = vunpack.c.h.b16 %v617
        %v1098 = vunpack.c.l.b16 %v618
        %v1099 = vunpack.c.h.b16 %v618
        %v1100 = vunpack.c.l.b16 %v619
        %v1101 = vunpack.c.h.b16 %v619
        %v1102 = vunpack.c.l.b16 %v620
        %v1103 = vunpack.c.h.b16 %v620
        %v1104 = vunpack.c.l.b16 %v621
        %v1105 = vunpack.c.h.b16 %v621
        %v1106 = vunpack.c.l.b16 %v622
        %v1107 = vunpack.c.h.b16 %v622
        %v1108 = vunpack.c.l.b16 %v623
        %v1109 = vunpack.c.h.b16 %v623
        %v1110 = vunpack.c.l.b16 %v624
        %v1111 = vunpack.c.h.b16 %v624
        %v1112 = vunpack.c.l.b16 %v625
        %v1113 = vunpack.c.h.b16 %v625
        %v1114 = vunpack.c.l.b16 %v626
        %v1115 = vunpack.c.h.b16 %v626
        %v1116 = vunpack.c.l.b16 %v627
        %v1117 = vunpack.c.h.b16 %v627
        %v1118 = vunpack.c.l.b16 %v628
        %v1119 = vunpack.c.h.b16 %v628
        %v1120 = vunpack.c.l.b16 %v629
        %v1121 = vunpack.c.h.b16 %v629
        %v1122 = vunpack.c.l.b16 %v630
        %v1123 = vunpack.c.h.b16 %v630
        %v1124 = vunpack.c.l.b16 %v631
        %v1125 = vunpack.c.h.b16 %v631
        %v1126 = vunpack.c.l.b16 %v632
        %v1127 = vunpack.c.h.b16 %v632
        %v1128 = vunpack.c.l.b16 %v633
        %v1129 = vunpack.c.h.b16 %v633
        %v1130 = vunpack.c.l.b16 %v634
        %v1131 = vunpack.c.h.b16 %v634
        %v1132 = vunpack.c.l.b16 %v635
        %v1133 = vunpack.c.h.b16 %v635
        %v1134 = vunpack.c.l.b16 %v636
        %v1135 = vunpack.c.h.b16 %v636
        %v1136 = vunpack.c.l.b16 %v637
        %v1137 = vunpack.c.h.b16 %v637
        %v1138 = vunpack.c.l.b16 %v638
        %v1139 = vunpack.c.h.b16 %v638
        %v1140 = vunpack.c.l.b16 %v639
        %v1141 = vunpack.c.h.b16 %v639
        %v1142 = vunpack.c.l.b16 %v640
        %v1143 = vunpack.c.h.b16 %v640
        %v1144 = vunpack.c.l.b16 %v641
        %v1145 = vunpack.c.h.b16 %v641
        %v1146 = vunpack.c.l.b16 %v642
        %v1147 = vunpack.c.h.b16 %v642
        %v1148 = vunpack.c.l.b16 %v643
        %v1149 = vunpack.c.h.b16 %v643
        %v1150 = vpack.c.b16 %v902, %v894
        %v1151 = vpack.c.b16 %v903, %v895
        %v1152 = vpack.c.b16 %v904, %v896
        %v1153 = vpack.c.b16 %v905, %v897
        %v1154 = vpack.c.b16 %v906, %v898
        %v1155 = vpack.c.b16 %v907, %v899
        %v1156 = vpack.c.b16 %v908, %v900
        %v1157 = vpack.c.b16 %v909, %v901
        %v1158 = vpack.c.b16 %v918, %v910
        %v1159 = vpack.c.b16 %v919, %v911
        %v1160 = vpack.c.b16 %v920, %v912
        %v1161 = vpack.c.b16 %v921, %v913
        %v1162 = vpack.c.b16 %v922, %v914
        %v1163 = vpack.c.b16 %v923, %v915
        %v1164 = vpack.c.b16 %v924, %v916
        %v1165 = vpack.c.b16 %v925, %v917
        %v1166 = vpack.c.b16 %v934, %v926
        %v1167 = vpack.c.b16 %v935, %v927
        %v1168 = vpack.c.b16 %v936, %v928
        %v1169 = vpack.c.b16 %v937, %v929
        %v1170 = vpack.c.b16 %v938, %v930
        %v1171 = vpack.c.b16 %v939, %v931
        %v1172 = vpack.c.b16 %v940, %v932
        %v1173 = vpack.c.b16 %v941, %v933
        %v1174 = vpack.c.b16 %v950, %v942
        %v1175 = vpack.c.b16 %v951, %v943
        %v1176 = vpack.c.b16 %v952, %v944
        %v1177 = vpack.c.b16 %v953, %v945
        %v1178 = vpack.c.b16 %v954, %v946
        %v1179 = vpack.c.b16 %v955, %v947
        %v1180 = vpack.c.b16 %v956, %v948
        %v1181 = vpack.c.b16 %v957, %v949
        %v1182 = vpack.c.b16 %v966, %v958
        %v1183 = vpack.c.b16 %v967, %v959
        %v1184 = vpack.c.b16 %v968, %v960
        %v1185 = vpack.c.b16 %v969, %v961
        %v1186 = vpack.c.b16 %v970, %v962
        %v1187 = vpack.c.b16 %v971, %v963
        %v1188 = vpack.c.b16 %v972, %v964
        %v1189 = vpack.c.b16 %v973, %v965
        %v1190 = vpack.c.b16 %v982, %v974
        %v1191 = vpack.c.b16 %v983, %v975
        %v1192 = vpack.c.b16 %v984, %v976
        %v1193 = vpack.c.b16 %v985, %v977
        %v1194 = vpack.c.b16 %v986, %v978
        %v1195 = vpack.c.b16 %v987, %v979
        %v1196 = vpack.c.b16 %v988, %v980
        %v1197 = vpack.c.b16 %v989, %v981
        %v1198 = vpack.c.b16 %v998, %v990
        %v1199 = vpack.c.b16 %v999, %v991
        %v1200 = vpack.c.b16 %v1000, %v992
        %v1201 = vpack.c.b16 %v1001, %v993
        %v1202 = vpack.c.b16 %v1002, %v994
        %v1203 = vpack.c.b16 %v1003, %v995
        %v1204 = vpack.c.b16 %v1004, %v996
        %v1205 = vpack.c.b16 %v1005, %v997
        %v1206 = vpack.c.b16 %v1014, %v1006
        %v1207 = vpack.c.b16 %v1015, %v1007
        %v1208 = vpack.c.b16 %v1016, %v1008
        %v1209 = vpack.c.b16 %v1017, %v1009
        %v1210 = vpack.c.b16 %v1018, %v1010
        %v1211 = vpack.c.b16 %v1019, %v1011
        %v1212 = vpack.c.b16 %v1020, %v1012
        %v1213 = vpack.c.b16 %v1021, %v1013
        %v1214 = vpack.c.b16 %v1030, %v1022
        %v1215 = vpack.c.b16 %v1031, %v1023
        %v1216 = vpack.c.b16 %v1032, %v1024
        %v1217 = vpack.c.b16 %v1033, %v1025
        %v1218 = vpack.c.b16 %v1034, %v1026
        %v1219 = vpack.c.b16 %v1035, %v1027
        %v1220 = vpack.c.b16 %v1036, %v1028
        %v1221 = vpack.c.b16 %v1037, %v1029
        %v1222 = vpack.c.b16 %v1046, %v1038
        %v1223 = vpack.c.b16 %v1047, %v1039
        %v1224 = vpack.c.b16 %v1048, %v1040
        %v1225 = vpack.c.b16 %v1049, %v1041
        %v1226 = vpack.c.b16 %v1050, %v1042
        %v1227 = vpack.c.b16 %v1051, %v1043
        %v1228 = vpack.c.b16 %v1052, %v1044
        %v1229 = vpack.c.b16 %v1053, %v1045
        %v1230 = vpack.c.b16 %v1062, %v1054
        %v1231 = vpack.c.b16 %v1063, %v1055
        %v1232 = vpack.c.b16 %v1064, %v1056
        %v1233 = vpack.c.b16 %v1065, %v1057
        %v1234 = vpack.c.b16 %v1066, %v1058
        %v1235 = vpack.c.b16 %v1067, %v1059
        %v1236 = vpack.c.b16 %v1068, %v1060
        %v1237 = vpack.c.b16 %v1069, %v1061
        %v1238 = vpack.c.b16 %v1078, %v1070
        %v1239 = vpack.c.b16 %v1079, %v1071
        %v1240 = vpack.c.b16 %v1080, %v1072
        %v1241 = vpack.c.b16 %v1081, %v1073
        %v1242 = vpack.c.b16 %v1082, %v1074
        %v1243 = vpack.c.b16 %v1083, %v1075
        %v1244 = vpack.c.b16 %v1084, %v1076
        %v1245 = vpack.c.b16 %v1085, %v1077
        %v1246 = vpack.c.b16 %v1094, %v1086
        %v1247 = vpack.c.b16 %v1095, %v1087
        %v1248 = vpack.c.b16 %v1096, %v1088
        %v1249 = vpack.c.b16 %v1097, %v1089
        %v1250 = vpack.c.b16 %v1098, %v1090
        %v1251 = vpack.c.b16 %v1099, %v1091
        %v1252 = vpack.c.b16 %v1100, %v1092
        %v1253 = vpack.c.b16 %v1101, %v1093
        %v1254 = vpack.c.b16 %v1110, %v1102
        %v1255 = vpack.c.b16 %v1111, %v1103
        %v1256 = vpack.c.b16 %v1112, %v1104
        %v1257 = vpack.c.b16 %v1113, %v1105
        %v1258 = vpack.c.b16 %v1114, %v1106
        %v1259 = vpack.c.b16 %v1115, %v1107
        %v1260 = vpack.c.b16 %v1116, %v1108
        %v1261 = vpack.c.b16 %v1117, %v1109
        %v1262 = vpack.c.b16 %v1126, %v1118
        %v1263 = vpack.c.b16 %v1127, %v1119
        %v1264 = vpack.c.b16 %v1128, %v1120
        %v1265 = vpack.c.b16 %v1129, %v1121
        %v1266 = vpack.c.b16 %v1130, %v1122
        %v1267 = vpack.c.b16 %v1131, %v1123
        %v1268 = vpack.c.b16 %v1132, %v1124
        %v1269 = vpack.c.b16 %v1133, %v1125
        %v1270 = vpack.c.b16 %v1142, %v1134
        %v1271 = vpack.c.b16 %v1143, %v1135
        %v1272 = vpack.c.b16 %v1144, %v1136
        %v1273 = vpack.c.b16 %v1145, %v1137
        %v1274 = vpack.c.b16 %v1146, %v1138
        %v1275 = vpack.c.b16 %v1147, %v1139
        %v1276 = vpack.c.b16 %v1148, %v1140
        %v1277 = vpack.c.b16 %v1149, %v1141
        %1406 = vmatprep.subr.bf16.mxu0 %v1207
        %1407 = vmatpush1.bf16.msra.mxu0 %v1206
        %1408 = vmatprep.subr.bf16.mxu0 %v1199
        %1409 = vmatpush1.bf16.msra.mxu0 %v1198
        %1410 = vmatprep.subr.bf16.mxu0 %v1191
        %1411 = vmatpush1.bf16.msra.mxu0 %v1190
        %1412 = vmatprep.subr.bf16.mxu0 %v1183
        %1413 = vmatpush1.bf16.msra.mxu0 %v1182
        %1414 = vmatprep.subr.bf16.mxu0 %v1175
        %1415 = vmatpush1.bf16.msra.mxu0 %v1174
        %1416 = vmatprep.subr.bf16.mxu0 %v1167
        %1417 = vmatpush1.bf16.msra.mxu0 %v1166
        %1418 = vmatprep.subr.bf16.mxu0 %v1159
        %1419 = vmatpush1.bf16.msra.mxu0 %v1158
        %1420 = vmatprep.subr.bf16.mxu0 %v1151
        %1421 = vmatpush1.bf16.msra.mxu0 %v1150
        %1422 = vmatprep.subr.bf16.mxu0 %v1271
        %1423 = vmatpush2.bf16.msra.mxu0 %v1270
        %1424 = vmatprep.subr.bf16.mxu0 %v1263
        %1425 = vmatpush2.bf16.msra.mxu0 %v1262
        %1426 = vmatprep.subr.bf16.mxu0 %v1255
        %1427 = vmatpush2.bf16.msra.mxu0 %v1254
        %1428 = vmatprep.subr.bf16.mxu0 %v1247
        %1429 = vmatpush2.bf16.msra.mxu0 %v1246
        %1430 = vmatprep.subr.bf16.mxu0 %v1239
        %1431 = vmatpush2.bf16.msra.mxu0 %v1238
        %1432 = vmatprep.subr.bf16.mxu0 %v1231
        %1433 = vmatpush2.bf16.msra.mxu0 %v1230
        %1434 = vmatprep.subr.bf16.mxu0 %v1223
        %1435 = vmatpush2.bf16.msra.mxu0 %v1222
        %1436 = vmatprep.subr.bf16.mxu0 %v1215
        %1437 = vmatpush2.bf16.msra.mxu0 %v1214
        %1438 = vmatprep.mubr.bf16.mxu0 %v735
        %1439 = vmatmul.mubr.bf16.gmra.mxu0 %v734
        %v1440 = vpop.f32.mrf.mxu0
        %v1441 = vadd.f32 %v649, %v1440
        %v1442 = vpop.f32.mrf.mxu0
        %v1443 = vadd.f32 %v653, %v1442
        %v1444 = vpop.f32.mrf.mxu0
        %v1445 = vadd.f32 %v649, %v1444
        %v1446 = vpop.f32.mrf.mxu0
        %v1447 = vadd.f32 %v653, %v1446
        %1448 = vmatprep.mubr.bf16.mxu0 %v737
        %1449 = vmatmul.mubr.bf16.gmra.mxu0 %v736
        %v1450 = vpop.f32.mrf.mxu0
        %v1451 = vadd.f32 %v649, %v1450
        %v1452 = vpop.f32.mrf.mxu0
        %v1453 = vadd.f32 %v653, %v1452
        %v1454 = vpop.f32.mrf.mxu0
        %v1455 = vadd.f32 %v649, %v1454
        %v1456 = vpop.f32.mrf.mxu0
        %v1457 = vadd.f32 %v653, %v1456
        %1458 = vmatprep.mubr.bf16.mxu0 %v739
        %1459 = vmatmul.mubr.bf16.gmra.mxu0 %v738
        %v1460 = vpop.f32.mrf.mxu0
        %v1461 = vadd.f32 %v649, %v1460
        %v1462 = vpop.f32.mrf.mxu0
        %v1463 = vadd.f32 %v653, %v1462
        %v1464 = vpop.f32.mrf.mxu0
        %v1465 = vadd.f32 %v649, %v1464
        %v1466 = vpop.f32.mrf.mxu0
        %v1467 = vadd.f32 %v653, %v1466
        %1468 = vmatprep.mubr.bf16.mxu0 %v741
        %1469 = vmatmul.mubr.bf16.gmra.mxu0 %v740
        %v1470 = vpop.f32.mrf.mxu0
        %v1471 = vadd.f32 %v649, %v1470
        %v1472 = vpop.f32.mrf.mxu0
        %v1473 = vadd.f32 %v653, %v1472
        %v1474 = vpop.f32.mrf.mxu0
        %v1475 = vadd.f32 %v649, %v1474
        %v1476 = vpop.f32.mrf.mxu0
        %v1477 = vadd.f32 %v653, %v1476
        %1478 = vmatprep.mubr.bf16.mxu0 %v743
        %1479 = vmatmul.mubr.bf16.gmra.mxu0 %v742
        %v1480 = vpop.f32.mrf.mxu0
        %v1481 = vadd.f32 %v649, %v1480
        %v1482 = vpop.f32.mrf.mxu0
        %v1483 = vadd.f32 %v653, %v1482
        %v1484 = vpop.f32.mrf.mxu0
        %v1485 = vadd.f32 %v649, %v1484
        %v1486 = vpop.f32.mrf.mxu0
        %v1487 = vadd.f32 %v653, %v1486
        %1488 = vmatprep.mubr.bf16.mxu0 %v745
        %1489 = vmatmul.mubr.bf16.gmra.mxu0 %v744
        %v1490 = vpop.f32.mrf.mxu0
        %v1491 = vadd.f32 %v649, %v1490
        %v1492 = vpop.f32.mrf.mxu0
        %v1493 = vadd.f32 %v653, %v1492
        %v1494 = vpop.f32.mrf.mxu0
        %v1495 = vadd.f32 %v649, %v1494
        %v1496 = vpop.f32.mrf.mxu0
        %v1497 = vadd.f32 %v653, %v1496
        %1498 = vmatprep.mubr.bf16.mxu0 %v747
        %1499 = vmatmul.mubr.bf16.gmra.mxu0 %v746
        %v1500 = vpop.f32.mrf.mxu0
        %v1501 = vadd.f32 %v649, %v1500
        %v1502 = vpop.f32.mrf.mxu0
        %v1503 = vadd.f32 %v653, %v1502
        %v1504 = vpop.f32.mrf.mxu0
        %v1505 = vadd.f32 %v649, %v1504
        %v1506 = vpop.f32.mrf.mxu0
        %v1507 = vadd.f32 %v653, %v1506
        %1508 = vmatprep.mubr.bf16.mxu0 %v749
        %1509 = vmatmul.mubr.bf16.gmra.mxu0 %v748
        %v1510 = vpop.f32.mrf.mxu0
        %v1511 = vadd.f32 %v649, %v1510
        %v1512 = vpop.f32.mrf.mxu0
        %v1513 = vadd.f32 %v653, %v1512
        %v1514 = vpop.f32.mrf.mxu0
        %v1515 = vadd.f32 %v649, %v1514
        %v1516 = vpop.f32.mrf.mxu0
        %v1517 = vadd.f32 %v653, %v1516
        %1518 = vdwg.mxu0
        %1519 = vmatprep.subr.bf16.mxu0 %v1209
        %1520 = vmatpush1.bf16.msra.mxu0 %v1208
        %1521 = vmatprep.subr.bf16.mxu0 %v1201
        %1522 = vmatpush1.bf16.msra.mxu0 %v1200
        %1523 = vmatprep.subr.bf16.mxu0 %v1193
        %1524 = vmatpush1.bf16.msra.mxu0 %v1192
        %1525 = vmatprep.subr.bf16.mxu0 %v1185
        %1526 = vmatpush1.bf16.msra.mxu0 %v1184
        %1527 = vmatprep.subr.bf16.mxu0 %v1177
        %1528 = vmatpush1.bf16.msra.mxu0 %v1176
        %1529 = vmatprep.subr.bf16.mxu0 %v1169
        %1530 = vmatpush1.bf16.msra.mxu0 %v1168
        %1531 = vmatprep.subr.bf16.mxu0 %v1161
        %1532 = vmatpush1.bf16.msra.mxu0 %v1160
        %1533 = vmatprep.subr.bf16.mxu0 %v1153
        %1534 = vmatpush1.bf16.msra.mxu0 %v1152
        %1535 = vmatprep.subr.bf16.mxu0 %v1273
        %1536 = vmatpush2.bf16.msra.mxu0 %v1272
        %1537 = vmatprep.subr.bf16.mxu0 %v1265
        %1538 = vmatpush2.bf16.msra.mxu0 %v1264
        %1539 = vmatprep.subr.bf16.mxu0 %v1257
        %1540 = vmatpush2.bf16.msra.mxu0 %v1256
        %1541 = vmatprep.subr.bf16.mxu0 %v1249
        %1542 = vmatpush2.bf16.msra.mxu0 %v1248
        %1543 = vmatprep.subr.bf16.mxu0 %v1241
        %1544 = vmatpush2.bf16.msra.mxu0 %v1240
        %1545 = vmatprep.subr.bf16.mxu0 %v1233
        %1546 = vmatpush2.bf16.msra.mxu0 %v1232
        %1547 = vmatprep.subr.bf16.mxu0 %v1225
        %1548 = vmatpush2.bf16.msra.mxu0 %v1224
        %1549 = vmatprep.subr.bf16.mxu0 %v1217
        %1550 = vmatpush2.bf16.msra.mxu0 %v1216
        %1551 = vmatprep.mubr.bf16.mxu0 %v735
        %1552 = vmatmul.mubr.bf16.gmra.mxu0 %v734
        %v1553 = vpop.f32.mrf.mxu0
        %v1554 = vadd.f32 %v657, %v1553
        %v1555 = vpop.f32.mrf.mxu0
        %v1556 = vadd.f32 %v661, %v1555
        %v1557 = vpop.f32.mrf.mxu0
        %v1558 = vadd.f32 %v657, %v1557
        %v1559 = vpop.f32.mrf.mxu0
        %v1560 = vadd.f32 %v661, %v1559
        %1561 = vmatprep.mubr.bf16.mxu0 %v737
        %1562 = vmatmul.mubr.bf16.gmra.mxu0 %v736
        %v1563 = vpop.f32.mrf.mxu0
        %v1564 = vadd.f32 %v657, %v1563
        %v1565 = vpop.f32.mrf.mxu0
        %v1566 = vadd.f32 %v661, %v1565
        %v1567 = vpop.f32.mrf.mxu0
        %v1568 = vadd.f32 %v657, %v1567
        %v1569 = vpop.f32.mrf.mxu0
        %v1570 = vadd.f32 %v661, %v1569
        %1571 = vmatprep.mubr.bf16.mxu0 %v739
        %1572 = vmatmul.mubr.bf16.gmra.mxu0 %v738
        %v1573 = vpop.f32.mrf.mxu0
        %v1574 = vadd.f32 %v657, %v1573
        %v1575 = vpop.f32.mrf.mxu0
        %v1576 = vadd.f32 %v661, %v1575
        %v1577 = vpop.f32.mrf.mxu0
        %v1578 = vadd.f32 %v657, %v1577
        %v1579 = vpop.f32.mrf.mxu0
        %v1580 = vadd.f32 %v661, %v1579
        %1581 = vmatprep.mubr.bf16.mxu0 %v741
        %1582 = vmatmul.mubr.bf16.gmra.mxu0 %v740
        %v1583 = vpop.f32.mrf.mxu0
        %v1584 = vadd.f32 %v657, %v1583
        %v1585 = vpop.f32.mrf.mxu0
        %v1586 = vadd.f32 %v661, %v1585
        %v1587 = vpop.f32.mrf.mxu0
        %v1588 = vadd.f32 %v657, %v1587
        %v1589 = vpop.f32.mrf.mxu0
        %v1590 = vadd.f32 %v661, %v1589
        %1591 = vmatprep.mubr.bf16.mxu0 %v743
        %1592 = vmatmul.mubr.bf16.gmra.mxu0 %v742
        %v1593 = vpop.f32.mrf.mxu0
        %v1594 = vadd.f32 %v657, %v1593
        %v1595 = vpop.f32.mrf.mxu0
        %v1596 = vadd.f32 %v661, %v1595
        %v1597 = vpop.f32.mrf.mxu0
        %v1598 = vadd.f32 %v657, %v1597
        %v1599 = vpop.f32.mrf.mxu0
        %v1600 = vadd.f32 %v661, %v1599
        %1601 = vmatprep.mubr.bf16.mxu0 %v745
        %1602 = vmatmul.mubr.bf16.gmra.mxu0 %v744
        %v1603 = vpop.f32.mrf.mxu0
        %v1604 = vadd.f32 %v657, %v1603
        %v1605 = vpop.f32.mrf.mxu0
        %v1606 = vadd.f32 %v661, %v1605
        %v1607 = vpop.f32.mrf.mxu0
        %v1608 = vadd.f32 %v657, %v1607
        %v1609 = vpop.f32.mrf.mxu0
        %v1610 = vadd.f32 %v661, %v1609
        %1611 = vmatprep.mubr.bf16.mxu0 %v747
        %1612 = vmatmul.mubr.bf16.gmra.mxu0 %v746
        %v1613 = vpop.f32.mrf.mxu0
        %v1614 = vadd.f32 %v657, %v1613
        %v1615 = vpop.f32.mrf.mxu0
        %v1616 = vadd.f32 %v661, %v1615
        %v1617 = vpop.f32.mrf.mxu0
        %v1618 = vadd.f32 %v657, %v1617
        %v1619 = vpop.f32.mrf.mxu0
        %v1620 = vadd.f32 %v661, %v1619
        %1621 = vmatprep.mubr.bf16.mxu0 %v749
        %1622 = vmatmul.mubr.bf16.gmra.mxu0 %v748
        %v1623 = vpop.f32.mrf.mxu0
        %v1624 = vadd.f32 %v657, %v1623
        %v1625 = vpop.f32.mrf.mxu0
        %v1626 = vadd.f32 %v661, %v1625
        %v1627 = vpop.f32.mrf.mxu0
        %v1628 = vadd.f32 %v657, %v1627
        %v1629 = vpop.f32.mrf.mxu0
        %v1630 = vadd.f32 %v661, %v1629
        %1631 = vdwg.mxu0
        %1632 = vmatprep.subr.bf16.mxu0 %v1211
        %1633 = vmatpush1.bf16.msra.mxu0 %v1210
        %1634 = vmatprep.subr.bf16.mxu0 %v1203
        %1635 = vmatpush1.bf16.msra.mxu0 %v1202
        %1636 = vmatprep.subr.bf16.mxu0 %v1195
        %1637 = vmatpush1.bf16.msra.mxu0 %v1194
        %1638 = vmatprep.subr.bf16.mxu0 %v1187
        %1639 = vmatpush1.bf16.msra.mxu0 %v1186
        %1640 = vmatprep.subr.bf16.mxu0 %v1179
        %1641 = vmatpush1.bf16.msra.mxu0 %v1178
        %1642 = vmatprep.subr.bf16.mxu0 %v1171
        %1643 = vmatpush1.bf16.msra.mxu0 %v1170
        %1644 = vmatprep.subr.bf16.mxu0 %v1163
        %1645 = vmatpush1.bf16.msra.mxu0 %v1162
        %1646 = vmatprep.subr.bf16.mxu0 %v1155
        %1647 = vmatpush1.bf16.msra.mxu0 %v1154
        %1648 = vmatprep.subr.bf16.mxu0 %v1275
        %1649 = vmatpush2.bf16.msra.mxu0 %v1274
        %1650 = vmatprep.subr.bf16.mxu0 %v1267
        %1651 = vmatpush2.bf16.msra.mxu0 %v1266
        %1652 = vmatprep.subr.bf16.mxu0 %v1259
        %1653 = vmatpush2.bf16.msra.mxu0 %v1258
        %1654 = vmatprep.subr.bf16.mxu0 %v1251
        %1655 = vmatpush2.bf16.msra.mxu0 %v1250
        %1656 = vmatprep.subr.bf16.mxu0 %v1243
        %1657 = vmatpush2.bf16.msra.mxu0 %v1242
        %1658 = vmatprep.subr.bf16.mxu0 %v1235
        %1659 = vmatpush2.bf16.msra.mxu0 %v1234
        %1660 = vmatprep.subr.bf16.mxu0 %v1227
        %1661 = vmatpush2.bf16.msra.mxu0 %v1226
        %1662 = vmatprep.subr.bf16.mxu0 %v1219
        %1663 = vmatpush2.bf16.msra.mxu0 %v1218
        %1664 = vmatprep.mubr.bf16.mxu0 %v735
        %1665 = vmatmul.mubr.bf16.gmra.mxu0 %v734
        %v1666 = vpop.f32.mrf.mxu0
        %v1667 = vadd.f32 %v665, %v1666
        %v1668 = vpop.f32.mrf.mxu0
        %v1669 = vadd.f32 %v669, %v1668
        %v1670 = vpop.f32.mrf.mxu0
        %v1671 = vadd.f32 %v665, %v1670
        %v1672 = vpop.f32.mrf.mxu0
        %v1673 = vadd.f32 %v669, %v1672
        %1674 = vmatprep.mubr.bf16.mxu0 %v737
        %1675 = vmatmul.mubr.bf16.gmra.mxu0 %v736
        %v1676 = vpop.f32.mrf.mxu0
        %v1677 = vadd.f32 %v665, %v1676
        %v1678 = vpop.f32.mrf.mxu0
        %v1679 = vadd.f32 %v669, %v1678
        %v1680 = vpop.f32.mrf.mxu0
        %v1681 = vadd.f32 %v665, %v1680
        %v1682 = vpop.f32.mrf.mxu0
        %v1683 = vadd.f32 %v669, %v1682
        %1684 = vmatprep.mubr.bf16.mxu0 %v739
        %1685 = vmatmul.mubr.bf16.gmra.mxu0 %v738
        %v1686 = vpop.f32.mrf.mxu0
        %v1687 = vadd.f32 %v665, %v1686
        %v1688 = vpop.f32.mrf.mxu0
        %v1689 = vadd.f32 %v669, %v1688
        %v1690 = vpop.f32.mrf.mxu0
        %v1691 = vadd.f32 %v665, %v1690
        %v1692 = vpop.f32.mrf.mxu0
        %v1693 = vadd.f32 %v669, %v1692
        %1694 = vmatprep.mubr.bf16.mxu0 %v741
        %1695 = vmatmul.mubr.bf16.gmra.mxu0 %v740
        %v1696 = vpop.f32.mrf.mxu0
        %v1697 = vadd.f32 %v665, %v1696
        %v1698 = vpop.f32.mrf.mxu0
        %v1699 = vadd.f32 %v669, %v1698
        %v1700 = vpop.f32.mrf.mxu0
        %v1701 = vadd.f32 %v665, %v1700
        %v1702 = vpop.f32.mrf.mxu0
        %v1703 = vadd.f32 %v669, %v1702
        %1704 = vmatprep.mubr.bf16.mxu0 %v743
        %1705 = vmatmul.mubr.bf16.gmra.mxu0 %v742
        %v1706 = vpop.f32.mrf.mxu0
        %v1707 = vadd.f32 %v665, %v1706
        %v1708 = vpop.f32.mrf.mxu0
        %v1709 = vadd.f32 %v669, %v1708
        %v1710 = vpop.f32.mrf.mxu0
        %v1711 = vadd.f32 %v665, %v1710
        %v1712 = vpop.f32.mrf.mxu0
        %v1713 = vadd.f32 %v669, %v1712
        %1714 = vmatprep.mubr.bf16.mxu0 %v745
        %1715 = vmatmul.mubr.bf16.gmra.mxu0 %v744
        %v1716 = vpop.f32.mrf.mxu0
        %v1717 = vadd.f32 %v665, %v1716
        %v1718 = vpop.f32.mrf.mxu0
        %v1719 = vadd.f32 %v669, %v1718
        %v1720 = vpop.f32.mrf.mxu0
        %v1721 = vadd.f32 %v665, %v1720
        %v1722 = vpop.f32.mrf.mxu0
        %v1723 = vadd.f32 %v669, %v1722
        %1724 = vmatprep.mubr.bf16.mxu0 %v747
        %1725 = vmatmul.mubr.bf16.gmra.mxu0 %v746
        %v1726 = vpop.f32.mrf.mxu0
        %v1727 = vadd.f32 %v665, %v1726
        %v1728 = vpop.f32.mrf.mxu0
        %v1729 = vadd.f32 %v669, %v1728
        %v1730 = vpop.f32.mrf.mxu0
        %v1731 = vadd.f32 %v665, %v1730
        %v1732 = vpop.f32.mrf.mxu0
        %v1733 = vadd.f32 %v669, %v1732
        %1734 = vmatprep.mubr.bf16.mxu0 %v749
        %1735 = vmatmul.mubr.bf16.gmra.mxu0 %v748
        %v1736 = vpop.f32.mrf.mxu0
        %v1737 = vadd.f32 %v665, %v1736
        %v1738 = vpop.f32.mrf.mxu0
        %v1739 = vadd.f32 %v669, %v1738
        %v1740 = vpop.f32.mrf.mxu0
        %v1741 = vadd.f32 %v665, %v1740
        %v1742 = vpop.f32.mrf.mxu0
        %v1743 = vadd.f32 %v669, %v1742
        %1744 = vdwg.mxu0
        %1745 = vmatprep.subr.bf16.mxu0 %v1213
        %1746 = vmatpush1.bf16.msra.mxu0 %v1212
        %1747 = vmatprep.subr.bf16.mxu0 %v1205
        %1748 = vmatpush1.bf16.msra.mxu0 %v1204
        %1749 = vmatprep.subr.bf16.mxu0 %v1197
        %1750 = vmatpush1.bf16.msra.mxu0 %v1196
        %1751 = vmatprep.subr.bf16.mxu0 %v1189
        %1752 = vmatpush1.bf16.msra.mxu0 %v1188
        %1753 = vmatprep.subr.bf16.mxu0 %v1181
        %1754 = vmatpush1.bf16.msra.mxu0 %v1180
        %1755 = vmatprep.subr.bf16.mxu0 %v1173
        %1756 = vmatpush1.bf16.msra.mxu0 %v1172
        %1757 = vmatprep.subr.bf16.mxu0 %v1165
        %1758 = vmatpush1.bf16.msra.mxu0 %v1164
        %1759 = vmatprep.subr.bf16.mxu0 %v1157
        %1760 = vmatpush1.bf16.msra.mxu0 %v1156
        %1761 = vmatprep.subr.bf16.mxu0 %v1277
        %1762 = vmatpush2.bf16.msra.mxu0 %v1276
        %1763 = vmatprep.subr.bf16.mxu0 %v1269
        %1764 = vmatpush2.bf16.msra.mxu0 %v1268
        %1765 = vmatprep.subr.bf16.mxu0 %v1261
        %1766 = vmatpush2.bf16.msra.mxu0 %v1260
        %1767 = vmatprep.subr.bf16.mxu0 %v1253
        %1768 = vmatpush2.bf16.msra.mxu0 %v1252
        %1769 = vmatprep.subr.bf16.mxu0 %v1245
        %1770 = vmatpush2.bf16.msra.mxu0 %v1244
        %1771 = vmatprep.subr.bf16.mxu0 %v1237
        %1772 = vmatpush2.bf16.msra.mxu0 %v1236
        %1773 = vmatprep.subr.bf16.mxu0 %v1229
        %1774 = vmatpush2.bf16.msra.mxu0 %v1228
        %1775 = vmatprep.subr.bf16.mxu0 %v1221
        %1776 = vmatpush2.bf16.msra.mxu0 %v1220
        %1777 = vmatprep.mubr.bf16.mxu0 %v735
        %1778 = vmatmul.mubr.bf16.gmra.mxu0 %v734
        %v1779 = vpop.f32.mrf.mxu0
        %v1780 = vadd.f32 %v673, %v1779
        %v1781 = vpop.f32.mrf.mxu0
        %v1782 = vadd.f32 %v677, %v1781
        %v1783 = vpop.f32.mrf.mxu0
        %v1784 = vadd.f32 %v673, %v1783
        %v1785 = vpop.f32.mrf.mxu0
        %v1786 = vadd.f32 %v677, %v1785
        %1787 = vmatprep.mubr.bf16.mxu0 %v737
        %1788 = vmatmul.mubr.bf16.gmra.mxu0 %v736
        %v1789 = vpop.f32.mrf.mxu0
        %v1790 = vadd.f32 %v673, %v1789
        %v1791 = vpop.f32.mrf.mxu0
        %v1792 = vadd.f32 %v677, %v1791
        %v1793 = vpop.f32.mrf.mxu0
        %v1794 = vadd.f32 %v673, %v1793
        %v1795 = vpop.f32.mrf.mxu0
        %v1796 = vadd.f32 %v677, %v1795
        %1797 = vmatprep.mubr.bf16.mxu0 %v739
        %1798 = vmatmul.mubr.bf16.gmra.mxu0 %v738
        %v1799 = vpop.f32.mrf.mxu0
        %v1800 = vadd.f32 %v673, %v1799
        %v1801 = vpop.f32.mrf.mxu0
        %v1802 = vadd.f32 %v677, %v1801
        %v1803 = vpop.f32.mrf.mxu0
        %v1804 = vadd.f32 %v673, %v1803
        %v1805 = vpop.f32.mrf.mxu0
        %v1806 = vadd.f32 %v677, %v1805
        %1807 = vmatprep.mubr.bf16.mxu0 %v741
        %1808 = vmatmul.mubr.bf16.gmra.mxu0 %v740
        %v1809 = vpop.f32.mrf.mxu0
        %v1810 = vadd.f32 %v673, %v1809
        %v1811 = vpop.f32.mrf.mxu0
        %v1812 = vadd.f32 %v677, %v1811
        %v1813 = vpop.f32.mrf.mxu0
        %v1814 = vadd.f32 %v673, %v1813
        %v1815 = vpop.f32.mrf.mxu0
        %v1816 = vadd.f32 %v677, %v1815
        %1817 = vmatprep.mubr.bf16.mxu0 %v743
        %1818 = vmatmul.mubr.bf16.gmra.mxu0 %v742
        %v1819 = vpop.f32.mrf.mxu0
        %v1820 = vadd.f32 %v673, %v1819
        %v1821 = vpop.f32.mrf.mxu0
        %v1822 = vadd.f32 %v677, %v1821
        %v1823 = vpop.f32.mrf.mxu0
        %v1824 = vadd.f32 %v673, %v1823
        %v1825 = vpop.f32.mrf.mxu0
        %v1826 = vadd.f32 %v677, %v1825
        %1827 = vmatprep.mubr.bf16.mxu0 %v745
        %1828 = vmatmul.mubr.bf16.gmra.mxu0 %v744
        %v1829 = vpop.f32.mrf.mxu0
        %v1830 = vadd.f32 %v673, %v1829
        %v1831 = vpop.f32.mrf.mxu0
        %v1832 = vadd.f32 %v677, %v1831
        %v1833 = vpop.f32.mrf.mxu0
        %v1834 = vadd.f32 %v673, %v1833
        %v1835 = vpop.f32.mrf.mxu0
        %v1836 = vadd.f32 %v677, %v1835
        %1837 = vmatprep.mubr.bf16.mxu0 %v747
        %1838 = vmatmul.mubr.bf16.gmra.mxu0 %v746
        %v1839 = vpop.f32.mrf.mxu0
        %v1840 = vadd.f32 %v673, %v1839
        %v1841 = vpop.f32.mrf.mxu0
        %v1842 = vadd.f32 %v677, %v1841
        %v1843 = vpop.f32.mrf.mxu0
        %v1844 = vadd.f32 %v673, %v1843
        %v1845 = vpop.f32.mrf.mxu0
        %v1846 = vadd.f32 %v677, %v1845
        %1847 = vmatprep.mubr.bf16.mxu0 %v749
        %1848 = vmatmul.mubr.bf16.gmra.mxu0 %v748
        %v1849 = vpop.f32.mrf.mxu0
        %v1850 = vadd.f32 %v673, %v1849
        %v1851 = vpop.f32.mrf.mxu0
        %v1852 = vadd.f32 %v677, %v1851
        %v1853 = vpop.f32.mrf.mxu0
        %v1854 = vadd.f32 %v673, %v1853
        %v1855 = vpop.f32.mrf.mxu0
        %v1856 = vadd.f32 %v677, %v1855
        %1857 = vdwg.mxu0
        %v1858 = vpack.c.bf16 %v1445, %v1441
        %v1859 = vpack.c.bf16 %v1447, %v1443
        %v1860 = vpack.c.bf16 %v1558, %v1554
        %v1861 = vpack.c.bf16 %v1560, %v1556
        %v1862 = vpack.c.bf16 %v1671, %v1667
        %v1863 = vpack.c.bf16 %v1673, %v1669
        %v1864 = vpack.c.bf16 %v1784, %v1780
        %v1865 = vpack.c.bf16 %v1786, %v1782
        %v1866 = vpack.c.bf16 %v1455, %v1451
        %v1867 = vpack.c.bf16 %v1457, %v1453
        %v1868 = vpack.c.bf16 %v1568, %v1564
        %v1869 = vpack.c.bf16 %v1570, %v1566
        %v1870 = vpack.c.bf16 %v1681, %v1677
        %v1871 = vpack.c.bf16 %v1683, %v1679
        %v1872 = vpack.c.bf16 %v1794, %v1790
        %v1873 = vpack.c.bf16 %v1796, %v1792
        %v1874 = vpack.c.bf16 %v1465, %v1461
        %v1875 = vpack.c.bf16 %v1467, %v1463
        %v1876 = vpack.c.bf16 %v1578, %v1574
        %v1877 = vpack.c.bf16 %v1580, %v1576
        %v1878 = vpack.c.bf16 %v1691, %v1687
        %v1879 = vpack.c.bf16 %v1693, %v1689
        %v1880 = vpack.c.bf16 %v1804, %v1800
        %v1881 = vpack.c.bf16 %v1806, %v1802
        %v1882 = vpack.c.bf16 %v1475, %v1471
        %v1883 = vpack.c.bf16 %v1477, %v1473
        %v1884 = vpack.c.bf16 %v1588, %v1584
        %v1885 = vpack.c.bf16 %v1590, %v1586
        %v1886 = vpack.c.bf16 %v1701, %v1697
        %v1887 = vpack.c.bf16 %v1703, %v1699
        %v1888 = vpack.c.bf16 %v1814, %v1810
        %v1889 = vpack.c.bf16 %v1816, %v1812
        %v1890 = vpack.c.bf16 %v1485, %v1481
        %v1891 = vpack.c.bf16 %v1487, %v1483
        %v1892 = vpack.c.bf16 %v1598, %v1594
        %v1893 = vpack.c.bf16 %v1600, %v1596
        %v1894 = vpack.c.bf16 %v1711, %v1707
        %v1895 = vpack.c.bf16 %v1713, %v1709
        %v1896 = vpack.c.bf16 %v1824, %v1820
        %v1897 = vpack.c.bf16 %v1826, %v1822
        %v1898 = vpack.c.bf16 %v1495, %v1491
        %v1899 = vpack.c.bf16 %v1497, %v1493
        %v1900 = vpack.c.bf16 %v1608, %v1604
        %v1901 = vpack.c.bf16 %v1610, %v1606
        %v1902 = vpack.c.bf16 %v1721, %v1717
        %v1903 = vpack.c.bf16 %v1723, %v1719
        %v1904 = vpack.c.bf16 %v1834, %v1830
        %v1905 = vpack.c.bf16 %v1836, %v1832
        %v1906 = vpack.c.bf16 %v1505, %v1501
        %v1907 = vpack.c.bf16 %v1507, %v1503
        %v1908 = vpack.c.bf16 %v1618, %v1614
        %v1909 = vpack.c.bf16 %v1620, %v1616
        %v1910 = vpack.c.bf16 %v1731, %v1727
        %v1911 = vpack.c.bf16 %v1733, %v1729
        %v1912 = vpack.c.bf16 %v1844, %v1840
        %v1913 = vpack.c.bf16 %v1846, %v1842
        %v1914 = vpack.c.bf16 %v1515, %v1511
        %v1915 = vpack.c.bf16 %v1517, %v1513
        %v1916 = vpack.c.bf16 %v1628, %v1624
        %v1917 = vpack.c.bf16 %v1630, %v1626
        %v1918 = vpack.c.bf16 %v1741, %v1737
        %v1919 = vpack.c.bf16 %v1743, %v1739
        %v1920 = vpack.c.bf16 %v1854, %v1850
        %v1921 = vpack.c.bf16 %v1856, %v1852
        %v1986 = vunpack.c.l.b16 %v1858
        %v1987 = vunpack.c.l.b16 %v1859
        %v1988 = vunpack.c.l.b16 %v1860
        %v1989 = vunpack.c.l.b16 %v1861
        %v1990 = vunpack.c.l.b16 %v1862
        %v1991 = vunpack.c.l.b16 %v1863
        %v1992 = vunpack.c.l.b16 %v1864
        %v1993 = vunpack.c.l.b16 %v1865
        %v1994 = vunpack.c.h.b16 %v1858
        %v1995 = vunpack.c.h.b16 %v1859
        %v1996 = vunpack.c.h.b16 %v1860
        %v1997 = vunpack.c.h.b16 %v1861
        %v1998 = vunpack.c.h.b16 %v1862
        %v1999 = vunpack.c.h.b16 %v1863
        %v2000 = vunpack.c.h.b16 %v1864
        %v2001 = vunpack.c.h.b16 %v1865
        %v2002 = vunpack.c.l.b16 %v1866
        %v2003 = vunpack.c.l.b16 %v1867
        %v2004 = vunpack.c.l.b16 %v1868
        %v2005 = vunpack.c.l.b16 %v1869
        %v2006 = vunpack.c.l.b16 %v1870
        %v2007 = vunpack.c.l.b16 %v1871
        %v2008 = vunpack.c.l.b16 %v1872
        %v2009 = vunpack.c.l.b16 %v1873
        %v2010 = vunpack.c.h.b16 %v1866
        %v2011 = vunpack.c.h.b16 %v1867
        %v2012 = vunpack.c.h.b16 %v1868
        %v2013 = vunpack.c.h.b16 %v1869
        %v2014 = vunpack.c.h.b16 %v1870
        %v2015 = vunpack.c.h.b16 %v1871
        %v2016 = vunpack.c.h.b16 %v1872
        %v2017 = vunpack.c.h.b16 %v1873
        %v2018 = vunpack.c.l.b16 %v1874
        %v2019 = vunpack.c.l.b16 %v1875
        %v2020 = vunpack.c.l.b16 %v1876
        %v2021 = vunpack.c.l.b16 %v1877
        %v2022 = vunpack.c.l.b16 %v1878
        %v2023 = vunpack.c.l.b16 %v1879
        %v2024 = vunpack.c.l.b16 %v1880
        %v2025 = vunpack.c.l.b16 %v1881
        %v2026 = vunpack.c.h.b16 %v1874
        %v2027 = vunpack.c.h.b16 %v1875
        %v2028 = vunpack.c.h.b16 %v1876
        %v2029 = vunpack.c.h.b16 %v1877
        %v2030 = vunpack.c.h.b16 %v1878
        %v2031 = vunpack.c.h.b16 %v1879
        %v2032 = vunpack.c.h.b16 %v1880
        %v2033 = vunpack.c.h.b16 %v1881
        %v2034 = vunpack.c.l.b16 %v1882
        %v2035 = vunpack.c.l.b16 %v1883
        %v2036 = vunpack.c.l.b16 %v1884
        %v2037 = vunpack.c.l.b16 %v1885
        %v2038 = vunpack.c.l.b16 %v1886
        %v2039 = vunpack.c.l.b16 %v1887
        %v2040 = vunpack.c.l.b16 %v1888
        %v2041 = vunpack.c.l.b16 %v1889
        %v2042 = vunpack.c.h.b16 %v1882
        %v2043 = vunpack.c.h.b16 %v1883
        %v2044 = vunpack.c.h.b16 %v1884
        %v2045 = vunpack.c.h.b16 %v1885
        %v2046 = vunpack.c.h.b16 %v1886
        %v2047 = vunpack.c.h.b16 %v1887
        %v2048 = vunpack.c.h.b16 %v1888
        %v2049 = vunpack.c.h.b16 %v1889
        %v2050 = vunpack.c.l.b16 %v1890
        %v2051 = vunpack.c.l.b16 %v1891
        %v2052 = vunpack.c.l.b16 %v1892
        %v2053 = vunpack.c.l.b16 %v1893
        %v2054 = vunpack.c.l.b16 %v1894
        %v2055 = vunpack.c.l.b16 %v1895
        %v2056 = vunpack.c.l.b16 %v1896
        %v2057 = vunpack.c.l.b16 %v1897
        %v2058 = vunpack.c.h.b16 %v1890
        %v2059 = vunpack.c.h.b16 %v1891
        %v2060 = vunpack.c.h.b16 %v1892
        %v2061 = vunpack.c.h.b16 %v1893
        %v2062 = vunpack.c.h.b16 %v1894
        %v2063 = vunpack.c.h.b16 %v1895
        %v2064 = vunpack.c.h.b16 %v1896
        %v2065 = vunpack.c.h.b16 %v1897
        %v2066 = vunpack.c.l.b16 %v1898
        %v2067 = vunpack.c.l.b16 %v1899
        %v2068 = vunpack.c.l.b16 %v1900
        %v2069 = vunpack.c.l.b16 %v1901
        %v2070 = vunpack.c.l.b16 %v1902
        %v2071 = vunpack.c.l.b16 %v1903
        %v2072 = vunpack.c.l.b16 %v1904
        %v2073 = vunpack.c.l.b16 %v1905
        %v2074 = vunpack.c.h.b16 %v1898
        %v2075 = vunpack.c.h.b16 %v1899
        %v2076 = vunpack.c.h.b16 %v1900
        %v2077 = vunpack.c.h.b16 %v1901
        %v2078 = vunpack.c.h.b16 %v1902
        %v2079 = vunpack.c.h.b16 %v1903
        %v2080 = vunpack.c.h.b16 %v1904
        %v2081 = vunpack.c.h.b16 %v1905
        %v2082 = vunpack.c.l.b16 %v1906
        %v2083 = vunpack.c.l.b16 %v1907
        %v2084 = vunpack.c.l.b16 %v1908
        %v2085 = vunpack.c.l.b16 %v1909
        %v2086 = vunpack.c.l.b16 %v1910
        %v2087 = vunpack.c.l.b16 %v1911
        %v2088 = vunpack.c.l.b16 %v1912
        %v2089 = vunpack.c.l.b16 %v1913
        %v2090 = vunpack.c.h.b16 %v1906
        %v2091 = vunpack.c.h.b16 %v1907
        %v2092 = vunpack.c.h.b16 %v1908
        %v2093 = vunpack.c.h.b16 %v1909
        %v2094 = vunpack.c.h.b16 %v1910
        %v2095 = vunpack.c.h.b16 %v1911
        %v2096 = vunpack.c.h.b16 %v1912
        %v2097 = vunpack.c.h.b16 %v1913
        %v2098 = vunpack.c.l.b16 %v1914
        %v2099 = vunpack.c.l.b16 %v1915
        %v2100 = vunpack.c.l.b16 %v1916
        %v2101 = vunpack.c.l.b16 %v1917
        %v2102 = vunpack.c.l.b16 %v1918
        %v2103 = vunpack.c.l.b16 %v1919
        %v2104 = vunpack.c.l.b16 %v1920
        %v2105 = vunpack.c.l.b16 %v1921
        %v2106 = vunpack.c.h.b16 %v1914
        %v2107 = vunpack.c.h.b16 %v1915
        %v2108 = vunpack.c.h.b16 %v1916
        %v2109 = vunpack.c.h.b16 %v1917
        %v2110 = vunpack.c.h.b16 %v1918
        %v2111 = vunpack.c.h.b16 %v1919
        %v2112 = vunpack.c.h.b16 %v1920
        %v2113 = vunpack.c.h.b16 %v1921
        %v2114 = vpack.c.b16 %v1987, %v1986
        %v2115 = vpack.c.b16 %v1989, %v1988
        %v2116 = vpack.c.b16 %v1991, %v1990
        %v2117 = vpack.c.b16 %v1993, %v1992
        %v2118 = vpack.c.b16 %v1995, %v1994
        %v2119 = vpack.c.b16 %v1997, %v1996
        %v2120 = vpack.c.b16 %v1999, %v1998
        %v2121 = vpack.c.b16 %v2001, %v2000
        %v2122 = vpack.c.b16 %v2003, %v2002
        %v2123 = vpack.c.b16 %v2005, %v2004
        %v2124 = vpack.c.b16 %v2007, %v2006
        %v2125 = vpack.c.b16 %v2009, %v2008
        %v2126 = vpack.c.b16 %v2011, %v2010
        %v2127 = vpack.c.b16 %v2013, %v2012
        %v2128 = vpack.c.b16 %v2015, %v2014
        %v2129 = vpack.c.b16 %v2017, %v2016
        %v2130 = vpack.c.b16 %v2019, %v2018
        %v2131 = vpack.c.b16 %v2021, %v2020
        %v2132 = vpack.c.b16 %v2023, %v2022
        %v2133 = vpack.c.b16 %v2025, %v2024
        %v2134 = vpack.c.b16 %v2027, %v2026
        %v2135 = vpack.c.b16 %v2029, %v2028
        %v2136 = vpack.c.b16 %v2031, %v2030
        %v2137 = vpack.c.b16 %v2033, %v2032
        %v2138 = vpack.c.b16 %v2035, %v2034
        %v2139 = vpack.c.b16 %v2037, %v2036
        %v2140 = vpack.c.b16 %v2039, %v2038
        %v2141 = vpack.c.b16 %v2041, %v2040
        %v2142 = vpack.c.b16 %v2043, %v2042
        %v2143 = vpack.c.b16 %v2045, %v2044
        %v2144 = vpack.c.b16 %v2047, %v2046
        %v2145 = vpack.c.b16 %v2049, %v2048
        %v2146 = vpack.c.b16 %v2051, %v2050
        %v2147 = vpack.c.b16 %v2053, %v2052
        %v2148 = vpack.c.b16 %v2055, %v2054
        %v2149 = vpack.c.b16 %v2057, %v2056
        %v2150 = vpack.c.b16 %v2059, %v2058
        %v2151 = vpack.c.b16 %v2061, %v2060
        %v2152 = vpack.c.b16 %v2063, %v2062
        %v2153 = vpack.c.b16 %v2065, %v2064
        %v2154 = vpack.c.b16 %v2067, %v2066
        %v2155 = vpack.c.b16 %v2069, %v2068
        %v2156 = vpack.c.b16 %v2071, %v2070
        %v2157 = vpack.c.b16 %v2073, %v2072
        %v2158 = vpack.c.b16 %v2075, %v2074
        %v2159 = vpack.c.b16 %v2077, %v2076
        %v2160 = vpack.c.b16 %v2079, %v2078
        %v2161 = vpack.c.b16 %v2081, %v2080
        %v2162 = vpack.c.b16 %v2083, %v2082
        %v2163 = vpack.c.b16 %v2085, %v2084
        %v2164 = vpack.c.b16 %v2087, %v2086
        %v2165 = vpack.c.b16 %v2089, %v2088
        %v2166 = vpack.c.b16 %v2091, %v2090
        %v2167 = vpack.c.b16 %v2093, %v2092
        %v2168 = vpack.c.b16 %v2095, %v2094
        %v2169 = vpack.c.b16 %v2097, %v2096
        %v2170 = vpack.c.b16 %v2099, %v2098
        %v2171 = vpack.c.b16 %v2101, %v2100
        %v2172 = vpack.c.b16 %v2103, %v2102
        %v2173 = vpack.c.b16 %v2105, %v2104
        %v2174 = vpack.c.b16 %v2107, %v2106
        %v2175 = vpack.c.b16 %v2109, %v2108
        %v2176 = vpack.c.b16 %v2111, %v2110
        %v2177 = vpack.c.b16 %v2113, %v2112
        %2242 = vst [vmem:[%s484] sm:$0xff] %v2114
        %2243 = vst [vmem:[%s484 + $0x8] sm:$0xff] %v2115
        %2244 = vst [vmem:[%s484 + $0x10] sm:$0xff] %v2116
        %2245 = vst [vmem:[%s484 + $0x18] sm:$0xff] %v2117
        %2246 = vst [vmem:[%s484 + $0x20] sm:$0xff] %v2118
        %2247 = vst [vmem:[%s484 + $0x28] sm:$0xff] %v2119
        %2248 = vst [vmem:[%s484 + $0x30] sm:$0xff] %v2120
        %2249 = vst [vmem:[%s484 + $0x38] sm:$0xff] %v2121
        %2250 = vst [vmem:[%s484 + $0x40] sm:$0xff] %v2122
        %2251 = vst [vmem:[%s484 + $0x48] sm:$0xff] %v2123
        %2252 = vst [vmem:[%s484 + $0x50] sm:$0xff] %v2124
        %2253 = vst [vmem:[%s484 + $0x58] sm:$0xff] %v2125
        %2254 = vst [vmem:[%s484 + $0x60] sm:$0xff] %v2126
        %2255 = vst [vmem:[%s484 + $0x68] sm:$0xff] %v2127
        %2256 = vst [vmem:[%s484 + $0x70] sm:$0xff] %v2128
        %2257 = vst [vmem:[%s484 + $0x78] sm:$0xff] %v2129
        %2258 = vst [vmem:[%s484 + $0x80] sm:$0xff] %v2130
        %2259 = vst [vmem:[%s484 + $0x88] sm:$0xff] %v2131
        %2260 = vst [vmem:[%s484 + $0x90] sm:$0xff] %v2132
        %2261 = vst [vmem:[%s484 + $0x98] sm:$0xff] %v2133
        %2262 = vst [vmem:[%s484 + $0xa0] sm:$0xff] %v2134
        %2263 = vst [vmem:[%s484 + $0xa8] sm:$0xff] %v2135
        %2264 = vst [vmem:[%s484 + $0xb0] sm:$0xff] %v2136
        %2265 = vst [vmem:[%s484 + $0xb8] sm:$0xff] %v2137
        %2266 = vst [vmem:[%s484 + $0xc0] sm:$0xff] %v2138
        %2267 = vst [vmem:[%s484 + $0xc8] sm:$0xff] %v2139
        %2268 = vst [vmem:[%s484 + $0xd0] sm:$0xff] %v2140
        %2269 = vst [vmem:[%s484 + $0xd8] sm:$0xff] %v2141
        %2270 = vst [vmem:[%s484 + $0xe0] sm:$0xff] %v2142
        %2271 = vst [vmem:[%s484 + $0xe8] sm:$0xff] %v2143
        %2272 = vst [vmem:[%s484 + $0xf0] sm:$0xff] %v2144
        %2273 = vst [vmem:[%s484 + $0xf8] sm:$0xff] %v2145
        %2274 = vst [vmem:[%s484 + $0x100] sm:$0xff] %v2146
        %2275 = vst [vmem:[%s484 + $0x108] sm:$0xff] %v2147
        %2276 = vst [vmem:[%s484 + $0x110] sm:$0xff] %v2148
        %2277 = vst [vmem:[%s484 + $0x118] sm:$0xff] %v2149
        %2278 = vst [vmem:[%s484 + $0x120] sm:$0xff] %v2150
        %2279 = vst [vmem:[%s484 + $0x128] sm:$0xff] %v2151
        %2280 = vst [vmem:[%s484 + $0x130] sm:$0xff] %v2152
        %2281 = vst [vmem:[%s484 + $0x138] sm:$0xff] %v2153
        %2282 = vst [vmem:[%s484 + $0x140] sm:$0xff] %v2154
        %2283 = vst [vmem:[%s484 + $0x148] sm:$0xff] %v2155
        %2284 = vst [vmem:[%s484 + $0x150] sm:$0xff] %v2156
        %2285 = vst [vmem:[%s484 + $0x158] sm:$0xff] %v2157
        %2286 = vst [vmem:[%s484 + $0x160] sm:$0xff] %v2158
        %2287 = vst [vmem:[%s484 + $0x168] sm:$0xff] %v2159
        %2288 = vst [vmem:[%s484 + $0x170] sm:$0xff] %v2160
        %2289 = vst [vmem:[%s484 + $0x178] sm:$0xff] %v2161
        %2290 = vst [vmem:[%s484 + $0x180] sm:$0xff] %v2162
        %2291 = vst [vmem:[%s484 + $0x188] sm:$0xff] %v2163
        %2292 = vst [vmem:[%s484 + $0x190] sm:$0xff] %v2164
        %2293 = vst [vmem:[%s484 + $0x198] sm:$0xff] %v2165
        %2294 = vst [vmem:[%s484 + $0x1a0] sm:$0xff] %v2166
        %2295 = vst [vmem:[%s484 + $0x1a8] sm:$0xff] %v2167
        %2296 = vst [vmem:[%s484 + $0x1b0] sm:$0xff] %v2168
        %2297 = vst [vmem:[%s484 + $0x1b8] sm:$0xff] %v2169
        %2298 = vst [vmem:[%s484 + $0x1c0] sm:$0xff] %v2170
        %2299 = vst [vmem:[%s484 + $0x1c8] sm:$0xff] %v2171
        %2300 = vst [vmem:[%s484 + $0x1d0] sm:$0xff] %v2172
        %2301 = vst [vmem:[%s484 + $0x1d8] sm:$0xff] %v2173
        %2302 = vst [vmem:[%s484 + $0x1e0] sm:$0xff] %v2174
        %2303 = vst [vmem:[%s484 + $0x1e8] sm:$0xff] %v2175
        %2304 = vst [vmem:[%s484 + $0x1f0] sm:$0xff] %v2176
        %2305 = vst [vmem:[%s484 + $0x1f8] sm:$0xff] %v2177
        %s2306 = sand.u32 %s114, 1
        %s2307 = sand.u32 %s114, 1
        %s2308 = smul.addr %s2307, 512
        %s2309 = scalar_lea.vmem [#allocation3], %s2308
        // Predicated region
        $region56: #{texture_generator_forward.6} parent=50 // pred_check
          %p2310 = pneg %p124
        $region57: #{texture_generator_forward.6} parent=50 // pred_check_branch
          %2312 = sbr.rel (%p2310) target = $region59
        $region58: #{texture_generator_forward.6} parent=50 // pred_region
          %s2313 = smul.u32 16, %s18
          %s2314 = smul.u32 8, %s19
          %s2315 = smul.addr %s2313, 16
          %s2316 = sadd.s32 %s2314, %s2315
          %s2317 = smul.addr %s2316, 4
          %s2318 = scalar_lea.vmem %s3, %s2317
          // Predicated region
          $region60: #{texture_generator_forward.6} parent=58 // pred_check
            _
          $region61: #{texture_generator_forward.6} parent=58 // pred_check_branch
            %2320 = sbr.rel (0) target = $region63
          $region62: #{texture_generator_forward.6} parent=58 // pred_region
            // Predicated region
            $region64: #{texture_generator_forward.6} parent=62 // pred_check
              _
            $region65: #{texture_generator_forward.6} parent=62 // pred_check_branch
              %2322 = sbr.rel (0) target = $region67
            $region66: #{texture_generator_forward.6} parent=62 // pred_region
              loop: start=0, step=1, limit=1
              $region68: #{texture_generator_forward.6} parent=66 // loop_pre_header
                _
              $region69: #{texture_generator_forward.6} parent=66 // loop_header
                %s2324 = sphi 0, %s2328
                %p2325 = scmp.ge.s32.totalorder %s2324, 1
                %s2329 = sphi %s2309, %s2309
                %s2330 = sphi %s2318, %s2318
              $region70: #{texture_generator_forward.6} parent=66 // loop_header_branch
                %2327 = sbr.rel (%p2325) target = $region74
              $region71: #{texture_generator_forward.6} parent=66 // loop_body
                %v2331 = vld [vmem:[%s2329] sm:$0xff]
                %2332 = vst [vmem:[%s2330] sm:$0xff] %v2331
                %v2333 = vld [vmem:[%s2329 + $0x8] sm:$0xff]
                %2334 = vst [vmem:[%s2330 + $0x8] sm:$0xff] %v2333
                %v2335 = vld [vmem:[%s2329 + $0x10] sm:$0xff]
                %2336 = vst [vmem:[%s2330 + $0x10] sm:$0xff] %v2335
                %v2337 = vld [vmem:[%s2329 + $0x18] sm:$0xff]
                %2338 = vst [vmem:[%s2330 + $0x18] sm:$0xff] %v2337
                %v2339 = vld [vmem:[%s2329 + $0x20] sm:$0xff]
                %2340 = vst [vmem:[%s2330 + $0x40] sm:$0xff] %v2339
                %v2341 = vld [vmem:[%s2329 + $0x28] sm:$0xff]
                %2342 = vst [vmem:[%s2330 + $0x48] sm:$0xff] %v2341
                %v2343 = vld [vmem:[%s2329 + $0x30] sm:$0xff]
                %2344 = vst [vmem:[%s2330 + $0x50] sm:$0xff] %v2343
                %v2345 = vld [vmem:[%s2329 + $0x38] sm:$0xff]
                %2346 = vst [vmem:[%s2330 + $0x58] sm:$0xff] %v2345
                %v2347 = vld [vmem:[%s2329 + $0x40] sm:$0xff]
                %2348 = vst [vmem:[%s2330 + $0x80] sm:$0xff] %v2347
                %v2349 = vld [vmem:[%s2329 + $0x48] sm:$0xff]
                %2350 = vst [vmem:[%s2330 + $0x88] sm:$0xff] %v2349
                %v2351 = vld [vmem:[%s2329 + $0x50] sm:$0xff]
                %2352 = vst [vmem:[%s2330 + $0x90] sm:$0xff] %v2351
                %v2353 = vld [vmem:[%s2329 + $0x58] sm:$0xff]
                %2354 = vst [vmem:[%s2330 + $0x98] sm:$0xff] %v2353
                %v2355 = vld [vmem:[%s2329 + $0x60] sm:$0xff]
                %2356 = vst [vmem:[%s2330 + $0xc0] sm:$0xff] %v2355
                %v2357 = vld [vmem:[%s2329 + $0x68] sm:$0xff]
                %2358 = vst [vmem:[%s2330 + $0xc8] sm:$0xff] %v2357
                %v2359 = vld [vmem:[%s2329 + $0x70] sm:$0xff]
                %2360 = vst [vmem:[%s2330 + $0xd0] sm:$0xff] %v2359
                %v2361 = vld [vmem:[%s2329 + $0x78] sm:$0xff]
                %2362 = vst [vmem:[%s2330 + $0xd8] sm:$0xff] %v2361
                %v2363 = vld [vmem:[%s2329 + $0x80] sm:$0xff]
                %2364 = vst [vmem:[%s2330 + $0x100] sm:$0xff] %v2363
                %v2365 = vld [vmem:[%s2329 + $0x88] sm:$0xff]
                %2366 = vst [vmem:[%s2330 + $0x108] sm:$0xff] %v2365
                %v2367 = vld [vmem:[%s2329 + $0x90] sm:$0xff]
                %2368 = vst [vmem:[%s2330 + $0x110] sm:$0xff] %v2367
                %v2369 = vld [vmem:[%s2329 + $0x98] sm:$0xff]
                %2370 = vst [vmem:[%s2330 + $0x118] sm:$0xff] %v2369
                %v2371 = vld [vmem:[%s2329 + $0xa0] sm:$0xff]
                %2372 = vst [vmem:[%s2330 + $0x140] sm:$0xff] %v2371
                %v2373 = vld [vmem:[%s2329 + $0xa8] sm:$0xff]
                %2374 = vst [vmem:[%s2330 + $0x148] sm:$0xff] %v2373
                %v2375 = vld [vmem:[%s2329 + $0xb0] sm:$0xff]
                %2376 = vst [vmem:[%s2330 + $0x150] sm:$0xff] %v2375
                %v2377 = vld [vmem:[%s2329 + $0xb8] sm:$0xff]
                %2378 = vst [vmem:[%s2330 + $0x158] sm:$0xff] %v2377
                %v2379 = vld [vmem:[%s2329 + $0xc0] sm:$0xff]
                %2380 = vst [vmem:[%s2330 + $0x180] sm:$0xff] %v2379
                %v2381 = vld [vmem:[%s2329 + $0xc8] sm:$0xff]
                %2382 = vst [vmem:[%s2330 + $0x188] sm:$0xff] %v2381
                %v2383 = vld [vmem:[%s2329 + $0xd0] sm:$0xff]
                %2384 = vst [vmem:[%s2330 + $0x190] sm:$0xff] %v2383
                %v2385 = vld [vmem:[%s2329 + $0xd8] sm:$0xff]
                %2386 = vst [vmem:[%s2330 + $0x198] sm:$0xff] %v2385
                %v2387 = vld [vmem:[%s2329 + $0xe0] sm:$0xff]
                %2388 = vst [vmem:[%s2330 + $0x1c0] sm:$0xff] %v2387
                %v2389 = vld [vmem:[%s2329 + $0xe8] sm:$0xff]
                %2390 = vst [vmem:[%s2330 + $0x1c8] sm:$0xff] %v2389
                %v2391 = vld [vmem:[%s2329 + $0xf0] sm:$0xff]
                %2392 = vst [vmem:[%s2330 + $0x1d0] sm:$0xff] %v2391
                %v2393 = vld [vmem:[%s2329 + $0xf8] sm:$0xff]
                %2394 = vst [vmem:[%s2330 + $0x1d8] sm:$0xff] %v2393
                %v2395 = vld [vmem:[%s2329 + $0x100] sm:$0xff]
                %2396 = vst [vmem:[%s2330 + $0x200] sm:$0xff] %v2395
                %v2397 = vld [vmem:[%s2329 + $0x108] sm:$0xff]
                %2398 = vst [vmem:[%s2330 + $0x208] sm:$0xff] %v2397
                %v2399 = vld [vmem:[%s2329 + $0x110] sm:$0xff]
                %2400 = vst [vmem:[%s2330 + $0x210] sm:$0xff] %v2399
                %v2401 = vld [vmem:[%s2329 + $0x118] sm:$0xff]
                %2402 = vst [vmem:[%s2330 + $0x218] sm:$0xff] %v2401
                %v2403 = vld [vmem:[%s2329 + $0x120] sm:$0xff]
                %2404 = vst [vmem:[%s2330 + $0x240] sm:$0xff] %v2403
                %v2405 = vld [vmem:[%s2329 + $0x128] sm:$0xff]
                %2406 = vst [vmem:[%s2330 + $0x248] sm:$0xff] %v2405
                %v2407 = vld [vmem:[%s2329 + $0x130] sm:$0xff]
                %2408 = vst [vmem:[%s2330 + $0x250] sm:$0xff] %v2407
                %v2409 = vld [vmem:[%s2329 + $0x138] sm:$0xff]
                %2410 = vst [vmem:[%s2330 + $0x258] sm:$0xff] %v2409
                %v2411 = vld [vmem:[%s2329 + $0x140] sm:$0xff]
                %2412 = vst [vmem:[%s2330 + $0x280] sm:$0xff] %v2411
                %v2413 = vld [vmem:[%s2329 + $0x148] sm:$0xff]
                %2414 = vst [vmem:[%s2330 + $0x288] sm:$0xff] %v2413
                %v2415 = vld [vmem:[%s2329 + $0x150] sm:$0xff]
                %2416 = vst [vmem:[%s2330 + $0x290] sm:$0xff] %v2415
                %v2417 = vld [vmem:[%s2329 + $0x158] sm:$0xff]
                %2418 = vst [vmem:[%s2330 + $0x298] sm:$0xff] %v2417
                %v2419 = vld [vmem:[%s2329 + $0x160] sm:$0xff]
                %2420 = vst [vmem:[%s2330 + $0x2c0] sm:$0xff] %v2419
                %v2421 = vld [vmem:[%s2329 + $0x168] sm:$0xff]
                %2422 = vst [vmem:[%s2330 + $0x2c8] sm:$0xff] %v2421
                %v2423 = vld [vmem:[%s2329 + $0x170] sm:$0xff]
                %2424 = vst [vmem:[%s2330 + $0x2d0] sm:$0xff] %v2423
                %v2425 = vld [vmem:[%s2329 + $0x178] sm:$0xff]
                %2426 = vst [vmem:[%s2330 + $0x2d8] sm:$0xff] %v2425
                %v2427 = vld [vmem:[%s2329 + $0x180] sm:$0xff]
                %2428 = vst [vmem:[%s2330 + $0x300] sm:$0xff] %v2427
                %v2429 = vld [vmem:[%s2329 + $0x188] sm:$0xff]
                %2430 = vst [vmem:[%s2330 + $0x308] sm:$0xff] %v2429
                %v2431 = vld [vmem:[%s2329 + $0x190] sm:$0xff]
                %2432 = vst [vmem:[%s2330 + $0x310] sm:$0xff] %v2431
                %v2433 = vld [vmem:[%s2329 + $0x198] sm:$0xff]
                %2434 = vst [vmem:[%s2330 + $0x318] sm:$0xff] %v2433
                %v2435 = vld [vmem:[%s2329 + $0x1a0] sm:$0xff]
                %2436 = vst [vmem:[%s2330 + $0x340] sm:$0xff] %v2435
                %v2437 = vld [vmem:[%s2329 + $0x1a8] sm:$0xff]
                %2438 = vst [vmem:[%s2330 + $0x348] sm:$0xff] %v2437
                %v2439 = vld [vmem:[%s2329 + $0x1b0] sm:$0xff]
                %2440 = vst [vmem:[%s2330 + $0x350] sm:$0xff] %v2439
                %v2441 = vld [vmem:[%s2329 + $0x1b8] sm:$0xff]
                %2442 = vst [vmem:[%s2330 + $0x358] sm:$0xff] %v2441
                %v2443 = vld [vmem:[%s2329 + $0x1c0] sm:$0xff]
                %2444 = vst [vmem:[%s2330 + $0x380] sm:$0xff] %v2443
                %v2445 = vld [vmem:[%s2329 + $0x1c8] sm:$0xff]
                %2446 = vst [vmem:[%s2330 + $0x388] sm:$0xff] %v2445
                %v2447 = vld [vmem:[%s2329 + $0x1d0] sm:$0xff]
                %2448 = vst [vmem:[%s2330 + $0x390] sm:$0xff] %v2447
                %v2449 = vld [vmem:[%s2329 + $0x1d8] sm:$0xff]
                %2450 = vst [vmem:[%s2330 + $0x398] sm:$0xff] %v2449
                %v2451 = vld [vmem:[%s2329 + $0x1e0] sm:$0xff]
                %2452 = vst [vmem:[%s2330 + $0x3c0] sm:$0xff] %v2451
                %v2453 = vld [vmem:[%s2329 + $0x1e8] sm:$0xff]
                %2454 = vst [vmem:[%s2330 + $0x3c8] sm:$0xff] %v2453
                %v2455 = vld [vmem:[%s2329 + $0x1f0] sm:$0xff]
                %2456 = vst [vmem:[%s2330 + $0x3d0] sm:$0xff] %v2455
                %v2457 = vld [vmem:[%s2329 + $0x1f8] sm:$0xff]
                %2458 = vst [vmem:[%s2330 + $0x3d8] sm:$0xff] %v2457
              $region72: #{texture_generator_forward.6} parent=66 // loop_footer
                %s2328 = sadd.s32 1, %s2324
              $region73: #{texture_generator_forward.6} parent=66 // loop_footer_branch
                %2323 = sbr.rel target = $region69
              $region74: #{texture_generator_forward.6} parent=66 // loop_exit
                _
            $region67: #{texture_generator_forward.6} parent=62 // pred_fallthru
              _
            // Predicated region
            $region75: #{texture_generator_forward.6} parent=62 // pred_check
              _
            $region76: #{texture_generator_forward.6} parent=62 // pred_check_branch
              %2460 = sbr.rel target = $region78
            $region77: #{texture_generator_forward.6} parent=62 // pred_region
              _
            $region78: #{texture_generator_forward.6} parent=62 // pred_fallthru
              _
          $region63: #{texture_generator_forward.6} parent=58 // pred_fallthru
            _
          %2461 = vnop
        $region59: #{texture_generator_forward.6} parent=50 // pred_fallthru
          _
      $region51: #{texture_generator_forward.6} parent=5 // pred_fallthru
        _
      %p2462 = scmp.le.s32.totalorder 2, %s9
      // Predicated region
      $region79: #{texture_generator_forward.6} parent=5 // pred_check
        %p2463 = pneg %p2462
      $region80: #{texture_generator_forward.6} parent=5 // pred_check_branch
        %2465 = sbr.rel (%p2463) target = $region82
      $region81: #{texture_generator_forward.6} parent=5 // pred_region
        %s2466 = ssub.s32 %s9, 2
        // Predicated region
        $region83: #{texture_generator_forward.6} parent=81 // pred_check
          %p2467 = pneg %p130
        $region84: #{texture_generator_forward.6} parent=81 // pred_check_branch
          %2469 = sbr.rel (%p2467) target = $region86
        $region85: #{texture_generator_forward.6} parent=81 // pred_region
          %s2470 = sand.u32 %s115, 1
          %s2471 = sand.u32 %s115, 1
          %s2472 = smul.addr %s2471, 512
          %s2473 = scalar_lea.vmem [#allocation3], %s2472
        $region86: #{texture_generator_forward.6} parent=81 // pred_fallthru
          _
      $region82: #{texture_generator_forward.6} parent=5 // pred_fallthru
        _
    $region6: #{texture_generator_forward.6} parent=1 // loop_footer
      %s13 = sadd.s32 1, %s9
    $region7: #{texture_generator_forward.6} parent=1 // loop_footer_branch
      %8 = sbr.rel target = $region3
    $region8: #{texture_generator_forward.6} parent=1 // loop_exit
      _

// kernel: texture_generator_forward.7
$region0: #{texture_generator_forward.7}
  #allocation0 [shape = 'u32[]', space=smem, size = 0x4, offset = 0x4, fixed_abs, tag = 'smem constant byte address 0x4 - core index']
  #allocation1 [shape = 'u32[144,128]{1,0:T(1,128)}', space=vmem, size = 0x12000, scoped, tag = 'internal scratch']
  %s0 = inlined_call_operand.vmem [shape: bf16[512,128], index: 0, kind: input, shape index: {}]
  %s1 = inlined_call_operand.vmem [shape: bf16[128,1024], index: 1, kind: input, shape index: {}]
  %s2 = inlined_call_operand.vmem [shape: f32[1,1024], index: 2, kind: input, shape index: {}]
  %s3 = inlined_call_operand.vmem [shape: bf16[512,1024], index: 3, kind: output, shape index: {}]
  %s4 = sld [smem:[#allocation0]]
  $region87: #{texture_generator_forward.7} parent=0
    _
  %s6 = ssub.s32 1, %s4
  %s7 = scalar_select 0, %s6, %s4
  $region1: #{texture_generator_forward.7} parent=0
    #allocation2 [shape = 'u8[262144]{0}', space=vmem, size = 0x40000, scoped, tag = 'input window, operand 1']
    #allocation3 [shape = 'u8[1048576]{0}', space=vmem, size = 0x100000, scoped, tag = 'output window, operand 0']
    loop: start=0, step=1, limit=4
    $region2: #{texture_generator_forward.7} parent=1 // loop_pre_header
      _
    $region3: #{texture_generator_forward.7} parent=1 // loop_header
      %s9 = sphi 0, %s13
      %p10 = scmp.ge.s32.totalorder %s9, 4
      %s16 = sphi 0, %s28
      %s17 = sphi 0, %s24
      %s18 = sphi 0, %s16
      %s19 = sphi 0, %s17
      %s20 = sphi 0, %s18
      %s21 = sphi 0, %s19
      %s31 = sphi 0, %s33
      %s34 = sphi 0, %s31
      %s35 = sphi 0, %s34
      %s51 = sphi 0, %s35
      %s57 = sphi 0, %s59
      %s60 = sphi 0, %s57
      %s61 = sphi 0, %s60
      %s77 = sphi 0, %s61
      %s83 = sphi 0, %s85
      %s86 = sphi 0, %s83
      %s87 = sphi 0, %s86
      %s103 = sphi 0, %s87
      %s111 = sphi 0, %s113
      %s114 = sphi 0, %s111
      %s115 = sphi 0, %s114
      %s131 = sphi 0, %s115
    $region4: #{texture_generator_forward.7} parent=1 // loop_header_branch
      %12 = sbr.rel (%p10) target = $region8
    $region5: #{texture_generator_forward.7} parent=1 // loop_body
      %s14 = ssub.s32 %s9, 1
      %s15 = ssub.s32 %s9, 2
      %s22 = sadd.s32 1, %s17
      %p23 = scmp.ge.s32.totalorder %s22, 2
      %s24 = scalar_select %p23, 0, %s22
      %s25 = sadd.s32 1, %s16
      %s26 = scalar_select %p23, %s25, %s16
      %p27 = scmp.ge.s32.totalorder %s26, 1
      %s28 = scalar_select %p27, 0, %s26
      %s29 = ssub.s32 %s16, %s28
      %p30 = scmp.eq.s32.totalorder %s29, 0
      %s32 = sadd.s32 %s31, 1
      %s33 = scalar_select %p30, %s31, %s32
      %p36 = pneg %p30
      %p37 = scmp.eq.s32.totalorder %s9, 1
      %p38 = por %p36, %p37
      %p39 = scmp.ne.s32.totalorder %s31, %s34
      %p40 = scmp.eq.s32.totalorder %s9, 0
      %p41 = por %p39, %p40
      %p42 = scmp.ne.s32.totalorder %s31, %s34
      %p43 = scmp.eq.s32.totalorder %s14, 1
      %p44 = por %p42, %p43
      %p45 = scmp.ne.s32.totalorder %s34, %s35
      %p46 = scmp.eq.s32.totalorder %s14, 0
      %p47 = por %p45, %p46
      %p48 = scmp.ne.s32.totalorder %s34, %s35
      %p49 = scmp.eq.s32.totalorder %s15, 1
      %p50 = por %p48, %p49
      %p52 = scmp.ne.s32.totalorder %s35, %s51
      %p53 = scmp.eq.s32.totalorder %s15, 0
      %p54 = por %p52, %p53
      %s55 = ssub.s32 %s17, %s24
      %p56 = scmp.eq.s32.totalorder %s55, 0
      %s58 = sadd.s32 %s57, 1
      %s59 = scalar_select %p56, %s57, %s58
      %p62 = pneg %p56
      %p63 = scmp.eq.s32.totalorder %s9, 1
      %p64 = por %p62, %p63
      %p65 = scmp.ne.s32.totalorder %s57, %s60
      %p66 = scmp.eq.s32.totalorder %s9, 0
      %p67 = por %p65, %p66
      %p68 = scmp.ne.s32.totalorder %s57, %s60
      %p69 = scmp.eq.s32.totalorder %s14, 1
      %p70 = por %p68, %p69
      %p71 = scmp.ne.s32.totalorder %s60, %s61
      %p72 = scmp.eq.s32.totalorder %s14, 0
      %p73 = por %p71, %p72
      %p74 = scmp.ne.s32.totalorder %s60, %s61
      %p75 = scmp.eq.s32.totalorder %s15, 1
      %p76 = por %p74, %p75
      %p78 = scmp.ne.s32.totalorder %s61, %s77
      %p79 = scmp.eq.s32.totalorder %s15, 0
      %p80 = por %p78, %p79
      %s81 = ssub.s32 %s17, %s24
      %p82 = scmp.eq.s32.totalorder %s81, 0
      %s84 = sadd.s32 %s83, 1
      %s85 = scalar_select %p82, %s83, %s84
      %p88 = pneg %p82
      %p89 = scmp.eq.s32.totalorder %s9, 1
      %p90 = por %p88, %p89
      %p91 = scmp.ne.s32.totalorder %s83, %s86
      %p92 = scmp.eq.s32.totalorder %s9, 0
      %p93 = por %p91, %p92
      %p94 = scmp.ne.s32.totalorder %s83, %s86
      %p95 = scmp.eq.s32.totalorder %s14, 1
      %p96 = por %p94, %p95
      %p97 = scmp.ne.s32.totalorder %s86, %s87
      %p98 = scmp.eq.s32.totalorder %s14, 0
      %p99 = por %p97, %p98
      %p100 = scmp.ne.s32.totalorder %s86, %s87
      %p101 = scmp.eq.s32.totalorder %s15, 1
      %p102 = por %p100, %p101
      %p104 = scmp.ne.s32.totalorder %s87, %s103
      %p105 = scmp.eq.s32.totalorder %s15, 0
      %p106 = por %p104, %p105
      %s107 = ssub.s32 %s16, %s28
      %s108 = ssub.s32 %s17, %s24
      %s109 = sor.u32 %s107, %s108
      %p110 = scmp.eq.s32.totalorder %s109, 0
      %s112 = sadd.s32 %s111, 1
      %s113 = scalar_select %p110, %s111, %s112
      %p116 = pneg %p110
      %p117 = scmp.eq.s32.totalorder %s9, 1
      %p118 = por %p116, %p117
      %p119 = scmp.ne.s32.totalorder %s111, %s114
      %p120 = scmp.eq.s32.totalorder %s9, 0
      %p121 = por %p119, %p120
      %p122 = scmp.ne.s32.totalorder %s111, %s114
      %p123 = scmp.eq.s32.totalorder %s14, 1
      %p124 = por %p122, %p123
      %p125 = scmp.ne.s32.totalorder %s114, %s115
      %p126 = scmp.eq.s32.totalorder %s14, 0
      %p127 = por %p125, %p126
      %p128 = scmp.ne.s32.totalorder %s114, %s115
      %p129 = scmp.eq.s32.totalorder %s15, 1
      %p130 = por %p128, %p129
      %p132 = scmp.ne.s32.totalorder %s115, %s131
      %p133 = scmp.eq.s32.totalorder %s15, 0
      %p134 = por %p132, %p133
      %p135 = scmp.le.s32.totalorder 1, %s9
      %p136 = scmp.lt.s32.totalorder %s9, 3
      %p137 = pnand %p135, %p136
      %p138 = pneg %p137
      // Predicated region
      $region9: #{texture_generator_forward.7} parent=5 // pred_check
        _
      $region10: #{texture_generator_forward.7} parent=5 // pred_check_branch
        %140 = sbr.rel (%p137) target = $region12
      $region11: #{texture_generator_forward.7} parent=5 // pred_region
        %s141 = ssub.s32 %s9, 1
        // Predicated region
        $region13: #{texture_generator_forward.7} parent=11 // pred_check
          %p142 = pneg %p47
        $region14: #{texture_generator_forward.7} parent=11 // pred_check_branch
          %144 = sbr.rel (%p142) target = $region16
        $region15: #{texture_generator_forward.7} parent=11 // pred_region
          %s145 = smul.u32 64, %s18
          %p146 = scmp.lt.s32.totalorder %s145, 63
          %s147 = scalar_select %p146, %s145, 63
          %s148 = smul.addr %s147, 4
          %s149 = scalar_lea.vmem %s0, %s148
          %s150 = smul.u32 64, %s18
        $region16: #{texture_generator_forward.7} parent=11 // pred_fallthru
          _
      $region12: #{texture_generator_forward.7} parent=5 // pred_fallthru
        _
      %p151 = scmp.lt.s32.totalorder %s9, 2
      // Predicated region
      $region17: #{texture_generator_forward.7} parent=5 // pred_check
        %p152 = pneg %p151
      $region18: #{texture_generator_forward.7} parent=5 // pred_check_branch
        %154 = sbr.rel (%p152) target = $region20
      $region19: #{texture_generator_forward.7} parent=5 // pred_region
        // Predicated region
        $region21: #{texture_generator_forward.7} parent=19 // pred_check
          %p155 = pneg %p67
        $region22: #{texture_generator_forward.7} parent=19 // pred_check_branch
          %157 = sbr.rel (%p155) target = $region24
        $region23: #{texture_generator_forward.7} parent=19 // pred_region
          %s158 = sand.u32 %s57, 1
          %s159 = sand.u32 %s57, 1
          %s160 = smul.addr %s159, 256
          %s161 = scalar_lea.vmem [#allocation2], %s160
          %s162 = smul.u32 4, %s17
          %s163 = smul.addr %s162, 4
          %s164 = scalar_lea.vmem %s1, %s163
          // Predicated region
          $region25: #{texture_generator_forward.7} parent=23 // pred_check
            _
          $region26: #{texture_generator_forward.7} parent=23 // pred_check_branch
            %166 = sbr.rel (0) target = $region28
          $region27: #{texture_generator_forward.7} parent=23 // pred_region
            // Predicated region
            $region29: #{texture_generator_forward.7} parent=27 // pred_check
              _
            $region30: #{texture_generator_forward.7} parent=27 // pred_check_branch
              %168 = sbr.rel (0) target = $region32
            $region31: #{texture_generator_forward.7} parent=27 // pred_region
              loop: start=0, step=1, limit=1
              $region33: #{texture_generator_forward.7} parent=31 // loop_pre_header
                _
              $region34: #{texture_generator_forward.7} parent=31 // loop_header
                %s170 = sphi 0, %s174
                %p171 = scmp.ge.s32.totalorder %s170, 1
                %s175 = sphi %s164, %s164
                %s176 = sphi %s161, %s161
              $region35: #{texture_generator_forward.7} parent=31 // loop_header_branch
                %173 = sbr.rel (%p171) target = $region39
              $region36: #{texture_generator_forward.7} parent=31 // loop_body
                %v177 = vld [vmem:[%s175] sm:$0xff]
                %178 = vst [vmem:[%s176] sm:$0xff] %v177
                %v179 = vld [vmem:[%s175 + $0x8] sm:$0xff]
                %180 = vst [vmem:[%s176 + $0x8] sm:$0xff] %v179
                %v181 = vld [vmem:[%s175 + $0x20] sm:$0xff]
                %182 = vst [vmem:[%s176 + $0x10] sm:$0xff] %v181
                %v183 = vld [vmem:[%s175 + $0x28] sm:$0xff]
                %184 = vst [vmem:[%s176 + $0x18] sm:$0xff] %v183
                %v185 = vld [vmem:[%s175 + $0x40] sm:$0xff]
                %186 = vst [vmem:[%s176 + $0x20] sm:$0xff] %v185
                %v187 = vld [vmem:[%s175 + $0x48] sm:$0xff]
                %188 = vst [vmem:[%s176 + $0x28] sm:$0xff] %v187
                %v189 = vld [vmem:[%s175 + $0x60] sm:$0xff]
                %190 = vst [vmem:[%s176 + $0x30] sm:$0xff] %v189
                %v191 = vld [vmem:[%s175 + $0x68] sm:$0xff]
                %192 = vst [vmem:[%s176 + $0x38] sm:$0xff] %v191
                %v193 = vld [vmem:[%s175 + $0x80] sm:$0xff]
                %194 = vst [vmem:[%s176 + $0x40] sm:$0xff] %v193
                %v195 = vld [vmem:[%s175 + $0x88] sm:$0xff]
                %196 = vst [vmem:[%s176 + $0x48] sm:$0xff] %v195
                %v197 = vld [vmem:[%s175 + $0xa0] sm:$0xff]
                %198 = vst [vmem:[%s176 + $0x50] sm:$0xff] %v197
                %v199 = vld [vmem:[%s175 + $0xa8] sm:$0xff]
                %200 = vst [vmem:[%s176 + $0x58] sm:$0xff] %v199
                %v201 = vld [vmem:[%s175 + $0xc0] sm:$0xff]
                %202 = vst [vmem:[%s176 + $0x60] sm:$0xff] %v201
                %v203 = vld [vmem:[%s175 + $0xc8] sm:$0xff]
                %204 = vst [vmem:[%s176 + $0x68] sm:$0xff] %v203
                %v205 = vld [vmem:[%s175 + $0xe0] sm:$0xff]
                %206 = vst [vmem:[%s176 + $0x70] sm:$0xff] %v205
                %v207 = vld [vmem:[%s175 + $0xe8] sm:$0xff]
                %208 = vst [vmem:[%s176 + $0x78] sm:$0xff] %v207
                %v209 = vld [vmem:[%s175 + $0x100] sm:$0xff]
                %210 = vst [vmem:[%s176 + $0x80] sm:$0xff] %v209
                %v211 = vld [vmem:[%s175 + $0x108] sm:$0xff]
                %212 = vst [vmem:[%s176 + $0x88] sm:$0xff] %v211
                %v213 = vld [vmem:[%s175 + $0x120] sm:$0xff]
                %214 = vst [vmem:[%s176 + $0x90] sm:$0xff] %v213
                %v215 = vld [vmem:[%s175 + $0x128] sm:$0xff]
                %216 = vst [vmem:[%s176 + $0x98] sm:$0xff] %v215
                %v217 = vld [vmem:[%s175 + $0x140] sm:$0xff]
                %218 = vst [vmem:[%s176 + $0xa0] sm:$0xff] %v217
                %v219 = vld [vmem:[%s175 + $0x148] sm:$0xff]
                %220 = vst [vmem:[%s176 + $0xa8] sm:$0xff] %v219
                %v221 = vld [vmem:[%s175 + $0x160] sm:$0xff]
                %222 = vst [vmem:[%s176 + $0xb0] sm:$0xff] %v221
                %v223 = vld [vmem:[%s175 + $0x168] sm:$0xff]
                %224 = vst [vmem:[%s176 + $0xb8] sm:$0xff] %v223
                %v225 = vld [vmem:[%s175 + $0x180] sm:$0xff]
                %226 = vst [vmem:[%s176 + $0xc0] sm:$0xff] %v225
                %v227 = vld [vmem:[%s175 + $0x188] sm:$0xff]
                %228 = vst [vmem:[%s176 + $0xc8] sm:$0xff] %v227
                %v229 = vld [vmem:[%s175 + $0x1a0] sm:$0xff]
                %230 = vst [vmem:[%s176 + $0xd0] sm:$0xff] %v229
                %v231 = vld [vmem:[%s175 + $0x1a8] sm:$0xff]
                %232 = vst [vmem:[%s176 + $0xd8] sm:$0xff] %v231
                %v233 = vld [vmem:[%s175 + $0x1c0] sm:$0xff]
                %234 = vst [vmem:[%s176 + $0xe0] sm:$0xff] %v233
                %v235 = vld [vmem:[%s175 + $0x1c8] sm:$0xff]
                %236 = vst [vmem:[%s176 + $0xe8] sm:$0xff] %v235
                %v237 = vld [vmem:[%s175 + $0x1e0] sm:$0xff]
                %238 = vst [vmem:[%s176 + $0xf0] sm:$0xff] %v237
                %v239 = vld [vmem:[%s175 + $0x1e8] sm:$0xff]
                %240 = vst [vmem:[%s176 + $0xf8] sm:$0xff] %v239
              $region37: #{texture_generator_forward.7} parent=31 // loop_footer
                %s174 = sadd.s32 1, %s170
              $region38: #{texture_generator_forward.7} parent=31 // loop_footer_branch
                %169 = sbr.rel target = $region34
              $region39: #{texture_generator_forward.7} parent=31 // loop_exit
                _
            $region32: #{texture_generator_forward.7} parent=27 // pred_fallthru
              _
            // Predicated region
            $region40: #{texture_generator_forward.7} parent=27 // pred_check
              _
            $region41: #{texture_generator_forward.7} parent=27 // pred_check_branch
              %242 = sbr.rel target = $region43
            $region42: #{texture_generator_forward.7} parent=27 // pred_region
              _
            $region43: #{texture_generator_forward.7} parent=27 // pred_fallthru
              _
          $region28: #{texture_generator_forward.7} parent=23 // pred_fallthru
            _
          %243 = vnop
        $region24: #{texture_generator_forward.7} parent=19 // pred_fallthru
          _
        // Predicated region
        $region44: #{texture_generator_forward.7} parent=19 // pred_check
          %p244 = pneg %p93
        $region45: #{texture_generator_forward.7} parent=19 // pred_check_branch
          %246 = sbr.rel (%p244) target = $region47
        $region46: #{texture_generator_forward.7} parent=19 // pred_region
          %s247 = smul.u32 4, %s17
          %p248 = scmp.lt.s32.totalorder %s247, 7
          %s249 = scalar_select %p248, %s247, 7
          %s250 = scalar_lea.vmem %s2, %s249
          %s251 = smul.u32 4, %s17
        $region47: #{texture_generator_forward.7} parent=19 // pred_fallthru
          _
      $region20: #{texture_generator_forward.7} parent=5 // pred_fallthru
        _
      %p252 = scmp.le.s32.totalorder 1, %s9
      %p253 = scmp.lt.s32.totalorder %s9, 3
      %p254 = pnand %p252, %p253
      %p255 = pneg %p254
      // Predicated region
      $region48: #{texture_generator_forward.7} parent=5 // pred_check
        _
      $region49: #{texture_generator_forward.7} parent=5 // pred_check_branch
        %257 = sbr.rel (%p254) target = $region51
      $region50: #{texture_generator_forward.7} parent=5 // pred_region
        %s258 = ssub.s32 %s9, 1
        %s259 = sand.u32 %s60, 1
        %s260 = sand.u32 %s60, 1
        %s261 = smul.addr %s260, 256
        %s262 = scalar_lea.vmem [#allocation2], %s261
        // Predicated region
        $region52: #{texture_generator_forward.7} parent=50 // pred_check
          %p263 = pneg %p73
        $region53: #{texture_generator_forward.7} parent=50 // pred_check_branch
          %265 = sbr.rel (%p263) target = $region55
        $region54: #{texture_generator_forward.7} parent=50 // pred_region
          _
        $region55: #{texture_generator_forward.7} parent=50 // pred_fallthru
          _
        %s266 = smul.u32 64, %s18
        %p267 = scmp.lt.s32.totalorder %s266, 63
        %s268 = scalar_select %p267, %s266, 63
        %s269 = smul.addr %s268, 4
        %s270 = scalar_lea.vmem %s0, %s269
        %p271 = pneg %p47
        %p272 = pneg %p44
        %s273 = sand.u32 %s60, 1
        %s274 = sand.u32 %s60, 1
        %s275 = smul.addr %s274, 256
        %s276 = scalar_lea.vmem [#allocation2], %s275
        %p277 = pneg %p73
        %p278 = pneg %p70
        %s279 = smul.u32 4, %s19
        %p280 = scmp.lt.s32.totalorder %s279, 7
        %s281 = scalar_select %p280, %s279, 7
        %s282 = scalar_lea.vmem %s2, %s281
        %p283 = pneg %p99
        %p284 = pneg %p96
        %p285 = pneg %p127
        %p286 = pneg %p124
        %s287 = sand.u32 %s114, 1
        %s288 = sand.u32 %s114, 1
        %s289 = smul.addr %s288, 1024
        %s290 = scalar_lea.vmem [#allocation3], %s289
        %s291 = smul.u32 64, %s18
        %p292 = scmp.lt.s32.totalorder %s291, 63
        %s293 = scalar_select %p292, %s291, 63
        %s294 = smul.addr %s293, 4
        %s295 = scalar_lea.vmem %s0, %s294
        %s296 = smul.u32 64, %s18
        %s297 = smul.u32 4, %s19
        %s298 = smul.u32 4, %s19
        %p299 = scmp.lt.s32.totalorder %s298, 7
        %s300 = scalar_select %p299, %s298, 7
        %s301 = scalar_lea.vmem %s2, %s300
        %s302 = smul.u32 4, %s19
        %s303 = smul.u32 64, %s18
        %s304 = smul.u32 4, %s19
        %v306 = vld [vmem:[%s295] sm:$0xf]
        %v307 = vld [vmem:[%s295 + $0x4] sm:$0xf]
        %v308 = vld [vmem:[%s295 + $0x8] sm:$0xf]
        %v309 = vld [vmem:[%s295 + $0xc] sm:$0xf]
        %v310 = vld [vmem:[%s295 + $0x10] sm:$0xf]
        %v311 = vld [vmem:[%s295 + $0x14] sm:$0xf]
        %v312 = vld [vmem:[%s295 + $0x18] sm:$0xf]
        %v313 = vld [vmem:[%s295 + $0x1c] sm:$0xf]
        %v314 = vld [vmem:[%s295 + $0x20] sm:$0xf]
        %v315 = vld [vmem:[%s295 + $0x24] sm:$0xf]
        %v316 = vld [vmem:[%s295 + $0x28] sm:$0xf]
        %v317 = vld [vmem:[%s295 + $0x2c] sm:$0xf]
        %v318 = vld [vmem:[%s295 + $0x30] sm:$0xf]
        %v319 = vld [vmem:[%s295 + $0x34] sm:$0xf]
        %v320 = vld [vmem:[%s295 + $0x38] sm:$0xf]
        %v321 = vld [vmem:[%s295 + $0x3c] sm:$0xf]
        %v322 = vld [vmem:[%s295 + $0x40] sm:$0xf]
        %v323 = vld [vmem:[%s295 + $0x44] sm:$0xf]
        %v324 = vld [vmem:[%s295 + $0x48] sm:$0xf]
        %v325 = vld [vmem:[%s295 + $0x4c] sm:$0xf]
        %v326 = vld [vmem:[%s295 + $0x50] sm:$0xf]
        %v327 = vld [vmem:[%s295 + $0x54] sm:$0xf]
        %v328 = vld [vmem:[%s295 + $0x58] sm:$0xf]
        %v329 = vld [vmem:[%s295 + $0x5c] sm:$0xf]
        %v330 = vld [vmem:[%s295 + $0x60] sm:$0xf]
        %v331 = vld [vmem:[%s295 + $0x64] sm:$0xf]
        %v332 = vld [vmem:[%s295 + $0x68] sm:$0xf]
        %v333 = vld [vmem:[%s295 + $0x6c] sm:$0xf]
        %v334 = vld [vmem:[%s295 + $0x70] sm:$0xf]
        %v335 = vld [vmem:[%s295 + $0x74] sm:$0xf]
        %v336 = vld [vmem:[%s295 + $0x78] sm:$0xf]
        %v337 = vld [vmem:[%s295 + $0x7c] sm:$0xf]
        %v338 = vld [vmem:[%s295 + $0x80] sm:$0xf]
        %v339 = vld [vmem:[%s295 + $0x84] sm:$0xf]
        %v340 = vld [vmem:[%s295 + $0x88] sm:$0xf]
        %v341 = vld [vmem:[%s295 + $0x8c] sm:$0xf]
        %v342 = vld [vmem:[%s295 + $0x90] sm:$0xf]
        %v343 = vld [vmem:[%s295 + $0x94] sm:$0xf]
        %v344 = vld [vmem:[%s295 + $0x98] sm:$0xf]
        %v345 = vld [vmem:[%s295 + $0x9c] sm:$0xf]
        %v346 = vld [vmem:[%s295 + $0xa0] sm:$0xf]
        %v347 = vld [vmem:[%s295 + $0xa4] sm:$0xf]
        %v348 = vld [vmem:[%s295 + $0xa8] sm:$0xf]
        %v349 = vld [vmem:[%s295 + $0xac] sm:$0xf]
        %v350 = vld [vmem:[%s295 + $0xb0] sm:$0xf]
        %v351 = vld [vmem:[%s295 + $0xb4] sm:$0xf]
        %v352 = vld [vmem:[%s295 + $0xb8] sm:$0xf]
        %v353 = vld [vmem:[%s295 + $0xbc] sm:$0xf]
        %v354 = vld [vmem:[%s295 + $0xc0] sm:$0xf]
        %v355 = vld [vmem:[%s295 + $0xc4] sm:$0xf]
        %v356 = vld [vmem:[%s295 + $0xc8] sm:$0xf]
        %v357 = vld [vmem:[%s295 + $0xcc] sm:$0xf]
        %v358 = vld [vmem:[%s295 + $0xd0] sm:$0xf]
        %v359 = vld [vmem:[%s295 + $0xd4] sm:$0xf]
        %v360 = vld [vmem:[%s295 + $0xd8] sm:$0xf]
        %v361 = vld [vmem:[%s295 + $0xdc] sm:$0xf]
        %v362 = vld [vmem:[%s295 + $0xe0] sm:$0xf]
        %v363 = vld [vmem:[%s295 + $0xe4] sm:$0xf]
        %v364 = vld [vmem:[%s295 + $0xe8] sm:$0xf]
        %v365 = vld [vmem:[%s295 + $0xec] sm:$0xf]
        %v366 = vld [vmem:[%s295 + $0xf0] sm:$0xf]
        %v367 = vld [vmem:[%s295 + $0xf4] sm:$0xf]
        %v368 = vld [vmem:[%s295 + $0xf8] sm:$0xf]
        %v369 = vld [vmem:[%s295 + $0xfc] sm:$0xf]
        %v370 = vld [vmem:[%s262] sm:$0xff]
        %v371 = vld [vmem:[%s262 + $0x8] sm:$0xff]
        %v372 = vld [vmem:[%s262 + $0x10] sm:$0xff]
        %v373 = vld [vmem:[%s262 + $0x18] sm:$0xff]
        %v374 = vld [vmem:[%s262 + $0x20] sm:$0xff]
        %v375 = vld [vmem:[%s262 + $0x28] sm:$0xff]
        %v376 = vld [vmem:[%s262 + $0x30] sm:$0xff]
        %v377 = vld [vmem:[%s262 + $0x38] sm:$0xff]
        %v378 = vld [vmem:[%s262 + $0x40] sm:$0xff]
        %v379 = vld [vmem:[%s262 + $0x48] sm:$0xff]
        %v380 = vld [vmem:[%s262 + $0x50] sm:$0xff]
        %v381 = vld [vmem:[%s262 + $0x58] sm:$0xff]
        %v382 = vld [vmem:[%s262 + $0x60] sm:$0xff]
        %v383 = vld [vmem:[%s262 + $0x68] sm:$0xff]
        %v384 = vld [vmem:[%s262 + $0x70] sm:$0xff]
        %v385 = vld [vmem:[%s262 + $0x78] sm:$0xff]
        %v386 = vld [vmem:[%s262 + $0x80] sm:$0xff]
        %v387 = vld [vmem:[%s262 + $0x88] sm:$0xff]
        %v388 = vld [vmem:[%s262 + $0x90] sm:$0xff]
        %v389 = vld [vmem:[%s262 + $0x98] sm:$0xff]
        %v390 = vld [vmem:[%s262 + $0xa0] sm:$0xff]
        %v391 = vld [vmem:[%s262 + $0xa8] sm:$0xff]
        %v392 = vld [vmem:[%s262 + $0xb0] sm:$0xff]
        %v393 = vld [vmem:[%s262 + $0xb8] sm:$0xff]
        %v394 = vld [vmem:[%s262 + $0xc0] sm:$0xff]
        %v395 = vld [vmem:[%s262 + $0xc8] sm:$0xff]
        %v396 = vld [vmem:[%s262 + $0xd0] sm:$0xff]
        %v397 = vld [vmem:[%s262 + $0xd8] sm:$0xff]
        %v398 = vld [vmem:[%s262 + $0xe0] sm:$0xff]
        %v399 = vld [vmem:[%s262 + $0xe8] sm:$0xff]
        %v400 = vld [vmem:[%s262 + $0xf0] sm:$0xff]
        %v401 = vld [vmem:[%s262 + $0xf8] sm:$0xff]
        %v402 = vld [vmem:[%s301] sm:$0xf]
        %v404 = vlaneseq
        %v405 = vshrl.u32 %v404, 7
        %v406 = vsub.s32 0, %v405
        %v407 = vrot.slane %v402, %v406
        %v408 = vlaneseq
        %v409 = vshrl.u32 %v408, 7
        %v410 = vsub.s32 1, %v409
        %v411 = vrot.slane %v402, %v410
        %v412 = vlaneseq
        %v413 = vshrl.u32 %v412, 7
        %v414 = vsub.s32 2, %v413
        %v415 = vrot.slane %v402, %v414
        %v416 = vlaneseq
        %v417 = vshrl.u32 %v416, 7
        %v418 = vsub.s32 3, %v417
        %v419 = vrot.slane %v402, %v418
        %v488 = vunpack.c.l.b16 %v306
        %v489 = vunpack.c.l.b16 %v307
        %v490 = vunpack.c.l.b16 %v308
        %v491 = vunpack.c.l.b16 %v309
        %v492 = vunpack.c.l.b16 %v310
        %v493 = vunpack.c.l.b16 %v311
        %v494 = vunpack.c.l.b16 %v312
        %v495 = vunpack.c.l.b16 %v313
        %v496 = vunpack.c.l.b16 %v314
        %v497 = vunpack.c.l.b16 %v315
        %v498 = vunpack.c.l.b16 %v316
        %v499 = vunpack.c.l.b16 %v317
        %v500 = vunpack.c.l.b16 %v318
        %v501 = vunpack.c.l.b16 %v319
        %v502 = vunpack.c.l.b16 %v320
        %v503 = vunpack.c.l.b16 %v321
        %v504 = vunpack.c.l.b16 %v322
        %v505 = vunpack.c.l.b16 %v323
        %v506 = vunpack.c.l.b16 %v324
        %v507 = vunpack.c.l.b16 %v325
        %v508 = vunpack.c.l.b16 %v326
        %v509 = vunpack.c.l.b16 %v327
        %v510 = vunpack.c.l.b16 %v328
        %v511 = vunpack.c.l.b16 %v329
        %v512 = vunpack.c.l.b16 %v330
        %v513 = vunpack.c.l.b16 %v331
        %v514 = vunpack.c.l.b16 %v332
        %v515 = vunpack.c.l.b16 %v333
        %v516 = vunpack.c.l.b16 %v334
        %v517 = vunpack.c.l.b16 %v335
        %v518 = vunpack.c.l.b16 %v336
        %v519 = vunpack.c.l.b16 %v337
        %v520 = vunpack.c.l.b16 %v338
        %v521 = vunpack.c.l.b16 %v339
        %v522 = vunpack.c.l.b16 %v340
        %v523 = vunpack.c.l.b16 %v341
        %v524 = vunpack.c.l.b16 %v342
        %v525 = vunpack.c.l.b16 %v343
        %v526 = vunpack.c.l.b16 %v344
        %v527 = vunpack.c.l.b16 %v345
        %v528 = vunpack.c.l.b16 %v346
        %v529 = vunpack.c.l.b16 %v347
        %v530 = vunpack.c.l.b16 %v348
        %v531 = vunpack.c.l.b16 %v349
        %v532 = vunpack.c.l.b16 %v350
        %v533 = vunpack.c.l.b16 %v351
        %v534 = vunpack.c.l.b16 %v352
        %v535 = vunpack.c.l.b16 %v353
        %v536 = vunpack.c.l.b16 %v354
        %v537 = vunpack.c.l.b16 %v355
        %v538 = vunpack.c.l.b16 %v356
        %v539 = vunpack.c.l.b16 %v357
        %v540 = vunpack.c.l.b16 %v358
        %v541 = vunpack.c.l.b16 %v359
        %v542 = vunpack.c.l.b16 %v360
        %v543 = vunpack.c.l.b16 %v361
        %v544 = vunpack.c.l.b16 %v362
        %v545 = vunpack.c.l.b16 %v363
        %v546 = vunpack.c.l.b16 %v364
        %v547 = vunpack.c.l.b16 %v365
        %v548 = vunpack.c.l.b16 %v366
        %v549 = vunpack.c.l.b16 %v367
        %v550 = vunpack.c.l.b16 %v368
        %v551 = vunpack.c.l.b16 %v369
        %v552 = vpack.c.b16 %v489, %v488
        %v553 = vpack.c.b16 %v491, %v490
        %v554 = vpack.c.b16 %v493, %v492
        %v555 = vpack.c.b16 %v495, %v494
        %v556 = vpack.c.b16 %v497, %v496
        %v557 = vpack.c.b16 %v499, %v498
        %v558 = vpack.c.b16 %v501, %v500
        %v559 = vpack.c.b16 %v503, %v502
        %v560 = vpack.c.b16 %v505, %v504
        %v561 = vpack.c.b16 %v507, %v506
        %v562 = vpack.c.b16 %v509, %v508
        %v563 = vpack.c.b16 %v511, %v510
        %v564 = vpack.c.b16 %v513, %v512
        %v565 = vpack.c.b16 %v515, %v514
        %v566 = vpack.c.b16 %v517, %v516
        %v567 = vpack.c.b16 %v519, %v518
        %v568 = vpack.c.b16 %v521, %v520
        %v569 = vpack.c.b16 %v523, %v522
        %v570 = vpack.c.b16 %v525, %v524
        %v571 = vpack.c.b16 %v527, %v526
        %v572 = vpack.c.b16 %v529, %v528
        %v573 = vpack.c.b16 %v531, %v530
        %v574 = vpack.c.b16 %v533, %v532
        %v575 = vpack.c.b16 %v535, %v534
        %v576 = vpack.c.b16 %v537, %v536
        %v577 = vpack.c.b16 %v539, %v538
        %v578 = vpack.c.b16 %v541, %v540
        %v579 = vpack.c.b16 %v543, %v542
        %v580 = vpack.c.b16 %v545, %v544
        %v581 = vpack.c.b16 %v547, %v546
        %v582 = vpack.c.b16 %v549, %v548
        %v583 = vpack.c.b16 %v551, %v550
        %v648 = vunpack.c.l.b16 %v370
        %v649 = vunpack.c.h.b16 %v370
        %v650 = vunpack.c.l.b16 %v371
        %v651 = vunpack.c.h.b16 %v371
        %v652 = vunpack.c.l.b16 %v372
        %v653 = vunpack.c.h.b16 %v372
        %v654 = vunpack.c.l.b16 %v373
        %v655 = vunpack.c.h.b16 %v373
        %v656 = vunpack.c.l.b16 %v374
        %v657 = vunpack.c.h.b16 %v374
        %v658 = vunpack.c.l.b16 %v375
        %v659 = vunpack.c.h.b16 %v375
        %v660 = vunpack.c.l.b16 %v376
        %v661 = vunpack.c.h.b16 %v376
        %v662 = vunpack.c.l.b16 %v377
        %v663 = vunpack.c.h.b16 %v377
        %v664 = vunpack.c.l.b16 %v378
        %v665 = vunpack.c.h.b16 %v378
        %v666 = vunpack.c.l.b16 %v379
        %v667 = vunpack.c.h.b16 %v379
        %v668 = vunpack.c.l.b16 %v380
        %v669 = vunpack.c.h.b16 %v380
        %v670 = vunpack.c.l.b16 %v381
        %v671 = vunpack.c.h.b16 %v381
        %v672 = vunpack.c.l.b16 %v382
        %v673 = vunpack.c.h.b16 %v382
        %v674 = vunpack.c.l.b16 %v383
        %v675 = vunpack.c.h.b16 %v383
        %v676 = vunpack.c.l.b16 %v384
        %v677 = vunpack.c.h.b16 %v384
        %v678 = vunpack.c.l.b16 %v385
        %v679 = vunpack.c.h.b16 %v385
        %v680 = vunpack.c.l.b16 %v386
        %v681 = vunpack.c.h.b16 %v386
        %v682 = vunpack.c.l.b16 %v387
        %v683 = vunpack.c.h.b16 %v387
        %v684 = vunpack.c.l.b16 %v388
        %v685 = vunpack.c.h.b16 %v388
        %v686 = vunpack.c.l.b16 %v389
        %v687 = vunpack.c.h.b16 %v389
        %v688 = vunpack.c.l.b16 %v390
        %v689 = vunpack.c.h.b16 %v390
        %v690 = vunpack.c.l.b16 %v391
        %v691 = vunpack.c.h.b16 %v391
        %v692 = vunpack.c.l.b16 %v392
        %v693 = vunpack.c.h.b16 %v392
        %v694 = vunpack.c.l.b16 %v393
        %v695 = vunpack.c.h.b16 %v393
        %v696 = vunpack.c.l.b16 %v394
        %v697 = vunpack.c.h.b16 %v394
        %v698 = vunpack.c.l.b16 %v395
        %v699 = vunpack.c.h.b16 %v395
        %v700 = vunpack.c.l.b16 %v396
        %v701 = vunpack.c.h.b16 %v396
        %v702 = vunpack.c.l.b16 %v397
        %v703 = vunpack.c.h.b16 %v397
        %v704 = vunpack.c.l.b16 %v398
        %v705 = vunpack.c.h.b16 %v398
        %v706 = vunpack.c.l.b16 %v399
        %v707 = vunpack.c.h.b16 %v399
        %v708 = vunpack.c.l.b16 %v400
        %v709 = vunpack.c.h.b16 %v400
        %v710 = vunpack.c.l.b16 %v401
        %v711 = vunpack.c.h.b16 %v401
        %v712 = vpack.c.b16 %v652, %v648
        %v713 = vpack.c.b16 %v653, %v649
        %v714 = vpack.c.b16 %v654, %v650
        %v715 = vpack.c.b16 %v655, %v651
        %v716 = vpack.c.b16 %v660, %v656
        %v717 = vpack.c.b16 %v661, %v657
        %v718 = vpack.c.b16 %v662, %v658
        %v719 = vpack.c.b16 %v663, %v659
        %v720 = vpack.c.b16 %v668, %v664
        %v721 = vpack.c.b16 %v669, %v665
        %v722 = vpack.c.b16 %v670, %v666
        %v723 = vpack.c.b16 %v671, %v667
        %v724 = vpack.c.b16 %v676, %v672
        %v725 = vpack.c.b16 %v677, %v673
        %v726 = vpack.c.b16 %v678, %v674
        %v727 = vpack.c.b16 %v679, %v675
        %v728 = vpack.c.b16 %v684, %v680
        %v729 = vpack.c.b16 %v685, %v681
        %v730 = vpack.c.b16 %v686, %v682
        %v731 = vpack.c.b16 %v687, %v683
        %v732 = vpack.c.b16 %v692, %v688
        %v733 = vpack.c.b16 %v693, %v689
        %v734 = vpack.c.b16 %v694, %v690
        %v735 = vpack.c.b16 %v695, %v691
        %v736 = vpack.c.b16 %v700, %v696
        %v737 = vpack.c.b16 %v701, %v697
        %v738 = vpack.c.b16 %v702, %v698
        %v739 = vpack.c.b16 %v703, %v699
        %v740 = vpack.c.b16 %v708, %v704
        %v741 = vpack.c.b16 %v709, %v705
        %v742 = vpack.c.b16 %v710, %v706
        %v743 = vpack.c.b16 %v711, %v707
        %776 = vmatprep.subr.bf16.mxu0 %v741
        %777 = vmatpush1.bf16.msra.mxu0 %v740
        %778 = vmatprep.subr.bf16.mxu0 %v737
        %779 = vmatpush1.bf16.msra.mxu0 %v736
        %780 = vmatprep.subr.bf16.mxu0 %v733
        %781 = vmatpush1.bf16.msra.mxu0 %v732
        %782 = vmatprep.subr.bf16.mxu0 %v729
        %783 = vmatpush1.bf16.msra.mxu0 %v728
        %784 = vmatprep.subr.bf16.mxu0 %v725
        %785 = vmatpush1.bf16.msra.mxu0 %v724
        %786 = vmatprep.subr.bf16.mxu0 %v721
        %787 = vmatpush1.bf16.msra.mxu0 %v720
        %788 = vmatprep.subr.bf16.mxu0 %v717
        %789 = vmatpush1.bf16.msra.mxu0 %v716
        %790 = vmatprep.subr.bf16.mxu0 %v713
        %791 = vmatpush1.bf16.msra.mxu0 %v712
        %792 = vmatprep.subr.bf16.mxu0 0
        %793 = vmatpush2.bf16.msra.mxu0 0
        %794 = vmatprep.subr.bf16.mxu0 0
        %795 = vmatpush2.bf16.msra.mxu0 0
        %796 = vmatprep.subr.bf16.mxu0 0
        %797 = vmatpush2.bf16.msra.mxu0 0
        %798 = vmatprep.subr.bf16.mxu0 0
        %799 = vmatpush2.bf16.msra.mxu0 0
        %800 = vmatprep.subr.bf16.mxu0 0
        %801 = vmatpush2.bf16.msra.mxu0 0
        %802 = vmatprep.subr.bf16.mxu0 0
        %803 = vmatpush2.bf16.msra.mxu0 0
        %804 = vmatprep.subr.bf16.mxu0 0
        %805 = vmatpush2.bf16.msra.mxu0 0
        %806 = vmatprep.subr.bf16.mxu0 0
        %807 = vmatpush2.bf16.msra.mxu0 0
        %808 = vmatprep.mubr.bf16.mxu0 0
        %809 = vmatmul.mubr.bf16.gmra.mxu0 %v552
        %v810 = vpop.f32.mrf.mxu0
        %v811 = vadd.f32 %v407, %v810
        %v812 = vpop.f32.mrf.mxu0
        %v813 = vadd.f32 %v411, %v812
        %v814 = vpop.f32.mrf.mxu0
        %v815 = vadd.f32 %v407, %v814
        %v816 = vpop.f32.mrf.mxu0
        %v817 = vadd.f32 %v411, %v816
        %818 = vmatprep.mubr.bf16.mxu0 0
        %819 = vmatmul.mubr.bf16.gmra.mxu0 %v553
        %v820 = vpop.f32.mrf.mxu0
        %v821 = vadd.f32 %v407, %v820
        %v822 = vpop.f32.mrf.mxu0
        %v823 = vadd.f32 %v411, %v822
        %v824 = vpop.f32.mrf.mxu0
        %v825 = vadd.f32 %v407, %v824
        %v826 = vpop.f32.mrf.mxu0
        %v827 = vadd.f32 %v411, %v826
        %828 = vmatprep.mubr.bf16.mxu0 0
        %829 = vmatmul.mubr.bf16.gmra.mxu0 %v554
        %v830 = vpop.f32.mrf.mxu0
        %v831 = vadd.f32 %v407, %v830
        %v832 = vpop.f32.mrf.mxu0
        %v833 = vadd.f32 %v411, %v832
        %v834 = vpop.f32.mrf.mxu0
        %v835 = vadd.f32 %v407, %v834
        %v836 = vpop.f32.mrf.mxu0
        %v837 = vadd.f32 %v411, %v836
        %838 = vmatprep.mubr.bf16.mxu0 0
        %839 = vmatmul.mubr.bf16.gmra.mxu0 %v555
        %v840 = vpop.f32.mrf.mxu0
        %v841 = vadd.f32 %v407, %v840
        %v842 = vpop.f32.mrf.mxu0
        %v843 = vadd.f32 %v411, %v842
        %v844 = vpop.f32.mrf.mxu0
        %v845 = vadd.f32 %v407, %v844
        %v846 = vpop.f32.mrf.mxu0
        %v847 = vadd.f32 %v411, %v846
        %848 = vmatprep.mubr.bf16.mxu0 0
        %849 = vmatmul.mubr.bf16.gmra.mxu0 %v556
        %v850 = vpop.f32.mrf.mxu0
        %v851 = vadd.f32 %v407, %v850
        %v852 = vpop.f32.mrf.mxu0
        %v853 = vadd.f32 %v411, %v852
        %v854 = vpop.f32.mrf.mxu0
        %v855 = vadd.f32 %v407, %v854
        %v856 = vpop.f32.mrf.mxu0
        %v857 = vadd.f32 %v411, %v856
        %858 = vmatprep.mubr.bf16.mxu0 0
        %859 = vmatmul.mubr.bf16.gmra.mxu0 %v557
        %v860 = vpop.f32.mrf.mxu0
        %v861 = vadd.f32 %v407, %v860
        %v862 = vpop.f32.mrf.mxu0
        %v863 = vadd.f32 %v411, %v862
        %v864 = vpop.f32.mrf.mxu0
        %v865 = vadd.f32 %v407, %v864
        %v866 = vpop.f32.mrf.mxu0
        %v867 = vadd.f32 %v411, %v866
        %868 = vmatprep.mubr.bf16.mxu0 0
        %869 = vmatmul.mubr.bf16.gmra.mxu0 %v558
        %v870 = vpop.f32.mrf.mxu0
        %v871 = vadd.f32 %v407, %v870
        %v872 = vpop.f32.mrf.mxu0
        %v873 = vadd.f32 %v411, %v872
        %v874 = vpop.f32.mrf.mxu0
        %v875 = vadd.f32 %v407, %v874
        %v876 = vpop.f32.mrf.mxu0
        %v877 = vadd.f32 %v411, %v876
        %878 = vmatprep.mubr.bf16.mxu0 0
        %879 = vmatmul.mubr.bf16.gmra.mxu0 %v559
        %v880 = vpop.f32.mrf.mxu0
        %v881 = vadd.f32 %v407, %v880
        %v882 = vpop.f32.mrf.mxu0
        %v883 = vadd.f32 %v411, %v882
        %v884 = vpop.f32.mrf.mxu0
        %v885 = vadd.f32 %v407, %v884
        %v886 = vpop.f32.mrf.mxu0
        %v887 = vadd.f32 %v411, %v886
        %888 = vmatprep.mubr.bf16.mxu0 0
        %889 = vmatmul.mubr.bf16.gmra.mxu0 %v560
        %v890 = vpop.f32.mrf.mxu0
        %v891 = vadd.f32 %v407, %v890
        %v892 = vpop.f32.mrf.mxu0
        %v893 = vadd.f32 %v411, %v892
        %v894 = vpop.f32.mrf.mxu0
        %v895 = vadd.f32 %v407, %v894
        %v896 = vpop.f32.mrf.mxu0
        %v897 = vadd.f32 %v411, %v896
        %898 = vmatprep.mubr.bf16.mxu0 0
        %899 = vmatmul.mubr.bf16.gmra.mxu0 %v561
        %v900 = vpop.f32.mrf.mxu0
        %v901 = vadd.f32 %v407, %v900
        %v902 = vpop.f32.mrf.mxu0
        %v903 = vadd.f32 %v411, %v902
        %v904 = vpop.f32.mrf.mxu0
        %v905 = vadd.f32 %v407, %v904
        %v906 = vpop.f32.mrf.mxu0
        %v907 = vadd.f32 %v411, %v906
        %908 = vmatprep.mubr.bf16.mxu0 0
        %909 = vmatmul.mubr.bf16.gmra.mxu0 %v562
        %v910 = vpop.f32.mrf.mxu0
        %v911 = vadd.f32 %v407, %v910
        %v912 = vpop.f32.mrf.mxu0
        %v913 = vadd.f32 %v411, %v912
        %v914 = vpop.f32.mrf.mxu0
        %v915 = vadd.f32 %v407, %v914
        %v916 = vpop.f32.mrf.mxu0
        %v917 = vadd.f32 %v411, %v916
        %918 = vmatprep.mubr.bf16.mxu0 0
        %919 = vmatmul.mubr.bf16.gmra.mxu0 %v563
        %v920 = vpop.f32.mrf.mxu0
        %v921 = vadd.f32 %v407, %v920
        %v922 = vpop.f32.mrf.mxu0
        %v923 = vadd.f32 %v411, %v922
        %v924 = vpop.f32.mrf.mxu0
        %v925 = vadd.f32 %v407, %v924
        %v926 = vpop.f32.mrf.mxu0
        %v927 = vadd.f32 %v411, %v926
        %928 = vmatprep.mubr.bf16.mxu0 0
        %929 = vmatmul.mubr.bf16.gmra.mxu0 %v564
        %v930 = vpop.f32.mrf.mxu0
        %v931 = vadd.f32 %v407, %v930
        %v932 = vpop.f32.mrf.mxu0
        %v933 = vadd.f32 %v411, %v932
        %v934 = vpop.f32.mrf.mxu0
        %v935 = vadd.f32 %v407, %v934
        %v936 = vpop.f32.mrf.mxu0
        %v937 = vadd.f32 %v411, %v936
        %938 = vmatprep.mubr.bf16.mxu0 0
        %939 = vmatmul.mubr.bf16.gmra.mxu0 %v565
        %v940 = vpop.f32.mrf.mxu0
        %v941 = vadd.f32 %v407, %v940
        %v942 = vpop.f32.mrf.mxu0
        %v943 = vadd.f32 %v411, %v942
        %v944 = vpop.f32.mrf.mxu0
        %v945 = vadd.f32 %v407, %v944
        %v946 = vpop.f32.mrf.mxu0
        %v947 = vadd.f32 %v411, %v946
        %948 = vmatprep.mubr.bf16.mxu0 0
        %949 = vmatmul.mubr.bf16.gmra.mxu0 %v566
        %v950 = vpop.f32.mrf.mxu0
        %v951 = vadd.f32 %v407, %v950
        %v952 = vpop.f32.mrf.mxu0
        %v953 = vadd.f32 %v411, %v952
        %v954 = vpop.f32.mrf.mxu0
        %v955 = vadd.f32 %v407, %v954
        %v956 = vpop.f32.mrf.mxu0
        %v957 = vadd.f32 %v411, %v956
        %958 = vmatprep.mubr.bf16.mxu0 0
        %959 = vmatmul.mubr.bf16.gmra.mxu0 %v567
        %v960 = vpop.f32.mrf.mxu0
        %v961 = vadd.f32 %v407, %v960
        %v962 = vpop.f32.mrf.mxu0
        %v963 = vadd.f32 %v411, %v962
        %v964 = vpop.f32.mrf.mxu0
        %v965 = vadd.f32 %v407, %v964
        %v966 = vpop.f32.mrf.mxu0
        %v967 = vadd.f32 %v411, %v966
        %968 = vmatprep.mubr.bf16.mxu0 0
        %969 = vmatmul.mubr.bf16.gmra.mxu0 %v568
        %v970 = vpop.f32.mrf.mxu0
        %v971 = vadd.f32 %v407, %v970
        %v972 = vpop.f32.mrf.mxu0
        %v973 = vadd.f32 %v411, %v972
        %v974 = vpop.f32.mrf.mxu0
        %v975 = vadd.f32 %v407, %v974
        %v976 = vpop.f32.mrf.mxu0
        %v977 = vadd.f32 %v411, %v976
        %978 = vmatprep.mubr.bf16.mxu0 0
        %979 = vmatmul.mubr.bf16.gmra.mxu0 %v569
        %v980 = vpop.f32.mrf.mxu0
        %v981 = vadd.f32 %v407, %v980
        %v982 = vpop.f32.mrf.mxu0
        %v983 = vadd.f32 %v411, %v982
        %v984 = vpop.f32.mrf.mxu0
        %v985 = vadd.f32 %v407, %v984
        %v986 = vpop.f32.mrf.mxu0
        %v987 = vadd.f32 %v411, %v986
        %988 = vmatprep.mubr.bf16.mxu0 0
        %989 = vmatmul.mubr.bf16.gmra.mxu0 %v570
        %v990 = vpop.f32.mrf.mxu0
        %v991 = vadd.f32 %v407, %v990
        %v992 = vpop.f32.mrf.mxu0
        %v993 = vadd.f32 %v411, %v992
        %v994 = vpop.f32.mrf.mxu0
        %v995 = vadd.f32 %v407, %v994
        %v996 = vpop.f32.mrf.mxu0
        %v997 = vadd.f32 %v411, %v996
        %998 = vmatprep.mubr.bf16.mxu0 0
        %999 = vmatmul.mubr.bf16.gmra.mxu0 %v571
        %v1000 = vpop.f32.mrf.mxu0
        %v1001 = vadd.f32 %v407, %v1000
        %v1002 = vpop.f32.mrf.mxu0
        %v1003 = vadd.f32 %v411, %v1002
        %v1004 = vpop.f32.mrf.mxu0
        %v1005 = vadd.f32 %v407, %v1004
        %v1006 = vpop.f32.mrf.mxu0
        %v1007 = vadd.f32 %v411, %v1006
        %1008 = vmatprep.mubr.bf16.mxu0 0
        %1009 = vmatmul.mubr.bf16.gmra.mxu0 %v572
        %v1010 = vpop.f32.mrf.mxu0
        %v1011 = vadd.f32 %v407, %v1010
        %v1012 = vpop.f32.mrf.mxu0
        %v1013 = vadd.f32 %v411, %v1012
        %v1014 = vpop.f32.mrf.mxu0
        %v1015 = vadd.f32 %v407, %v1014
        %v1016 = vpop.f32.mrf.mxu0
        %v1017 = vadd.f32 %v411, %v1016
        %1018 = vmatprep.mubr.bf16.mxu0 0
        %1019 = vmatmul.mubr.bf16.gmra.mxu0 %v573
        %v1020 = vpop.f32.mrf.mxu0
        %v1021 = vadd.f32 %v407, %v1020
        %v1022 = vpop.f32.mrf.mxu0
        %v1023 = vadd.f32 %v411, %v1022
        %v1024 = vpop.f32.mrf.mxu0
        %v1025 = vadd.f32 %v407, %v1024
        %v1026 = vpop.f32.mrf.mxu0
        %v1027 = vadd.f32 %v411, %v1026
        %1028 = vmatprep.mubr.bf16.mxu0 0
        %1029 = vmatmul.mubr.bf16.gmra.mxu0 %v574
        %v1030 = vpop.f32.mrf.mxu0
        %v1031 = vadd.f32 %v407, %v1030
        %v1032 = vpop.f32.mrf.mxu0
        %v1033 = vadd.f32 %v411, %v1032
        %v1034 = vpop.f32.mrf.mxu0
        %v1035 = vadd.f32 %v407, %v1034
        %v1036 = vpop.f32.mrf.mxu0
        %v1037 = vadd.f32 %v411, %v1036
        %1038 = vmatprep.mubr.bf16.mxu0 0
        %1039 = vmatmul.mubr.bf16.gmra.mxu0 %v575
        %v1040 = vpop.f32.mrf.mxu0
        %v1041 = vadd.f32 %v407, %v1040
        %v1042 = vpop.f32.mrf.mxu0
        %v1043 = vadd.f32 %v411, %v1042
        %v1044 = vpop.f32.mrf.mxu0
        %v1045 = vadd.f32 %v407, %v1044
        %v1046 = vpop.f32.mrf.mxu0
        %v1047 = vadd.f32 %v411, %v1046
        %1048 = vmatprep.mubr.bf16.mxu0 0
        %1049 = vmatmul.mubr.bf16.gmra.mxu0 %v576
        %v1050 = vpop.f32.mrf.mxu0
        %v1051 = vadd.f32 %v407, %v1050
        %v1052 = vpop.f32.mrf.mxu0
        %v1053 = vadd.f32 %v411, %v1052
        %v1054 = vpop.f32.mrf.mxu0
        %v1055 = vadd.f32 %v407, %v1054
        %v1056 = vpop.f32.mrf.mxu0
        %v1057 = vadd.f32 %v411, %v1056
        %1058 = vmatprep.mubr.bf16.mxu0 0
        %1059 = vmatmul.mubr.bf16.gmra.mxu0 %v577
        %v1060 = vpop.f32.mrf.mxu0
        %v1061 = vadd.f32 %v407, %v1060
        %v1062 = vpop.f32.mrf.mxu0
        %v1063 = vadd.f32 %v411, %v1062
        %v1064 = vpop.f32.mrf.mxu0
        %v1065 = vadd.f32 %v407, %v1064
        %v1066 = vpop.f32.mrf.mxu0
        %v1067 = vadd.f32 %v411, %v1066
        %1068 = vmatprep.mubr.bf16.mxu0 0
        %1069 = vmatmul.mubr.bf16.gmra.mxu0 %v578
        %v1070 = vpop.f32.mrf.mxu0
        %v1071 = vadd.f32 %v407, %v1070
        %v1072 = vpop.f32.mrf.mxu0
        %v1073 = vadd.f32 %v411, %v1072
        %v1074 = vpop.f32.mrf.mxu0
        %v1075 = vadd.f32 %v407, %v1074
        %v1076 = vpop.f32.mrf.mxu0
        %v1077 = vadd.f32 %v411, %v1076
        %1078 = vmatprep.mubr.bf16.mxu0 0
        %1079 = vmatmul.mubr.bf16.gmra.mxu0 %v579
        %v1080 = vpop.f32.mrf.mxu0
        %v1081 = vadd.f32 %v407, %v1080
        %v1082 = vpop.f32.mrf.mxu0
        %v1083 = vadd.f32 %v411, %v1082
        %v1084 = vpop.f32.mrf.mxu0
        %v1085 = vadd.f32 %v407, %v1084
        %v1086 = vpop.f32.mrf.mxu0
        %v1087 = vadd.f32 %v411, %v1086
        %1088 = vmatprep.mubr.bf16.mxu0 0
        %1089 = vmatmul.mubr.bf16.gmra.mxu0 %v580
        %v1090 = vpop.f32.mrf.mxu0
        %v1091 = vadd.f32 %v407, %v1090
        %v1092 = vpop.f32.mrf.mxu0
        %v1093 = vadd.f32 %v411, %v1092
        %v1094 = vpop.f32.mrf.mxu0
        %v1095 = vadd.f32 %v407, %v1094
        %v1096 = vpop.f32.mrf.mxu0
        %v1097 = vadd.f32 %v411, %v1096
        %1098 = vmatprep.mubr.bf16.mxu0 0
        %1099 = vmatmul.mubr.bf16.gmra.mxu0 %v581
        %v1100 = vpop.f32.mrf.mxu0
        %v1101 = vadd.f32 %v407, %v1100
        %v1102 = vpop.f32.mrf.mxu0
        %v1103 = vadd.f32 %v411, %v1102
        %v1104 = vpop.f32.mrf.mxu0
        %v1105 = vadd.f32 %v407, %v1104
        %v1106 = vpop.f32.mrf.mxu0
        %v1107 = vadd.f32 %v411, %v1106
        %1108 = vmatprep.mubr.bf16.mxu0 0
        %1109 = vmatmul.mubr.bf16.gmra.mxu0 %v582
        %v1110 = vpop.f32.mrf.mxu0
        %v1111 = vadd.f32 %v407, %v1110
        %v1112 = vpop.f32.mrf.mxu0
        %v1113 = vadd.f32 %v411, %v1112
        %v1114 = vpop.f32.mrf.mxu0
        %v1115 = vadd.f32 %v407, %v1114
        %v1116 = vpop.f32.mrf.mxu0
        %v1117 = vadd.f32 %v411, %v1116
        %1118 = vmatprep.mubr.bf16.mxu0 0
        %1119 = vmatmul.mubr.bf16.gmra.mxu0 %v583
        %v1120 = vpop.f32.mrf.mxu0
        %v1121 = vadd.f32 %v407, %v1120
        %v1122 = vpop.f32.mrf.mxu0
        %v1123 = vadd.f32 %v411, %v1122
        %v1124 = vpop.f32.mrf.mxu0
        %v1125 = vadd.f32 %v407, %v1124
        %v1126 = vpop.f32.mrf.mxu0
        %v1127 = vadd.f32 %v411, %v1126
        %1128 = vdwg.mxu0
        %1129 = vmatprep.subr.bf16.mxu0 %v743
        %1130 = vmatpush1.bf16.msra.mxu0 %v742
        %1131 = vmatprep.subr.bf16.mxu0 %v739
        %1132 = vmatpush1.bf16.msra.mxu0 %v738
        %1133 = vmatprep.subr.bf16.mxu0 %v735
        %1134 = vmatpush1.bf16.msra.mxu0 %v734
        %1135 = vmatprep.subr.bf16.mxu0 %v731
        %1136 = vmatpush1.bf16.msra.mxu0 %v730
        %1137 = vmatprep.subr.bf16.mxu0 %v727
        %1138 = vmatpush1.bf16.msra.mxu0 %v726
        %1139 = vmatprep.subr.bf16.mxu0 %v723
        %1140 = vmatpush1.bf16.msra.mxu0 %v722
        %1141 = vmatprep.subr.bf16.mxu0 %v719
        %1142 = vmatpush1.bf16.msra.mxu0 %v718
        %1143 = vmatprep.subr.bf16.mxu0 %v715
        %1144 = vmatpush1.bf16.msra.mxu0 %v714
        %1145 = vmatprep.subr.bf16.mxu0 0
        %1146 = vmatpush2.bf16.msra.mxu0 0
        %1147 = vmatprep.subr.bf16.mxu0 0
        %1148 = vmatpush2.bf16.msra.mxu0 0
        %1149 = vmatprep.subr.bf16.mxu0 0
        %1150 = vmatpush2.bf16.msra.mxu0 0
        %1151 = vmatprep.subr.bf16.mxu0 0
        %1152 = vmatpush2.bf16.msra.mxu0 0
        %1153 = vmatprep.subr.bf16.mxu0 0
        %1154 = vmatpush2.bf16.msra.mxu0 0
        %1155 = vmatprep.subr.bf16.mxu0 0
        %1156 = vmatpush2.bf16.msra.mxu0 0
        %1157 = vmatprep.subr.bf16.mxu0 0
        %1158 = vmatpush2.bf16.msra.mxu0 0
        %1159 = vmatprep.subr.bf16.mxu0 0
        %1160 = vmatpush2.bf16.msra.mxu0 0
        %1161 = vmatprep.mubr.bf16.mxu0 0
        %1162 = vmatmul.mubr.bf16.gmra.mxu0 %v552
        %v1163 = vpop.f32.mrf.mxu0
        %v1164 = vadd.f32 %v415, %v1163
        %v1165 = vpop.f32.mrf.mxu0
        %v1166 = vadd.f32 %v419, %v1165
        %v1167 = vpop.f32.mrf.mxu0
        %v1168 = vadd.f32 %v415, %v1167
        %v1169 = vpop.f32.mrf.mxu0
        %v1170 = vadd.f32 %v419, %v1169
        %1171 = vmatprep.mubr.bf16.mxu0 0
        %1172 = vmatmul.mubr.bf16.gmra.mxu0 %v553
        %v1173 = vpop.f32.mrf.mxu0
        %v1174 = vadd.f32 %v415, %v1173
        %v1175 = vpop.f32.mrf.mxu0
        %v1176 = vadd.f32 %v419, %v1175
        %v1177 = vpop.f32.mrf.mxu0
        %v1178 = vadd.f32 %v415, %v1177
        %v1179 = vpop.f32.mrf.mxu0
        %v1180 = vadd.f32 %v419, %v1179
        %1181 = vmatprep.mubr.bf16.mxu0 0
        %1182 = vmatmul.mubr.bf16.gmra.mxu0 %v554
        %v1183 = vpop.f32.mrf.mxu0
        %v1184 = vadd.f32 %v415, %v1183
        %v1185 = vpop.f32.mrf.mxu0
        %v1186 = vadd.f32 %v419, %v1185
        %v1187 = vpop.f32.mrf.mxu0
        %v1188 = vadd.f32 %v415, %v1187
        %v1189 = vpop.f32.mrf.mxu0
        %v1190 = vadd.f32 %v419, %v1189
        %1191 = vmatprep.mubr.bf16.mxu0 0
        %1192 = vmatmul.mubr.bf16.gmra.mxu0 %v555
        %v1193 = vpop.f32.mrf.mxu0
        %v1194 = vadd.f32 %v415, %v1193
        %v1195 = vpop.f32.mrf.mxu0
        %v1196 = vadd.f32 %v419, %v1195
        %v1197 = vpop.f32.mrf.mxu0
        %v1198 = vadd.f32 %v415, %v1197
        %v1199 = vpop.f32.mrf.mxu0
        %v1200 = vadd.f32 %v419, %v1199
        %1201 = vmatprep.mubr.bf16.mxu0 0
        %1202 = vmatmul.mubr.bf16.gmra.mxu0 %v556
        %v1203 = vpop.f32.mrf.mxu0
        %v1204 = vadd.f32 %v415, %v1203
        %v1205 = vpop.f32.mrf.mxu0
        %v1206 = vadd.f32 %v419, %v1205
        %v1207 = vpop.f32.mrf.mxu0
        %v1208 = vadd.f32 %v415, %v1207
        %v1209 = vpop.f32.mrf.mxu0
        %v1210 = vadd.f32 %v419, %v1209
        %1211 = vmatprep.mubr.bf16.mxu0 0
        %1212 = vmatmul.mubr.bf16.gmra.mxu0 %v557
        %v1213 = vpop.f32.mrf.mxu0
        %v1214 = vadd.f32 %v415, %v1213
        %v1215 = vpop.f32.mrf.mxu0
        %v1216 = vadd.f32 %v419, %v1215
        %v1217 = vpop.f32.mrf.mxu0
        %v1218 = vadd.f32 %v415, %v1217
        %v1219 = vpop.f32.mrf.mxu0
        %v1220 = vadd.f32 %v419, %v1219
        %1221 = vmatprep.mubr.bf16.mxu0 0
        %1222 = vmatmul.mubr.bf16.gmra.mxu0 %v558
        %v1223 = vpop.f32.mrf.mxu0
        %v1224 = vadd.f32 %v415, %v1223
        %v1225 = vpop.f32.mrf.mxu0
        %v1226 = vadd.f32 %v419, %v1225
        %v1227 = vpop.f32.mrf.mxu0
        %v1228 = vadd.f32 %v415, %v1227
        %v1229 = vpop.f32.mrf.mxu0
        %v1230 = vadd.f32 %v419, %v1229
        %1231 = vmatprep.mubr.bf16.mxu0 0
        %1232 = vmatmul.mubr.bf16.gmra.mxu0 %v559
        %v1233 = vpop.f32.mrf.mxu0
        %v1234 = vadd.f32 %v415, %v1233
        %v1235 = vpop.f32.mrf.mxu0
        %v1236 = vadd.f32 %v419, %v1235
        %v1237 = vpop.f32.mrf.mxu0
        %v1238 = vadd.f32 %v415, %v1237
        %v1239 = vpop.f32.mrf.mxu0
        %v1240 = vadd.f32 %v419, %v1239
        %1241 = vmatprep.mubr.bf16.mxu0 0
        %1242 = vmatmul.mubr.bf16.gmra.mxu0 %v560
        %v1243 = vpop.f32.mrf.mxu0
        %v1244 = vadd.f32 %v415, %v1243
        %v1245 = vpop.f32.mrf.mxu0
        %v1246 = vadd.f32 %v419, %v1245
        %v1247 = vpop.f32.mrf.mxu0
        %v1248 = vadd.f32 %v415, %v1247
        %v1249 = vpop.f32.mrf.mxu0
        %v1250 = vadd.f32 %v419, %v1249
        %1251 = vmatprep.mubr.bf16.mxu0 0
        %1252 = vmatmul.mubr.bf16.gmra.mxu0 %v561
        %v1253 = vpop.f32.mrf.mxu0
        %v1254 = vadd.f32 %v415, %v1253
        %v1255 = vpop.f32.mrf.mxu0
        %v1256 = vadd.f32 %v419, %v1255
        %v1257 = vpop.f32.mrf.mxu0
        %v1258 = vadd.f32 %v415, %v1257
        %v1259 = vpop.f32.mrf.mxu0
        %v1260 = vadd.f32 %v419, %v1259
        %1261 = vmatprep.mubr.bf16.mxu0 0
        %1262 = vmatmul.mubr.bf16.gmra.mxu0 %v562
        %v1263 = vpop.f32.mrf.mxu0
        %v1264 = vadd.f32 %v415, %v1263
        %v1265 = vpop.f32.mrf.mxu0
        %v1266 = vadd.f32 %v419, %v1265
        %v1267 = vpop.f32.mrf.mxu0
        %v1268 = vadd.f32 %v415, %v1267
        %v1269 = vpop.f32.mrf.mxu0
        %v1270 = vadd.f32 %v419, %v1269
        %1271 = vmatprep.mubr.bf16.mxu0 0
        %1272 = vmatmul.mubr.bf16.gmra.mxu0 %v563
        %v1273 = vpop.f32.mrf.mxu0
        %v1274 = vadd.f32 %v415, %v1273
        %v1275 = vpop.f32.mrf.mxu0
        %v1276 = vadd.f32 %v419, %v1275
        %v1277 = vpop.f32.mrf.mxu0
        %v1278 = vadd.f32 %v415, %v1277
        %v1279 = vpop.f32.mrf.mxu0
        %v1280 = vadd.f32 %v419, %v1279
        %1281 = vmatprep.mubr.bf16.mxu0 0
        %1282 = vmatmul.mubr.bf16.gmra.mxu0 %v564
        %v1283 = vpop.f32.mrf.mxu0
        %v1284 = vadd.f32 %v415, %v1283
        %v1285 = vpop.f32.mrf.mxu0
        %v1286 = vadd.f32 %v419, %v1285
        %v1287 = vpop.f32.mrf.mxu0
        %v1288 = vadd.f32 %v415, %v1287
        %v1289 = vpop.f32.mrf.mxu0
        %v1290 = vadd.f32 %v419, %v1289
        %1291 = vmatprep.mubr.bf16.mxu0 0
        %1292 = vmatmul.mubr.bf16.gmra.mxu0 %v565
        %v1293 = vpop.f32.mrf.mxu0
        %v1294 = vadd.f32 %v415, %v1293
        %v1295 = vpop.f32.mrf.mxu0
        %v1296 = vadd.f32 %v419, %v1295
        %v1297 = vpop.f32.mrf.mxu0
        %v1298 = vadd.f32 %v415, %v1297
        %v1299 = vpop.f32.mrf.mxu0
        %v1300 = vadd.f32 %v419, %v1299
        %1301 = vmatprep.mubr.bf16.mxu0 0
        %1302 = vmatmul.mubr.bf16.gmra.mxu0 %v566
        %v1303 = vpop.f32.mrf.mxu0
        %v1304 = vadd.f32 %v415, %v1303
        %v1305 = vpop.f32.mrf.mxu0
        %v1306 = vadd.f32 %v419, %v1305
        %v1307 = vpop.f32.mrf.mxu0
        %v1308 = vadd.f32 %v415, %v1307
        %v1309 = vpop.f32.mrf.mxu0
        %v1310 = vadd.f32 %v419, %v1309
        %1311 = vmatprep.mubr.bf16.mxu0 0
        %1312 = vmatmul.mubr.bf16.gmra.mxu0 %v567
        %v1313 = vpop.f32.mrf.mxu0
        %v1314 = vadd.f32 %v415, %v1313
        %v1315 = vpop.f32.mrf.mxu0
        %v1316 = vadd.f32 %v419, %v1315
        %v1317 = vpop.f32.mrf.mxu0
        %v1318 = vadd.f32 %v415, %v1317
        %v1319 = vpop.f32.mrf.mxu0
        %v1320 = vadd.f32 %v419, %v1319
        %1321 = vmatprep.mubr.bf16.mxu0 0
        %1322 = vmatmul.mubr.bf16.gmra.mxu0 %v568
        %v1323 = vpop.f32.mrf.mxu0
        %v1324 = vadd.f32 %v415, %v1323
        %v1325 = vpop.f32.mrf.mxu0
        %v1326 = vadd.f32 %v419, %v1325
        %v1327 = vpop.f32.mrf.mxu0
        %v1328 = vadd.f32 %v415, %v1327
        %v1329 = vpop.f32.mrf.mxu0
        %v1330 = vadd.f32 %v419, %v1329
        %1331 = vmatprep.mubr.bf16.mxu0 0
        %1332 = vmatmul.mubr.bf16.gmra.mxu0 %v569
        %v1333 = vpop.f32.mrf.mxu0
        %v1334 = vadd.f32 %v415, %v1333
        %v1335 = vpop.f32.mrf.mxu0
        %v1336 = vadd.f32 %v419, %v1335
        %v1337 = vpop.f32.mrf.mxu0
        %v1338 = vadd.f32 %v415, %v1337
        %v1339 = vpop.f32.mrf.mxu0
        %v1340 = vadd.f32 %v419, %v1339
        %1341 = vmatprep.mubr.bf16.mxu0 0
        %1342 = vmatmul.mubr.bf16.gmra.mxu0 %v570
        %v1343 = vpop.f32.mrf.mxu0
        %v1344 = vadd.f32 %v415, %v1343
        %v1345 = vpop.f32.mrf.mxu0
        %v1346 = vadd.f32 %v419, %v1345
        %v1347 = vpop.f32.mrf.mxu0
        %v1348 = vadd.f32 %v415, %v1347
        %v1349 = vpop.f32.mrf.mxu0
        %v1350 = vadd.f32 %v419, %v1349
        %1351 = vmatprep.mubr.bf16.mxu0 0
        %1352 = vmatmul.mubr.bf16.gmra.mxu0 %v571
        %v1353 = vpop.f32.mrf.mxu0
        %v1354 = vadd.f32 %v415, %v1353
        %v1355 = vpop.f32.mrf.mxu0
        %v1356 = vadd.f32 %v419, %v1355
        %v1357 = vpop.f32.mrf.mxu0
        %v1358 = vadd.f32 %v415, %v1357
        %v1359 = vpop.f32.mrf.mxu0
        %v1360 = vadd.f32 %v419, %v1359
        %1361 = vmatprep.mubr.bf16.mxu0 0
        %1362 = vmatmul.mubr.bf16.gmra.mxu0 %v572
        %v1363 = vpop.f32.mrf.mxu0
        %v1364 = vadd.f32 %v415, %v1363
        %v1365 = vpop.f32.mrf.mxu0
        %v1366 = vadd.f32 %v419, %v1365
        %v1367 = vpop.f32.mrf.mxu0
        %v1368 = vadd.f32 %v415, %v1367
        %v1369 = vpop.f32.mrf.mxu0
        %v1370 = vadd.f32 %v419, %v1369
        %1371 = vmatprep.mubr.bf16.mxu0 0
        %1372 = vmatmul.mubr.bf16.gmra.mxu0 %v573
        %v1373 = vpop.f32.mrf.mxu0
        %v1374 = vadd.f32 %v415, %v1373
        %v1375 = vpop.f32.mrf.mxu0
        %v1376 = vadd.f32 %v419, %v1375
        %v1377 = vpop.f32.mrf.mxu0
        %v1378 = vadd.f32 %v415, %v1377
        %v1379 = vpop.f32.mrf.mxu0
        %v1380 = vadd.f32 %v419, %v1379
        %1381 = vmatprep.mubr.bf16.mxu0 0
        %1382 = vmatmul.mubr.bf16.gmra.mxu0 %v574
        %v1383 = vpop.f32.mrf.mxu0
        %v1384 = vadd.f32 %v415, %v1383
        %v1385 = vpop.f32.mrf.mxu0
        %v1386 = vadd.f32 %v419, %v1385
        %v1387 = vpop.f32.mrf.mxu0
        %v1388 = vadd.f32 %v415, %v1387
        %v1389 = vpop.f32.mrf.mxu0
        %v1390 = vadd.f32 %v419, %v1389
        %1391 = vmatprep.mubr.bf16.mxu0 0
        %1392 = vmatmul.mubr.bf16.gmra.mxu0 %v575
        %v1393 = vpop.f32.mrf.mxu0
        %v1394 = vadd.f32 %v415, %v1393
        %v1395 = vpop.f32.mrf.mxu0
        %v1396 = vadd.f32 %v419, %v1395
        %v1397 = vpop.f32.mrf.mxu0
        %v1398 = vadd.f32 %v415, %v1397
        %v1399 = vpop.f32.mrf.mxu0
        %v1400 = vadd.f32 %v419, %v1399
        %1401 = vmatprep.mubr.bf16.mxu0 0
        %1402 = vmatmul.mubr.bf16.gmra.mxu0 %v576
        %v1403 = vpop.f32.mrf.mxu0
        %v1404 = vadd.f32 %v415, %v1403
        %v1405 = vpop.f32.mrf.mxu0
        %v1406 = vadd.f32 %v419, %v1405
        %v1407 = vpop.f32.mrf.mxu0
        %v1408 = vadd.f32 %v415, %v1407
        %v1409 = vpop.f32.mrf.mxu0
        %v1410 = vadd.f32 %v419, %v1409
        %1411 = vmatprep.mubr.bf16.mxu0 0
        %1412 = vmatmul.mubr.bf16.gmra.mxu0 %v577
        %v1413 = vpop.f32.mrf.mxu0
        %v1414 = vadd.f32 %v415, %v1413
        %v1415 = vpop.f32.mrf.mxu0
        %v1416 = vadd.f32 %v419, %v1415
        %v1417 = vpop.f32.mrf.mxu0
        %v1418 = vadd.f32 %v415, %v1417
        %v1419 = vpop.f32.mrf.mxu0
        %v1420 = vadd.f32 %v419, %v1419
        %1421 = vmatprep.mubr.bf16.mxu0 0
        %1422 = vmatmul.mubr.bf16.gmra.mxu0 %v578
        %v1423 = vpop.f32.mrf.mxu0
        %v1424 = vadd.f32 %v415, %v1423
        %v1425 = vpop.f32.mrf.mxu0
        %v1426 = vadd.f32 %v419, %v1425
        %v1427 = vpop.f32.mrf.mxu0
        %v1428 = vadd.f32 %v415, %v1427
        %v1429 = vpop.f32.mrf.mxu0
        %v1430 = vadd.f32 %v419, %v1429
        %1431 = vmatprep.mubr.bf16.mxu0 0
        %1432 = vmatmul.mubr.bf16.gmra.mxu0 %v579
        %v1433 = vpop.f32.mrf.mxu0
        %v1434 = vadd.f32 %v415, %v1433
        %v1435 = vpop.f32.mrf.mxu0
        %v1436 = vadd.f32 %v419, %v1435
        %v1437 = vpop.f32.mrf.mxu0
        %v1438 = vadd.f32 %v415, %v1437
        %v1439 = vpop.f32.mrf.mxu0
        %v1440 = vadd.f32 %v419, %v1439
        %1441 = vmatprep.mubr.bf16.mxu0 0
        %1442 = vmatmul.mubr.bf16.gmra.mxu0 %v580
        %v1443 = vpop.f32.mrf.mxu0
        %v1444 = vadd.f32 %v415, %v1443
        %v1445 = vpop.f32.mrf.mxu0
        %v1446 = vadd.f32 %v419, %v1445
        %v1447 = vpop.f32.mrf.mxu0
        %v1448 = vadd.f32 %v415, %v1447
        %v1449 = vpop.f32.mrf.mxu0
        %v1450 = vadd.f32 %v419, %v1449
        %1451 = vmatprep.mubr.bf16.mxu0 0
        %1452 = vmatmul.mubr.bf16.gmra.mxu0 %v581
        %v1453 = vpop.f32.mrf.mxu0
        %v1454 = vadd.f32 %v415, %v1453
        %v1455 = vpop.f32.mrf.mxu0
        %v1456 = vadd.f32 %v419, %v1455
        %v1457 = vpop.f32.mrf.mxu0
        %v1458 = vadd.f32 %v415, %v1457
        %v1459 = vpop.f32.mrf.mxu0
        %v1460 = vadd.f32 %v419, %v1459
        %1461 = vmatprep.mubr.bf16.mxu0 0
        %1462 = vmatmul.mubr.bf16.gmra.mxu0 %v582
        %v1463 = vpop.f32.mrf.mxu0
        %v1464 = vadd.f32 %v415, %v1463
        %v1465 = vpop.f32.mrf.mxu0
        %v1466 = vadd.f32 %v419, %v1465
        %v1467 = vpop.f32.mrf.mxu0
        %v1468 = vadd.f32 %v415, %v1467
        %v1469 = vpop.f32.mrf.mxu0
        %v1470 = vadd.f32 %v419, %v1469
        %1471 = vmatprep.mubr.bf16.mxu0 0
        %1472 = vmatmul.mubr.bf16.gmra.mxu0 %v583
        %v1473 = vpop.f32.mrf.mxu0
        %v1474 = vadd.f32 %v415, %v1473
        %v1475 = vpop.f32.mrf.mxu0
        %v1476 = vadd.f32 %v419, %v1475
        %v1477 = vpop.f32.mrf.mxu0
        %v1478 = vadd.f32 %v415, %v1477
        %v1479 = vpop.f32.mrf.mxu0
        %v1480 = vadd.f32 %v419, %v1479
        %1481 = vdwg.mxu0
        %v1482 = vpack.c.bf16 %v815, %v811
        %v1483 = vpack.c.bf16 %v817, %v813
        %v1484 = vpack.c.bf16 %v1168, %v1164
        %v1485 = vpack.c.bf16 %v1170, %v1166
        %v1486 = vpack.c.bf16 %v825, %v821
        %v1487 = vpack.c.bf16 %v827, %v823
        %v1488 = vpack.c.bf16 %v1178, %v1174
        %v1489 = vpack.c.bf16 %v1180, %v1176
        %v1490 = vpack.c.bf16 %v835, %v831
        %v1491 = vpack.c.bf16 %v837, %v833
        %v1492 = vpack.c.bf16 %v1188, %v1184
        %v1493 = vpack.c.bf16 %v1190, %v1186
        %v1494 = vpack.c.bf16 %v845, %v841
        %v1495 = vpack.c.bf16 %v847, %v843
        %v1496 = vpack.c.bf16 %v1198, %v1194
        %v1497 = vpack.c.bf16 %v1200, %v1196
        %v1498 = vpack.c.bf16 %v855, %v851
        %v1499 = vpack.c.bf16 %v857, %v853
        %v1500 = vpack.c.bf16 %v1208, %v1204
        %v1501 = vpack.c.bf16 %v1210, %v1206
        %v1502 = vpack.c.bf16 %v865, %v861
        %v1503 = vpack.c.bf16 %v867, %v863
        %v1504 = vpack.c.bf16 %v1218, %v1214
        %v1505 = vpack.c.bf16 %v1220, %v1216
        %v1506 = vpack.c.bf16 %v875, %v871
        %v1507 = vpack.c.bf16 %v877, %v873
        %v1508 = vpack.c.bf16 %v1228, %v1224
        %v1509 = vpack.c.bf16 %v1230, %v1226
        %v1510 = vpack.c.bf16 %v885, %v881
        %v1511 = vpack.c.bf16 %v887, %v883
        %v1512 = vpack.c.bf16 %v1238, %v1234
        %v1513 = vpack.c.bf16 %v1240, %v1236
        %v1514 = vpack.c.bf16 %v895, %v891
        %v1515 = vpack.c.bf16 %v897, %v893
        %v1516 = vpack.c.bf16 %v1248, %v1244
        %v1517 = vpack.c.bf16 %v1250, %v1246
        %v1518 = vpack.c.bf16 %v905, %v901
        %v1519 = vpack.c.bf16 %v907, %v903
        %v1520 = vpack.c.bf16 %v1258, %v1254
        %v1521 = vpack.c.bf16 %v1260, %v1256
        %v1522 = vpack.c.bf16 %v915, %v911
        %v1523 = vpack.c.bf16 %v917, %v913
        %v1524 = vpack.c.bf16 %v1268, %v1264
        %v1525 = vpack.c.bf16 %v1270, %v1266
        %v1526 = vpack.c.bf16 %v925, %v921
        %v1527 = vpack.c.bf16 %v927, %v923
        %v1528 = vpack.c.bf16 %v1278, %v1274
        %v1529 = vpack.c.bf16 %v1280, %v1276
        %v1530 = vpack.c.bf16 %v935, %v931
        %v1531 = vpack.c.bf16 %v937, %v933
        %v1532 = vpack.c.bf16 %v1288, %v1284
        %v1533 = vpack.c.bf16 %v1290, %v1286
        %v1534 = vpack.c.bf16 %v945, %v941
        %v1535 = vpack.c.bf16 %v947, %v943
        %v1536 = vpack.c.bf16 %v1298, %v1294
        %v1537 = vpack.c.bf16 %v1300, %v1296
        %v1538 = vpack.c.bf16 %v955, %v951
        %v1539 = vpack.c.bf16 %v957, %v953
        %v1540 = vpack.c.bf16 %v1308, %v1304
        %v1541 = vpack.c.bf16 %v1310, %v1306
        %v1542 = vpack.c.bf16 %v965, %v961
        %v1543 = vpack.c.bf16 %v967, %v963
        %v1544 = vpack.c.bf16 %v1318, %v1314
        %v1545 = vpack.c.bf16 %v1320, %v1316
        %v1546 = vpack.c.bf16 %v975, %v971
        %v1547 = vpack.c.bf16 %v977, %v973
        %v1548 = vpack.c.bf16 %v1328, %v1324
        %v1549 = vpack.c.bf16 %v1330, %v1326
        %v1550 = vpack.c.bf16 %v985, %v981
        %v1551 = vpack.c.bf16 %v987, %v983
        %v1552 = vpack.c.bf16 %v1338, %v1334
        %v1553 = vpack.c.bf16 %v1340, %v1336
        %v1554 = vpack.c.bf16 %v995, %v991
        %v1555 = vpack.c.bf16 %v997, %v993
        %v1556 = vpack.c.bf16 %v1348, %v1344
        %v1557 = vpack.c.bf16 %v1350, %v1346
        %v1558 = vpack.c.bf16 %v1005, %v1001
        %v1559 = vpack.c.bf16 %v1007, %v1003
        %v1560 = vpack.c.bf16 %v1358, %v1354
        %v1561 = vpack.c.bf16 %v1360, %v1356
        %v1562 = vpack.c.bf16 %v1015, %v1011
        %v1563 = vpack.c.bf16 %v1017, %v1013
        %v1564 = vpack.c.bf16 %v1368, %v1364
        %v1565 = vpack.c.bf16 %v1370, %v1366
        %v1566 = vpack.c.bf16 %v1025, %v1021
        %v1567 = vpack.c.bf16 %v1027, %v1023
        %v1568 = vpack.c.bf16 %v1378, %v1374
        %v1569 = vpack.c.bf16 %v1380, %v1376
        %v1570 = vpack.c.bf16 %v1035, %v1031
        %v1571 = vpack.c.bf16 %v1037, %v1033
        %v1572 = vpack.c.bf16 %v1388, %v1384
        %v1573 = vpack.c.bf16 %v1390, %v1386
        %v1574 = vpack.c.bf16 %v1045, %v1041
        %v1575 = vpack.c.bf16 %v1047, %v1043
        %v1576 = vpack.c.bf16 %v1398, %v1394
        %v1577 = vpack.c.bf16 %v1400, %v1396
        %v1578 = vpack.c.bf16 %v1055, %v1051
        %v1579 = vpack.c.bf16 %v1057, %v1053
        %v1580 = vpack.c.bf16 %v1408, %v1404
        %v1581 = vpack.c.bf16 %v1410, %v1406
        %v1582 = vpack.c.bf16 %v1065, %v1061
        %v1583 = vpack.c.bf16 %v1067, %v1063
        %v1584 = vpack.c.bf16 %v1418, %v1414
        %v1585 = vpack.c.bf16 %v1420, %v1416
        %v1586 = vpack.c.bf16 %v1075, %v1071
        %v1587 = vpack.c.bf16 %v1077, %v1073
        %v1588 = vpack.c.bf16 %v1428, %v1424
        %v1589 = vpack.c.bf16 %v1430, %v1426
        %v1590 = vpack.c.bf16 %v1085, %v1081
        %v1591 = vpack.c.bf16 %v1087, %v1083
        %v1592 = vpack.c.bf16 %v1438, %v1434
        %v1593 = vpack.c.bf16 %v1440, %v1436
        %v1594 = vpack.c.bf16 %v1095, %v1091
        %v1595 = vpack.c.bf16 %v1097, %v1093
        %v1596 = vpack.c.bf16 %v1448, %v1444
        %v1597 = vpack.c.bf16 %v1450, %v1446
        %v1598 = vpack.c.bf16 %v1105, %v1101
        %v1599 = vpack.c.bf16 %v1107, %v1103
        %v1600 = vpack.c.bf16 %v1458, %v1454
        %v1601 = vpack.c.bf16 %v1460, %v1456
        %v1602 = vpack.c.bf16 %v1115, %v1111
        %v1603 = vpack.c.bf16 %v1117, %v1113
        %v1604 = vpack.c.bf16 %v1468, %v1464
        %v1605 = vpack.c.bf16 %v1470, %v1466
        %v1606 = vpack.c.bf16 %v1125, %v1121
        %v1607 = vpack.c.bf16 %v1127, %v1123
        %v1608 = vpack.c.bf16 %v1478, %v1474
        %v1609 = vpack.c.bf16 %v1480, %v1476
        %v1738 = vunpack.c.l.b16 %v1482
        %v1739 = vunpack.c.l.b16 %v1483
        %v1740 = vunpack.c.l.b16 %v1484
        %v1741 = vunpack.c.l.b16 %v1485
        %v1742 = vunpack.c.h.b16 %v1482
        %v1743 = vunpack.c.h.b16 %v1483
        %v1744 = vunpack.c.h.b16 %v1484
        %v1745 = vunpack.c.h.b16 %v1485
        %v1746 = vunpack.c.l.b16 %v1486
        %v1747 = vunpack.c.l.b16 %v1487
        %v1748 = vunpack.c.l.b16 %v1488
        %v1749 = vunpack.c.l.b16 %v1489
        %v1750 = vunpack.c.h.b16 %v1486
        %v1751 = vunpack.c.h.b16 %v1487
        %v1752 = vunpack.c.h.b16 %v1488
        %v1753 = vunpack.c.h.b16 %v1489
        %v1754 = vunpack.c.l.b16 %v1490
        %v1755 = vunpack.c.l.b16 %v1491
        %v1756 = vunpack.c.l.b16 %v1492
        %v1757 = vunpack.c.l.b16 %v1493
        %v1758 = vunpack.c.h.b16 %v1490
        %v1759 = vunpack.c.h.b16 %v1491
        %v1760 = vunpack.c.h.b16 %v1492
        %v1761 = vunpack.c.h.b16 %v1493
        %v1762 = vunpack.c.l.b16 %v1494
        %v1763 = vunpack.c.l.b16 %v1495
        %v1764 = vunpack.c.l.b16 %v1496
        %v1765 = vunpack.c.l.b16 %v1497
        %v1766 = vunpack.c.h.b16 %v1494
        %v1767 = vunpack.c.h.b16 %v1495
        %v1768 = vunpack.c.h.b16 %v1496
        %v1769 = vunpack.c.h.b16 %v1497
        %v1770 = vunpack.c.l.b16 %v1498
        %v1771 = vunpack.c.l.b16 %v1499
        %v1772 = vunpack.c.l.b16 %v1500
        %v1773 = vunpack.c.l.b16 %v1501
        %v1774 = vunpack.c.h.b16 %v1498
        %v1775 = vunpack.c.h.b16 %v1499
        %v1776 = vunpack.c.h.b16 %v1500
        %v1777 = vunpack.c.h.b16 %v1501
        %v1778 = vunpack.c.l.b16 %v1502
        %v1779 = vunpack.c.l.b16 %v1503
        %v1780 = vunpack.c.l.b16 %v1504
        %v1781 = vunpack.c.l.b16 %v1505
        %v1782 = vunpack.c.h.b16 %v1502
        %v1783 = vunpack.c.h.b16 %v1503
        %v1784 = vunpack.c.h.b16 %v1504
        %v1785 = vunpack.c.h.b16 %v1505
        %v1786 = vunpack.c.l.b16 %v1506
        %v1787 = vunpack.c.l.b16 %v1507
        %v1788 = vunpack.c.l.b16 %v1508
        %v1789 = vunpack.c.l.b16 %v1509
        %v1790 = vunpack.c.h.b16 %v1506
        %v1791 = vunpack.c.h.b16 %v1507
        %v1792 = vunpack.c.h.b16 %v1508
        %v1793 = vunpack.c.h.b16 %v1509
        %v1794 = vunpack.c.l.b16 %v1510
        %v1795 = vunpack.c.l.b16 %v1511
        %v1796 = vunpack.c.l.b16 %v1512
        %v1797 = vunpack.c.l.b16 %v1513
        %v1798 = vunpack.c.h.b16 %v1510
        %v1799 = vunpack.c.h.b16 %v1511
        %v1800 = vunpack.c.h.b16 %v1512
        %v1801 = vunpack.c.h.b16 %v1513
        %v1802 = vunpack.c.l.b16 %v1514
        %v1803 = vunpack.c.l.b16 %v1515
        %v1804 = vunpack.c.l.b16 %v1516
        %v1805 = vunpack.c.l.b16 %v1517
        %v1806 = vunpack.c.h.b16 %v1514
        %v1807 = vunpack.c.h.b16 %v1515
        %v1808 = vunpack.c.h.b16 %v1516
        %v1809 = vunpack.c.h.b16 %v1517
        %v1810 = vunpack.c.l.b16 %v1518
        %v1811 = vunpack.c.l.b16 %v1519
        %v1812 = vunpack.c.l.b16 %v1520
        %v1813 = vunpack.c.l.b16 %v1521
        %v1814 = vunpack.c.h.b16 %v1518
        %v1815 = vunpack.c.h.b16 %v1519
        %v1816 = vunpack.c.h.b16 %v1520
        %v1817 = vunpack.c.h.b16 %v1521
        %v1818 = vunpack.c.l.b16 %v1522
        %v1819 = vunpack.c.l.b16 %v1523
        %v1820 = vunpack.c.l.b16 %v1524
        %v1821 = vunpack.c.l.b16 %v1525
        %v1822 = vunpack.c.h.b16 %v1522
        %v1823 = vunpack.c.h.b16 %v1523
        %v1824 = vunpack.c.h.b16 %v1524
        %v1825 = vunpack.c.h.b16 %v1525
        %v1826 = vunpack.c.l.b16 %v1526
        %v1827 = vunpack.c.l.b16 %v1527
        %v1828 = vunpack.c.l.b16 %v1528
        %v1829 = vunpack.c.l.b16 %v1529
        %v1830 = vunpack.c.h.b16 %v1526
        %v1831 = vunpack.c.h.b16 %v1527
        %v1832 = vunpack.c.h.b16 %v1528
        %v1833 = vunpack.c.h.b16 %v1529
        %v1834 = vunpack.c.l.b16 %v1530
        %v1835 = vunpack.c.l.b16 %v1531
        %v1836 = vunpack.c.l.b16 %v1532
        %v1837 = vunpack.c.l.b16 %v1533
        %v1838 = vunpack.c.h.b16 %v1530
        %v1839 = vunpack.c.h.b16 %v1531
        %v1840 = vunpack.c.h.b16 %v1532
        %v1841 = vunpack.c.h.b16 %v1533
        %v1842 = vunpack.c.l.b16 %v1534
        %v1843 = vunpack.c.l.b16 %v1535
        %v1844 = vunpack.c.l.b16 %v1536
        %v1845 = vunpack.c.l.b16 %v1537
        %v1846 = vunpack.c.h.b16 %v1534
        %v1847 = vunpack.c.h.b16 %v1535
        %v1848 = vunpack.c.h.b16 %v1536
        %v1849 = vunpack.c.h.b16 %v1537
        %v1850 = vunpack.c.l.b16 %v1538
        %v1851 = vunpack.c.l.b16 %v1539
        %v1852 = vunpack.c.l.b16 %v1540
        %v1853 = vunpack.c.l.b16 %v1541
        %v1854 = vunpack.c.h.b16 %v1538
        %v1855 = vunpack.c.h.b16 %v1539
        %v1856 = vunpack.c.h.b16 %v1540
        %v1857 = vunpack.c.h.b16 %v1541
        %v1858 = vunpack.c.l.b16 %v1542
        %v1859 = vunpack.c.l.b16 %v1543
        %v1860 = vunpack.c.l.b16 %v1544
        %v1861 = vunpack.c.l.b16 %v1545
        %v1862 = vunpack.c.h.b16 %v1542
        %v1863 = vunpack.c.h.b16 %v1543
        %v1864 = vunpack.c.h.b16 %v1544
        %v1865 = vunpack.c.h.b16 %v1545
        %v1866 = vunpack.c.l.b16 %v1546
        %v1867 = vunpack.c.l.b16 %v1547
        %v1868 = vunpack.c.l.b16 %v1548
        %v1869 = vunpack.c.l.b16 %v1549
        %v1870 = vunpack.c.h.b16 %v1546
        %v1871 = vunpack.c.h.b16 %v1547
        %v1872 = vunpack.c.h.b16 %v1548
        %v1873 = vunpack.c.h.b16 %v1549
        %v1874 = vunpack.c.l.b16 %v1550
        %v1875 = vunpack.c.l.b16 %v1551
        %v1876 = vunpack.c.l.b16 %v1552
        %v1877 = vunpack.c.l.b16 %v1553
        %v1878 = vunpack.c.h.b16 %v1550
        %v1879 = vunpack.c.h.b16 %v1551
        %v1880 = vunpack.c.h.b16 %v1552
        %v1881 = vunpack.c.h.b16 %v1553
        %v1882 = vunpack.c.l.b16 %v1554
        %v1883 = vunpack.c.l.b16 %v1555
        %v1884 = vunpack.c.l.b16 %v1556
        %v1885 = vunpack.c.l.b16 %v1557
        %v1886 = vunpack.c.h.b16 %v1554
        %v1887 = vunpack.c.h.b16 %v1555
        %v1888 = vunpack.c.h.b16 %v1556
        %v1889 = vunpack.c.h.b16 %v1557
        %v1890 = vunpack.c.l.b16 %v1558
        %v1891 = vunpack.c.l.b16 %v1559
        %v1892 = vunpack.c.l.b16 %v1560
        %v1893 = vunpack.c.l.b16 %v1561
        %v1894 = vunpack.c.h.b16 %v1558
        %v1895 = vunpack.c.h.b16 %v1559
        %v1896 = vunpack.c.h.b16 %v1560
        %v1897 = vunpack.c.h.b16 %v1561
        %v1898 = vunpack.c.l.b16 %v1562
        %v1899 = vunpack.c.l.b16 %v1563
        %v1900 = vunpack.c.l.b16 %v1564
        %v1901 = vunpack.c.l.b16 %v1565
        %v1902 = vunpack.c.h.b16 %v1562
        %v1903 = vunpack.c.h.b16 %v1563
        %v1904 = vunpack.c.h.b16 %v1564
        %v1905 = vunpack.c.h.b16 %v1565
        %v1906 = vunpack.c.l.b16 %v1566
        %v1907 = vunpack.c.l.b16 %v1567
        %v1908 = vunpack.c.l.b16 %v1568
        %v1909 = vunpack.c.l.b16 %v1569
        %v1910 = vunpack.c.h.b16 %v1566
        %v1911 = vunpack.c.h.b16 %v1567
        %v1912 = vunpack.c.h.b16 %v1568
        %v1913 = vunpack.c.h.b16 %v1569
        %v1914 = vunpack.c.l.b16 %v1570
        %v1915 = vunpack.c.l.b16 %v1571
        %v1916 = vunpack.c.l.b16 %v1572
        %v1917 = vunpack.c.l.b16 %v1573
        %v1918 = vunpack.c.h.b16 %v1570
        %v1919 = vunpack.c.h.b16 %v1571
        %v1920 = vunpack.c.h.b16 %v1572
        %v1921 = vunpack.c.h.b16 %v1573
        %v1922 = vunpack.c.l.b16 %v1574
        %v1923 = vunpack.c.l.b16 %v1575
        %v1924 = vunpack.c.l.b16 %v1576
        %v1925 = vunpack.c.l.b16 %v1577
        %v1926 = vunpack.c.h.b16 %v1574
        %v1927 = vunpack.c.h.b16 %v1575
        %v1928 = vunpack.c.h.b16 %v1576
        %v1929 = vunpack.c.h.b16 %v1577
        %v1930 = vunpack.c.l.b16 %v1578
        %v1931 = vunpack.c.l.b16 %v1579
        %v1932 = vunpack.c.l.b16 %v1580
        %v1933 = vunpack.c.l.b16 %v1581
        %v1934 = vunpack.c.h.b16 %v1578
        %v1935 = vunpack.c.h.b16 %v1579
        %v1936 = vunpack.c.h.b16 %v1580
        %v1937 = vunpack.c.h.b16 %v1581
        %v1938 = vunpack.c.l.b16 %v1582
        %v1939 = vunpack.c.l.b16 %v1583
        %v1940 = vunpack.c.l.b16 %v1584
        %v1941 = vunpack.c.l.b16 %v1585
        %v1942 = vunpack.c.h.b16 %v1582
        %v1943 = vunpack.c.h.b16 %v1583
        %v1944 = vunpack.c.h.b16 %v1584
        %v1945 = vunpack.c.h.b16 %v1585
        %v1946 = vunpack.c.l.b16 %v1586
        %v1947 = vunpack.c.l.b16 %v1587
        %v1948 = vunpack.c.l.b16 %v1588
        %v1949 = vunpack.c.l.b16 %v1589
        %v1950 = vunpack.c.h.b16 %v1586
        %v1951 = vunpack.c.h.b16 %v1587
        %v1952 = vunpack.c.h.b16 %v1588
        %v1953 = vunpack.c.h.b16 %v1589
        %v1954 = vunpack.c.l.b16 %v1590
        %v1955 = vunpack.c.l.b16 %v1591
        %v1956 = vunpack.c.l.b16 %v1592
        %v1957 = vunpack.c.l.b16 %v1593
        %v1958 = vunpack.c.h.b16 %v1590
        %v1959 = vunpack.c.h.b16 %v1591
        %v1960 = vunpack.c.h.b16 %v1592
        %v1961 = vunpack.c.h.b16 %v1593
        %v1962 = vunpack.c.l.b16 %v1594
        %v1963 = vunpack.c.l.b16 %v1595
        %v1964 = vunpack.c.l.b16 %v1596
        %v1965 = vunpack.c.l.b16 %v1597
        %v1966 = vunpack.c.h.b16 %v1594
        %v1967 = vunpack.c.h.b16 %v1595
        %v1968 = vunpack.c.h.b16 %v1596
        %v1969 = vunpack.c.h.b16 %v1597
        %v1970 = vunpack.c.l.b16 %v1598
        %v1971 = vunpack.c.l.b16 %v1599
        %v1972 = vunpack.c.l.b16 %v1600
        %v1973 = vunpack.c.l.b16 %v1601
        %v1974 = vunpack.c.h.b16 %v1598
        %v1975 = vunpack.c.h.b16 %v1599
        %v1976 = vunpack.c.h.b16 %v1600
        %v1977 = vunpack.c.h.b16 %v1601
        %v1978 = vunpack.c.l.b16 %v1602
        %v1979 = vunpack.c.l.b16 %v1603
        %v1980 = vunpack.c.l.b16 %v1604
        %v1981 = vunpack.c.l.b16 %v1605
        %v1982 = vunpack.c.h.b16 %v1602
        %v1983 = vunpack.c.h.b16 %v1603
        %v1984 = vunpack.c.h.b16 %v1604
        %v1985 = vunpack.c.h.b16 %v1605
        %v1986 = vunpack.c.l.b16 %v1606
        %v1987 = vunpack.c.l.b16 %v1607
        %v1988 = vunpack.c.l.b16 %v1608
        %v1989 = vunpack.c.l.b16 %v1609
        %v1990 = vunpack.c.h.b16 %v1606
        %v1991 = vunpack.c.h.b16 %v1607
        %v1992 = vunpack.c.h.b16 %v1608
        %v1993 = vunpack.c.h.b16 %v1609
        %v1994 = vpack.c.b16 %v1739, %v1738
        %v1995 = vpack.c.b16 %v1741, %v1740
        %v1996 = vpack.c.b16 %v1743, %v1742
        %v1997 = vpack.c.b16 %v1745, %v1744
        %v1998 = vpack.c.b16 %v1747, %v1746
        %v1999 = vpack.c.b16 %v1749, %v1748
        %v2000 = vpack.c.b16 %v1751, %v1750
        %v2001 = vpack.c.b16 %v1753, %v1752
        %v2002 = vpack.c.b16 %v1755, %v1754
        %v2003 = vpack.c.b16 %v1757, %v1756
        %v2004 = vpack.c.b16 %v1759, %v1758
        %v2005 = vpack.c.b16 %v1761, %v1760
        %v2006 = vpack.c.b16 %v1763, %v1762
        %v2007 = vpack.c.b16 %v1765, %v1764
        %v2008 = vpack.c.b16 %v1767, %v1766
        %v2009 = vpack.c.b16 %v1769, %v1768
        %v2010 = vpack.c.b16 %v1771, %v1770
        %v2011 = vpack.c.b16 %v1773, %v1772
        %v2012 = vpack.c.b16 %v1775, %v1774
        %v2013 = vpack.c.b16 %v1777, %v1776
        %v2014 = vpack.c.b16 %v1779, %v1778
        %v2015 = vpack.c.b16 %v1781, %v1780
        %v2016 = vpack.c.b16 %v1783, %v1782
        %v2017 = vpack.c.b16 %v1785, %v1784
        %v2018 = vpack.c.b16 %v1787, %v1786
        %v2019 = vpack.c.b16 %v1789, %v1788
        %v2020 = vpack.c.b16 %v1791, %v1790
        %v2021 = vpack.c.b16 %v1793, %v1792
        %v2022 = vpack.c.b16 %v1795, %v1794
        %v2023 = vpack.c.b16 %v1797, %v1796
        %v2024 = vpack.c.b16 %v1799, %v1798
        %v2025 = vpack.c.b16 %v1801, %v1800
        %v2026 = vpack.c.b16 %v1803, %v1802
        %v2027 = vpack.c.b16 %v1805, %v1804
        %v2028 = vpack.c.b16 %v1807, %v1806
        %v2029 = vpack.c.b16 %v1809, %v1808
        %v2030 = vpack.c.b16 %v1811, %v1810
        %v2031 = vpack.c.b16 %v1813, %v1812
        %v2032 = vpack.c.b16 %v1815, %v1814
        %v2033 = vpack.c.b16 %v1817, %v1816
        %v2034 = vpack.c.b16 %v1819, %v1818
        %v2035 = vpack.c.b16 %v1821, %v1820
        %v2036 = vpack.c.b16 %v1823, %v1822
        %v2037 = vpack.c.b16 %v1825, %v1824
        %v2038 = vpack.c.b16 %v1827, %v1826
        %v2039 = vpack.c.b16 %v1829, %v1828
        %v2040 = vpack.c.b16 %v1831, %v1830
        %v2041 = vpack.c.b16 %v1833, %v1832
        %v2042 = vpack.c.b16 %v1835, %v1834
        %v2043 = vpack.c.b16 %v1837, %v1836
        %v2044 = vpack.c.b16 %v1839, %v1838
        %v2045 = vpack.c.b16 %v1841, %v1840
        %v2046 = vpack.c.b16 %v1843, %v1842
        %v2047 = vpack.c.b16 %v1845, %v1844
        %v2048 = vpack.c.b16 %v1847, %v1846
        %v2049 = vpack.c.b16 %v1849, %v1848
        %v2050 = vpack.c.b16 %v1851, %v1850
        %v2051 = vpack.c.b16 %v1853, %v1852
        %v2052 = vpack.c.b16 %v1855, %v1854
        %v2053 = vpack.c.b16 %v1857, %v1856
        %v2054 = vpack.c.b16 %v1859, %v1858
        %v2055 = vpack.c.b16 %v1861, %v1860
        %v2056 = vpack.c.b16 %v1863, %v1862
        %v2057 = vpack.c.b16 %v1865, %v1864
        %v2058 = vpack.c.b16 %v1867, %v1866
        %v2059 = vpack.c.b16 %v1869, %v1868
        %v2060 = vpack.c.b16 %v1871, %v1870
        %v2061 = vpack.c.b16 %v1873, %v1872
        %v2062 = vpack.c.b16 %v1875, %v1874
        %v2063 = vpack.c.b16 %v1877, %v1876
        %v2064 = vpack.c.b16 %v1879, %v1878
        %v2065 = vpack.c.b16 %v1881, %v1880
        %v2066 = vpack.c.b16 %v1883, %v1882
        %v2067 = vpack.c.b16 %v1885, %v1884
        %v2068 = vpack.c.b16 %v1887, %v1886
        %v2069 = vpack.c.b16 %v1889, %v1888
        %v2070 = vpack.c.b16 %v1891, %v1890
        %v2071 = vpack.c.b16 %v1893, %v1892
        %v2072 = vpack.c.b16 %v1895, %v1894
        %v2073 = vpack.c.b16 %v1897, %v1896
        %v2074 = vpack.c.b16 %v1899, %v1898
        %v2075 = vpack.c.b16 %v1901, %v1900
        %v2076 = vpack.c.b16 %v1903, %v1902
        %v2077 = vpack.c.b16 %v1905, %v1904
        %v2078 = vpack.c.b16 %v1907, %v1906
        %v2079 = vpack.c.b16 %v1909, %v1908
        %v2080 = vpack.c.b16 %v1911, %v1910
        %v2081 = vpack.c.b16 %v1913, %v1912
        %v2082 = vpack.c.b16 %v1915, %v1914
        %v2083 = vpack.c.b16 %v1917, %v1916
        %v2084 = vpack.c.b16 %v1919, %v1918
        %v2085 = vpack.c.b16 %v1921, %v1920
        %v2086 = vpack.c.b16 %v1923, %v1922
        %v2087 = vpack.c.b16 %v1925, %v1924
        %v2088 = vpack.c.b16 %v1927, %v1926
        %v2089 = vpack.c.b16 %v1929, %v1928
        %v2090 = vpack.c.b16 %v1931, %v1930
        %v2091 = vpack.c.b16 %v1933, %v1932
        %v2092 = vpack.c.b16 %v1935, %v1934
        %v2093 = vpack.c.b16 %v1937, %v1936
        %v2094 = vpack.c.b16 %v1939, %v1938
        %v2095 = vpack.c.b16 %v1941, %v1940
        %v2096 = vpack.c.b16 %v1943, %v1942
        %v2097 = vpack.c.b16 %v1945, %v1944
        %v2098 = vpack.c.b16 %v1947, %v1946
        %v2099 = vpack.c.b16 %v1949, %v1948
        %v2100 = vpack.c.b16 %v1951, %v1950
        %v2101 = vpack.c.b16 %v1953, %v1952
        %v2102 = vpack.c.b16 %v1955, %v1954
        %v2103 = vpack.c.b16 %v1957, %v1956
        %v2104 = vpack.c.b16 %v1959, %v1958
        %v2105 = vpack.c.b16 %v1961, %v1960
        %v2106 = vpack.c.b16 %v1963, %v1962
        %v2107 = vpack.c.b16 %v1965, %v1964
        %v2108 = vpack.c.b16 %v1967, %v1966
        %v2109 = vpack.c.b16 %v1969, %v1968
        %v2110 = vpack.c.b16 %v1971, %v1970
        %v2111 = vpack.c.b16 %v1973, %v1972
        %v2112 = vpack.c.b16 %v1975, %v1974
        %v2113 = vpack.c.b16 %v1977, %v1976
        %v2114 = vpack.c.b16 %v1979, %v1978
        %v2115 = vpack.c.b16 %v1981, %v1980
        %v2116 = vpack.c.b16 %v1983, %v1982
        %v2117 = vpack.c.b16 %v1985, %v1984
        %v2118 = vpack.c.b16 %v1987, %v1986
        %v2119 = vpack.c.b16 %v1989, %v1988
        %v2120 = vpack.c.b16 %v1991, %v1990
        %v2121 = vpack.c.b16 %v1993, %v1992
        %2250 = vst [vmem:[%s290] sm:$0xff] %v1994
        %2251 = vst [vmem:[%s290 + $0x8] sm:$0xff] %v1995
        %2252 = vst [vmem:[%s290 + $0x10] sm:$0xff] %v1996
        %2253 = vst [vmem:[%s290 + $0x18] sm:$0xff] %v1997
        %2254 = vst [vmem:[%s290 + $0x20] sm:$0xff] %v1998
        %2255 = vst [vmem:[%s290 + $0x28] sm:$0xff] %v1999
        %2256 = vst [vmem:[%s290 + $0x30] sm:$0xff] %v2000
        %2257 = vst [vmem:[%s290 + $0x38] sm:$0xff] %v2001
        %2258 = vst [vmem:[%s290 + $0x40] sm:$0xff] %v2002
        %2259 = vst [vmem:[%s290 + $0x48] sm:$0xff] %v2003
        %2260 = vst [vmem:[%s290 + $0x50] sm:$0xff] %v2004
        %2261 = vst [vmem:[%s290 + $0x58] sm:$0xff] %v2005
        %2262 = vst [vmem:[%s290 + $0x60] sm:$0xff] %v2006
        %2263 = vst [vmem:[%s290 + $0x68] sm:$0xff] %v2007
        %2264 = vst [vmem:[%s290 + $0x70] sm:$0xff] %v2008
        %2265 = vst [vmem:[%s290 + $0x78] sm:$0xff] %v2009
        %2266 = vst [vmem:[%s290 + $0x80] sm:$0xff] %v2010
        %2267 = vst [vmem:[%s290 + $0x88] sm:$0xff] %v2011
        %2268 = vst [vmem:[%s290 + $0x90] sm:$0xff] %v2012
        %2269 = vst [vmem:[%s290 + $0x98] sm:$0xff] %v2013
        %2270 = vst [vmem:[%s290 + $0xa0] sm:$0xff] %v2014
        %2271 = vst [vmem:[%s290 + $0xa8] sm:$0xff] %v2015
        %2272 = vst [vmem:[%s290 + $0xb0] sm:$0xff] %v2016
        %2273 = vst [vmem:[%s290 + $0xb8] sm:$0xff] %v2017
        %2274 = vst [vmem:[%s290 + $0xc0] sm:$0xff] %v2018
        %2275 = vst [vmem:[%s290 + $0xc8] sm:$0xff] %v2019
        %2276 = vst [vmem:[%s290 + $0xd0] sm:$0xff] %v2020
        %2277 = vst [vmem:[%s290 + $0xd8] sm:$0xff] %v2021
        %2278 = vst [vmem:[%s290 + $0xe0] sm:$0xff] %v2022
        %2279 = vst [vmem:[%s290 + $0xe8] sm:$0xff] %v2023
        %2280 = vst [vmem:[%s290 + $0xf0] sm:$0xff] %v2024
        %2281 = vst [vmem:[%s290 + $0xf8] sm:$0xff] %v2025
        %2282 = vst [vmem:[%s290 + $0x100] sm:$0xff] %v2026
        %2283 = vst [vmem:[%s290 + $0x108] sm:$0xff] %v2027
        %2284 = vst [vmem:[%s290 + $0x110] sm:$0xff] %v2028
        %2285 = vst [vmem:[%s290 + $0x118] sm:$0xff] %v2029
        %2286 = vst [vmem:[%s290 + $0x120] sm:$0xff] %v2030
        %2287 = vst [vmem:[%s290 + $0x128] sm:$0xff] %v2031
        %2288 = vst [vmem:[%s290 + $0x130] sm:$0xff] %v2032
        %2289 = vst [vmem:[%s290 + $0x138] sm:$0xff] %v2033
        %2290 = vst [vmem:[%s290 + $0x140] sm:$0xff] %v2034
        %2291 = vst [vmem:[%s290 + $0x148] sm:$0xff] %v2035
        %2292 = vst [vmem:[%s290 + $0x150] sm:$0xff] %v2036
        %2293 = vst [vmem:[%s290 + $0x158] sm:$0xff] %v2037
        %2294 = vst [vmem:[%s290 + $0x160] sm:$0xff] %v2038
        %2295 = vst [vmem:[%s290 + $0x168] sm:$0xff] %v2039
        %2296 = vst [vmem:[%s290 + $0x170] sm:$0xff] %v2040
        %2297 = vst [vmem:[%s290 + $0x178] sm:$0xff] %v2041
        %2298 = vst [vmem:[%s290 + $0x180] sm:$0xff] %v2042
        %2299 = vst [vmem:[%s290 + $0x188] sm:$0xff] %v2043
        %2300 = vst [vmem:[%s290 + $0x190] sm:$0xff] %v2044
        %2301 = vst [vmem:[%s290 + $0x198] sm:$0xff] %v2045
        %2302 = vst [vmem:[%s290 + $0x1a0] sm:$0xff] %v2046
        %2303 = vst [vmem:[%s290 + $0x1a8] sm:$0xff] %v2047
        %2304 = vst [vmem:[%s290 + $0x1b0] sm:$0xff] %v2048
        %2305 = vst [vmem:[%s290 + $0x1b8] sm:$0xff] %v2049
        %2306 = vst [vmem:[%s290 + $0x1c0] sm:$0xff] %v2050
        %2307 = vst [vmem:[%s290 + $0x1c8] sm:$0xff] %v2051
        %2308 = vst [vmem:[%s290 + $0x1d0] sm:$0xff] %v2052
        %2309 = vst [vmem:[%s290 + $0x1d8] sm:$0xff] %v2053
        %2310 = vst [vmem:[%s290 + $0x1e0] sm:$0xff] %v2054
        %2311 = vst [vmem:[%s290 + $0x1e8] sm:$0xff] %v2055
        %2312 = vst [vmem:[%s290 + $0x1f0] sm:$0xff] %v2056
        %2313 = vst [vmem:[%s290 + $0x1f8] sm:$0xff] %v2057
        %2314 = vst [vmem:[%s290 + $0x200] sm:$0xff] %v2058
        %2315 = vst [vmem:[%s290 + $0x208] sm:$0xff] %v2059
        %2316 = vst [vmem:[%s290 + $0x210] sm:$0xff] %v2060
        %2317 = vst [vmem:[%s290 + $0x218] sm:$0xff] %v2061
        %2318 = vst [vmem:[%s290 + $0x220] sm:$0xff] %v2062
        %2319 = vst [vmem:[%s290 + $0x228] sm:$0xff] %v2063
        %2320 = vst [vmem:[%s290 + $0x230] sm:$0xff] %v2064
        %2321 = vst [vmem:[%s290 + $0x238] sm:$0xff] %v2065
        %2322 = vst [vmem:[%s290 + $0x240] sm:$0xff] %v2066
        %2323 = vst [vmem:[%s290 + $0x248] sm:$0xff] %v2067
        %2324 = vst [vmem:[%s290 + $0x250] sm:$0xff] %v2068
        %2325 = vst [vmem:[%s290 + $0x258] sm:$0xff] %v2069
        %2326 = vst [vmem:[%s290 + $0x260] sm:$0xff] %v2070
        %2327 = vst [vmem:[%s290 + $0x268] sm:$0xff] %v2071
        %2328 = vst [vmem:[%s290 + $0x270] sm:$0xff] %v2072
        %2329 = vst [vmem:[%s290 + $0x278] sm:$0xff] %v2073
        %2330 = vst [vmem:[%s290 + $0x280] sm:$0xff] %v2074
        %2331 = vst [vmem:[%s290 + $0x288] sm:$0xff] %v2075
        %2332 = vst [vmem:[%s290 + $0x290] sm:$0xff] %v2076
        %2333 = vst [vmem:[%s290 + $0x298] sm:$0xff] %v2077
        %2334 = vst [vmem:[%s290 + $0x2a0] sm:$0xff] %v2078
        %2335 = vst [vmem:[%s290 + $0x2a8] sm:$0xff] %v2079
        %2336 = vst [vmem:[%s290 + $0x2b0] sm:$0xff] %v2080
        %2337 = vst [vmem:[%s290 + $0x2b8] sm:$0xff] %v2081
        %2338 = vst [vmem:[%s290 + $0x2c0] sm:$0xff] %v2082
        %2339 = vst [vmem:[%s290 + $0x2c8] sm:$0xff] %v2083
        %2340 = vst [vmem:[%s290 + $0x2d0] sm:$0xff] %v2084
        %2341 = vst [vmem:[%s290 + $0x2d8] sm:$0xff] %v2085
        %2342 = vst [vmem:[%s290 + $0x2e0] sm:$0xff] %v2086
        %2343 = vst [vmem:[%s290 + $0x2e8] sm:$0xff] %v2087
        %2344 = vst [vmem:[%s290 + $0x2f0] sm:$0xff] %v2088
        %2345 = vst [vmem:[%s290 + $0x2f8] sm:$0xff] %v2089
        %2346 = vst [vmem:[%s290 + $0x300] sm:$0xff] %v2090
        %2347 = vst [vmem:[%s290 + $0x308] sm:$0xff] %v2091
        %2348 = vst [vmem:[%s290 + $0x310] sm:$0xff] %v2092
        %2349 = vst [vmem:[%s290 + $0x318] sm:$0xff] %v2093
        %2350 = vst [vmem:[%s290 + $0x320] sm:$0xff] %v2094
        %2351 = vst [vmem:[%s290 + $0x328] sm:$0xff] %v2095
        %2352 = vst [vmem:[%s290 + $0x330] sm:$0xff] %v2096
        %2353 = vst [vmem:[%s290 + $0x338] sm:$0xff] %v2097
        %2354 = vst [vmem:[%s290 + $0x340] sm:$0xff] %v2098
        %2355 = vst [vmem:[%s290 + $0x348] sm:$0xff] %v2099
        %2356 = vst [vmem:[%s290 + $0x350] sm:$0xff] %v2100
        %2357 = vst [vmem:[%s290 + $0x358] sm:$0xff] %v2101
        %2358 = vst [vmem:[%s290 + $0x360] sm:$0xff] %v2102
        %2359 = vst [vmem:[%s290 + $0x368] sm:$0xff] %v2103
        %2360 = vst [vmem:[%s290 + $0x370] sm:$0xff] %v2104
        %2361 = vst [vmem:[%s290 + $0x378] sm:$0xff] %v2105
        %2362 = vst [vmem:[%s290 + $0x380] sm:$0xff] %v2106
        %2363 = vst [vmem:[%s290 + $0x388] sm:$0xff] %v2107
        %2364 = vst [vmem:[%s290 + $0x390] sm:$0xff] %v2108
        %2365 = vst [vmem:[%s290 + $0x398] sm:$0xff] %v2109
        %2366 = vst [vmem:[%s290 + $0x3a0] sm:$0xff] %v2110
        %2367 = vst [vmem:[%s290 + $0x3a8] sm:$0xff] %v2111
        %2368 = vst [vmem:[%s290 + $0x3b0] sm:$0xff] %v2112
        %2369 = vst [vmem:[%s290 + $0x3b8] sm:$0xff] %v2113
        %2370 = vst [vmem:[%s290 + $0x3c0] sm:$0xff] %v2114
        %2371 = vst [vmem:[%s290 + $0x3c8] sm:$0xff] %v2115
        %2372 = vst [vmem:[%s290 + $0x3d0] sm:$0xff] %v2116
        %2373 = vst [vmem:[%s290 + $0x3d8] sm:$0xff] %v2117
        %2374 = vst [vmem:[%s290 + $0x3e0] sm:$0xff] %v2118
        %2375 = vst [vmem:[%s290 + $0x3e8] sm:$0xff] %v2119
        %2376 = vst [vmem:[%s290 + $0x3f0] sm:$0xff] %v2120
        %2377 = vst [vmem:[%s290 + $0x3f8] sm:$0xff] %v2121
        %s2378 = sand.u32 %s114, 1
        %s2379 = sand.u32 %s114, 1
        %s2380 = smul.addr %s2379, 1024
        %s2381 = scalar_lea.vmem [#allocation3], %s2380
        // Predicated region
        $region56: #{texture_generator_forward.7} parent=50 // pred_check
          %p2382 = pneg %p124
        $region57: #{texture_generator_forward.7} parent=50 // pred_check_branch
          %2384 = sbr.rel (%p2382) target = $region59
        $region58: #{texture_generator_forward.7} parent=50 // pred_region
          %s2385 = smul.u32 64, %s18
          %s2386 = smul.u32 4, %s19
          %s2387 = smul.addr %s2385, 8
          %s2388 = sadd.s32 %s2386, %s2387
          %s2389 = smul.addr %s2388, 4
          %s2390 = scalar_lea.vmem %s3, %s2389
          // Predicated region
          $region60: #{texture_generator_forward.7} parent=58 // pred_check
            _
          $region61: #{texture_generator_forward.7} parent=58 // pred_check_branch
            %2392 = sbr.rel (0) target = $region63
          $region62: #{texture_generator_forward.7} parent=58 // pred_region
            // Predicated region
            $region64: #{texture_generator_forward.7} parent=62 // pred_check
              _
            $region65: #{texture_generator_forward.7} parent=62 // pred_check_branch
              %2394 = sbr.rel (0) target = $region67
            $region66: #{texture_generator_forward.7} parent=62 // pred_region
              loop: start=0, step=1, limit=1
              $region68: #{texture_generator_forward.7} parent=66 // loop_pre_header
                _
              $region69: #{texture_generator_forward.7} parent=66 // loop_header
                %s2396 = sphi 0, %s2400
                %p2397 = scmp.ge.s32.totalorder %s2396, 1
                %s2401 = sphi %s2381, %s2381
                %s2402 = sphi %s2390, %s2390
              $region70: #{texture_generator_forward.7} parent=66 // loop_header_branch
                %2399 = sbr.rel (%p2397) target = $region74
              $region71: #{texture_generator_forward.7} parent=66 // loop_body
                %v2403 = vld [vmem:[%s2401] sm:$0xff]
                %2404 = vst [vmem:[%s2402] sm:$0xff] %v2403
                %v2405 = vld [vmem:[%s2401 + $0x8] sm:$0xff]
                %2406 = vst [vmem:[%s2402 + $0x8] sm:$0xff] %v2405
                %v2407 = vld [vmem:[%s2401 + $0x10] sm:$0xff]
                %2408 = vst [vmem:[%s2402 + $0x20] sm:$0xff] %v2407
                %v2409 = vld [vmem:[%s2401 + $0x18] sm:$0xff]
                %2410 = vst [vmem:[%s2402 + $0x28] sm:$0xff] %v2409
                %v2411 = vld [vmem:[%s2401 + $0x20] sm:$0xff]
                %2412 = vst [vmem:[%s2402 + $0x40] sm:$0xff] %v2411
                %v2413 = vld [vmem:[%s2401 + $0x28] sm:$0xff]
                %2414 = vst [vmem:[%s2402 + $0x48] sm:$0xff] %v2413
                %v2415 = vld [vmem:[%s2401 + $0x30] sm:$0xff]
                %2416 = vst [vmem:[%s2402 + $0x60] sm:$0xff] %v2415
                %v2417 = vld [vmem:[%s2401 + $0x38] sm:$0xff]
                %2418 = vst [vmem:[%s2402 + $0x68] sm:$0xff] %v2417
                %v2419 = vld [vmem:[%s2401 + $0x40] sm:$0xff]
                %2420 = vst [vmem:[%s2402 + $0x80] sm:$0xff] %v2419
                %v2421 = vld [vmem:[%s2401 + $0x48] sm:$0xff]
                %2422 = vst [vmem:[%s2402 + $0x88] sm:$0xff] %v2421
                %v2423 = vld [vmem:[%s2401 + $0x50] sm:$0xff]
                %2424 = vst [vmem:[%s2402 + $0xa0] sm:$0xff] %v2423
                %v2425 = vld [vmem:[%s2401 + $0x58] sm:$0xff]
                %2426 = vst [vmem:[%s2402 + $0xa8] sm:$0xff] %v2425
                %v2427 = vld [vmem:[%s2401 + $0x60] sm:$0xff]
                %2428 = vst [vmem:[%s2402 + $0xc0] sm:$0xff] %v2427
                %v2429 = vld [vmem:[%s2401 + $0x68] sm:$0xff]
                %2430 = vst [vmem:[%s2402 + $0xc8] sm:$0xff] %v2429
                %v2431 = vld [vmem:[%s2401 + $0x70] sm:$0xff]
                %2432 = vst [vmem:[%s2402 + $0xe0] sm:$0xff] %v2431
                %v2433 = vld [vmem:[%s2401 + $0x78] sm:$0xff]
                %2434 = vst [vmem:[%s2402 + $0xe8] sm:$0xff] %v2433
                %v2435 = vld [vmem:[%s2401 + $0x80] sm:$0xff]
                %2436 = vst [vmem:[%s2402 + $0x100] sm:$0xff] %v2435
                %v2437 = vld [vmem:[%s2401 + $0x88] sm:$0xff]
                %2438 = vst [vmem:[%s2402 + $0x108] sm:$0xff] %v2437
                %v2439 = vld [vmem:[%s2401 + $0x90] sm:$0xff]
                %2440 = vst [vmem:[%s2402 + $0x120] sm:$0xff] %v2439
                %v2441 = vld [vmem:[%s2401 + $0x98] sm:$0xff]
                %2442 = vst [vmem:[%s2402 + $0x128] sm:$0xff] %v2441
                %v2443 = vld [vmem:[%s2401 + $0xa0] sm:$0xff]
                %2444 = vst [vmem:[%s2402 + $0x140] sm:$0xff] %v2443
                %v2445 = vld [vmem:[%s2401 + $0xa8] sm:$0xff]
                %2446 = vst [vmem:[%s2402 + $0x148] sm:$0xff] %v2445
                %v2447 = vld [vmem:[%s2401 + $0xb0] sm:$0xff]
                %2448 = vst [vmem:[%s2402 + $0x160] sm:$0xff] %v2447
                %v2449 = vld [vmem:[%s2401 + $0xb8] sm:$0xff]
                %2450 = vst [vmem:[%s2402 + $0x168] sm:$0xff] %v2449
                %v2451 = vld [vmem:[%s2401 + $0xc0] sm:$0xff]
                %2452 = vst [vmem:[%s2402 + $0x180] sm:$0xff] %v2451
                %v2453 = vld [vmem:[%s2401 + $0xc8] sm:$0xff]
                %2454 = vst [vmem:[%s2402 + $0x188] sm:$0xff] %v2453
                %v2455 = vld [vmem:[%s2401 + $0xd0] sm:$0xff]
                %2456 = vst [vmem:[%s2402 + $0x1a0] sm:$0xff] %v2455
                %v2457 = vld [vmem:[%s2401 + $0xd8] sm:$0xff]
                %2458 = vst [vmem:[%s2402 + $0x1a8] sm:$0xff] %v2457
                %v2459 = vld [vmem:[%s2401 + $0xe0] sm:$0xff]
                %2460 = vst [vmem:[%s2402 + $0x1c0] sm:$0xff] %v2459
                %v2461 = vld [vmem:[%s2401 + $0xe8] sm:$0xff]
                %2462 = vst [vmem:[%s2402 + $0x1c8] sm:$0xff] %v2461
                %v2463 = vld [vmem:[%s2401 + $0xf0] sm:$0xff]
                %2464 = vst [vmem:[%s2402 + $0x1e0] sm:$0xff] %v2463
                %v2465 = vld [vmem:[%s2401 + $0xf8] sm:$0xff]
                %2466 = vst [vmem:[%s2402 + $0x1e8] sm:$0xff] %v2465
                %v2467 = vld [vmem:[%s2401 + $0x100] sm:$0xff]
                %2468 = vst [vmem:[%s2402 + $0x200] sm:$0xff] %v2467
                %v2469 = vld [vmem:[%s2401 + $0x108] sm:$0xff]
                %2470 = vst [vmem:[%s2402 + $0x208] sm:$0xff] %v2469
                %v2471 = vld [vmem:[%s2401 + $0x110] sm:$0xff]
                %2472 = vst [vmem:[%s2402 + $0x220] sm:$0xff] %v2471
                %v2473 = vld [vmem:[%s2401 + $0x118] sm:$0xff]
                %2474 = vst [vmem:[%s2402 + $0x228] sm:$0xff] %v2473
                %v2475 = vld [vmem:[%s2401 + $0x120] sm:$0xff]
                %2476 = vst [vmem:[%s2402 + $0x240] sm:$0xff] %v2475
                %v2477 = vld [vmem:[%s2401 + $0x128] sm:$0xff]
                %2478 = vst [vmem:[%s2402 + $0x248] sm:$0xff] %v2477
                %v2479 = vld [vmem:[%s2401 + $0x130] sm:$0xff]
                %2480 = vst [vmem:[%s2402 + $0x260] sm:$0xff] %v2479
                %v2481 = vld [vmem:[%s2401 + $0x138] sm:$0xff]
                %2482 = vst [vmem:[%s2402 + $0x268] sm:$0xff] %v2481
                %v2483 = vld [vmem:[%s2401 + $0x140] sm:$0xff]
                %2484 = vst [vmem:[%s2402 + $0x280] sm:$0xff] %v2483
                %v2485 = vld [vmem:[%s2401 + $0x148] sm:$0xff]
                %2486 = vst [vmem:[%s2402 + $0x288] sm:$0xff] %v2485
                %v2487 = vld [vmem:[%s2401 + $0x150] sm:$0xff]
                %2488 = vst [vmem:[%s2402 + $0x2a0] sm:$0xff] %v2487
                %v2489 = vld [vmem:[%s2401 + $0x158] sm:$0xff]
                %2490 = vst [vmem:[%s2402 + $0x2a8] sm:$0xff] %v2489
                %v2491 = vld [vmem:[%s2401 + $0x160] sm:$0xff]
                %2492 = vst [vmem:[%s2402 + $0x2c0] sm:$0xff] %v2491
                %v2493 = vld [vmem:[%s2401 + $0x168] sm:$0xff]
                %2494 = vst [vmem:[%s2402 + $0x2c8] sm:$0xff] %v2493
                %v2495 = vld [vmem:[%s2401 + $0x170] sm:$0xff]
                %2496 = vst [vmem:[%s2402 + $0x2e0] sm:$0xff] %v2495
                %v2497 = vld [vmem:[%s2401 + $0x178] sm:$0xff]
                %2498 = vst [vmem:[%s2402 + $0x2e8] sm:$0xff] %v2497
                %v2499 = vld [vmem:[%s2401 + $0x180] sm:$0xff]
                %2500 = vst [vmem:[%s2402 + $0x300] sm:$0xff] %v2499
                %v2501 = vld [vmem:[%s2401 + $0x188] sm:$0xff]
                %2502 = vst [vmem:[%s2402 + $0x308] sm:$0xff] %v2501
                %v2503 = vld [vmem:[%s2401 + $0x190] sm:$0xff]
                %2504 = vst [vmem:[%s2402 + $0x320] sm:$0xff] %v2503
                %v2505 = vld [vmem:[%s2401 + $0x198] sm:$0xff]
                %2506 = vst [vmem:[%s2402 + $0x328] sm:$0xff] %v2505
                %v2507 = vld [vmem:[%s2401 + $0x1a0] sm:$0xff]
                %2508 = vst [vmem:[%s2402 + $0x340] sm:$0xff] %v2507
                %v2509 = vld [vmem:[%s2401 + $0x1a8] sm:$0xff]
                %2510 = vst [vmem:[%s2402 + $0x348] sm:$0xff] %v2509
                %v2511 = vld [vmem:[%s2401 + $0x1b0] sm:$0xff]
                %2512 = vst [vmem:[%s2402 + $0x360] sm:$0xff] %v2511
                %v2513 = vld [vmem:[%s2401 + $0x1b8] sm:$0xff]
                %2514 = vst [vmem:[%s2402 + $0x368] sm:$0xff] %v2513
                %v2515 = vld [vmem:[%s2401 + $0x1c0] sm:$0xff]
                %2516 = vst [vmem:[%s2402 + $0x380] sm:$0xff] %v2515
                %v2517 = vld [vmem:[%s2401 + $0x1c8] sm:$0xff]
                %2518 = vst [vmem:[%s2402 + $0x388] sm:$0xff] %v2517
                %v2519 = vld [vmem:[%s2401 + $0x1d0] sm:$0xff]
                %2520 = vst [vmem:[%s2402 + $0x3a0] sm:$0xff] %v2519
                %v2521 = vld [vmem:[%s2401 + $0x1d8] sm:$0xff]
                %2522 = vst [vmem:[%s2402 + $0x3a8] sm:$0xff] %v2521
                %v2523 = vld [vmem:[%s2401 + $0x1e0] sm:$0xff]
                %2524 = vst [vmem:[%s2402 + $0x3c0] sm:$0xff] %v2523
                %v2525 = vld [vmem:[%s2401 + $0x1e8] sm:$0xff]
                %2526 = vst [vmem:[%s2402 + $0x3c8] sm:$0xff] %v2525
                %v2527 = vld [vmem:[%s2401 + $0x1f0] sm:$0xff]
                %2528 = vst [vmem:[%s2402 + $0x3e0] sm:$0xff] %v2527
                %v2529 = vld [vmem:[%s2401 + $0x1f8] sm:$0xff]
                %2530 = vst [vmem:[%s2402 + $0x3e8] sm:$0xff] %v2529
                %v2531 = vld [vmem:[%s2401 + $0x200] sm:$0xff]
                %2532 = vst [vmem:[%s2402 + $0x400] sm:$0xff] %v2531
                %v2533 = vld [vmem:[%s2401 + $0x208] sm:$0xff]
                %2534 = vst [vmem:[%s2402 + $0x408] sm:$0xff] %v2533
                %v2535 = vld [vmem:[%s2401 + $0x210] sm:$0xff]
                %2536 = vst [vmem:[%s2402 + $0x420] sm:$0xff] %v2535
                %v2537 = vld [vmem:[%s2401 + $0x218] sm:$0xff]
                %2538 = vst [vmem:[%s2402 + $0x428] sm:$0xff] %v2537
                %v2539 = vld [vmem:[%s2401 + $0x220] sm:$0xff]
                %2540 = vst [vmem:[%s2402 + $0x440] sm:$0xff] %v2539
                %v2541 = vld [vmem:[%s2401 + $0x228] sm:$0xff]
                %2542 = vst [vmem:[%s2402 + $0x448] sm:$0xff] %v2541
                %v2543 = vld [vmem:[%s2401 + $0x230] sm:$0xff]
                %2544 = vst [vmem:[%s2402 + $0x460] sm:$0xff] %v2543
                %v2545 = vld [vmem:[%s2401 + $0x238] sm:$0xff]
                %2546 = vst [vmem:[%s2402 + $0x468] sm:$0xff] %v2545
                %v2547 = vld [vmem:[%s2401 + $0x240] sm:$0xff]
                %2548 = vst [vmem:[%s2402 + $0x480] sm:$0xff] %v2547
                %v2549 = vld [vmem:[%s2401 + $0x248] sm:$0xff]
                %2550 = vst [vmem:[%s2402 + $0x488] sm:$0xff] %v2549
                %v2551 = vld [vmem:[%s2401 + $0x250] sm:$0xff]
                %2552 = vst [vmem:[%s2402 + $0x4a0] sm:$0xff] %v2551
                %v2553 = vld [vmem:[%s2401 + $0x258] sm:$0xff]
                %2554 = vst [vmem:[%s2402 + $0x4a8] sm:$0xff] %v2553
                %v2555 = vld [vmem:[%s2401 + $0x260] sm:$0xff]
                %2556 = vst [vmem:[%s2402 + $0x4c0] sm:$0xff] %v2555
                %v2557 = vld [vmem:[%s2401 + $0x268] sm:$0xff]
                %2558 = vst [vmem:[%s2402 + $0x4c8] sm:$0xff] %v2557
                %v2559 = vld [vmem:[%s2401 + $0x270] sm:$0xff]
                %2560 = vst [vmem:[%s2402 + $0x4e0] sm:$0xff] %v2559
                %v2561 = vld [vmem:[%s2401 + $0x278] sm:$0xff]
                %2562 = vst [vmem:[%s2402 + $0x4e8] sm:$0xff] %v2561
                %v2563 = vld [vmem:[%s2401 + $0x280] sm:$0xff]
                %2564 = vst [vmem:[%s2402 + $0x500] sm:$0xff] %v2563
                %v2565 = vld [vmem:[%s2401 + $0x288] sm:$0xff]
                %2566 = vst [vmem:[%s2402 + $0x508] sm:$0xff] %v2565
                %v2567 = vld [vmem:[%s2401 + $0x290] sm:$0xff]
                %2568 = vst [vmem:[%s2402 + $0x520] sm:$0xff] %v2567
                %v2569 = vld [vmem:[%s2401 + $0x298] sm:$0xff]
                %2570 = vst [vmem:[%s2402 + $0x528] sm:$0xff] %v2569
                %v2571 = vld [vmem:[%s2401 + $0x2a0] sm:$0xff]
                %2572 = vst [vmem:[%s2402 + $0x540] sm:$0xff] %v2571
                %v2573 = vld [vmem:[%s2401 + $0x2a8] sm:$0xff]
                %2574 = vst [vmem:[%s2402 + $0x548] sm:$0xff] %v2573
                %v2575 = vld [vmem:[%s2401 + $0x2b0] sm:$0xff]
                %2576 = vst [vmem:[%s2402 + $0x560] sm:$0xff] %v2575
                %v2577 = vld [vmem:[%s2401 + $0x2b8] sm:$0xff]
                %2578 = vst [vmem:[%s2402 + $0x568] sm:$0xff] %v2577
                %v2579 = vld [vmem:[%s2401 + $0x2c0] sm:$0xff]
                %2580 = vst [vmem:[%s2402 + $0x580] sm:$0xff] %v2579
                %v2581 = vld [vmem:[%s2401 + $0x2c8] sm:$0xff]
                %2582 = vst [vmem:[%s2402 + $0x588] sm:$0xff] %v2581
                %v2583 = vld [vmem:[%s2401 + $0x2d0] sm:$0xff]
                %2584 = vst [vmem:[%s2402 + $0x5a0] sm:$0xff] %v2583
                %v2585 = vld [vmem:[%s2401 + $0x2d8] sm:$0xff]
                %2586 = vst [vmem:[%s2402 + $0x5a8] sm:$0xff] %v2585
                %v2587 = vld [vmem:[%s2401 + $0x2e0] sm:$0xff]
                %2588 = vst [vmem:[%s2402 + $0x5c0] sm:$0xff] %v2587
                %v2589 = vld [vmem:[%s2401 + $0x2e8] sm:$0xff]
                %2590 = vst [vmem:[%s2402 + $0x5c8] sm:$0xff] %v2589
                %v2591 = vld [vmem:[%s2401 + $0x2f0] sm:$0xff]
                %2592 = vst [vmem:[%s2402 + $0x5e0] sm:$0xff] %v2591
                %v2593 = vld [vmem:[%s2401 + $0x2f8] sm:$0xff]
                %2594 = vst [vmem:[%s2402 + $0x5e8] sm:$0xff] %v2593
                %v2595 = vld [vmem:[%s2401 + $0x300] sm:$0xff]
                %2596 = vst [vmem:[%s2402 + $0x600] sm:$0xff] %v2595
                %v2597 = vld [vmem:[%s2401 + $0x308] sm:$0xff]
                %2598 = vst [vmem:[%s2402 + $0x608] sm:$0xff] %v2597
                %v2599 = vld [vmem:[%s2401 + $0x310] sm:$0xff]
                %2600 = vst [vmem:[%s2402 + $0x620] sm:$0xff] %v2599
                %v2601 = vld [vmem:[%s2401 + $0x318] sm:$0xff]
                %2602 = vst [vmem:[%s2402 + $0x628] sm:$0xff] %v2601
                %v2603 = vld [vmem:[%s2401 + $0x320] sm:$0xff]
                %2604 = vst [vmem:[%s2402 + $0x640] sm:$0xff] %v2603
                %v2605 = vld [vmem:[%s2401 + $0x328] sm:$0xff]
                %2606 = vst [vmem:[%s2402 + $0x648] sm:$0xff] %v2605
                %v2607 = vld [vmem:[%s2401 + $0x330] sm:$0xff]
                %2608 = vst [vmem:[%s2402 + $0x660] sm:$0xff] %v2607
                %v2609 = vld [vmem:[%s2401 + $0x338] sm:$0xff]
                %2610 = vst [vmem:[%s2402 + $0x668] sm:$0xff] %v2609
                %v2611 = vld [vmem:[%s2401 + $0x340] sm:$0xff]
                %2612 = vst [vmem:[%s2402 + $0x680] sm:$0xff] %v2611
                %v2613 = vld [vmem:[%s2401 + $0x348] sm:$0xff]
                %2614 = vst [vmem:[%s2402 + $0x688] sm:$0xff] %v2613
                %v2615 = vld [vmem:[%s2401 + $0x350] sm:$0xff]
                %2616 = vst [vmem:[%s2402 + $0x6a0] sm:$0xff] %v2615
                %v2617 = vld [vmem:[%s2401 + $0x358] sm:$0xff]
                %2618 = vst [vmem:[%s2402 + $0x6a8] sm:$0xff] %v2617
                %v2619 = vld [vmem:[%s2401 + $0x360] sm:$0xff]
                %2620 = vst [vmem:[%s2402 + $0x6c0] sm:$0xff] %v2619
                %v2621 = vld [vmem:[%s2401 + $0x368] sm:$0xff]
                %2622 = vst [vmem:[%s2402 + $0x6c8] sm:$0xff] %v2621
                %v2623 = vld [vmem:[%s2401 + $0x370] sm:$0xff]
                %2624 = vst [vmem:[%s2402 + $0x6e0] sm:$0xff] %v2623
                %v2625 = vld [vmem:[%s2401 + $0x378] sm:$0xff]
                %2626 = vst [vmem:[%s2402 + $0x6e8] sm:$0xff] %v2625
                %v2627 = vld [vmem:[%s2401 + $0x380] sm:$0xff]
                %2628 = vst [vmem:[%s2402 + $0x700] sm:$0xff] %v2627
                %v2629 = vld [vmem:[%s2401 + $0x388] sm:$0xff]
                %2630 = vst [vmem:[%s2402 + $0x708] sm:$0xff] %v2629
                %v2631 = vld [vmem:[%s2401 + $0x390] sm:$0xff]
                %2632 = vst [vmem:[%s2402 + $0x720] sm:$0xff] %v2631
                %v2633 = vld [vmem:[%s2401 + $0x398] sm:$0xff]
                %2634 = vst [vmem:[%s2402 + $0x728] sm:$0xff] %v2633
                %v2635 = vld [vmem:[%s2401 + $0x3a0] sm:$0xff]
                %2636 = vst [vmem:[%s2402 + $0x740] sm:$0xff] %v2635
                %v2637 = vld [vmem:[%s2401 + $0x3a8] sm:$0xff]
                %2638 = vst [vmem:[%s2402 + $0x748] sm:$0xff] %v2637
                %v2639 = vld [vmem:[%s2401 + $0x3b0] sm:$0xff]
                %2640 = vst [vmem:[%s2402 + $0x760] sm:$0xff] %v2639
                %v2641 = vld [vmem:[%s2401 + $0x3b8] sm:$0xff]
                %2642 = vst [vmem:[%s2402 + $0x768] sm:$0xff] %v2641
                %v2643 = vld [vmem:[%s2401 + $0x3c0] sm:$0xff]
                %2644 = vst [vmem:[%s2402 + $0x780] sm:$0xff] %v2643
                %v2645 = vld [vmem:[%s2401 + $0x3c8] sm:$0xff]
                %2646 = vst [vmem:[%s2402 + $0x788] sm:$0xff] %v2645
                %v2647 = vld [vmem:[%s2401 + $0x3d0] sm:$0xff]
                %2648 = vst [vmem:[%s2402 + $0x7a0] sm:$0xff] %v2647
                %v2649 = vld [vmem:[%s2401 + $0x3d8] sm:$0xff]
                %2650 = vst [vmem:[%s2402 + $0x7a8] sm:$0xff] %v2649
                %v2651 = vld [vmem:[%s2401 + $0x3e0] sm:$0xff]
                %2652 = vst [vmem:[%s2402 + $0x7c0] sm:$0xff] %v2651
                %v2653 = vld [vmem:[%s2401 + $0x3e8] sm:$0xff]
                %2654 = vst [vmem:[%s2402 + $0x7c8] sm:$0xff] %v2653
                %v2655 = vld [vmem:[%s2401 + $0x3f0] sm:$0xff]
                %2656 = vst [vmem:[%s2402 + $0x7e0] sm:$0xff] %v2655
                %v2657 = vld [vmem:[%s2401 + $0x3f8] sm:$0xff]
                %2658 = vst [vmem:[%s2402 + $0x7e8] sm:$0xff] %v2657
              $region72: #{texture_generator_forward.7} parent=66 // loop_footer
                %s2400 = sadd.s32 1, %s2396
              $region73: #{texture_generator_forward.7} parent=66 // loop_footer_branch
                %2395 = sbr.rel target = $region69
              $region74: #{texture_generator_forward.7} parent=66 // loop_exit
                _
            $region67: #{texture_generator_forward.7} parent=62 // pred_fallthru
              _
            // Predicated region
            $region75: #{texture_generator_forward.7} parent=62 // pred_check
              _
            $region76: #{texture_generator_forward.7} parent=62 // pred_check_branch
              %2660 = sbr.rel target = $region78
            $region77: #{texture_generator_forward.7} parent=62 // pred_region
              _
            $region78: #{texture_generator_forward.7} parent=62 // pred_fallthru
              _
          $region63: #{texture_generator_forward.7} parent=58 // pred_fallthru
            _
          %2661 = vnop
        $region59: #{texture_generator_forward.7} parent=50 // pred_fallthru
          _
      $region51: #{texture_generator_forward.7} parent=5 // pred_fallthru
        _
      %p2662 = scmp.le.s32.totalorder 2, %s9
      // Predicated region
      $region79: #{texture_generator_forward.7} parent=5 // pred_check
        %p2663 = pneg %p2662
      $region80: #{texture_generator_forward.7} parent=5 // pred_check_branch
        %2665 = sbr.rel (%p2663) target = $region82
      $region81: #{texture_generator_forward.7} parent=5 // pred_region
        %s2666 = ssub.s32 %s9, 2
        // Predicated region
        $region83: #{texture_generator_forward.7} parent=81 // pred_check
          %p2667 = pneg %p130
        $region84: #{texture_generator_forward.7} parent=81 // pred_check_branch
          %2669 = sbr.rel (%p2667) target = $region86
        $region85: #{texture_generator_forward.7} parent=81 // pred_region
          %s2670 = sand.u32 %s115, 1
          %s2671 = sand.u32 %s115, 1
          %s2672 = smul.addr %s2671, 1024
          %s2673 = scalar_lea.vmem [#allocation3], %s2672
        $region86: #{texture_generator_forward.7} parent=81 // pred_fallthru
          _
      $region82: #{texture_generator_forward.7} parent=5 // pred_fallthru
        _
    $region6: #{texture_generator_forward.7} parent=1 // loop_footer
      %s13 = sadd.s32 1, %s9
    $region7: #{texture_generator_forward.7} parent=1 // loop_footer_branch
      %8 = sbr.rel target = $region3
    $region8: #{texture_generator_forward.7} parent=1 // loop_exit
      _

// kernel: texture_generator_forward.8
$region0: #{texture_generator_forward.8}
  #allocation0 [shape = 'u32[]', space=smem, size = 0x4, offset = 0x4, fixed_abs, tag = 'smem constant byte address 0x4 - core index']
  #allocation1 [shape = 'u32[144,128]{1,0:T(1,128)}', space=vmem, size = 0x12000, scoped, tag = 'internal scratch']
  %s0 = inlined_call_operand.vmem [shape: bf16[2048,64], index: 0, kind: input, shape index: {}]
  %s1 = inlined_call_operand.vmem [shape: bf16[64,128], index: 1, kind: input, shape index: {}]
  %s2 = inlined_call_operand.vmem [shape: f32[1,128], index: 2, kind: input, shape index: {}]
  %s3 = inlined_call_operand.vmem [shape: bf16[2048,128], index: 3, kind: output, shape index: {}]
  %s4 = sld [smem:[#allocation0]]
  $region45: #{texture_generator_forward.8} parent=0
    _
  %s6 = ssub.s32 1, %s4
  %s7 = scalar_select 0, %s6, %s4
  loop: start=0, step=1, limit=4
  $region2: #{texture_generator_forward.8} parent=0 // loop_pre_header
    _
  $region3: #{texture_generator_forward.8} parent=0 // loop_header
    %s9 = sphi 0, %s13
    %p10 = scmp.ge.s32.totalorder %s9, 4
    %s16 = sphi 0, %s28
    %s17 = sphi 0, %s24
    %s18 = sphi 0, %s16
    %s19 = sphi 0, %s17
    %s20 = sphi 0, %s18
    %s21 = sphi 0, %s19
    %s31 = sphi 0, %s33
    %s34 = sphi 0, %s31
    %s35 = sphi 0, %s34
    %s51 = sphi 0, %s35
    %s57 = sphi 0, %s59
    %s60 = sphi 0, %s57
    %s61 = sphi 0, %s60
    %s77 = sphi 0, %s61
    %s83 = sphi 0, %s85
    %s86 = sphi 0, %s83
    %s87 = sphi 0, %s86
    %s103 = sphi 0, %s87
    %s111 = sphi 0, %s113
    %s114 = sphi 0, %s111
    %s115 = sphi 0, %s114
    %s131 = sphi 0, %s115
  $region4: #{texture_generator_forward.8} parent=0 // loop_header_branch
    %12 = sbr.rel (%p10) target = $region8
  $region5: #{texture_generator_forward.8} parent=0 // loop_body
    %s14 = ssub.s32 %s9, 1
    %s15 = ssub.s32 %s9, 2
    %s22 = sadd.s32 1, %s17
    %p23 = scmp.ge.s32.totalorder %s22, 1
    %s24 = scalar_select %p23, 0, %s22
    %s25 = sadd.s32 1, %s16
    %s26 = scalar_select %p23, %s25, %s16
    %p27 = scmp.ge.s32.totalorder %s26, 2
    %s28 = scalar_select %p27, 0, %s26
    %s29 = ssub.s32 %s16, %s28
    %p30 = scmp.eq.s32.totalorder %s29, 0
    %s32 = sadd.s32 %s31, 1
    %s33 = scalar_select %p30, %s31, %s32
    %p36 = pneg %p30
    %p37 = scmp.eq.s32.totalorder %s9, 1
    %p38 = por %p36, %p37
    %p39 = scmp.ne.s32.totalorder %s31, %s34
    %p40 = scmp.eq.s32.totalorder %s9, 0
    %p41 = por %p39, %p40
    %p42 = scmp.ne.s32.totalorder %s31, %s34
    %p43 = scmp.eq.s32.totalorder %s14, 1
    %p44 = por %p42, %p43
    %p45 = scmp.ne.s32.totalorder %s34, %s35
    %p46 = scmp.eq.s32.totalorder %s14, 0
    %p47 = por %p45, %p46
    %p48 = scmp.ne.s32.totalorder %s34, %s35
    %p49 = scmp.eq.s32.totalorder %s15, 1
    %p50 = por %p48, %p49
    %p52 = scmp.ne.s32.totalorder %s35, %s51
    %p53 = scmp.eq.s32.totalorder %s15, 0
    %p54 = por %p52, %p53
    %s55 = ssub.s32 %s17, %s24
    %p56 = scmp.eq.s32.totalorder %s55, 0
    %s58 = sadd.s32 %s57, 1
    %s59 = scalar_select %p56, %s57, %s58
    %p62 = pneg %p56
    %p63 = scmp.eq.s32.totalorder %s9, 1
    %p64 = por %p62, %p63
    %p65 = scmp.ne.s32.totalorder %s57, %s60
    %p66 = scmp.eq.s32.totalorder %s9, 0
    %p67 = por %p65, %p66
    %p68 = scmp.ne.s32.totalorder %s57, %s60
    %p69 = scmp.eq.s32.totalorder %s14, 1
    %p70 = por %p68, %p69
    %p71 = scmp.ne.s32.totalorder %s60, %s61
    %p72 = scmp.eq.s32.totalorder %s14, 0
    %p73 = por %p71, %p72
    %p74 = scmp.ne.s32.totalorder %s60, %s61
    %p75 = scmp.eq.s32.totalorder %s15, 1
    %p76 = por %p74, %p75
    %p78 = scmp.ne.s32.totalorder %s61, %s77
    %p79 = scmp.eq.s32.totalorder %s15, 0
    %p80 = por %p78, %p79
    %s81 = ssub.s32 %s17, %s24
    %p82 = scmp.eq.s32.totalorder %s81, 0
    %s84 = sadd.s32 %s83, 1
    %s85 = scalar_select %p82, %s83, %s84
    %p88 = pneg %p82
    %p89 = scmp.eq.s32.totalorder %s9, 1
    %p90 = por %p88, %p89
    %p91 = scmp.ne.s32.totalorder %s83, %s86
    %p92 = scmp.eq.s32.totalorder %s9, 0
    %p93 = por %p91, %p92
    %p94 = scmp.ne.s32.totalorder %s83, %s86
    %p95 = scmp.eq.s32.totalorder %s14, 1
    %p96 = por %p94, %p95
    %p97 = scmp.ne.s32.totalorder %s86, %s87
    %p98 = scmp.eq.s32.totalorder %s14, 0
    %p99 = por %p97, %p98
    %p100 = scmp.ne.s32.totalorder %s86, %s87
    %p101 = scmp.eq.s32.totalorder %s15, 1
    %p102 = por %p100, %p101
    %p104 = scmp.ne.s32.totalorder %s87, %s103
    %p105 = scmp.eq.s32.totalorder %s15, 0
    %p106 = por %p104, %p105
    %s107 = ssub.s32 %s16, %s28
    %s108 = ssub.s32 %s17, %s24
    %s109 = sor.u32 %s107, %s108
    %p110 = scmp.eq.s32.totalorder %s109, 0
    %s112 = sadd.s32 %s111, 1
    %s113 = scalar_select %p110, %s111, %s112
    %p116 = pneg %p110
    %p117 = scmp.eq.s32.totalorder %s9, 1
    %p118 = por %p116, %p117
    %p119 = scmp.ne.s32.totalorder %s111, %s114
    %p120 = scmp.eq.s32.totalorder %s9, 0
    %p121 = por %p119, %p120
    %p122 = scmp.ne.s32.totalorder %s111, %s114
    %p123 = scmp.eq.s32.totalorder %s14, 1
    %p124 = por %p122, %p123
    %p125 = scmp.ne.s32.totalorder %s114, %s115
    %p126 = scmp.eq.s32.totalorder %s14, 0
    %p127 = por %p125, %p126
    %p128 = scmp.ne.s32.totalorder %s114, %s115
    %p129 = scmp.eq.s32.totalorder %s15, 1
    %p130 = por %p128, %p129
    %p132 = scmp.ne.s32.totalorder %s115, %s131
    %p133 = scmp.eq.s32.totalorder %s15, 0
    %p134 = por %p132, %p133
    %p135 = scmp.le.s32.totalorder 1, %s9
    %p136 = scmp.lt.s32.totalorder %s9, 3
    %p137 = pnand %p135, %p136
    %p138 = pneg %p137
    // Predicated region
    $region9: #{texture_generator_forward.8} parent=5 // pred_check
      _
    $region10: #{texture_generator_forward.8} parent=5 // pred_check_branch
      %140 = sbr.rel (%p137) target = $region12
    $region11: #{texture_generator_forward.8} parent=5 // pred_region
      %s141 = ssub.s32 %s9, 1
      // Predicated region
      $region13: #{texture_generator_forward.8} parent=11 // pred_check
        %p142 = pneg %p73
      $region14: #{texture_generator_forward.8} parent=11 // pred_check_branch
        %144 = sbr.rel (%p142) target = $region16
      $region15: #{texture_generator_forward.8} parent=11 // pred_region
        %p145 = scmp.lt.s32.totalorder %s19, 0
        %s146 = scalar_select %p145, %s19, 0
        %s147 = smul.addr %s146, 4
        %s148 = scalar_lea.vmem %s1, %s147
      $region16: #{texture_generator_forward.8} parent=11 // pred_fallthru
        _
      // Predicated region
      $region17: #{texture_generator_forward.8} parent=11 // pred_check
        %p149 = pneg %p99
      $region18: #{texture_generator_forward.8} parent=11 // pred_check_branch
        %151 = sbr.rel (%p149) target = $region20
      $region19: #{texture_generator_forward.8} parent=11 // pred_region
        %p152 = scmp.lt.s32.totalorder %s19, 0
        %s153 = scalar_select %p152, %s19, 0
        %s154 = scalar_lea.vmem %s2, %s153
      $region20: #{texture_generator_forward.8} parent=11 // pred_fallthru
        _
    $region12: #{texture_generator_forward.8} parent=5 // pred_fallthru
      _
    %p155 = scmp.lt.s32.totalorder %s9, 2
    // Predicated region
    $region21: #{texture_generator_forward.8} parent=5 // pred_check
      %p156 = pneg %p155
    $region22: #{texture_generator_forward.8} parent=5 // pred_check_branch
      %158 = sbr.rel (%p156) target = $region24
    $region23: #{texture_generator_forward.8} parent=5 // pred_region
      // Predicated region
      $region25: #{texture_generator_forward.8} parent=23 // pred_check
        %p159 = pneg %p41
      $region26: #{texture_generator_forward.8} parent=23 // pred_check_branch
        %161 = sbr.rel (%p159) target = $region28
      $region27: #{texture_generator_forward.8} parent=23 // pred_region
        %s162 = smul.u32 128, %s16
        %p163 = scmp.lt.s32.totalorder %s162, 255
        %s164 = scalar_select %p163, %s162, 255
        %s165 = smul.addr %s164, 4
        %s166 = scalar_lea.vmem %s0, %s165
        %s167 = smul.u32 128, %s16
      $region28: #{texture_generator_forward.8} parent=23 // pred_fallthru
        _
    $region24: #{texture_generator_forward.8} parent=5 // pred_fallthru
      _
    %p168 = scmp.le.s32.totalorder 1, %s9
    %p169 = scmp.lt.s32.totalorder %s9, 3
    %p170 = pnand %p168, %p169
    %p171 = pneg %p170
    // Predicated region
    $region29: #{texture_generator_forward.8} parent=5 // pred_check
      _
    $region30: #{texture_generator_forward.8} parent=5 // pred_check_branch
      %173 = sbr.rel (%p170) target = $region32
    $region31: #{texture_generator_forward.8} parent=5 // pred_region
      %s174 = ssub.s32 %s9, 1
      %s175 = smul.u32 128, %s18
      %p176 = scmp.lt.s32.totalorder %s175, 255
      %s177 = scalar_select %p176, %s175, 255
      %s178 = smul.addr %s177, 4
      %s179 = scalar_lea.vmem %s0, %s178
      %p180 = pneg %p47
      %p181 = pneg %p44
      %p182 = scmp.lt.s32.totalorder %s19, 0
      %s183 = scalar_select %p182, %s19, 0
      %s184 = smul.addr %s183, 4
      %s185 = scalar_lea.vmem %s1, %s184
      %p186 = pneg %p73
      %p187 = pneg %p70
      %p188 = scmp.lt.s32.totalorder %s19, 0
      %s189 = scalar_select %p188, %s19, 0
      %s190 = scalar_lea.vmem %s2, %s189
      %p191 = pneg %p99
      %p192 = pneg %p96
      %p193 = pneg %p127
      %p194 = pneg %p124
      %s195 = smul.u32 128, %s18
      %p196 = scmp.lt.s32.totalorder %s195, 255
      %s197 = scalar_select %p196, %s195, 255
      %p198 = scmp.lt.s32.totalorder %s19, 0
      %s199 = scalar_select %p198, %s19, 0
      %s200 = sadd.s32 %s199, %s197
      %s201 = smul.addr %s200, 4
      %s202 = scalar_lea.vmem %s3, %s201
      %s203 = smul.u32 128, %s18
      %p204 = scmp.lt.s32.totalorder %s203, 255
      %s205 = scalar_select %p204, %s203, 255
      %s206 = smul.addr %s205, 4
      %s207 = scalar_lea.vmem %s0, %s206
      %s208 = smul.u32 128, %s18
      %p209 = scmp.lt.s32.totalorder %s19, 0
      %s210 = scalar_select %p209, %s19, 0
      %s211 = smul.addr %s210, 4
      %s212 = scalar_lea.vmem %s1, %s211
      %p213 = scmp.lt.s32.totalorder %s19, 0
      %s214 = scalar_select %p213, %s19, 0
      %s215 = scalar_lea.vmem %s2, %s214
      %s216 = smul.u32 128, %s18
      %p217 = scmp.lt.s32.totalorder %s216, 255
      %s218 = scalar_select %p217, %s216, 255
      %p219 = scmp.lt.s32.totalorder %s19, 0
      %s220 = scalar_select %p219, %s19, 0
      %s221 = sadd.s32 %s220, %s218
      %s222 = smul.addr %s221, 4
      %s223 = scalar_lea.vmem %s3, %s222
      %s224 = smul.u32 128, %s18
      %v226 = vld [vmem:[%s207] sm:$0xf]
      %v227 = vld [vmem:[%s207 + $0x4] sm:$0xf]
      %v228 = vld [vmem:[%s207 + $0x8] sm:$0xf]
      %v229 = vld [vmem:[%s207 + $0xc] sm:$0xf]
      %v230 = vld [vmem:[%s207 + $0x10] sm:$0xf]
      %v231 = vld [vmem:[%s207 + $0x14] sm:$0xf]
      %v232 = vld [vmem:[%s207 + $0x18] sm:$0xf]
      %v233 = vld [vmem:[%s207 + $0x1c] sm:$0xf]
      %v234 = vld [vmem:[%s207 + $0x20] sm:$0xf]
      %v235 = vld [vmem:[%s207 + $0x24] sm:$0xf]
      %v236 = vld [vmem:[%s207 + $0x28] sm:$0xf]
      %v237 = vld [vmem:[%s207 + $0x2c] sm:$0xf]
      %v238 = vld [vmem:[%s207 + $0x30] sm:$0xf]
      %v239 = vld [vmem:[%s207 + $0x34] sm:$0xf]
      %v240 = vld [vmem:[%s207 + $0x38] sm:$0xf]
      %v241 = vld [vmem:[%s207 + $0x3c] sm:$0xf]
      %v242 = vld [vmem:[%s207 + $0x40] sm:$0xf]
      %v243 = vld [vmem:[%s207 + $0x44] sm:$0xf]
      %v244 = vld [vmem:[%s207 + $0x48] sm:$0xf]
      %v245 = vld [vmem:[%s207 + $0x4c] sm:$0xf]
      %v246 = vld [vmem:[%s207 + $0x50] sm:$0xf]
      %v247 = vld [vmem:[%s207 + $0x54] sm:$0xf]
      %v248 = vld [vmem:[%s207 + $0x58] sm:$0xf]
      %v249 = vld [vmem:[%s207 + $0x5c] sm:$0xf]
      %v250 = vld [vmem:[%s207 + $0x60] sm:$0xf]
      %v251 = vld [vmem:[%s207 + $0x64] sm:$0xf]
      %v252 = vld [vmem:[%s207 + $0x68] sm:$0xf]
      %v253 = vld [vmem:[%s207 + $0x6c] sm:$0xf]
      %v254 = vld [vmem:[%s207 + $0x70] sm:$0xf]
      %v255 = vld [vmem:[%s207 + $0x74] sm:$0xf]
      %v256 = vld [vmem:[%s207 + $0x78] sm:$0xf]
      %v257 = vld [vmem:[%s207 + $0x7c] sm:$0xf]
      %v258 = vld [vmem:[%s207 + $0x80] sm:$0xf]
      %v259 = vld [vmem:[%s207 + $0x84] sm:$0xf]
      %v260 = vld [vmem:[%s207 + $0x88] sm:$0xf]
      %v261 = vld [vmem:[%s207 + $0x8c] sm:$0xf]
      %v262 = vld [vmem:[%s207 + $0x90] sm:$0xf]
      %v263 = vld [vmem:[%s207 + $0x94] sm:$0xf]
      %v264 = vld [vmem:[%s207 + $0x98] sm:$0xf]
      %v265 = vld [vmem:[%s207 + $0x9c] sm:$0xf]
      %v266 = vld [vmem:[%s207 + $0xa0] sm:$0xf]
      %v267 = vld [vmem:[%s207 + $0xa4] sm:$0xf]
      %v268 = vld [vmem:[%s207 + $0xa8] sm:$0xf]
      %v269 = vld [vmem:[%s207 + $0xac] sm:$0xf]
      %v270 = vld [vmem:[%s207 + $0xb0] sm:$0xf]
      %v271 = vld [vmem:[%s207 + $0xb4] sm:$0xf]
      %v272 = vld [vmem:[%s207 + $0xb8] sm:$0xf]
      %v273 = vld [vmem:[%s207 + $0xbc] sm:$0xf]
      %v274 = vld [vmem:[%s207 + $0xc0] sm:$0xf]
      %v275 = vld [vmem:[%s207 + $0xc4] sm:$0xf]
      %v276 = vld [vmem:[%s207 + $0xc8] sm:$0xf]
      %v277 = vld [vmem:[%s207 + $0xcc] sm:$0xf]
      %v278 = vld [vmem:[%s207 + $0xd0] sm:$0xf]
      %v279 = vld [vmem:[%s207 + $0xd4] sm:$0xf]
      %v280 = vld [vmem:[%s207 + $0xd8] sm:$0xf]
      %v281 = vld [vmem:[%s207 + $0xdc] sm:$0xf]
      %v282 = vld [vmem:[%s207 + $0xe0] sm:$0xf]
      %v283 = vld [vmem:[%s207 + $0xe4] sm:$0xf]
      %v284 = vld [vmem:[%s207 + $0xe8] sm:$0xf]
      %v285 = vld [vmem:[%s207 + $0xec] sm:$0xf]
      %v286 = vld [vmem:[%s207 + $0xf0] sm:$0xf]
      %v287 = vld [vmem:[%s207 + $0xf4] sm:$0xf]
      %v288 = vld [vmem:[%s207 + $0xf8] sm:$0xf]
      %v289 = vld [vmem:[%s207 + $0xfc] sm:$0xf]
      %v290 = vld [vmem:[%s207 + $0x100] sm:$0xf]
      %v291 = vld [vmem:[%s207 + $0x104] sm:$0xf]
      %v292 = vld [vmem:[%s207 + $0x108] sm:$0xf]
      %v293 = vld [vmem:[%s207 + $0x10c] sm:$0xf]
      %v294 = vld [vmem:[%s207 + $0x110] sm:$0xf]
      %v295 = vld [vmem:[%s207 + $0x114] sm:$0xf]
      %v296 = vld [vmem:[%s207 + $0x118] sm:$0xf]
      %v297 = vld [vmem:[%s207 + $0x11c] sm:$0xf]
      %v298 = vld [vmem:[%s207 + $0x120] sm:$0xf]
      %v299 = vld [vmem:[%s207 + $0x124] sm:$0xf]
      %v300 = vld [vmem:[%s207 + $0x128] sm:$0xf]
      %v301 = vld [vmem:[%s207 + $0x12c] sm:$0xf]
      %v302 = vld [vmem:[%s207 + $0x130] sm:$0xf]
      %v303 = vld [vmem:[%s207 + $0x134] sm:$0xf]
      %v304 = vld [vmem:[%s207 + $0x138] sm:$0xf]
      %v305 = vld [vmem:[%s207 + $0x13c] sm:$0xf]
      %v306 = vld [vmem:[%s207 + $0x140] sm:$0xf]
      %v307 = vld [vmem:[%s207 + $0x144] sm:$0xf]
      %v308 = vld [vmem:[%s207 + $0x148] sm:$0xf]
      %v309 = vld [vmem:[%s207 + $0x14c] sm:$0xf]
      %v310 = vld [vmem:[%s207 + $0x150] sm:$0xf]
      %v311 = vld [vmem:[%s207 + $0x154] sm:$0xf]
      %v312 = vld [vmem:[%s207 + $0x158] sm:$0xf]
      %v313 = vld [vmem:[%s207 + $0x15c] sm:$0xf]
      %v314 = vld [vmem:[%s207 + $0x160] sm:$0xf]
      %v315 = vld [vmem:[%s207 + $0x164] sm:$0xf]
      %v316 = vld [vmem:[%s207 + $0x168] sm:$0xf]
      %v317 = vld [vmem:[%s207 + $0x16c] sm:$0xf]
      %v318 = vld [vmem:[%s207 + $0x170] sm:$0xf]
      %v319 = vld [vmem:[%s207 + $0x174] sm:$0xf]
      %v320 = vld [vmem:[%s207 + $0x178] sm:$0xf]
      %v321 = vld [vmem:[%s207 + $0x17c] sm:$0xf]
      %v322 = vld [vmem:[%s207 + $0x180] sm:$0xf]
      %v323 = vld [vmem:[%s207 + $0x184] sm:$0xf]
      %v324 = vld [vmem:[%s207 + $0x188] sm:$0xf]
      %v325 = vld [vmem:[%s207 + $0x18c] sm:$0xf]
      %v326 = vld [vmem:[%s207 + $0x190] sm:$0xf]
      %v327 = vld [vmem:[%s207 + $0x194] sm:$0xf]
      %v328 = vld [vmem:[%s207 + $0x198] sm:$0xf]
      %v329 = vld [vmem:[%s207 + $0x19c] sm:$0xf]
      %v330 = vld [vmem:[%s207 + $0x1a0] sm:$0xf]
      %v331 = vld [vmem:[%s207 + $0x1a4] sm:$0xf]
      %v332 = vld [vmem:[%s207 + $0x1a8] sm:$0xf]
      %v333 = vld [vmem:[%s207 + $0x1ac] sm:$0xf]
      %v334 = vld [vmem:[%s207 + $0x1b0] sm:$0xf]
      %v335 = vld [vmem:[%s207 + $0x1b4] sm:$0xf]
      %v336 = vld [vmem:[%s207 + $0x1b8] sm:$0xf]
      %v337 = vld [vmem:[%s207 + $0x1bc] sm:$0xf]
      %v338 = vld [vmem:[%s207 + $0x1c0] sm:$0xf]
      %v339 = vld [vmem:[%s207 + $0x1c4] sm:$0xf]
      %v340 = vld [vmem:[%s207 + $0x1c8] sm:$0xf]
      %v341 = vld [vmem:[%s207 + $0x1cc] sm:$0xf]
      %v342 = vld [vmem:[%s207 + $0x1d0] sm:$0xf]
      %v343 = vld [vmem:[%s207 + $0x1d4] sm:$0xf]
      %v344 = vld [vmem:[%s207 + $0x1d8] sm:$0xf]
      %v345 = vld [vmem:[%s207 + $0x1dc] sm:$0xf]
      %v346 = vld [vmem:[%s207 + $0x1e0] sm:$0xf]
      %v347 = vld [vmem:[%s207 + $0x1e4] sm:$0xf]
      %v348 = vld [vmem:[%s207 + $0x1e8] sm:$0xf]
      %v349 = vld [vmem:[%s207 + $0x1ec] sm:$0xf]
      %v350 = vld [vmem:[%s207 + $0x1f0] sm:$0xf]
      %v351 = vld [vmem:[%s207 + $0x1f4] sm:$0xf]
      %v352 = vld [vmem:[%s207 + $0x1f8] sm:$0xf]
      %v353 = vld [vmem:[%s207 + $0x1fc] sm:$0xf]
      %v354 = vld [vmem:[%s212] sm:$0xf]
      %v355 = vld [vmem:[%s212 + $0x4] sm:$0xf]
      %v356 = vld [vmem:[%s212 + $0x8] sm:$0xf]
      %v357 = vld [vmem:[%s212 + $0xc] sm:$0xf]
      %v358 = vld [vmem:[%s212 + $0x10] sm:$0xf]
      %v359 = vld [vmem:[%s212 + $0x14] sm:$0xf]
      %v360 = vld [vmem:[%s212 + $0x18] sm:$0xf]
      %v361 = vld [vmem:[%s212 + $0x1c] sm:$0xf]
      %v362 = vld [vmem:[%s215] sm:$0x1]
      %v364 = vlaneseq
      %v365 = vshrl.u32 %v364, 7
      %v366 = vsub.s32 0, %v365
      %v367 = vrot.slane %v362, %v366
      %v497 = vunpack.c.l.b16 %v226
      %v498 = vunpack.c.l.b16 %v227
      %v499 = vunpack.c.l.b16 %v228
      %v500 = vunpack.c.l.b16 %v229
      %v501 = vunpack.c.l.b16 %v230
      %v502 = vunpack.c.l.b16 %v231
      %v503 = vunpack.c.l.b16 %v232
      %v504 = vunpack.c.l.b16 %v233
      %v505 = vunpack.c.l.b16 %v234
      %v506 = vunpack.c.l.b16 %v235
      %v507 = vunpack.c.l.b16 %v236
      %v508 = vunpack.c.l.b16 %v237
      %v509 = vunpack.c.l.b16 %v238
      %v510 = vunpack.c.l.b16 %v239
      %v511 = vunpack.c.l.b16 %v240
      %v512 = vunpack.c.l.b16 %v241
      %v513 = vunpack.c.l.b16 %v242
      %v514 = vunpack.c.l.b16 %v243
      %v515 = vunpack.c.l.b16 %v244
      %v516 = vunpack.c.l.b16 %v245
      %v517 = vunpack.c.l.b16 %v246
      %v518 = vunpack.c.l.b16 %v247
      %v519 = vunpack.c.l.b16 %v248
      %v520 = vunpack.c.l.b16 %v249
      %v521 = vunpack.c.l.b16 %v250
      %v522 = vunpack.c.l.b16 %v251
      %v523 = vunpack.c.l.b16 %v252
      %v524 = vunpack.c.l.b16 %v253
      %v525 = vunpack.c.l.b16 %v254
      %v526 = vunpack.c.l.b16 %v255
      %v527 = vunpack.c.l.b16 %v256
      %v528 = vunpack.c.l.b16 %v257
      %v529 = vunpack.c.l.b16 %v258
      %v530 = vunpack.c.l.b16 %v259
      %v531 = vunpack.c.l.b16 %v260
      %v532 = vunpack.c.l.b16 %v261
      %v533 = vunpack.c.l.b16 %v262
      %v534 = vunpack.c.l.b16 %v263
      %v535 = vunpack.c.l.b16 %v264
      %v536 = vunpack.c.l.b16 %v265
      %v537 = vunpack.c.l.b16 %v266
      %v538 = vunpack.c.l.b16 %v267
      %v539 = vunpack.c.l.b16 %v268
      %v540 = vunpack.c.l.b16 %v269
      %v541 = vunpack.c.l.b16 %v270
      %v542 = vunpack.c.l.b16 %v271
      %v543 = vunpack.c.l.b16 %v272
      %v544 = vunpack.c.l.b16 %v273
      %v545 = vunpack.c.l.b16 %v274
      %v546 = vunpack.c.l.b16 %v275
      %v547 = vunpack.c.l.b16 %v276
      %v548 = vunpack.c.l.b16 %v277
      %v549 = vunpack.c.l.b16 %v278
      %v550 = vunpack.c.l.b16 %v279
      %v551 = vunpack.c.l.b16 %v280
      %v552 = vunpack.c.l.b16 %v281
      %v553 = vunpack.c.l.b16 %v282
      %v554 = vunpack.c.l.b16 %v283
      %v555 = vunpack.c.l.b16 %v284
      %v556 = vunpack.c.l.b16 %v285
      %v557 = vunpack.c.l.b16 %v286
      %v558 = vunpack.c.l.b16 %v287
      %v559 = vunpack.c.l.b16 %v288
      %v560 = vunpack.c.l.b16 %v289
      %v561 = vunpack.c.l.b16 %v290
      %v562 = vunpack.c.l.b16 %v291
      %v563 = vunpack.c.l.b16 %v292
      %v564 = vunpack.c.l.b16 %v293
      %v565 = vunpack.c.l.b16 %v294
      %v566 = vunpack.c.l.b16 %v295
      %v567 = vunpack.c.l.b16 %v296
      %v568 = vunpack.c.l.b16 %v297
      %v569 = vunpack.c.l.b16 %v298
      %v570 = vunpack.c.l.b16 %v299
      %v571 = vunpack.c.l.b16 %v300
      %v572 = vunpack.c.l.b16 %v301
      %v573 = vunpack.c.l.b16 %v302
      %v574 = vunpack.c.l.b16 %v303
      %v575 = vunpack.c.l.b16 %v304
      %v576 = vunpack.c.l.b16 %v305
      %v577 = vunpack.c.l.b16 %v306
      %v578 = vunpack.c.l.b16 %v307
      %v579 = vunpack.c.l.b16 %v308
      %v580 = vunpack.c.l.b16 %v309
      %v581 = vunpack.c.l.b16 %v310
      %v582 = vunpack.c.l.b16 %v311
      %v583 = vunpack.c.l.b16 %v312
      %v584 = vunpack.c.l.b16 %v313
      %v585 = vunpack.c.l.b16 %v314
      %v586 = vunpack.c.l.b16 %v315
      %v587 = vunpack.c.l.b16 %v316
      %v588 = vunpack.c.l.b16 %v317
      %v589 = vunpack.c.l.b16 %v318
      %v590 = vunpack.c.l.b16 %v319
      %v591 = vunpack.c.l.b16 %v320
      %v592 = vunpack.c.l.b16 %v321
      %v593 = vunpack.c.l.b16 %v322
      %v594 = vunpack.c.l.b16 %v323
      %v595 = vunpack.c.l.b16 %v324
      %v596 = vunpack.c.l.b16 %v325
      %v597 = vunpack.c.l.b16 %v326
      %v598 = vunpack.c.l.b16 %v327
      %v599 = vunpack.c.l.b16 %v328
      %v600 = vunpack.c.l.b16 %v329
      %v601 = vunpack.c.l.b16 %v330
      %v602 = vunpack.c.l.b16 %v331
      %v603 = vunpack.c.l.b16 %v332
      %v604 = vunpack.c.l.b16 %v333
      %v605 = vunpack.c.l.b16 %v334
      %v606 = vunpack.c.l.b16 %v335
      %v607 = vunpack.c.l.b16 %v336
      %v608 = vunpack.c.l.b16 %v337
      %v609 = vunpack.c.l.b16 %v338
      %v610 = vunpack.c.l.b16 %v339
      %v611 = vunpack.c.l.b16 %v340
      %v612 = vunpack.c.l.b16 %v341
      %v613 = vunpack.c.l.b16 %v342
      %v614 = vunpack.c.l.b16 %v343
      %v615 = vunpack.c.l.b16 %v344
      %v616 = vunpack.c.l.b16 %v345
      %v617 = vunpack.c.l.b16 %v346
      %v618 = vunpack.c.l.b16 %v347
      %v619 = vunpack.c.l.b16 %v348
      %v620 = vunpack.c.l.b16 %v349
      %v621 = vunpack.c.l.b16 %v350
      %v622 = vunpack.c.l.b16 %v351
      %v623 = vunpack.c.l.b16 %v352
      %v624 = vunpack.c.l.b16 %v353
      %v625 = vpack.c.b16 %v498, %v497
      %v626 = vpack.c.b16 %v500, %v499
      %v627 = vpack.c.b16 %v502, %v501
      %v628 = vpack.c.b16 %v504, %v503
      %v629 = vpack.c.b16 %v506, %v505
      %v630 = vpack.c.b16 %v508, %v507
      %v631 = vpack.c.b16 %v510, %v509
      %v632 = vpack.c.b16 %v512, %v511
      %v633 = vpack.c.b16 %v514, %v513
      %v634 = vpack.c.b16 %v516, %v515
      %v635 = vpack.c.b16 %v518, %v517
      %v636 = vpack.c.b16 %v520, %v519
      %v637 = vpack.c.b16 %v522, %v521
      %v638 = vpack.c.b16 %v524, %v523
      %v639 = vpack.c.b16 %v526, %v525
      %v640 = vpack.c.b16 %v528, %v527
      %v641 = vpack.c.b16 %v530, %v529
      %v642 = vpack.c.b16 %v532, %v531
      %v643 = vpack.c.b16 %v534, %v533
      %v644 = vpack.c.b16 %v536, %v535
      %v645 = vpack.c.b16 %v538, %v537
      %v646 = vpack.c.b16 %v540, %v539
      %v647 = vpack.c.b16 %v542, %v541
      %v648 = vpack.c.b16 %v544, %v543
      %v649 = vpack.c.b16 %v546, %v545
      %v650 = vpack.c.b16 %v548, %v547
      %v651 = vpack.c.b16 %v550, %v549
      %v652 = vpack.c.b16 %v552, %v551
      %v653 = vpack.c.b16 %v554, %v553
      %v654 = vpack.c.b16 %v556, %v555
      %v655 = vpack.c.b16 %v558, %v557
      %v656 = vpack.c.b16 %v560, %v559
      %v657 = vpack.c.b16 %v562, %v561
      %v658 = vpack.c.b16 %v564, %v563
      %v659 = vpack.c.b16 %v566, %v565
      %v660 = vpack.c.b16 %v568, %v567
      %v661 = vpack.c.b16 %v570, %v569
      %v662 = vpack.c.b16 %v572, %v571
      %v663 = vpack.c.b16 %v574, %v573
      %v664 = vpack.c.b16 %v576, %v575
      %v665 = vpack.c.b16 %v578, %v577
      %v666 = vpack.c.b16 %v580, %v579
      %v667 = vpack.c.b16 %v582, %v581
      %v668 = vpack.c.b16 %v584, %v583
      %v669 = vpack.c.b16 %v586, %v585
      %v670 = vpack.c.b16 %v588, %v587
      %v671 = vpack.c.b16 %v590, %v589
      %v672 = vpack.c.b16 %v592, %v591
      %v673 = vpack.c.b16 %v594, %v593
      %v674 = vpack.c.b16 %v596, %v595
      %v675 = vpack.c.b16 %v598, %v597
      %v676 = vpack.c.b16 %v600, %v599
      %v677 = vpack.c.b16 %v602, %v601
      %v678 = vpack.c.b16 %v604, %v603
      %v679 = vpack.c.b16 %v606, %v605
      %v680 = vpack.c.b16 %v608, %v607
      %v681 = vpack.c.b16 %v610, %v609
      %v682 = vpack.c.b16 %v612, %v611
      %v683 = vpack.c.b16 %v614, %v613
      %v684 = vpack.c.b16 %v616, %v615
      %v685 = vpack.c.b16 %v618, %v617
      %v686 = vpack.c.b16 %v620, %v619
      %v687 = vpack.c.b16 %v622, %v621
      %v688 = vpack.c.b16 %v624, %v623
      %v697 = vunpack.c.l.b16 %v354
      %v698 = vunpack.c.l.b16 %v355
      %v699 = vunpack.c.l.b16 %v356
      %v700 = vunpack.c.l.b16 %v357
      %v701 = vunpack.c.l.b16 %v358
      %v702 = vunpack.c.l.b16 %v359
      %v703 = vunpack.c.l.b16 %v360
      %v704 = vunpack.c.l.b16 %v361
      %v705 = vpack.c.b16 %v698, %v697
      %v706 = vpack.c.b16 %v700, %v699
      %v707 = vpack.c.b16 %v702, %v701
      %v708 = vpack.c.b16 %v704, %v703
      %vm713 = vcmask 523264
      %v715 = vsel %vm713, %v625, 0
      %v718 = vsel %vm713, %v626, 0
      %v721 = vsel %vm713, %v627, 0
      %v724 = vsel %vm713, %v628, 0
      %v727 = vsel %vm713, %v629, 0
      %v730 = vsel %vm713, %v630, 0
      %v733 = vsel %vm713, %v631, 0
      %v736 = vsel %vm713, %v632, 0
      %v739 = vsel %vm713, %v633, 0
      %v742 = vsel %vm713, %v634, 0
      %v745 = vsel %vm713, %v635, 0
      %v748 = vsel %vm713, %v636, 0
      %v751 = vsel %vm713, %v637, 0
      %v754 = vsel %vm713, %v638, 0
      %v757 = vsel %vm713, %v639, 0
      %v760 = vsel %vm713, %v640, 0
      %v763 = vsel %vm713, %v641, 0
      %v766 = vsel %vm713, %v642, 0
      %v769 = vsel %vm713, %v643, 0
      %v772 = vsel %vm713, %v644, 0
      %v775 = vsel %vm713, %v645, 0
      %v778 = vsel %vm713, %v646, 0
      %v781 = vsel %vm713, %v647, 0
      %v784 = vsel %vm713, %v648, 0
      %v787 = vsel %vm713, %v649, 0
      %v790 = vsel %vm713, %v650, 0
      %v793 = vsel %vm713, %v651, 0
      %v796 = vsel %vm713, %v652, 0
      %v799 = vsel %vm713, %v653, 0
      %v802 = vsel %vm713, %v654, 0
      %v805 = vsel %vm713, %v655, 0
      %v808 = vsel %vm713, %v656, 0
      %v811 = vsel %vm713, %v657, 0
      %v814 = vsel %vm713, %v658, 0
      %v817 = vsel %vm713, %v659, 0
      %v820 = vsel %vm713, %v660, 0
      %v823 = vsel %vm713, %v661, 0
      %v826 = vsel %vm713, %v662, 0
      %v829 = vsel %vm713, %v663, 0
      %v832 = vsel %vm713, %v664, 0
      %v835 = vsel %vm713, %v665, 0
      %v838 = vsel %vm713, %v666, 0
      %v841 = vsel %vm713, %v667, 0
      %v844 = vsel %vm713, %v668, 0
      %v847 = vsel %vm713, %v669, 0
      %v850 = vsel %vm713, %v670, 0
      %v853 = vsel %vm713, %v671, 0
      %v856 = vsel %vm713, %v672, 0
      %v859 = vsel %vm713, %v673, 0
      %v862 = vsel %vm713, %v674, 0
      %v865 = vsel %vm713, %v675, 0
      %v868 = vsel %vm713, %v676, 0
      %v871 = vsel %vm713, %v677, 0
      %v874 = vsel %vm713, %v678, 0
      %v877 = vsel %vm713, %v679, 0
      %v880 = vsel %vm713, %v680, 0
      %v883 = vsel %vm713, %v681, 0
      %v886 = vsel %vm713, %v682, 0
      %v889 = vsel %vm713, %v683, 0
      %v892 = vsel %vm713, %v684, 0
      %v895 = vsel %vm713, %v685, 0
      %v898 = vsel %vm713, %v686, 0
      %v901 = vsel %vm713, %v687, 0
      %v904 = vsel %vm713, %v688, 0
      %906 = vmatprep.subr.bf16.mxu0 0
      %907 = vmatpush1.bf16.msra.mxu0 0
      %908 = vmatprep.subr.bf16.mxu0 0
      %909 = vmatpush1.bf16.msra.mxu0 0
      %910 = vmatprep.subr.bf16.mxu0 0
      %911 = vmatpush1.bf16.msra.mxu0 0
      %912 = vmatprep.subr.bf16.mxu0 0
      %913 = vmatpush1.bf16.msra.mxu0 0
      %914 = vmatprep.subr.bf16.mxu0 0
      %915 = vmatpush1.bf16.msra.mxu0 %v708
      %916 = vmatprep.subr.bf16.mxu0 0
      %917 = vmatpush1.bf16.msra.mxu0 %v707
      %918 = vmatprep.subr.bf16.mxu0 0
      %919 = vmatpush1.bf16.msra.mxu0 %v706
      %920 = vmatprep.subr.bf16.mxu0 0
      %921 = vmatpush1.bf16.msra.mxu0 %v705
      %922 = vmatprep.subr.bf16.mxu0 0
      %923 = vmatpush2.bf16.msra.mxu0 0
      %924 = vmatprep.subr.bf16.mxu0 0
      %925 = vmatpush2.bf16.msra.mxu0 0
      %926 = vmatprep.subr.bf16.mxu0 0
      %927 = vmatpush2.bf16.msra.mxu0 0
      %928 = vmatprep.subr.bf16.mxu0 0
      %929 = vmatpush2.bf16.msra.mxu0 0
      %930 = vmatprep.subr.bf16.mxu0 0
      %931 = vmatpush2.bf16.msra.mxu0 0
      %932 = vmatprep.subr.bf16.mxu0 0
      %933 = vmatpush2.bf16.msra.mxu0 0
      %934 = vmatprep.subr.bf16.mxu0 0
      %935 = vmatpush2.bf16.msra.mxu0 0
      %936 = vmatprep.subr.bf16.mxu0 0
      %937 = vmatpush2.bf16.msra.mxu0 0
      %938 = vmatprep.mubr.bf16.mxu0 0
      %939 = vmatmul.mubr.bf16.gmra.mxu0 %v715
      %v940 = vpop.f32.mrf.mxu0
      %v941 = vadd.f32 %v367, %v940
      %v942 = vpop.f32.mrf.mxu0
      %v943 = vpop.f32.mrf.mxu0
      %v944 = vadd.f32 %v367, %v943
      %v945 = vpop.f32.mrf.mxu0
      %946 = vmatprep.mubr.bf16.mxu0 0
      %947 = vmatmul.mubr.bf16.gmra.mxu0 %v718
      %v948 = vpop.f32.mrf.mxu0
      %v949 = vadd.f32 %v367, %v948
      %v950 = vpop.f32.mrf.mxu0
      %v951 = vpop.f32.mrf.mxu0
      %v952 = vadd.f32 %v367, %v951
      %v953 = vpop.f32.mrf.mxu0
      %954 = vmatprep.mubr.bf16.mxu0 0
      %955 = vmatmul.mubr.bf16.gmra.mxu0 %v721
      %v956 = vpop.f32.mrf.mxu0
      %v957 = vadd.f32 %v367, %v956
      %v958 = vpop.f32.mrf.mxu0
      %v959 = vpop.f32.mrf.mxu0
      %v960 = vadd.f32 %v367, %v959
      %v961 = vpop.f32.mrf.mxu0
      %962 = vmatprep.mubr.bf16.mxu0 0
      %963 = vmatmul.mubr.bf16.gmra.mxu0 %v724
      %v964 = vpop.f32.mrf.mxu0
      %v965 = vadd.f32 %v367, %v964
      %v966 = vpop.f32.mrf.mxu0
      %v967 = vpop.f32.mrf.mxu0
      %v968 = vadd.f32 %v367, %v967
      %v969 = vpop.f32.mrf.mxu0
      %970 = vmatprep.mubr.bf16.mxu0 0
      %971 = vmatmul.mubr.bf16.gmra.mxu0 %v727
      %v972 = vpop.f32.mrf.mxu0
      %v973 = vadd.f32 %v367, %v972
      %v974 = vpop.f32.mrf.mxu0
      %v975 = vpop.f32.mrf.mxu0
      %v976 = vadd.f32 %v367, %v975
      %v977 = vpop.f32.mrf.mxu0
      %978 = vmatprep.mubr.bf16.mxu0 0
      %979 = vmatmul.mubr.bf16.gmra.mxu0 %v730
      %v980 = vpop.f32.mrf.mxu0
      %v981 = vadd.f32 %v367, %v980
      %v982 = vpop.f32.mrf.mxu0
      %v983 = vpop.f32.mrf.mxu0
      %v984 = vadd.f32 %v367, %v983
      %v985 = vpop.f32.mrf.mxu0
      %986 = vmatprep.mubr.bf16.mxu0 0
      %987 = vmatmul.mubr.bf16.gmra.mxu0 %v733
      %v988 = vpop.f32.mrf.mxu0
      %v989 = vadd.f32 %v367, %v988
      %v990 = vpop.f32.mrf.mxu0
      %v991 = vpop.f32.mrf.mxu0
      %v992 = vadd.f32 %v367, %v991
      %v993 = vpop.f32.mrf.mxu0
      %994 = vmatprep.mubr.bf16.mxu0 0
      %995 = vmatmul.mubr.bf16.gmra.mxu0 %v736
      %v996 = vpop.f32.mrf.mxu0
      %v997 = vadd.f32 %v367, %v996
      %v998 = vpop.f32.mrf.mxu0
      %v999 = vpop.f32.mrf.mxu0
      %v1000 = vadd.f32 %v367, %v999
      %v1001 = vpop.f32.mrf.mxu0
      %1002 = vmatprep.mubr.bf16.mxu0 0
      %1003 = vmatmul.mubr.bf16.gmra.mxu0 %v739
      %v1004 = vpop.f32.mrf.mxu0
      %v1005 = vadd.f32 %v367, %v1004
      %v1006 = vpop.f32.mrf.mxu0
      %v1007 = vpop.f32.mrf.mxu0
      %v1008 = vadd.f32 %v367, %v1007
      %v1009 = vpop.f32.mrf.mxu0
      %1010 = vmatprep.mubr.bf16.mxu0 0
      %1011 = vmatmul.mubr.bf16.gmra.mxu0 %v742
      %v1012 = vpop.f32.mrf.mxu0
      %v1013 = vadd.f32 %v367, %v1012
      %v1014 = vpop.f32.mrf.mxu0
      %v1015 = vpop.f32.mrf.mxu0
      %v1016 = vadd.f32 %v367, %v1015
      %v1017 = vpop.f32.mrf.mxu0
      %1018 = vmatprep.mubr.bf16.mxu0 0
      %1019 = vmatmul.mubr.bf16.gmra.mxu0 %v745
      %v1020 = vpop.f32.mrf.mxu0
      %v1021 = vadd.f32 %v367, %v1020
      %v1022 = vpop.f32.mrf.mxu0
      %v1023 = vpop.f32.mrf.mxu0
      %v1024 = vadd.f32 %v367, %v1023
      %v1025 = vpop.f32.mrf.mxu0
      %1026 = vmatprep.mubr.bf16.mxu0 0
      %1027 = vmatmul.mubr.bf16.gmra.mxu0 %v748
      %v1028 = vpop.f32.mrf.mxu0
      %v1029 = vadd.f32 %v367, %v1028
      %v1030 = vpop.f32.mrf.mxu0
      %v1031 = vpop.f32.mrf.mxu0
      %v1032 = vadd.f32 %v367, %v1031
      %v1033 = vpop.f32.mrf.mxu0
      %1034 = vmatprep.mubr.bf16.mxu0 0
      %1035 = vmatmul.mubr.bf16.gmra.mxu0 %v751
      %v1036 = vpop.f32.mrf.mxu0
      %v1037 = vadd.f32 %v367, %v1036
      %v1038 = vpop.f32.mrf.mxu0
      %v1039 = vpop.f32.mrf.mxu0
      %v1040 = vadd.f32 %v367, %v1039
      %v1041 = vpop.f32.mrf.mxu0
      %1042 = vmatprep.mubr.bf16.mxu0 0
      %1043 = vmatmul.mubr.bf16.gmra.mxu0 %v754
      %v1044 = vpop.f32.mrf.mxu0
      %v1045 = vadd.f32 %v367, %v1044
      %v1046 = vpop.f32.mrf.mxu0
      %v1047 = vpop.f32.mrf.mxu0
      %v1048 = vadd.f32 %v367, %v1047
      %v1049 = vpop.f32.mrf.mxu0
      %1050 = vmatprep.mubr.bf16.mxu0 0
      %1051 = vmatmul.mubr.bf16.gmra.mxu0 %v757
      %v1052 = vpop.f32.mrf.mxu0
      %v1053 = vadd.f32 %v367, %v1052
      %v1054 = vpop.f32.mrf.mxu0
      %v1055 = vpop.f32.mrf.mxu0
      %v1056 = vadd.f32 %v367, %v1055
      %v1057 = vpop.f32.mrf.mxu0
      %1058 = vmatprep.mubr.bf16.mxu0 0
      %1059 = vmatmul.mubr.bf16.gmra.mxu0 %v760
      %v1060 = vpop.f32.mrf.mxu0
      %v1061 = vadd.f32 %v367, %v1060
      %v1062 = vpop.f32.mrf.mxu0
      %v1063 = vpop.f32.mrf.mxu0
      %v1064 = vadd.f32 %v367, %v1063
      %v1065 = vpop.f32.mrf.mxu0
      %1066 = vmatprep.mubr.bf16.mxu0 0
      %1067 = vmatmul.mubr.bf16.gmra.mxu0 %v763
      %v1068 = vpop.f32.mrf.mxu0
      %v1069 = vadd.f32 %v367, %v1068
      %v1070 = vpop.f32.mrf.mxu0
      %v1071 = vpop.f32.mrf.mxu0
      %v1072 = vadd.f32 %v367, %v1071
      %v1073 = vpop.f32.mrf.mxu0
      %1074 = vmatprep.mubr.bf16.mxu0 0
      %1075 = vmatmul.mubr.bf16.gmra.mxu0 %v766
      %v1076 = vpop.f32.mrf.mxu0
      %v1077 = vadd.f32 %v367, %v1076
      %v1078 = vpop.f32.mrf.mxu0
      %v1079 = vpop.f32.mrf.mxu0
      %v1080 = vadd.f32 %v367, %v1079
      %v1081 = vpop.f32.mrf.mxu0
      %1082 = vmatprep.mubr.bf16.mxu0 0
      %1083 = vmatmul.mubr.bf16.gmra.mxu0 %v769
      %v1084 = vpop.f32.mrf.mxu0
      %v1085 = vadd.f32 %v367, %v1084
      %v1086 = vpop.f32.mrf.mxu0
      %v1087 = vpop.f32.mrf.mxu0
      %v1088 = vadd.f32 %v367, %v1087
      %v1089 = vpop.f32.mrf.mxu0
      %1090 = vmatprep.mubr.bf16.mxu0 0
      %1091 = vmatmul.mubr.bf16.gmra.mxu0 %v772
      %v1092 = vpop.f32.mrf.mxu0
      %v1093 = vadd.f32 %v367, %v1092
      %v1094 = vpop.f32.mrf.mxu0
      %v1095 = vpop.f32.mrf.mxu0
      %v1096 = vadd.f32 %v367, %v1095
      %v1097 = vpop.f32.mrf.mxu0
      %1098 = vmatprep.mubr.bf16.mxu0 0
      %1099 = vmatmul.mubr.bf16.gmra.mxu0 %v775
      %v1100 = vpop.f32.mrf.mxu0
      %v1101 = vadd.f32 %v367, %v1100
      %v1102 = vpop.f32.mrf.mxu0
      %v1103 = vpop.f32.mrf.mxu0
      %v1104 = vadd.f32 %v367, %v1103
      %v1105 = vpop.f32.mrf.mxu0
      %1106 = vmatprep.mubr.bf16.mxu0 0
      %1107 = vmatmul.mubr.bf16.gmra.mxu0 %v778
      %v1108 = vpop.f32.mrf.mxu0
      %v1109 = vadd.f32 %v367, %v1108
      %v1110 = vpop.f32.mrf.mxu0
      %v1111 = vpop.f32.mrf.mxu0
      %v1112 = vadd.f32 %v367, %v1111
      %v1113 = vpop.f32.mrf.mxu0
      %1114 = vmatprep.mubr.bf16.mxu0 0
      %1115 = vmatmul.mubr.bf16.gmra.mxu0 %v781
      %v1116 = vpop.f32.mrf.mxu0
      %v1117 = vadd.f32 %v367, %v1116
      %v1118 = vpop.f32.mrf.mxu0
      %v1119 = vpop.f32.mrf.mxu0
      %v1120 = vadd.f32 %v367, %v1119
      %v1121 = vpop.f32.mrf.mxu0
      %1122 = vmatprep.mubr.bf16.mxu0 0
      %1123 = vmatmul.mubr.bf16.gmra.mxu0 %v784
      %v1124 = vpop.f32.mrf.mxu0
      %v1125 = vadd.f32 %v367, %v1124
      %v1126 = vpop.f32.mrf.mxu0
      %v1127 = vpop.f32.mrf.mxu0
      %v1128 = vadd.f32 %v367, %v1127
      %v1129 = vpop.f32.mrf.mxu0
      %1130 = vmatprep.mubr.bf16.mxu0 0
      %1131 = vmatmul.mubr.bf16.gmra.mxu0 %v787
      %v1132 = vpop.f32.mrf.mxu0
      %v1133 = vadd.f32 %v367, %v1132
      %v1134 = vpop.f32.mrf.mxu0
      %v1135 = vpop.f32.mrf.mxu0
      %v1136 = vadd.f32 %v367, %v1135
      %v1137 = vpop.f32.mrf.mxu0
      %1138 = vmatprep.mubr.bf16.mxu0 0
      %1139 = vmatmul.mubr.bf16.gmra.mxu0 %v790
      %v1140 = vpop.f32.mrf.mxu0
      %v1141 = vadd.f32 %v367, %v1140
      %v1142 = vpop.f32.mrf.mxu0
      %v1143 = vpop.f32.mrf.mxu0
      %v1144 = vadd.f32 %v367, %v1143
      %v1145 = vpop.f32.mrf.mxu0
      %1146 = vmatprep.mubr.bf16.mxu0 0
      %1147 = vmatmul.mubr.bf16.gmra.mxu0 %v793
      %v1148 = vpop.f32.mrf.mxu0
      %v1149 = vadd.f32 %v367, %v1148
      %v1150 = vpop.f32.mrf.mxu0
      %v1151 = vpop.f32.mrf.mxu0
      %v1152 = vadd.f32 %v367, %v1151
      %v1153 = vpop.f32.mrf.mxu0
      %1154 = vmatprep.mubr.bf16.mxu0 0
      %1155 = vmatmul.mubr.bf16.gmra.mxu0 %v796
      %v1156 = vpop.f32.mrf.mxu0
      %v1157 = vadd.f32 %v367, %v1156
      %v1158 = vpop.f32.mrf.mxu0
      %v1159 = vpop.f32.mrf.mxu0
      %v1160 = vadd.f32 %v367, %v1159
      %v1161 = vpop.f32.mrf.mxu0
      %1162 = vmatprep.mubr.bf16.mxu0 0
      %1163 = vmatmul.mubr.bf16.gmra.mxu0 %v799
      %v1164 = vpop.f32.mrf.mxu0
      %v1165 = vadd.f32 %v367, %v1164
      %v1166 = vpop.f32.mrf.mxu0
      %v1167 = vpop.f32.mrf.mxu0
      %v1168 = vadd.f32 %v367, %v1167
      %v1169 = vpop.f32.mrf.mxu0
      %1170 = vmatprep.mubr.bf16.mxu0 0
      %1171 = vmatmul.mubr.bf16.gmra.mxu0 %v802
      %v1172 = vpop.f32.mrf.mxu0
      %v1173 = vadd.f32 %v367, %v1172
      %v1174 = vpop.f32.mrf.mxu0
      %v1175 = vpop.f32.mrf.mxu0
      %v1176 = vadd.f32 %v367, %v1175
      %v1177 = vpop.f32.mrf.mxu0
      %1178 = vmatprep.mubr.bf16.mxu0 0
      %1179 = vmatmul.mubr.bf16.gmra.mxu0 %v805
      %v1180 = vpop.f32.mrf.mxu0
      %v1181 = vadd.f32 %v367, %v1180
      %v1182 = vpop.f32.mrf.mxu0
      %v1183 = vpop.f32.mrf.mxu0
      %v1184 = vadd.f32 %v367, %v1183
      %v1185 = vpop.f32.mrf.mxu0
      %1186 = vmatprep.mubr.bf16.mxu0 0
      %1187 = vmatmul.mubr.bf16.gmra.mxu0 %v808
      %v1188 = vpop.f32.mrf.mxu0
      %v1189 = vadd.f32 %v367, %v1188
      %v1190 = vpop.f32.mrf.mxu0
      %v1191 = vpop.f32.mrf.mxu0
      %v1192 = vadd.f32 %v367, %v1191
      %v1193 = vpop.f32.mrf.mxu0
      %1194 = vmatprep.mubr.bf16.mxu0 0
      %1195 = vmatmul.mubr.bf16.gmra.mxu0 %v811
      %v1196 = vpop.f32.mrf.mxu0
      %v1197 = vadd.f32 %v367, %v1196
      %v1198 = vpop.f32.mrf.mxu0
      %v1199 = vpop.f32.mrf.mxu0
      %v1200 = vadd.f32 %v367, %v1199
      %v1201 = vpop.f32.mrf.mxu0
      %1202 = vmatprep.mubr.bf16.mxu0 0
      %1203 = vmatmul.mubr.bf16.gmra.mxu0 %v814
      %v1204 = vpop.f32.mrf.mxu0
      %v1205 = vadd.f32 %v367, %v1204
      %v1206 = vpop.f32.mrf.mxu0
      %v1207 = vpop.f32.mrf.mxu0
      %v1208 = vadd.f32 %v367, %v1207
      %v1209 = vpop.f32.mrf.mxu0
      %1210 = vmatprep.mubr.bf16.mxu0 0
      %1211 = vmatmul.mubr.bf16.gmra.mxu0 %v817
      %v1212 = vpop.f32.mrf.mxu0
      %v1213 = vadd.f32 %v367, %v1212
      %v1214 = vpop.f32.mrf.mxu0
      %v1215 = vpop.f32.mrf.mxu0
      %v1216 = vadd.f32 %v367, %v1215
      %v1217 = vpop.f32.mrf.mxu0
      %1218 = vmatprep.mubr.bf16.mxu0 0
      %1219 = vmatmul.mubr.bf16.gmra.mxu0 %v820
      %v1220 = vpop.f32.mrf.mxu0
      %v1221 = vadd.f32 %v367, %v1220
      %v1222 = vpop.f32.mrf.mxu0
      %v1223 = vpop.f32.mrf.mxu0
      %v1224 = vadd.f32 %v367, %v1223
      %v1225 = vpop.f32.mrf.mxu0
      %1226 = vmatprep.mubr.bf16.mxu0 0
      %1227 = vmatmul.mubr.bf16.gmra.mxu0 %v823
      %v1228 = vpop.f32.mrf.mxu0
      %v1229 = vadd.f32 %v367, %v1228
      %v1230 = vpop.f32.mrf.mxu0
      %v1231 = vpop.f32.mrf.mxu0
      %v1232 = vadd.f32 %v367, %v1231
      %v1233 = vpop.f32.mrf.mxu0
      %1234 = vmatprep.mubr.bf16.mxu0 0
      %1235 = vmatmul.mubr.bf16.gmra.mxu0 %v826
      %v1236 = vpop.f32.mrf.mxu0
      %v1237 = vadd.f32 %v367, %v1236
      %v1238 = vpop.f32.mrf.mxu0
      %v1239 = vpop.f32.mrf.mxu0
      %v1240 = vadd.f32 %v367, %v1239
      %v1241 = vpop.f32.mrf.mxu0
      %1242 = vmatprep.mubr.bf16.mxu0 0
      %1243 = vmatmul.mubr.bf16.gmra.mxu0 %v829
      %v1244 = vpop.f32.mrf.mxu0
      %v1245 = vadd.f32 %v367, %v1244
      %v1246 = vpop.f32.mrf.mxu0
      %v1247 = vpop.f32.mrf.mxu0
      %v1248 = vadd.f32 %v367, %v1247
      %v1249 = vpop.f32.mrf.mxu0
      %1250 = vmatprep.mubr.bf16.mxu0 0
      %1251 = vmatmul.mubr.bf16.gmra.mxu0 %v832
      %v1252 = vpop.f32.mrf.mxu0
      %v1253 = vadd.f32 %v367, %v1252
      %v1254 = vpop.f32.mrf.mxu0
      %v1255 = vpop.f32.mrf.mxu0
      %v1256 = vadd.f32 %v367, %v1255
      %v1257 = vpop.f32.mrf.mxu0
      %1258 = vmatprep.mubr.bf16.mxu0 0
      %1259 = vmatmul.mubr.bf16.gmra.mxu0 %v835
      %v1260 = vpop.f32.mrf.mxu0
      %v1261 = vadd.f32 %v367, %v1260
      %v1262 = vpop.f32.mrf.mxu0
      %v1263 = vpop.f32.mrf.mxu0
      %v1264 = vadd.f32 %v367, %v1263
      %v1265 = vpop.f32.mrf.mxu0
      %1266 = vmatprep.mubr.bf16.mxu0 0
      %1267 = vmatmul.mubr.bf16.gmra.mxu0 %v838
      %v1268 = vpop.f32.mrf.mxu0
      %v1269 = vadd.f32 %v367, %v1268
      %v1270 = vpop.f32.mrf.mxu0
      %v1271 = vpop.f32.mrf.mxu0
      %v1272 = vadd.f32 %v367, %v1271
      %v1273 = vpop.f32.mrf.mxu0
      %1274 = vmatprep.mubr.bf16.mxu0 0
      %1275 = vmatmul.mubr.bf16.gmra.mxu0 %v841
      %v1276 = vpop.f32.mrf.mxu0
      %v1277 = vadd.f32 %v367, %v1276
      %v1278 = vpop.f32.mrf.mxu0
      %v1279 = vpop.f32.mrf.mxu0
      %v1280 = vadd.f32 %v367, %v1279
      %v1281 = vpop.f32.mrf.mxu0
      %1282 = vmatprep.mubr.bf16.mxu0 0
      %1283 = vmatmul.mubr.bf16.gmra.mxu0 %v844
      %v1284 = vpop.f32.mrf.mxu0
      %v1285 = vadd.f32 %v367, %v1284
      %v1286 = vpop.f32.mrf.mxu0
      %v1287 = vpop.f32.mrf.mxu0
      %v1288 = vadd.f32 %v367, %v1287
      %v1289 = vpop.f32.mrf.mxu0
      %1290 = vmatprep.mubr.bf16.mxu0 0
      %1291 = vmatmul.mubr.bf16.gmra.mxu0 %v847
      %v1292 = vpop.f32.mrf.mxu0
      %v1293 = vadd.f32 %v367, %v1292
      %v1294 = vpop.f32.mrf.mxu0
      %v1295 = vpop.f32.mrf.mxu0
      %v1296 = vadd.f32 %v367, %v1295
      %v1297 = vpop.f32.mrf.mxu0
      %1298 = vmatprep.mubr.bf16.mxu0 0
      %1299 = vmatmul.mubr.bf16.gmra.mxu0 %v850
      %v1300 = vpop.f32.mrf.mxu0
      %v1301 = vadd.f32 %v367, %v1300
      %v1302 = vpop.f32.mrf.mxu0
      %v1303 = vpop.f32.mrf.mxu0
      %v1304 = vadd.f32 %v367, %v1303
      %v1305 = vpop.f32.mrf.mxu0
      %1306 = vmatprep.mubr.bf16.mxu0 0
      %1307 = vmatmul.mubr.bf16.gmra.mxu0 %v853
      %v1308 = vpop.f32.mrf.mxu0
      %v1309 = vadd.f32 %v367, %v1308
      %v1310 = vpop.f32.mrf.mxu0
      %v1311 = vpop.f32.mrf.mxu0
      %v1312 = vadd.f32 %v367, %v1311
      %v1313 = vpop.f32.mrf.mxu0
      %1314 = vmatprep.mubr.bf16.mxu0 0
      %1315 = vmatmul.mubr.bf16.gmra.mxu0 %v856
      %v1316 = vpop.f32.mrf.mxu0
      %v1317 = vadd.f32 %v367, %v1316
      %v1318 = vpop.f32.mrf.mxu0
      %v1319 = vpop.f32.mrf.mxu0
      %v1320 = vadd.f32 %v367, %v1319
      %v1321 = vpop.f32.mrf.mxu0
      %1322 = vmatprep.mubr.bf16.mxu0 0
      %1323 = vmatmul.mubr.bf16.gmra.mxu0 %v859
      %v1324 = vpop.f32.mrf.mxu0
      %v1325 = vadd.f32 %v367, %v1324
      %v1326 = vpop.f32.mrf.mxu0
      %v1327 = vpop.f32.mrf.mxu0
      %v1328 = vadd.f32 %v367, %v1327
      %v1329 = vpop.f32.mrf.mxu0
      %1330 = vmatprep.mubr.bf16.mxu0 0
      %1331 = vmatmul.mubr.bf16.gmra.mxu0 %v862
      %v1332 = vpop.f32.mrf.mxu0
      %v1333 = vadd.f32 %v367, %v1332
      %v1334 = vpop.f32.mrf.mxu0
      %v1335 = vpop.f32.mrf.mxu0
      %v1336 = vadd.f32 %v367, %v1335
      %v1337 = vpop.f32.mrf.mxu0
      %1338 = vmatprep.mubr.bf16.mxu0 0
      %1339 = vmatmul.mubr.bf16.gmra.mxu0 %v865
      %v1340 = vpop.f32.mrf.mxu0
      %v1341 = vadd.f32 %v367, %v1340
      %v1342 = vpop.f32.mrf.mxu0
      %v1343 = vpop.f32.mrf.mxu0
      %v1344 = vadd.f32 %v367, %v1343
      %v1345 = vpop.f32.mrf.mxu0
      %1346 = vmatprep.mubr.bf16.mxu0 0
      %1347 = vmatmul.mubr.bf16.gmra.mxu0 %v868
      %v1348 = vpop.f32.mrf.mxu0
      %v1349 = vadd.f32 %v367, %v1348
      %v1350 = vpop.f32.mrf.mxu0
      %v1351 = vpop.f32.mrf.mxu0
      %v1352 = vadd.f32 %v367, %v1351
      %v1353 = vpop.f32.mrf.mxu0
      %1354 = vmatprep.mubr.bf16.mxu0 0
      %1355 = vmatmul.mubr.bf16.gmra.mxu0 %v871
      %v1356 = vpop.f32.mrf.mxu0
      %v1357 = vadd.f32 %v367, %v1356
      %v1358 = vpop.f32.mrf.mxu0
      %v1359 = vpop.f32.mrf.mxu0
      %v1360 = vadd.f32 %v367, %v1359
      %v1361 = vpop.f32.mrf.mxu0
      %1362 = vmatprep.mubr.bf16.mxu0 0
      %1363 = vmatmul.mubr.bf16.gmra.mxu0 %v874
      %v1364 = vpop.f32.mrf.mxu0
      %v1365 = vadd.f32 %v367, %v1364
      %v1366 = vpop.f32.mrf.mxu0
      %v1367 = vpop.f32.mrf.mxu0
      %v1368 = vadd.f32 %v367, %v1367
      %v1369 = vpop.f32.mrf.mxu0
      %1370 = vmatprep.mubr.bf16.mxu0 0
      %1371 = vmatmul.mubr.bf16.gmra.mxu0 %v877
      %v1372 = vpop.f32.mrf.mxu0
      %v1373 = vadd.f32 %v367, %v1372
      %v1374 = vpop.f32.mrf.mxu0
      %v1375 = vpop.f32.mrf.mxu0
      %v1376 = vadd.f32 %v367, %v1375
      %v1377 = vpop.f32.mrf.mxu0
      %1378 = vmatprep.mubr.bf16.mxu0 0
      %1379 = vmatmul.mubr.bf16.gmra.mxu0 %v880
      %v1380 = vpop.f32.mrf.mxu0
      %v1381 = vadd.f32 %v367, %v1380
      %v1382 = vpop.f32.mrf.mxu0
      %v1383 = vpop.f32.mrf.mxu0
      %v1384 = vadd.f32 %v367, %v1383
      %v1385 = vpop.f32.mrf.mxu0
      %1386 = vmatprep.mubr.bf16.mxu0 0
      %1387 = vmatmul.mubr.bf16.gmra.mxu0 %v883
      %v1388 = vpop.f32.mrf.mxu0
      %v1389 = vadd.f32 %v367, %v1388
      %v1390 = vpop.f32.mrf.mxu0
      %v1391 = vpop.f32.mrf.mxu0
      %v1392 = vadd.f32 %v367, %v1391
      %v1393 = vpop.f32.mrf.mxu0
      %1394 = vmatprep.mubr.bf16.mxu0 0
      %1395 = vmatmul.mubr.bf16.gmra.mxu0 %v886
      %v1396 = vpop.f32.mrf.mxu0
      %v1397 = vadd.f32 %v367, %v1396
      %v1398 = vpop.f32.mrf.mxu0
      %v1399 = vpop.f32.mrf.mxu0
      %v1400 = vadd.f32 %v367, %v1399
      %v1401 = vpop.f32.mrf.mxu0
      %1402 = vmatprep.mubr.bf16.mxu0 0
      %1403 = vmatmul.mubr.bf16.gmra.mxu0 %v889
      %v1404 = vpop.f32.mrf.mxu0
      %v1405 = vadd.f32 %v367, %v1404
      %v1406 = vpop.f32.mrf.mxu0
      %v1407 = vpop.f32.mrf.mxu0
      %v1408 = vadd.f32 %v367, %v1407
      %v1409 = vpop.f32.mrf.mxu0
      %1410 = vmatprep.mubr.bf16.mxu0 0
      %1411 = vmatmul.mubr.bf16.gmra.mxu0 %v892
      %v1412 = vpop.f32.mrf.mxu0
      %v1413 = vadd.f32 %v367, %v1412
      %v1414 = vpop.f32.mrf.mxu0
      %v1415 = vpop.f32.mrf.mxu0
      %v1416 = vadd.f32 %v367, %v1415
      %v1417 = vpop.f32.mrf.mxu0
      %1418 = vmatprep.mubr.bf16.mxu0 0
      %1419 = vmatmul.mubr.bf16.gmra.mxu0 %v895
      %v1420 = vpop.f32.mrf.mxu0
      %v1421 = vadd.f32 %v367, %v1420
      %v1422 = vpop.f32.mrf.mxu0
      %v1423 = vpop.f32.mrf.mxu0
      %v1424 = vadd.f32 %v367, %v1423
      %v1425 = vpop.f32.mrf.mxu0
      %1426 = vmatprep.mubr.bf16.mxu0 0
      %1427 = vmatmul.mubr.bf16.gmra.mxu0 %v898
      %v1428 = vpop.f32.mrf.mxu0
      %v1429 = vadd.f32 %v367, %v1428
      %v1430 = vpop.f32.mrf.mxu0
      %v1431 = vpop.f32.mrf.mxu0
      %v1432 = vadd.f32 %v367, %v1431
      %v1433 = vpop.f32.mrf.mxu0
      %1434 = vmatprep.mubr.bf16.mxu0 0
      %1435 = vmatmul.mubr.bf16.gmra.mxu0 %v901
      %v1436 = vpop.f32.mrf.mxu0
      %v1437 = vadd.f32 %v367, %v1436
      %v1438 = vpop.f32.mrf.mxu0
      %v1439 = vpop.f32.mrf.mxu0
      %v1440 = vadd.f32 %v367, %v1439
      %v1441 = vpop.f32.mrf.mxu0
      %1442 = vmatprep.mubr.bf16.mxu0 0
      %1443 = vmatmul.mubr.bf16.gmra.mxu0 %v904
      %v1444 = vpop.f32.mrf.mxu0
      %v1445 = vadd.f32 %v367, %v1444
      %v1446 = vpop.f32.mrf.mxu0
      %v1447 = vpop.f32.mrf.mxu0
      %v1448 = vadd.f32 %v367, %v1447
      %v1449 = vpop.f32.mrf.mxu0
      %1450 = vdwg.mxu0
      %v1451 = vpack.c.bf16 %v944, %v941
      %v1452 = vpack.c.bf16 %v952, %v949
      %v1453 = vpack.c.bf16 %v960, %v957
      %v1454 = vpack.c.bf16 %v968, %v965
      %v1455 = vpack.c.bf16 %v976, %v973
      %v1456 = vpack.c.bf16 %v984, %v981
      %v1457 = vpack.c.bf16 %v992, %v989
      %v1458 = vpack.c.bf16 %v1000, %v997
      %v1459 = vpack.c.bf16 %v1008, %v1005
      %v1460 = vpack.c.bf16 %v1016, %v1013
      %v1461 = vpack.c.bf16 %v1024, %v1021
      %v1462 = vpack.c.bf16 %v1032, %v1029
      %v1463 = vpack.c.bf16 %v1040, %v1037
      %v1464 = vpack.c.bf16 %v1048, %v1045
      %v1465 = vpack.c.bf16 %v1056, %v1053
      %v1466 = vpack.c.bf16 %v1064, %v1061
      %v1467 = vpack.c.bf16 %v1072, %v1069
      %v1468 = vpack.c.bf16 %v1080, %v1077
      %v1469 = vpack.c.bf16 %v1088, %v1085
      %v1470 = vpack.c.bf16 %v1096, %v1093
      %v1471 = vpack.c.bf16 %v1104, %v1101
      %v1472 = vpack.c.bf16 %v1112, %v1109
      %v1473 = vpack.c.bf16 %v1120, %v1117
      %v1474 = vpack.c.bf16 %v1128, %v1125
      %v1475 = vpack.c.bf16 %v1136, %v1133
      %v1476 = vpack.c.bf16 %v1144, %v1141
      %v1477 = vpack.c.bf16 %v1152, %v1149
      %v1478 = vpack.c.bf16 %v1160, %v1157
      %v1479 = vpack.c.bf16 %v1168, %v1165
      %v1480 = vpack.c.bf16 %v1176, %v1173
      %v1481 = vpack.c.bf16 %v1184, %v1181
      %v1482 = vpack.c.bf16 %v1192, %v1189
      %v1483 = vpack.c.bf16 %v1200, %v1197
      %v1484 = vpack.c.bf16 %v1208, %v1205
      %v1485 = vpack.c.bf16 %v1216, %v1213
      %v1486 = vpack.c.bf16 %v1224, %v1221
      %v1487 = vpack.c.bf16 %v1232, %v1229
      %v1488 = vpack.c.bf16 %v1240, %v1237
      %v1489 = vpack.c.bf16 %v1248, %v1245
      %v1490 = vpack.c.bf16 %v1256, %v1253
      %v1491 = vpack.c.bf16 %v1264, %v1261
      %v1492 = vpack.c.bf16 %v1272, %v1269
      %v1493 = vpack.c.bf16 %v1280, %v1277
      %v1494 = vpack.c.bf16 %v1288, %v1285
      %v1495 = vpack.c.bf16 %v1296, %v1293
      %v1496 = vpack.c.bf16 %v1304, %v1301
      %v1497 = vpack.c.bf16 %v1312, %v1309
      %v1498 = vpack.c.bf16 %v1320, %v1317
      %v1499 = vpack.c.bf16 %v1328, %v1325
      %v1500 = vpack.c.bf16 %v1336, %v1333
      %v1501 = vpack.c.bf16 %v1344, %v1341
      %v1502 = vpack.c.bf16 %v1352, %v1349
      %v1503 = vpack.c.bf16 %v1360, %v1357
      %v1504 = vpack.c.bf16 %v1368, %v1365
      %v1505 = vpack.c.bf16 %v1376, %v1373
      %v1506 = vpack.c.bf16 %v1384, %v1381
      %v1507 = vpack.c.bf16 %v1392, %v1389
      %v1508 = vpack.c.bf16 %v1400, %v1397
      %v1509 = vpack.c.bf16 %v1408, %v1405
      %v1510 = vpack.c.bf16 %v1416, %v1413
      %v1511 = vpack.c.bf16 %v1424, %v1421
      %v1512 = vpack.c.bf16 %v1432, %v1429
      %v1513 = vpack.c.bf16 %v1440, %v1437
      %v1514 = vpack.c.bf16 %v1448, %v1445
      %v1579 = vunpack.c.l.b16 %v1451
      %v1580 = vunpack.c.h.b16 %v1451
      %v1581 = vunpack.c.l.b16 %v1452
      %v1582 = vunpack.c.h.b16 %v1452
      %v1583 = vunpack.c.l.b16 %v1453
      %v1584 = vunpack.c.h.b16 %v1453
      %v1585 = vunpack.c.l.b16 %v1454
      %v1586 = vunpack.c.h.b16 %v1454
      %v1587 = vunpack.c.l.b16 %v1455
      %v1588 = vunpack.c.h.b16 %v1455
      %v1589 = vunpack.c.l.b16 %v1456
      %v1590 = vunpack.c.h.b16 %v1456
      %v1591 = vunpack.c.l.b16 %v1457
      %v1592 = vunpack.c.h.b16 %v1457
      %v1593 = vunpack.c.l.b16 %v1458
      %v1594 = vunpack.c.h.b16 %v1458
      %v1595 = vunpack.c.l.b16 %v1459
      %v1596 = vunpack.c.h.b16 %v1459
      %v1597 = vunpack.c.l.b16 %v1460
      %v1598 = vunpack.c.h.b16 %v1460
      %v1599 = vunpack.c.l.b16 %v1461
      %v1600 = vunpack.c.h.b16 %v1461
      %v1601 = vunpack.c.l.b16 %v1462
      %v1602 = vunpack.c.h.b16 %v1462
      %v1603 = vunpack.c.l.b16 %v1463
      %v1604 = vunpack.c.h.b16 %v1463
      %v1605 = vunpack.c.l.b16 %v1464
      %v1606 = vunpack.c.h.b16 %v1464
      %v1607 = vunpack.c.l.b16 %v1465
      %v1608 = vunpack.c.h.b16 %v1465
      %v1609 = vunpack.c.l.b16 %v1466
      %v1610 = vunpack.c.h.b16 %v1466
      %v1611 = vunpack.c.l.b16 %v1467
      %v1612 = vunpack.c.h.b16 %v1467
      %v1613 = vunpack.c.l.b16 %v1468
      %v1614 = vunpack.c.h.b16 %v1468
      %v1615 = vunpack.c.l.b16 %v1469
      %v1616 = vunpack.c.h.b16 %v1469
      %v1617 = vunpack.c.l.b16 %v1470
      %v1618 = vunpack.c.h.b16 %v1470
      %v1619 = vunpack.c.l.b16 %v1471
      %v1620 = vunpack.c.h.b16 %v1471
      %v1621 = vunpack.c.l.b16 %v1472
      %v1622 = vunpack.c.h.b16 %v1472
      %v1623 = vunpack.c.l.b16 %v1473
      %v1624 = vunpack.c.h.b16 %v1473
      %v1625 = vunpack.c.l.b16 %v1474
      %v1626 = vunpack.c.h.b16 %v1474
      %v1627 = vunpack.c.l.b16 %v1475
      %v1628 = vunpack.c.h.b16 %v1475
      %v1629 = vunpack.c.l.b16 %v1476
      %v1630 = vunpack.c.h.b16 %v1476
      %v1631 = vunpack.c.l.b16 %v1477
      %v1632 = vunpack.c.h.b16 %v1477
      %v1633 = vunpack.c.l.b16 %v1478
      %v1634 = vunpack.c.h.b16 %v1478
      %v1635 = vunpack.c.l.b16 %v1479
      %v1636 = vunpack.c.h.b16 %v1479
      %v1637 = vunpack.c.l.b16 %v1480
      %v1638 = vunpack.c.h.b16 %v1480
      %v1639 = vunpack.c.l.b16 %v1481
      %v1640 = vunpack.c.h.b16 %v1481
      %v1641 = vunpack.c.l.b16 %v1482
      %v1642 = vunpack.c.h.b16 %v1482
      %v1643 = vunpack.c.l.b16 %v1483
      %v1644 = vunpack.c.h.b16 %v1483
      %v1645 = vunpack.c.l.b16 %v1484
      %v1646 = vunpack.c.h.b16 %v1484
      %v1647 = vunpack.c.l.b16 %v1485
      %v1648 = vunpack.c.h.b16 %v1485
      %v1649 = vunpack.c.l.b16 %v1486
      %v1650 = vunpack.c.h.b16 %v1486
      %v1651 = vunpack.c.l.b16 %v1487
      %v1652 = vunpack.c.h.b16 %v1487
      %v1653 = vunpack.c.l.b16 %v1488
      %v1654 = vunpack.c.h.b16 %v1488
      %v1655 = vunpack.c.l.b16 %v1489
      %v1656 = vunpack.c.h.b16 %v1489
      %v1657 = vunpack.c.l.b16 %v1490
      %v1658 = vunpack.c.h.b16 %v1490
      %v1659 = vunpack.c.l.b16 %v1491
      %v1660 = vunpack.c.h.b16 %v1491
      %v1661 = vunpack.c.l.b16 %v1492
      %v1662 = vunpack.c.h.b16 %v1492
      %v1663 = vunpack.c.l.b16 %v1493
      %v1664 = vunpack.c.h.b16 %v1493
      %v1665 = vunpack.c.l.b16 %v1494
      %v1666 = vunpack.c.h.b16 %v1494
      %v1667 = vunpack.c.l.b16 %v1495
      %v1668 = vunpack.c.h.b16 %v1495
      %v1669 = vunpack.c.l.b16 %v1496
      %v1670 = vunpack.c.h.b16 %v1496
      %v1671 = vunpack.c.l.b16 %v1497
      %v1672 = vunpack.c.h.b16 %v1497
      %v1673 = vunpack.c.l.b16 %v1498
      %v1674 = vunpack.c.h.b16 %v1498
      %v1675 = vunpack.c.l.b16 %v1499
      %v1676 = vunpack.c.h.b16 %v1499
      %v1677 = vunpack.c.l.b16 %v1500
      %v1678 = vunpack.c.h.b16 %v1500
      %v1679 = vunpack.c.l.b16 %v1501
      %v1680 = vunpack.c.h.b16 %v1501
      %v1681 = vunpack.c.l.b16 %v1502
      %v1682 = vunpack.c.h.b16 %v1502
      %v1683 = vunpack.c.l.b16 %v1503
      %v1684 = vunpack.c.h.b16 %v1503
      %v1685 = vunpack.c.l.b16 %v1504
      %v1686 = vunpack.c.h.b16 %v1504
      %v1687 = vunpack.c.l.b16 %v1505
      %v1688 = vunpack.c.h.b16 %v1505
      %v1689 = vunpack.c.l.b16 %v1506
      %v1690 = vunpack.c.h.b16 %v1506
      %v1691 = vunpack.c.l.b16 %v1507
      %v1692 = vunpack.c.h.b16 %v1507
      %v1693 = vunpack.c.l.b16 %v1508
      %v1694 = vunpack.c.h.b16 %v1508
      %v1695 = vunpack.c.l.b16 %v1509
      %v1696 = vunpack.c.h.b16 %v1509
      %v1697 = vunpack.c.l.b16 %v1510
      %v1698 = vunpack.c.h.b16 %v1510
      %v1699 = vunpack.c.l.b16 %v1511
      %v1700 = vunpack.c.h.b16 %v1511
      %v1701 = vunpack.c.l.b16 %v1512
      %v1702 = vunpack.c.h.b16 %v1512
      %v1703 = vunpack.c.l.b16 %v1513
      %v1704 = vunpack.c.h.b16 %v1513
      %v1705 = vunpack.c.l.b16 %v1514
      %v1706 = vunpack.c.h.b16 %v1514
      %v1707 = vpack.c.b16 %v1579, %v1579
      %v1708 = vpack.c.b16 %v1580, %v1580
      %v1709 = vpack.c.b16 %v1581, %v1581
      %v1710 = vpack.c.b16 %v1582, %v1582
      %v1711 = vpack.c.b16 %v1583, %v1583
      %v1712 = vpack.c.b16 %v1584, %v1584
      %v1713 = vpack.c.b16 %v1585, %v1585
      %v1714 = vpack.c.b16 %v1586, %v1586
      %v1715 = vpack.c.b16 %v1587, %v1587
      %v1716 = vpack.c.b16 %v1588, %v1588
      %v1717 = vpack.c.b16 %v1589, %v1589
      %v1718 = vpack.c.b16 %v1590, %v1590
      %v1719 = vpack.c.b16 %v1591, %v1591
      %v1720 = vpack.c.b16 %v1592, %v1592
      %v1721 = vpack.c.b16 %v1593, %v1593
      %v1722 = vpack.c.b16 %v1594, %v1594
      %v1723 = vpack.c.b16 %v1595, %v1595
      %v1724 = vpack.c.b16 %v1596, %v1596
      %v1725 = vpack.c.b16 %v1597, %v1597
      %v1726 = vpack.c.b16 %v1598, %v1598
      %v1727 = vpack.c.b16 %v1599, %v1599
      %v1728 = vpack.c.b16 %v1600, %v1600
      %v1729 = vpack.c.b16 %v1601, %v1601
      %v1730 = vpack.c.b16 %v1602, %v1602
      %v1731 = vpack.c.b16 %v1603, %v1603
      %v1732 = vpack.c.b16 %v1604, %v1604
      %v1733 = vpack.c.b16 %v1605, %v1605
      %v1734 = vpack.c.b16 %v1606, %v1606
      %v1735 = vpack.c.b16 %v1607, %v1607
      %v1736 = vpack.c.b16 %v1608, %v1608
      %v1737 = vpack.c.b16 %v1609, %v1609
      %v1738 = vpack.c.b16 %v1610, %v1610
      %v1739 = vpack.c.b16 %v1611, %v1611
      %v1740 = vpack.c.b16 %v1612, %v1612
      %v1741 = vpack.c.b16 %v1613, %v1613
      %v1742 = vpack.c.b16 %v1614, %v1614
      %v1743 = vpack.c.b16 %v1615, %v1615
      %v1744 = vpack.c.b16 %v1616, %v1616
      %v1745 = vpack.c.b16 %v1617, %v1617
      %v1746 = vpack.c.b16 %v1618, %v1618
      %v1747 = vpack.c.b16 %v1619, %v1619
      %v1748 = vpack.c.b16 %v1620, %v1620
      %v1749 = vpack.c.b16 %v1621, %v1621
      %v1750 = vpack.c.b16 %v1622, %v1622
      %v1751 = vpack.c.b16 %v1623, %v1623
      %v1752 = vpack.c.b16 %v1624, %v1624
      %v1753 = vpack.c.b16 %v1625, %v1625
      %v1754 = vpack.c.b16 %v1626, %v1626
      %v1755 = vpack.c.b16 %v1627, %v1627
      %v1756 = vpack.c.b16 %v1628, %v1628
      %v1757 = vpack.c.b16 %v1629, %v1629
      %v1758 = vpack.c.b16 %v1630, %v1630
      %v1759 = vpack.c.b16 %v1631, %v1631
      %v1760 = vpack.c.b16 %v1632, %v1632
      %v1761 = vpack.c.b16 %v1633, %v1633
      %v1762 = vpack.c.b16 %v1634, %v1634
      %v1763 = vpack.c.b16 %v1635, %v1635
      %v1764 = vpack.c.b16 %v1636, %v1636
      %v1765 = vpack.c.b16 %v1637, %v1637
      %v1766 = vpack.c.b16 %v1638, %v1638
      %v1767 = vpack.c.b16 %v1639, %v1639
      %v1768 = vpack.c.b16 %v1640, %v1640
      %v1769 = vpack.c.b16 %v1641, %v1641
      %v1770 = vpack.c.b16 %v1642, %v1642
      %v1771 = vpack.c.b16 %v1643, %v1643
      %v1772 = vpack.c.b16 %v1644, %v1644
      %v1773 = vpack.c.b16 %v1645, %v1645
      %v1774 = vpack.c.b16 %v1646, %v1646
      %v1775 = vpack.c.b16 %v1647, %v1647
      %v1776 = vpack.c.b16 %v1648, %v1648
      %v1777 = vpack.c.b16 %v1649, %v1649
      %v1778 = vpack.c.b16 %v1650, %v1650
      %v1779 = vpack.c.b16 %v1651, %v1651
      %v1780 = vpack.c.b16 %v1652, %v1652
      %v1781 = vpack.c.b16 %v1653, %v1653
      %v1782 = vpack.c.b16 %v1654, %v1654
      %v1783 = vpack.c.b16 %v1655, %v1655
      %v1784 = vpack.c.b16 %v1656, %v1656
      %v1785 = vpack.c.b16 %v1657, %v1657
      %v1786 = vpack.c.b16 %v1658, %v1658
      %v1787 = vpack.c.b16 %v1659, %v1659
      %v1788 = vpack.c.b16 %v1660, %v1660
      %v1789 = vpack.c.b16 %v1661, %v1661
      %v1790 = vpack.c.b16 %v1662, %v1662
      %v1791 = vpack.c.b16 %v1663, %v1663
      %v1792 = vpack.c.b16 %v1664, %v1664
      %v1793 = vpack.c.b16 %v1665, %v1665
      %v1794 = vpack.c.b16 %v1666, %v1666
      %v1795 = vpack.c.b16 %v1667, %v1667
      %v1796 = vpack.c.b16 %v1668, %v1668
      %v1797 = vpack.c.b16 %v1669, %v1669
      %v1798 = vpack.c.b16 %v1670, %v1670
      %v1799 = vpack.c.b16 %v1671, %v1671
      %v1800 = vpack.c.b16 %v1672, %v1672
      %v1801 = vpack.c.b16 %v1673, %v1673
      %v1802 = vpack.c.b16 %v1674, %v1674
      %v1803 = vpack.c.b16 %v1675, %v1675
      %v1804 = vpack.c.b16 %v1676, %v1676
      %v1805 = vpack.c.b16 %v1677, %v1677
      %v1806 = vpack.c.b16 %v1678, %v1678
      %v1807 = vpack.c.b16 %v1679, %v1679
      %v1808 = vpack.c.b16 %v1680, %v1680
      %v1809 = vpack.c.b16 %v1681, %v1681
      %v1810 = vpack.c.b16 %v1682, %v1682
      %v1811 = vpack.c.b16 %v1683, %v1683
      %v1812 = vpack.c.b16 %v1684, %v1684
      %v1813 = vpack.c.b16 %v1685, %v1685
      %v1814 = vpack.c.b16 %v1686, %v1686
      %v1815 = vpack.c.b16 %v1687, %v1687
      %v1816 = vpack.c.b16 %v1688, %v1688
      %v1817 = vpack.c.b16 %v1689, %v1689
      %v1818 = vpack.c.b16 %v1690, %v1690
      %v1819 = vpack.c.b16 %v1691, %v1691
      %v1820 = vpack.c.b16 %v1692, %v1692
      %v1821 = vpack.c.b16 %v1693, %v1693
      %v1822 = vpack.c.b16 %v1694, %v1694
      %v1823 = vpack.c.b16 %v1695, %v1695
      %v1824 = vpack.c.b16 %v1696, %v1696
      %v1825 = vpack.c.b16 %v1697, %v1697
      %v1826 = vpack.c.b16 %v1698, %v1698
      %v1827 = vpack.c.b16 %v1699, %v1699
      %v1828 = vpack.c.b16 %v1700, %v1700
      %v1829 = vpack.c.b16 %v1701, %v1701
      %v1830 = vpack.c.b16 %v1702, %v1702
      %v1831 = vpack.c.b16 %v1703, %v1703
      %v1832 = vpack.c.b16 %v1704, %v1704
      %v1833 = vpack.c.b16 %v1705, %v1705
      %v1834 = vpack.c.b16 %v1706, %v1706
      %1963 = vst [vmem:[%s223] sm:$0xf] %v1707
      %1964 = vst [vmem:[%s223 + $0x4] sm:$0xf] %v1708
      %1965 = vst [vmem:[%s223 + $0x8] sm:$0xf] %v1709
      %1966 = vst [vmem:[%s223 + $0xc] sm:$0xf] %v1710
      %1967 = vst [vmem:[%s223 + $0x10] sm:$0xf] %v1711
      %1968 = vst [vmem:[%s223 + $0x14] sm:$0xf] %v1712
      %1969 = vst [vmem:[%s223 + $0x18] sm:$0xf] %v1713
      %1970 = vst [vmem:[%s223 + $0x1c] sm:$0xf] %v1714
      %1971 = vst [vmem:[%s223 + $0x20] sm:$0xf] %v1715
      %1972 = vst [vmem:[%s223 + $0x24] sm:$0xf] %v1716
      %1973 = vst [vmem:[%s223 + $0x28] sm:$0xf] %v1717
      %1974 = vst [vmem:[%s223 + $0x2c] sm:$0xf] %v1718
      %1975 = vst [vmem:[%s223 + $0x30] sm:$0xf] %v1719
      %1976 = vst [vmem:[%s223 + $0x34] sm:$0xf] %v1720
      %1977 = vst [vmem:[%s223 + $0x38] sm:$0xf] %v1721
      %1978 = vst [vmem:[%s223 + $0x3c] sm:$0xf] %v1722
      %1979 = vst [vmem:[%s223 + $0x40] sm:$0xf] %v1723
      %1980 = vst [vmem:[%s223 + $0x44] sm:$0xf] %v1724
      %1981 = vst [vmem:[%s223 + $0x48] sm:$0xf] %v1725
      %1982 = vst [vmem:[%s223 + $0x4c] sm:$0xf] %v1726
      %1983 = vst [vmem:[%s223 + $0x50] sm:$0xf] %v1727
      %1984 = vst [vmem:[%s223 + $0x54] sm:$0xf] %v1728
      %1985 = vst [vmem:[%s223 + $0x58] sm:$0xf] %v1729
      %1986 = vst [vmem:[%s223 + $0x5c] sm:$0xf] %v1730
      %1987 = vst [vmem:[%s223 + $0x60] sm:$0xf] %v1731
      %1988 = vst [vmem:[%s223 + $0x64] sm:$0xf] %v1732
      %1989 = vst [vmem:[%s223 + $0x68] sm:$0xf] %v1733
      %1990 = vst [vmem:[%s223 + $0x6c] sm:$0xf] %v1734
      %1991 = vst [vmem:[%s223 + $0x70] sm:$0xf] %v1735
      %1992 = vst [vmem:[%s223 + $0x74] sm:$0xf] %v1736
      %1993 = vst [vmem:[%s223 + $0x78] sm:$0xf] %v1737
      %1994 = vst [vmem:[%s223 + $0x7c] sm:$0xf] %v1738
      %1995 = vst [vmem:[%s223 + $0x80] sm:$0xf] %v1739
      %1996 = vst [vmem:[%s223 + $0x84] sm:$0xf] %v1740
      %1997 = vst [vmem:[%s223 + $0x88] sm:$0xf] %v1741
      %1998 = vst [vmem:[%s223 + $0x8c] sm:$0xf] %v1742
      %1999 = vst [vmem:[%s223 + $0x90] sm:$0xf] %v1743
      %2000 = vst [vmem:[%s223 + $0x94] sm:$0xf] %v1744
      %2001 = vst [vmem:[%s223 + $0x98] sm:$0xf] %v1745
      %2002 = vst [vmem:[%s223 + $0x9c] sm:$0xf] %v1746
      %2003 = vst [vmem:[%s223 + $0xa0] sm:$0xf] %v1747
      %2004 = vst [vmem:[%s223 + $0xa4] sm:$0xf] %v1748
      %2005 = vst [vmem:[%s223 + $0xa8] sm:$0xf] %v1749
      %2006 = vst [vmem:[%s223 + $0xac] sm:$0xf] %v1750
      %2007 = vst [vmem:[%s223 + $0xb0] sm:$0xf] %v1751
      %2008 = vst [vmem:[%s223 + $0xb4] sm:$0xf] %v1752
      %2009 = vst [vmem:[%s223 + $0xb8] sm:$0xf] %v1753
      %2010 = vst [vmem:[%s223 + $0xbc] sm:$0xf] %v1754
      %2011 = vst [vmem:[%s223 + $0xc0] sm:$0xf] %v1755
      %2012 = vst [vmem:[%s223 + $0xc4] sm:$0xf] %v1756
      %2013 = vst [vmem:[%s223 + $0xc8] sm:$0xf] %v1757
      %2014 = vst [vmem:[%s223 + $0xcc] sm:$0xf] %v1758
      %2015 = vst [vmem:[%s223 + $0xd0] sm:$0xf] %v1759
      %2016 = vst [vmem:[%s223 + $0xd4] sm:$0xf] %v1760
      %2017 = vst [vmem:[%s223 + $0xd8] sm:$0xf] %v1761
      %2018 = vst [vmem:[%s223 + $0xdc] sm:$0xf] %v1762
      %2019 = vst [vmem:[%s223 + $0xe0] sm:$0xf] %v1763
      %2020 = vst [vmem:[%s223 + $0xe4] sm:$0xf] %v1764
      %2021 = vst [vmem:[%s223 + $0xe8] sm:$0xf] %v1765
      %2022 = vst [vmem:[%s223 + $0xec] sm:$0xf] %v1766
      %2023 = vst [vmem:[%s223 + $0xf0] sm:$0xf] %v1767
      %2024 = vst [vmem:[%s223 + $0xf4] sm:$0xf] %v1768
      %2025 = vst [vmem:[%s223 + $0xf8] sm:$0xf] %v1769
      %2026 = vst [vmem:[%s223 + $0xfc] sm:$0xf] %v1770
      %2027 = vst [vmem:[%s223 + $0x100] sm:$0xf] %v1771
      %2028 = vst [vmem:[%s223 + $0x104] sm:$0xf] %v1772
      %2029 = vst [vmem:[%s223 + $0x108] sm:$0xf] %v1773
      %2030 = vst [vmem:[%s223 + $0x10c] sm:$0xf] %v1774
      %2031 = vst [vmem:[%s223 + $0x110] sm:$0xf] %v1775
      %2032 = vst [vmem:[%s223 + $0x114] sm:$0xf] %v1776
      %2033 = vst [vmem:[%s223 + $0x118] sm:$0xf] %v1777
      %2034 = vst [vmem:[%s223 + $0x11c] sm:$0xf] %v1778
      %2035 = vst [vmem:[%s223 + $0x120] sm:$0xf] %v1779
      %2036 = vst [vmem:[%s223 + $0x124] sm:$0xf] %v1780
      %2037 = vst [vmem:[%s223 + $0x128] sm:$0xf] %v1781
      %2038 = vst [vmem:[%s223 + $0x12c] sm:$0xf] %v1782
      %2039 = vst [vmem:[%s223 + $0x130] sm:$0xf] %v1783
      %2040 = vst [vmem:[%s223 + $0x134] sm:$0xf] %v1784
      %2041 = vst [vmem:[%s223 + $0x138] sm:$0xf] %v1785
      %2042 = vst [vmem:[%s223 + $0x13c] sm:$0xf] %v1786
      %2043 = vst [vmem:[%s223 + $0x140] sm:$0xf] %v1787
      %2044 = vst [vmem:[%s223 + $0x144] sm:$0xf] %v1788
      %2045 = vst [vmem:[%s223 + $0x148] sm:$0xf] %v1789
      %2046 = vst [vmem:[%s223 + $0x14c] sm:$0xf] %v1790
      %2047 = vst [vmem:[%s223 + $0x150] sm:$0xf] %v1791
      %2048 = vst [vmem:[%s223 + $0x154] sm:$0xf] %v1792
      %2049 = vst [vmem:[%s223 + $0x158] sm:$0xf] %v1793
      %2050 = vst [vmem:[%s223 + $0x15c] sm:$0xf] %v1794
      %2051 = vst [vmem:[%s223 + $0x160] sm:$0xf] %v1795
      %2052 = vst [vmem:[%s223 + $0x164] sm:$0xf] %v1796
      %2053 = vst [vmem:[%s223 + $0x168] sm:$0xf] %v1797
      %2054 = vst [vmem:[%s223 + $0x16c] sm:$0xf] %v1798
      %2055 = vst [vmem:[%s223 + $0x170] sm:$0xf] %v1799
      %2056 = vst [vmem:[%s223 + $0x174] sm:$0xf] %v1800
      %2057 = vst [vmem:[%s223 + $0x178] sm:$0xf] %v1801
      %2058 = vst [vmem:[%s223 + $0x17c] sm:$0xf] %v1802
      %2059 = vst [vmem:[%s223 + $0x180] sm:$0xf] %v1803
      %2060 = vst [vmem:[%s223 + $0x184] sm:$0xf] %v1804
      %2061 = vst [vmem:[%s223 + $0x188] sm:$0xf] %v1805
      %2062 = vst [vmem:[%s223 + $0x18c] sm:$0xf] %v1806
      %2063 = vst [vmem:[%s223 + $0x190] sm:$0xf] %v1807
      %2064 = vst [vmem:[%s223 + $0x194] sm:$0xf] %v1808
      %2065 = vst [vmem:[%s223 + $0x198] sm:$0xf] %v1809
      %2066 = vst [vmem:[%s223 + $0x19c] sm:$0xf] %v1810
      %2067 = vst [vmem:[%s223 + $0x1a0] sm:$0xf] %v1811
      %2068 = vst [vmem:[%s223 + $0x1a4] sm:$0xf] %v1812
      %2069 = vst [vmem:[%s223 + $0x1a8] sm:$0xf] %v1813
      %2070 = vst [vmem:[%s223 + $0x1ac] sm:$0xf] %v1814
      %2071 = vst [vmem:[%s223 + $0x1b0] sm:$0xf] %v1815
      %2072 = vst [vmem:[%s223 + $0x1b4] sm:$0xf] %v1816
      %2073 = vst [vmem:[%s223 + $0x1b8] sm:$0xf] %v1817
      %2074 = vst [vmem:[%s223 + $0x1bc] sm:$0xf] %v1818
      %2075 = vst [vmem:[%s223 + $0x1c0] sm:$0xf] %v1819
      %2076 = vst [vmem:[%s223 + $0x1c4] sm:$0xf] %v1820
      %2077 = vst [vmem:[%s223 + $0x1c8] sm:$0xf] %v1821
      %2078 = vst [vmem:[%s223 + $0x1cc] sm:$0xf] %v1822
      %2079 = vst [vmem:[%s223 + $0x1d0] sm:$0xf] %v1823
      %2080 = vst [vmem:[%s223 + $0x1d4] sm:$0xf] %v1824
      %2081 = vst [vmem:[%s223 + $0x1d8] sm:$0xf] %v1825
      %2082 = vst [vmem:[%s223 + $0x1dc] sm:$0xf] %v1826
      %2083 = vst [vmem:[%s223 + $0x1e0] sm:$0xf] %v1827
      %2084 = vst [vmem:[%s223 + $0x1e4] sm:$0xf] %v1828
      %2085 = vst [vmem:[%s223 + $0x1e8] sm:$0xf] %v1829
      %2086 = vst [vmem:[%s223 + $0x1ec] sm:$0xf] %v1830
      %2087 = vst [vmem:[%s223 + $0x1f0] sm:$0xf] %v1831
      %2088 = vst [vmem:[%s223 + $0x1f4] sm:$0xf] %v1832
      %2089 = vst [vmem:[%s223 + $0x1f8] sm:$0xf] %v1833
      %2090 = vst [vmem:[%s223 + $0x1fc] sm:$0xf] %v1834
      %s2091 = smul.u32 128, %s18
      %p2092 = scmp.lt.s32.totalorder %s2091, 255
      %s2093 = scalar_select %p2092, %s2091, 255
      %p2094 = scmp.lt.s32.totalorder %s19, 0
      %s2095 = scalar_select %p2094, %s19, 0
      %s2096 = sadd.s32 %s2095, %s2093
      %s2097 = smul.addr %s2096, 4
      %s2098 = scalar_lea.vmem %s3, %s2097
      // Predicated region
      $region33: #{texture_generator_forward.8} parent=31 // pred_check
        %p2099 = pneg %p124
      $region34: #{texture_generator_forward.8} parent=31 // pred_check_branch
        %2101 = sbr.rel (%p2099) target = $region36
      $region35: #{texture_generator_forward.8} parent=31 // pred_region
        %s2102 = smul.u32 128, %s18
      $region36: #{texture_generator_forward.8} parent=31 // pred_fallthru
        _
    $region32: #{texture_generator_forward.8} parent=5 // pred_fallthru
      _
    %p2103 = scmp.le.s32.totalorder 2, %s9
    // Predicated region
    $region37: #{texture_generator_forward.8} parent=5 // pred_check
      %p2104 = pneg %p2103
    $region38: #{texture_generator_forward.8} parent=5 // pred_check_branch
      %2106 = sbr.rel (%p2104) target = $region40
    $region39: #{texture_generator_forward.8} parent=5 // pred_region
      %s2107 = ssub.s32 %s9, 2
      // Predicated region
      $region41: #{texture_generator_forward.8} parent=39 // pred_check
        %p2108 = pneg %p130
      $region42: #{texture_generator_forward.8} parent=39 // pred_check_branch
        %2110 = sbr.rel (%p2108) target = $region44
      $region43: #{texture_generator_forward.8} parent=39 // pred_region
        %s2111 = smul.u32 128, %s20
        %p2112 = scmp.lt.s32.totalorder %s2111, 255
        %s2113 = scalar_select %p2112, %s2111, 255
        %p2114 = scmp.lt.s32.totalorder %s21, 0
        %s2115 = scalar_select %p2114, %s21, 0
        %s2116 = sadd.s32 %s2115, %s2113
        %s2117 = smul.addr %s2116, 4
        %s2118 = scalar_lea.vmem %s3, %s2117
      $region44: #{texture_generator_forward.8} parent=39 // pred_fallthru
        _
    $region40: #{texture_generator_forward.8} parent=5 // pred_fallthru
      _
  $region6: #{texture_generator_forward.8} parent=0 // loop_footer
    %s13 = sadd.s32 1, %s9
  $region7: #{texture_generator_forward.8} parent=0 // loop_footer_branch
    %8 = sbr.rel target = $region3
  $region8: #{texture_generator_forward.8} parent=0 // loop_exit
    _

// kernel: texture_generator_forward.9
$region0: #{texture_generator_forward.9}
  #allocation0 [shape = 'u32[]', space=smem, size = 0x4, offset = 0x4, fixed_abs, tag = 'smem constant byte address 0x4 - core index']
  #allocation1 [shape = 'u32[144,128]{1,0:T(1,128)}', space=vmem, size = 0x12000, scoped, tag = 'internal scratch']
  %s0 = inlined_call_operand.vmem [shape: bf16[8192,16], index: 0, kind: input, shape index: {}]
  %s1 = inlined_call_operand.vmem [shape: bf16[16,128], index: 1, kind: input, shape index: {}]
  %s2 = inlined_call_operand.vmem [shape: f32[1,128], index: 2, kind: input, shape index: {}]
  %s3 = inlined_call_operand.vmem [shape: bf16[8192,128], index: 3, kind: output, shape index: {}]
  %s4 = sld [smem:[#allocation0]]
  $region45: #{texture_generator_forward.9} parent=0
    _
  %s6 = ssub.s32 1, %s4
  %s7 = scalar_select 0, %s6, %s4
  loop: start=0, step=1, limit=6
  $region2: #{texture_generator_forward.9} parent=0 // loop_pre_header
    _
  $region3: #{texture_generator_forward.9} parent=0 // loop_header
    %s9 = sphi 0, %s13
    %p10 = scmp.ge.s32.totalorder %s9, 6
    %s16 = sphi 0, %s28
    %s17 = sphi 0, %s24
    %s18 = sphi 0, %s16
    %s19 = sphi 0, %s17
    %s20 = sphi 0, %s18
    %s21 = sphi 0, %s19
    %s31 = sphi 0, %s33
    %s34 = sphi 0, %s31
    %s35 = sphi 0, %s34
    %s51 = sphi 0, %s35
    %s57 = sphi 0, %s59
    %s60 = sphi 0, %s57
    %s61 = sphi 0, %s60
    %s77 = sphi 0, %s61
    %s83 = sphi 0, %s85
    %s86 = sphi 0, %s83
    %s87 = sphi 0, %s86
    %s103 = sphi 0, %s87
    %s111 = sphi 0, %s113
    %s114 = sphi 0, %s111
    %s115 = sphi 0, %s114
    %s131 = sphi 0, %s115
  $region4: #{texture_generator_forward.9} parent=0 // loop_header_branch
    %12 = sbr.rel (%p10) target = $region8
  $region5: #{texture_generator_forward.9} parent=0 // loop_body
    %s14 = ssub.s32 %s9, 1
    %s15 = ssub.s32 %s9, 2
    %s22 = sadd.s32 1, %s17
    %p23 = scmp.ge.s32.totalorder %s22, 1
    %s24 = scalar_select %p23, 0, %s22
    %s25 = sadd.s32 1, %s16
    %s26 = scalar_select %p23, %s25, %s16
    %p27 = scmp.ge.s32.totalorder %s26, 4
    %s28 = scalar_select %p27, 0, %s26
    %s29 = ssub.s32 %s16, %s28
    %p30 = scmp.eq.s32.totalorder %s29, 0
    %s32 = sadd.s32 %s31, 1
    %s33 = scalar_select %p30, %s31, %s32
    %p36 = pneg %p30
    %p37 = scmp.eq.s32.totalorder %s9, 3
    %p38 = por %p36, %p37
    %p39 = scmp.ne.s32.totalorder %s31, %s34
    %p40 = scmp.eq.s32.totalorder %s9, 0
    %p41 = por %p39, %p40
    %p42 = scmp.ne.s32.totalorder %s31, %s34
    %p43 = scmp.eq.s32.totalorder %s14, 3
    %p44 = por %p42, %p43
    %p45 = scmp.ne.s32.totalorder %s34, %s35
    %p46 = scmp.eq.s32.totalorder %s14, 0
    %p47 = por %p45, %p46
    %p48 = scmp.ne.s32.totalorder %s34, %s35
    %p49 = scmp.eq.s32.totalorder %s15, 3
    %p50 = por %p48, %p49
    %p52 = scmp.ne.s32.totalorder %s35, %s51
    %p53 = scmp.eq.s32.totalorder %s15, 0
    %p54 = por %p52, %p53
    %s55 = ssub.s32 %s17, %s24
    %p56 = scmp.eq.s32.totalorder %s55, 0
    %s58 = sadd.s32 %s57, 1
    %s59 = scalar_select %p56, %s57, %s58
    %p62 = pneg %p56
    %p63 = scmp.eq.s32.totalorder %s9, 3
    %p64 = por %p62, %p63
    %p65 = scmp.ne.s32.totalorder %s57, %s60
    %p66 = scmp.eq.s32.totalorder %s9, 0
    %p67 = por %p65, %p66
    %p68 = scmp.ne.s32.totalorder %s57, %s60
    %p69 = scmp.eq.s32.totalorder %s14, 3
    %p70 = por %p68, %p69
    %p71 = scmp.ne.s32.totalorder %s60, %s61
    %p72 = scmp.eq.s32.totalorder %s14, 0
    %p73 = por %p71, %p72
    %p74 = scmp.ne.s32.totalorder %s60, %s61
    %p75 = scmp.eq.s32.totalorder %s15, 3
    %p76 = por %p74, %p75
    %p78 = scmp.ne.s32.totalorder %s61, %s77
    %p79 = scmp.eq.s32.totalorder %s15, 0
    %p80 = por %p78, %p79
    %s81 = ssub.s32 %s17, %s24
    %p82 = scmp.eq.s32.totalorder %s81, 0
    %s84 = sadd.s32 %s83, 1
    %s85 = scalar_select %p82, %s83, %s84
    %p88 = pneg %p82
    %p89 = scmp.eq.s32.totalorder %s9, 3
    %p90 = por %p88, %p89
    %p91 = scmp.ne.s32.totalorder %s83, %s86
    %p92 = scmp.eq.s32.totalorder %s9, 0
    %p93 = por %p91, %p92
    %p94 = scmp.ne.s32.totalorder %s83, %s86
    %p95 = scmp.eq.s32.totalorder %s14, 3
    %p96 = por %p94, %p95
    %p97 = scmp.ne.s32.totalorder %s86, %s87
    %p98 = scmp.eq.s32.totalorder %s14, 0
    %p99 = por %p97, %p98
    %p100 = scmp.ne.s32.totalorder %s86, %s87
    %p101 = scmp.eq.s32.totalorder %s15, 3
    %p102 = por %p100, %p101
    %p104 = scmp.ne.s32.totalorder %s87, %s103
    %p105 = scmp.eq.s32.totalorder %s15, 0
    %p106 = por %p104, %p105
    %s107 = ssub.s32 %s16, %s28
    %s108 = ssub.s32 %s17, %s24
    %s109 = sor.u32 %s107, %s108
    %p110 = scmp.eq.s32.totalorder %s109, 0
    %s112 = sadd.s32 %s111, 1
    %s113 = scalar_select %p110, %s111, %s112
    %p116 = pneg %p110
    %p117 = scmp.eq.s32.totalorder %s9, 3
    %p118 = por %p116, %p117
    %p119 = scmp.ne.s32.totalorder %s111, %s114
    %p120 = scmp.eq.s32.totalorder %s9, 0
    %p121 = por %p119, %p120
    %p122 = scmp.ne.s32.totalorder %s111, %s114
    %p123 = scmp.eq.s32.totalorder %s14, 3
    %p124 = por %p122, %p123
    %p125 = scmp.ne.s32.totalorder %s114, %s115
    %p126 = scmp.eq.s32.totalorder %s14, 0
    %p127 = por %p125, %p126
    %p128 = scmp.ne.s32.totalorder %s114, %s115
    %p129 = scmp.eq.s32.totalorder %s15, 3
    %p130 = por %p128, %p129
    %p132 = scmp.ne.s32.totalorder %s115, %s131
    %p133 = scmp.eq.s32.totalorder %s15, 0
    %p134 = por %p132, %p133
    %p135 = scmp.le.s32.totalorder 1, %s9
    %p136 = scmp.lt.s32.totalorder %s9, 5
    %p137 = pnand %p135, %p136
    %p138 = pneg %p137
    // Predicated region
    $region9: #{texture_generator_forward.9} parent=5 // pred_check
      _
    $region10: #{texture_generator_forward.9} parent=5 // pred_check_branch
      %140 = sbr.rel (%p137) target = $region12
    $region11: #{texture_generator_forward.9} parent=5 // pred_region
      %s141 = ssub.s32 %s9, 1
      // Predicated region
      $region13: #{texture_generator_forward.9} parent=11 // pred_check
        %p142 = pneg %p73
      $region14: #{texture_generator_forward.9} parent=11 // pred_check_branch
        %144 = sbr.rel (%p142) target = $region16
      $region15: #{texture_generator_forward.9} parent=11 // pred_region
        %p145 = scmp.lt.s32.totalorder %s19, 0
        %s146 = scalar_select %p145, %s19, 0
        %s147 = smul.addr %s146, 4
        %s148 = scalar_lea.vmem %s1, %s147
      $region16: #{texture_generator_forward.9} parent=11 // pred_fallthru
        _
      // Predicated region
      $region17: #{texture_generator_forward.9} parent=11 // pred_check
        %p149 = pneg %p99
      $region18: #{texture_generator_forward.9} parent=11 // pred_check_branch
        %151 = sbr.rel (%p149) target = $region20
      $region19: #{texture_generator_forward.9} parent=11 // pred_region
        %p152 = scmp.lt.s32.totalorder %s19, 0
        %s153 = scalar_select %p152, %s19, 0
        %s154 = scalar_lea.vmem %s2, %s153
      $region20: #{texture_generator_forward.9} parent=11 // pred_fallthru
        _
    $region12: #{texture_generator_forward.9} parent=5 // pred_fallthru
      _
    %p155 = scmp.lt.s32.totalorder %s9, 4
    // Predicated region
    $region21: #{texture_generator_forward.9} parent=5 // pred_check
      %p156 = pneg %p155
    $region22: #{texture_generator_forward.9} parent=5 // pred_check_branch
      %158 = sbr.rel (%p156) target = $region24
    $region23: #{texture_generator_forward.9} parent=5 // pred_region
      // Predicated region
      $region25: #{texture_generator_forward.9} parent=23 // pred_check
        %p159 = pneg %p41
      $region26: #{texture_generator_forward.9} parent=23 // pred_check_branch
        %161 = sbr.rel (%p159) target = $region28
      $region27: #{texture_generator_forward.9} parent=23 // pred_region
        %s162 = smul.u32 256, %s16
        %p163 = scmp.lt.s32.totalorder %s162, 1023
        %s164 = scalar_select %p163, %s162, 1023
        %s165 = smul.addr %s164, 4
        %s166 = scalar_lea.vmem %s0, %s165
        %s167 = smul.u32 256, %s16
      $region28: #{texture_generator_forward.9} parent=23 // pred_fallthru
        _
    $region24: #{texture_generator_forward.9} parent=5 // pred_fallthru
      _
    %p168 = scmp.le.s32.totalorder 1, %s9
    %p169 = scmp.lt.s32.totalorder %s9, 5
    %p170 = pnand %p168, %p169
    %p171 = pneg %p170
    // Predicated region
    $region29: #{texture_generator_forward.9} parent=5 // pred_check
      _
    $region30: #{texture_generator_forward.9} parent=5 // pred_check_branch
      %173 = sbr.rel (%p170) target = $region32
    $region31: #{texture_generator_forward.9} parent=5 // pred_region
      %s174 = ssub.s32 %s9, 1
      %s175 = smul.u32 256, %s18
      %p176 = scmp.lt.s32.totalorder %s175, 1023
      %s177 = scalar_select %p176, %s175, 1023
      %s178 = smul.addr %s177, 4
      %s179 = scalar_lea.vmem %s0, %s178
      %p180 = pneg %p47
      %p181 = pneg %p44
      %p182 = scmp.lt.s32.totalorder %s19, 0
      %s183 = scalar_select %p182, %s19, 0
      %s184 = smul.addr %s183, 4
      %s185 = scalar_lea.vmem %s1, %s184
      %p186 = pneg %p73
      %p187 = pneg %p70
      %p188 = scmp.lt.s32.totalorder %s19, 0
      %s189 = scalar_select %p188, %s19, 0
      %s190 = scalar_lea.vmem %s2, %s189
      %p191 = pneg %p99
      %p192 = pneg %p96
      %p193 = pneg %p127
      %p194 = pneg %p124
      %s195 = smul.u32 256, %s18
      %p196 = scmp.lt.s32.totalorder %s195, 1023
      %s197 = scalar_select %p196, %s195, 1023
      %p198 = scmp.lt.s32.totalorder %s19, 0
      %s199 = scalar_select %p198, %s19, 0
      %s200 = sadd.s32 %s199, %s197
      %s201 = smul.addr %s200, 4
      %s202 = scalar_lea.vmem %s3, %s201
      %s203 = smul.u32 256, %s18
      %p204 = scmp.lt.s32.totalorder %s203, 1023
      %s205 = scalar_select %p204, %s203, 1023
      %s206 = smul.addr %s205, 4
      %s207 = scalar_lea.vmem %s0, %s206
      %s208 = smul.u32 256, %s18
      %p209 = scmp.lt.s32.totalorder %s19, 0
      %s210 = scalar_select %p209, %s19, 0
      %s211 = smul.addr %s210, 4
      %s212 = scalar_lea.vmem %s1, %s211
      %p213 = scmp.lt.s32.totalorder %s19, 0
      %s214 = scalar_select %p213, %s19, 0
      %s215 = scalar_lea.vmem %s2, %s214
      %s216 = smul.u32 256, %s18
      %p217 = scmp.lt.s32.totalorder %s216, 1023
      %s218 = scalar_select %p217, %s216, 1023
      %p219 = scmp.lt.s32.totalorder %s19, 0
      %s220 = scalar_select %p219, %s19, 0
      %s221 = sadd.s32 %s220, %s218
      %s222 = smul.addr %s221, 4
      %s223 = scalar_lea.vmem %s3, %s222
      %s224 = smul.u32 256, %s18
      %v226 = vld [vmem:[%s207] sm:$0xf]
      %v227 = vld [vmem:[%s207 + $0x4] sm:$0xf]
      %v228 = vld [vmem:[%s207 + $0x8] sm:$0xf]
      %v229 = vld [vmem:[%s207 + $0xc] sm:$0xf]
      %v230 = vld [vmem:[%s207 + $0x10] sm:$0xf]
      %v231 = vld [vmem:[%s207 + $0x14] sm:$0xf]
      %v232 = vld [vmem:[%s207 + $0x18] sm:$0xf]
      %v233 = vld [vmem:[%s207 + $0x1c] sm:$0xf]
      %v234 = vld [vmem:[%s207 + $0x20] sm:$0xf]
      %v235 = vld [vmem:[%s207 + $0x24] sm:$0xf]
      %v236 = vld [vmem:[%s207 + $0x28] sm:$0xf]
      %v237 = vld [vmem:[%s207 + $0x2c] sm:$0xf]
      %v238 = vld [vmem:[%s207 + $0x30] sm:$0xf]
      %v239 = vld [vmem:[%s207 + $0x34] sm:$0xf]
      %v240 = vld [vmem:[%s207 + $0x38] sm:$0xf]
      %v241 = vld [vmem:[%s207 + $0x3c] sm:$0xf]
      %v242 = vld [vmem:[%s207 + $0x40] sm:$0xf]
      %v243 = vld [vmem:[%s207 + $0x44] sm:$0xf]
      %v244 = vld [vmem:[%s207 + $0x48] sm:$0xf]
      %v245 = vld [vmem:[%s207 + $0x4c] sm:$0xf]
      %v246 = vld [vmem:[%s207 + $0x50] sm:$0xf]
      %v247 = vld [vmem:[%s207 + $0x54] sm:$0xf]
      %v248 = vld [vmem:[%s207 + $0x58] sm:$0xf]
      %v249 = vld [vmem:[%s207 + $0x5c] sm:$0xf]
      %v250 = vld [vmem:[%s207 + $0x60] sm:$0xf]
      %v251 = vld [vmem:[%s207 + $0x64] sm:$0xf]
      %v252 = vld [vmem:[%s207 + $0x68] sm:$0xf]
      %v253 = vld [vmem:[%s207 + $0x6c] sm:$0xf]
      %v254 = vld [vmem:[%s207 + $0x70] sm:$0xf]
      %v255 = vld [vmem:[%s207 + $0x74] sm:$0xf]
      %v256 = vld [vmem:[%s207 + $0x78] sm:$0xf]
      %v257 = vld [vmem:[%s207 + $0x7c] sm:$0xf]
      %v258 = vld [vmem:[%s207 + $0x80] sm:$0xf]
      %v259 = vld [vmem:[%s207 + $0x84] sm:$0xf]
      %v260 = vld [vmem:[%s207 + $0x88] sm:$0xf]
      %v261 = vld [vmem:[%s207 + $0x8c] sm:$0xf]
      %v262 = vld [vmem:[%s207 + $0x90] sm:$0xf]
      %v263 = vld [vmem:[%s207 + $0x94] sm:$0xf]
      %v264 = vld [vmem:[%s207 + $0x98] sm:$0xf]
      %v265 = vld [vmem:[%s207 + $0x9c] sm:$0xf]
      %v266 = vld [vmem:[%s207 + $0xa0] sm:$0xf]
      %v267 = vld [vmem:[%s207 + $0xa4] sm:$0xf]
      %v268 = vld [vmem:[%s207 + $0xa8] sm:$0xf]
      %v269 = vld [vmem:[%s207 + $0xac] sm:$0xf]
      %v270 = vld [vmem:[%s207 + $0xb0] sm:$0xf]
      %v271 = vld [vmem:[%s207 + $0xb4] sm:$0xf]
      %v272 = vld [vmem:[%s207 + $0xb8] sm:$0xf]
      %v273 = vld [vmem:[%s207 + $0xbc] sm:$0xf]
      %v274 = vld [vmem:[%s207 + $0xc0] sm:$0xf]
      %v275 = vld [vmem:[%s207 + $0xc4] sm:$0xf]
      %v276 = vld [vmem:[%s207 + $0xc8] sm:$0xf]
      %v277 = vld [vmem:[%s207 + $0xcc] sm:$0xf]
      %v278 = vld [vmem:[%s207 + $0xd0] sm:$0xf]
      %v279 = vld [vmem:[%s207 + $0xd4] sm:$0xf]
      %v280 = vld [vmem:[%s207 + $0xd8] sm:$0xf]
      %v281 = vld [vmem:[%s207 + $0xdc] sm:$0xf]
      %v282 = vld [vmem:[%s207 + $0xe0] sm:$0xf]
      %v283 = vld [vmem:[%s207 + $0xe4] sm:$0xf]
      %v284 = vld [vmem:[%s207 + $0xe8] sm:$0xf]
      %v285 = vld [vmem:[%s207 + $0xec] sm:$0xf]
      %v286 = vld [vmem:[%s207 + $0xf0] sm:$0xf]
      %v287 = vld [vmem:[%s207 + $0xf4] sm:$0xf]
      %v288 = vld [vmem:[%s207 + $0xf8] sm:$0xf]
      %v289 = vld [vmem:[%s207 + $0xfc] sm:$0xf]
      %v290 = vld [vmem:[%s207 + $0x100] sm:$0xf]
      %v291 = vld [vmem:[%s207 + $0x104] sm:$0xf]
      %v292 = vld [vmem:[%s207 + $0x108] sm:$0xf]
      %v293 = vld [vmem:[%s207 + $0x10c] sm:$0xf]
      %v294 = vld [vmem:[%s207 + $0x110] sm:$0xf]
      %v295 = vld [vmem:[%s207 + $0x114] sm:$0xf]
      %v296 = vld [vmem:[%s207 + $0x118] sm:$0xf]
      %v297 = vld [vmem:[%s207 + $0x11c] sm:$0xf]
      %v298 = vld [vmem:[%s207 + $0x120] sm:$0xf]
      %v299 = vld [vmem:[%s207 + $0x124] sm:$0xf]
      %v300 = vld [vmem:[%s207 + $0x128] sm:$0xf]
      %v301 = vld [vmem:[%s207 + $0x12c] sm:$0xf]
      %v302 = vld [vmem:[%s207 + $0x130] sm:$0xf]
      %v303 = vld [vmem:[%s207 + $0x134] sm:$0xf]
      %v304 = vld [vmem:[%s207 + $0x138] sm:$0xf]
      %v305 = vld [vmem:[%s207 + $0x13c] sm:$0xf]
      %v306 = vld [vmem:[%s207 + $0x140] sm:$0xf]
      %v307 = vld [vmem:[%s207 + $0x144] sm:$0xf]
      %v308 = vld [vmem:[%s207 + $0x148] sm:$0xf]
      %v309 = vld [vmem:[%s207 + $0x14c] sm:$0xf]
      %v310 = vld [vmem:[%s207 + $0x150] sm:$0xf]
      %v311 = vld [vmem:[%s207 + $0x154] sm:$0xf]
      %v312 = vld [vmem:[%s207 + $0x158] sm:$0xf]
      %v313 = vld [vmem:[%s207 + $0x15c] sm:$0xf]
      %v314 = vld [vmem:[%s207 + $0x160] sm:$0xf]
      %v315 = vld [vmem:[%s207 + $0x164] sm:$0xf]
      %v316 = vld [vmem:[%s207 + $0x168] sm:$0xf]
      %v317 = vld [vmem:[%s207 + $0x16c] sm:$0xf]
      %v318 = vld [vmem:[%s207 + $0x170] sm:$0xf]
      %v319 = vld [vmem:[%s207 + $0x174] sm:$0xf]
      %v320 = vld [vmem:[%s207 + $0x178] sm:$0xf]
      %v321 = vld [vmem:[%s207 + $0x17c] sm:$0xf]
      %v322 = vld [vmem:[%s207 + $0x180] sm:$0xf]
      %v323 = vld [vmem:[%s207 + $0x184] sm:$0xf]
      %v324 = vld [vmem:[%s207 + $0x188] sm:$0xf]
      %v325 = vld [vmem:[%s207 + $0x18c] sm:$0xf]
      %v326 = vld [vmem:[%s207 + $0x190] sm:$0xf]
      %v327 = vld [vmem:[%s207 + $0x194] sm:$0xf]
      %v328 = vld [vmem:[%s207 + $0x198] sm:$0xf]
      %v329 = vld [vmem:[%s207 + $0x19c] sm:$0xf]
      %v330 = vld [vmem:[%s207 + $0x1a0] sm:$0xf]
      %v331 = vld [vmem:[%s207 + $0x1a4] sm:$0xf]
      %v332 = vld [vmem:[%s207 + $0x1a8] sm:$0xf]
      %v333 = vld [vmem:[%s207 + $0x1ac] sm:$0xf]
      %v334 = vld [vmem:[%s207 + $0x1b0] sm:$0xf]
      %v335 = vld [vmem:[%s207 + $0x1b4] sm:$0xf]
      %v336 = vld [vmem:[%s207 + $0x1b8] sm:$0xf]
      %v337 = vld [vmem:[%s207 + $0x1bc] sm:$0xf]
      %v338 = vld [vmem:[%s207 + $0x1c0] sm:$0xf]
      %v339 = vld [vmem:[%s207 + $0x1c4] sm:$0xf]
      %v340 = vld [vmem:[%s207 + $0x1c8] sm:$0xf]
      %v341 = vld [vmem:[%s207 + $0x1cc] sm:$0xf]
      %v342 = vld [vmem:[%s207 + $0x1d0] sm:$0xf]
      %v343 = vld [vmem:[%s207 + $0x1d4] sm:$0xf]
      %v344 = vld [vmem:[%s207 + $0x1d8] sm:$0xf]
      %v345 = vld [vmem:[%s207 + $0x1dc] sm:$0xf]
      %v346 = vld [vmem:[%s207 + $0x1e0] sm:$0xf]
      %v347 = vld [vmem:[%s207 + $0x1e4] sm:$0xf]
      %v348 = vld [vmem:[%s207 + $0x1e8] sm:$0xf]
      %v349 = vld [vmem:[%s207 + $0x1ec] sm:$0xf]
      %v350 = vld [vmem:[%s207 + $0x1f0] sm:$0xf]
      %v351 = vld [vmem:[%s207 + $0x1f4] sm:$0xf]
      %v352 = vld [vmem:[%s207 + $0x1f8] sm:$0xf]
      %v353 = vld [vmem:[%s207 + $0x1fc] sm:$0xf]
      %v354 = vld [vmem:[%s207 + $0x200] sm:$0xf]
      %v355 = vld [vmem:[%s207 + $0x204] sm:$0xf]
      %v356 = vld [vmem:[%s207 + $0x208] sm:$0xf]
      %v357 = vld [vmem:[%s207 + $0x20c] sm:$0xf]
      %v358 = vld [vmem:[%s207 + $0x210] sm:$0xf]
      %v359 = vld [vmem:[%s207 + $0x214] sm:$0xf]
      %v360 = vld [vmem:[%s207 + $0x218] sm:$0xf]
      %v361 = vld [vmem:[%s207 + $0x21c] sm:$0xf]
      %v362 = vld [vmem:[%s207 + $0x220] sm:$0xf]
      %v363 = vld [vmem:[%s207 + $0x224] sm:$0xf]
      %v364 = vld [vmem:[%s207 + $0x228] sm:$0xf]
      %v365 = vld [vmem:[%s207 + $0x22c] sm:$0xf]
      %v366 = vld [vmem:[%s207 + $0x230] sm:$0xf]
      %v367 = vld [vmem:[%s207 + $0x234] sm:$0xf]
      %v368 = vld [vmem:[%s207 + $0x238] sm:$0xf]
      %v369 = vld [vmem:[%s207 + $0x23c] sm:$0xf]
      %v370 = vld [vmem:[%s207 + $0x240] sm:$0xf]
      %v371 = vld [vmem:[%s207 + $0x244] sm:$0xf]
      %v372 = vld [vmem:[%s207 + $0x248] sm:$0xf]
      %v373 = vld [vmem:[%s207 + $0x24c] sm:$0xf]
      %v374 = vld [vmem:[%s207 + $0x250] sm:$0xf]
      %v375 = vld [vmem:[%s207 + $0x254] sm:$0xf]
      %v376 = vld [vmem:[%s207 + $0x258] sm:$0xf]
      %v377 = vld [vmem:[%s207 + $0x25c] sm:$0xf]
      %v378 = vld [vmem:[%s207 + $0x260] sm:$0xf]
      %v379 = vld [vmem:[%s207 + $0x264] sm:$0xf]
      %v380 = vld [vmem:[%s207 + $0x268] sm:$0xf]
      %v381 = vld [vmem:[%s207 + $0x26c] sm:$0xf]
      %v382 = vld [vmem:[%s207 + $0x270] sm:$0xf]
      %v383 = vld [vmem:[%s207 + $0x274] sm:$0xf]
      %v384 = vld [vmem:[%s207 + $0x278] sm:$0xf]
      %v385 = vld [vmem:[%s207 + $0x27c] sm:$0xf]
      %v386 = vld [vmem:[%s207 + $0x280] sm:$0xf]
      %v387 = vld [vmem:[%s207 + $0x284] sm:$0xf]
      %v388 = vld [vmem:[%s207 + $0x288] sm:$0xf]
      %v389 = vld [vmem:[%s207 + $0x28c] sm:$0xf]
      %v390 = vld [vmem:[%s207 + $0x290] sm:$0xf]
      %v391 = vld [vmem:[%s207 + $0x294] sm:$0xf]
      %v392 = vld [vmem:[%s207 + $0x298] sm:$0xf]
      %v393 = vld [vmem:[%s207 + $0x29c] sm:$0xf]
      %v394 = vld [vmem:[%s207 + $0x2a0] sm:$0xf]
      %v395 = vld [vmem:[%s207 + $0x2a4] sm:$0xf]
      %v396 = vld [vmem:[%s207 + $0x2a8] sm:$0xf]
      %v397 = vld [vmem:[%s207 + $0x2ac] sm:$0xf]
      %v398 = vld [vmem:[%s207 + $0x2b0] sm:$0xf]
      %v399 = vld [vmem:[%s207 + $0x2b4] sm:$0xf]
      %v400 = vld [vmem:[%s207 + $0x2b8] sm:$0xf]
      %v401 = vld [vmem:[%s207 + $0x2bc] sm:$0xf]
      %v402 = vld [vmem:[%s207 + $0x2c0] sm:$0xf]
      %v403 = vld [vmem:[%s207 + $0x2c4] sm:$0xf]
      %v404 = vld [vmem:[%s207 + $0x2c8] sm:$0xf]
      %v405 = vld [vmem:[%s207 + $0x2cc] sm:$0xf]
      %v406 = vld [vmem:[%s207 + $0x2d0] sm:$0xf]
      %v407 = vld [vmem:[%s207 + $0x2d4] sm:$0xf]
      %v408 = vld [vmem:[%s207 + $0x2d8] sm:$0xf]
      %v409 = vld [vmem:[%s207 + $0x2dc] sm:$0xf]
      %v410 = vld [vmem:[%s207 + $0x2e0] sm:$0xf]
      %v411 = vld [vmem:[%s207 + $0x2e4] sm:$0xf]
      %v412 = vld [vmem:[%s207 + $0x2e8] sm:$0xf]
      %v413 = vld [vmem:[%s207 + $0x2ec] sm:$0xf]
      %v414 = vld [vmem:[%s207 + $0x2f0] sm:$0xf]
      %v415 = vld [vmem:[%s207 + $0x2f4] sm:$0xf]
      %v416 = vld [vmem:[%s207 + $0x2f8] sm:$0xf]
      %v417 = vld [vmem:[%s207 + $0x2fc] sm:$0xf]
      %v418 = vld [vmem:[%s207 + $0x300] sm:$0xf]
      %v419 = vld [vmem:[%s207 + $0x304] sm:$0xf]
      %v420 = vld [vmem:[%s207 + $0x308] sm:$0xf]
      %v421 = vld [vmem:[%s207 + $0x30c] sm:$0xf]
      %v422 = vld [vmem:[%s207 + $0x310] sm:$0xf]
      %v423 = vld [vmem:[%s207 + $0x314] sm:$0xf]
      %v424 = vld [vmem:[%s207 + $0x318] sm:$0xf]
      %v425 = vld [vmem:[%s207 + $0x31c] sm:$0xf]
      %v426 = vld [vmem:[%s207 + $0x320] sm:$0xf]
      %v427 = vld [vmem:[%s207 + $0x324] sm:$0xf]
      %v428 = vld [vmem:[%s207 + $0x328] sm:$0xf]
      %v429 = vld [vmem:[%s207 + $0x32c] sm:$0xf]
      %v430 = vld [vmem:[%s207 + $0x330] sm:$0xf]
      %v431 = vld [vmem:[%s207 + $0x334] sm:$0xf]
      %v432 = vld [vmem:[%s207 + $0x338] sm:$0xf]
      %v433 = vld [vmem:[%s207 + $0x33c] sm:$0xf]
      %v434 = vld [vmem:[%s207 + $0x340] sm:$0xf]
      %v435 = vld [vmem:[%s207 + $0x344] sm:$0xf]
      %v436 = vld [vmem:[%s207 + $0x348] sm:$0xf]
      %v437 = vld [vmem:[%s207 + $0x34c] sm:$0xf]
      %v438 = vld [vmem:[%s207 + $0x350] sm:$0xf]
      %v439 = vld [vmem:[%s207 + $0x354] sm:$0xf]
      %v440 = vld [vmem:[%s207 + $0x358] sm:$0xf]
      %v441 = vld [vmem:[%s207 + $0x35c] sm:$0xf]
      %v442 = vld [vmem:[%s207 + $0x360] sm:$0xf]
      %v443 = vld [vmem:[%s207 + $0x364] sm:$0xf]
      %v444 = vld [vmem:[%s207 + $0x368] sm:$0xf]
      %v445 = vld [vmem:[%s207 + $0x36c] sm:$0xf]
      %v446 = vld [vmem:[%s207 + $0x370] sm:$0xf]
      %v447 = vld [vmem:[%s207 + $0x374] sm:$0xf]
      %v448 = vld [vmem:[%s207 + $0x378] sm:$0xf]
      %v449 = vld [vmem:[%s207 + $0x37c] sm:$0xf]
      %v450 = vld [vmem:[%s207 + $0x380] sm:$0xf]
      %v451 = vld [vmem:[%s207 + $0x384] sm:$0xf]
      %v452 = vld [vmem:[%s207 + $0x388] sm:$0xf]
      %v453 = vld [vmem:[%s207 + $0x38c] sm:$0xf]
      %v454 = vld [vmem:[%s207 + $0x390] sm:$0xf]
      %v455 = vld [vmem:[%s207 + $0x394] sm:$0xf]
      %v456 = vld [vmem:[%s207 + $0x398] sm:$0xf]
      %v457 = vld [vmem:[%s207 + $0x39c] sm:$0xf]
      %v458 = vld [vmem:[%s207 + $0x3a0] sm:$0xf]
      %v459 = vld [vmem:[%s207 + $0x3a4] sm:$0xf]
      %v460 = vld [vmem:[%s207 + $0x3a8] sm:$0xf]
      %v461 = vld [vmem:[%s207 + $0x3ac] sm:$0xf]
      %v462 = vld [vmem:[%s207 + $0x3b0] sm:$0xf]
      %v463 = vld [vmem:[%s207 + $0x3b4] sm:$0xf]
      %v464 = vld [vmem:[%s207 + $0x3b8] sm:$0xf]
      %v465 = vld [vmem:[%s207 + $0x3bc] sm:$0xf]
      %v466 = vld [vmem:[%s207 + $0x3c0] sm:$0xf]
      %v467 = vld [vmem:[%s207 + $0x3c4] sm:$0xf]
      %v468 = vld [vmem:[%s207 + $0x3c8] sm:$0xf]
      %v469 = vld [vmem:[%s207 + $0x3cc] sm:$0xf]
      %v470 = vld [vmem:[%s207 + $0x3d0] sm:$0xf]
      %v471 = vld [vmem:[%s207 + $0x3d4] sm:$0xf]
      %v472 = vld [vmem:[%s207 + $0x3d8] sm:$0xf]
      %v473 = vld [vmem:[%s207 + $0x3dc] sm:$0xf]
      %v474 = vld [vmem:[%s207 + $0x3e0] sm:$0xf]
      %v475 = vld [vmem:[%s207 + $0x3e4] sm:$0xf]
      %v476 = vld [vmem:[%s207 + $0x3e8] sm:$0xf]
      %v477 = vld [vmem:[%s207 + $0x3ec] sm:$0xf]
      %v478 = vld [vmem:[%s207 + $0x3f0] sm:$0xf]
      %v479 = vld [vmem:[%s207 + $0x3f4] sm:$0xf]
      %v480 = vld [vmem:[%s207 + $0x3f8] sm:$0xf]
      %v481 = vld [vmem:[%s207 + $0x3fc] sm:$0xf]
      %v482 = vld [vmem:[%s212] sm:$0xf]
      %v483 = vld [vmem:[%s212 + $0x4] sm:$0xf]
      %v484 = vld [vmem:[%s215] sm:$0x1]
      %v486 = vlaneseq
      %v487 = vshrl.u32 %v486, 7
      %v488 = vsub.s32 0, %v487
      %v489 = vrot.slane %v484, %v488
      %v747 = vunpack.c.l.b16 %v226
      %v748 = vunpack.c.l.b16 %v227
      %v749 = vunpack.c.l.b16 %v228
      %v750 = vunpack.c.l.b16 %v229
      %v751 = vunpack.c.l.b16 %v230
      %v752 = vunpack.c.l.b16 %v231
      %v753 = vunpack.c.l.b16 %v232
      %v754 = vunpack.c.l.b16 %v233
      %v755 = vunpack.c.l.b16 %v234
      %v756 = vunpack.c.l.b16 %v235
      %v757 = vunpack.c.l.b16 %v236
      %v758 = vunpack.c.l.b16 %v237
      %v759 = vunpack.c.l.b16 %v238
      %v760 = vunpack.c.l.b16 %v239
      %v761 = vunpack.c.l.b16 %v240
      %v762 = vunpack.c.l.b16 %v241
      %v763 = vunpack.c.l.b16 %v242
      %v764 = vunpack.c.l.b16 %v243
      %v765 = vunpack.c.l.b16 %v244
      %v766 = vunpack.c.l.b16 %v245
      %v767 = vunpack.c.l.b16 %v246
      %v768 = vunpack.c.l.b16 %v247
      %v769 = vunpack.c.l.b16 %v248
      %v770 = vunpack.c.l.b16 %v249
      %v771 = vunpack.c.l.b16 %v250
      %v772 = vunpack.c.l.b16 %v251
      %v773 = vunpack.c.l.b16 %v252
      %v774 = vunpack.c.l.b16 %v253
      %v775 = vunpack.c.l.b16 %v254
      %v776 = vunpack.c.l.b16 %v255
      %v777 = vunpack.c.l.b16 %v256
      %v778 = vunpack.c.l.b16 %v257
      %v779 = vunpack.c.l.b16 %v258
      %v780 = vunpack.c.l.b16 %v259
      %v781 = vunpack.c.l.b16 %v260
      %v782 = vunpack.c.l.b16 %v261
      %v783 = vunpack.c.l.b16 %v262
      %v784 = vunpack.c.l.b16 %v263
      %v785 = vunpack.c.l.b16 %v264
      %v786 = vunpack.c.l.b16 %v265
      %v787 = vunpack.c.l.b16 %v266
      %v788 = vunpack.c.l.b16 %v267
      %v789 = vunpack.c.l.b16 %v268
      %v790 = vunpack.c.l.b16 %v269
      %v791 = vunpack.c.l.b16 %v270
      %v792 = vunpack.c.l.b16 %v271
      %v793 = vunpack.c.l.b16 %v272
      %v794 = vunpack.c.l.b16 %v273
      %v795 = vunpack.c.l.b16 %v274
      %v796 = vunpack.c.l.b16 %v275
      %v797 = vunpack.c.l.b16 %v276
      %v798 = vunpack.c.l.b16 %v277
      %v799 = vunpack.c.l.b16 %v278
      %v800 = vunpack.c.l.b16 %v279
      %v801 = vunpack.c.l.b16 %v280
      %v802 = vunpack.c.l.b16 %v281
      %v803 = vunpack.c.l.b16 %v282
      %v804 = vunpack.c.l.b16 %v283
      %v805 = vunpack.c.l.b16 %v284
      %v806 = vunpack.c.l.b16 %v285
      %v807 = vunpack.c.l.b16 %v286
      %v808 = vunpack.c.l.b16 %v287
      %v809 = vunpack.c.l.b16 %v288
      %v810 = vunpack.c.l.b16 %v289
      %v811 = vunpack.c.l.b16 %v290
      %v812 = vunpack.c.l.b16 %v291
      %v813 = vunpack.c.l.b16 %v292
      %v814 = vunpack.c.l.b16 %v293
      %v815 = vunpack.c.l.b16 %v294
      %v816 = vunpack.c.l.b16 %v295
      %v817 = vunpack.c.l.b16 %v296
      %v818 = vunpack.c.l.b16 %v297
      %v819 = vunpack.c.l.b16 %v298
      %v820 = vunpack.c.l.b16 %v299
      %v821 = vunpack.c.l.b16 %v300
      %v822 = vunpack.c.l.b16 %v301
      %v823 = vunpack.c.l.b16 %v302
      %v824 = vunpack.c.l.b16 %v303
      %v825 = vunpack.c.l.b16 %v304
      %v826 = vunpack.c.l.b16 %v305
      %v827 = vunpack.c.l.b16 %v306
      %v828 = vunpack.c.l.b16 %v307
      %v829 = vunpack.c.l.b16 %v308
      %v830 = vunpack.c.l.b16 %v309
      %v831 = vunpack.c.l.b16 %v310
      %v832 = vunpack.c.l.b16 %v311
      %v833 = vunpack.c.l.b16 %v312
      %v834 = vunpack.c.l.b16 %v313
      %v835 = vunpack.c.l.b16 %v314
      %v836 = vunpack.c.l.b16 %v315
      %v837 = vunpack.c.l.b16 %v316
      %v838 = vunpack.c.l.b16 %v317
      %v839 = vunpack.c.l.b16 %v318
      %v840 = vunpack.c.l.b16 %v319
      %v841 = vunpack.c.l.b16 %v320
      %v842 = vunpack.c.l.b16 %v321
      %v843 = vunpack.c.l.b16 %v322
      %v844 = vunpack.c.l.b16 %v323
      %v845 = vunpack.c.l.b16 %v324
      %v846 = vunpack.c.l.b16 %v325
      %v847 = vunpack.c.l.b16 %v326
      %v848 = vunpack.c.l.b16 %v327
      %v849 = vunpack.c.l.b16 %v328
      %v850 = vunpack.c.l.b16 %v329
      %v851 = vunpack.c.l.b16 %v330
      %v852 = vunpack.c.l.b16 %v331
      %v853 = vunpack.c.l.b16 %v332
      %v854 = vunpack.c.l.b16 %v333
      %v855 = vunpack.c.l.b16 %v334
      %v856 = vunpack.c.l.b16 %v335
      %v857 = vunpack.c.l.b16 %v336
      %v858 = vunpack.c.l.b16 %v337
      %v859 = vunpack.c.l.b16 %v338
      %v860 = vunpack.c.l.b16 %v339
      %v861 = vunpack.c.l.b16 %v340
      %v862 = vunpack.c.l.b16 %v341
      %v863 = vunpack.c.l.b16 %v342
      %v864 = vunpack.c.l.b16 %v343
      %v865 = vunpack.c.l.b16 %v344
      %v866 = vunpack.c.l.b16 %v345
      %v867 = vunpack.c.l.b16 %v346
      %v868 = vunpack.c.l.b16 %v347
      %v869 = vunpack.c.l.b16 %v348
      %v870 = vunpack.c.l.b16 %v349
      %v871 = vunpack.c.l.b16 %v350
      %v872 = vunpack.c.l.b16 %v351
      %v873 = vunpack.c.l.b16 %v352
      %v874 = vunpack.c.l.b16 %v353
      %v875 = vunpack.c.l.b16 %v354
      %v876 = vunpack.c.l.b16 %v355
      %v877 = vunpack.c.l.b16 %v356
      %v878 = vunpack.c.l.b16 %v357
      %v879 = vunpack.c.l.b16 %v358
      %v880 = vunpack.c.l.b16 %v359
      %v881 = vunpack.c.l.b16 %v360
      %v882 = vunpack.c.l.b16 %v361
      %v883 = vunpack.c.l.b16 %v362
      %v884 = vunpack.c.l.b16 %v363
      %v885 = vunpack.c.l.b16 %v364
      %v886 = vunpack.c.l.b16 %v365
      %v887 = vunpack.c.l.b16 %v366
      %v888 = vunpack.c.l.b16 %v367
      %v889 = vunpack.c.l.b16 %v368
      %v890 = vunpack.c.l.b16 %v369
      %v891 = vunpack.c.l.b16 %v370
      %v892 = vunpack.c.l.b16 %v371
      %v893 = vunpack.c.l.b16 %v372
      %v894 = vunpack.c.l.b16 %v373
      %v895 = vunpack.c.l.b16 %v374
      %v896 = vunpack.c.l.b16 %v375
      %v897 = vunpack.c.l.b16 %v376
      %v898 = vunpack.c.l.b16 %v377
      %v899 = vunpack.c.l.b16 %v378
      %v900 = vunpack.c.l.b16 %v379
      %v901 = vunpack.c.l.b16 %v380
      %v902 = vunpack.c.l.b16 %v381
      %v903 = vunpack.c.l.b16 %v382
      %v904 = vunpack.c.l.b16 %v383
      %v905 = vunpack.c.l.b16 %v384
      %v906 = vunpack.c.l.b16 %v385
      %v907 = vunpack.c.l.b16 %v386
      %v908 = vunpack.c.l.b16 %v387
      %v909 = vunpack.c.l.b16 %v388
      %v910 = vunpack.c.l.b16 %v389
      %v911 = vunpack.c.l.b16 %v390
      %v912 = vunpack.c.l.b16 %v391
      %v913 = vunpack.c.l.b16 %v392
      %v914 = vunpack.c.l.b16 %v393
      %v915 = vunpack.c.l.b16 %v394
      %v916 = vunpack.c.l.b16 %v395
      %v917 = vunpack.c.l.b16 %v396
      %v918 = vunpack.c.l.b16 %v397
      %v919 = vunpack.c.l.b16 %v398
      %v920 = vunpack.c.l.b16 %v399
      %v921 = vunpack.c.l.b16 %v400
      %v922 = vunpack.c.l.b16 %v401
      %v923 = vunpack.c.l.b16 %v402
      %v924 = vunpack.c.l.b16 %v403
      %v925 = vunpack.c.l.b16 %v404
      %v926 = vunpack.c.l.b16 %v405
      %v927 = vunpack.c.l.b16 %v406
      %v928 = vunpack.c.l.b16 %v407
      %v929 = vunpack.c.l.b16 %v408
      %v930 = vunpack.c.l.b16 %v409
      %v931 = vunpack.c.l.b16 %v410
      %v932 = vunpack.c.l.b16 %v411
      %v933 = vunpack.c.l.b16 %v412
      %v934 = vunpack.c.l.b16 %v413
      %v935 = vunpack.c.l.b16 %v414
      %v936 = vunpack.c.l.b16 %v415
      %v937 = vunpack.c.l.b16 %v416
      %v938 = vunpack.c.l.b16 %v417
      %v939 = vunpack.c.l.b16 %v418
      %v940 = vunpack.c.l.b16 %v419
      %v941 = vunpack.c.l.b16 %v420
      %v942 = vunpack.c.l.b16 %v421
      %v943 = vunpack.c.l.b16 %v422
      %v944 = vunpack.c.l.b16 %v423
      %v945 = vunpack.c.l.b16 %v424
      %v946 = vunpack.c.l.b16 %v425
      %v947 = vunpack.c.l.b16 %v426
      %v948 = vunpack.c.l.b16 %v427
      %v949 = vunpack.c.l.b16 %v428
      %v950 = vunpack.c.l.b16 %v429
      %v951 = vunpack.c.l.b16 %v430
      %v952 = vunpack.c.l.b16 %v431
      %v953 = vunpack.c.l.b16 %v432
      %v954 = vunpack.c.l.b16 %v433
      %v955 = vunpack.c.l.b16 %v434
      %v956 = vunpack.c.l.b16 %v435
      %v957 = vunpack.c.l.b16 %v436
      %v958 = vunpack.c.l.b16 %v437
      %v959 = vunpack.c.l.b16 %v438
      %v960 = vunpack.c.l.b16 %v439
      %v961 = vunpack.c.l.b16 %v440
      %v962 = vunpack.c.l.b16 %v441
      %v963 = vunpack.c.l.b16 %v442
      %v964 = vunpack.c.l.b16 %v443
      %v965 = vunpack.c.l.b16 %v444
      %v966 = vunpack.c.l.b16 %v445
      %v967 = vunpack.c.l.b16 %v446
      %v968 = vunpack.c.l.b16 %v447
      %v969 = vunpack.c.l.b16 %v448
      %v970 = vunpack.c.l.b16 %v449
      %v971 = vunpack.c.l.b16 %v450
      %v972 = vunpack.c.l.b16 %v451
      %v973 = vunpack.c.l.b16 %v452
      %v974 = vunpack.c.l.b16 %v453
      %v975 = vunpack.c.l.b16 %v454
      %v976 = vunpack.c.l.b16 %v455
      %v977 = vunpack.c.l.b16 %v456
      %v978 = vunpack.c.l.b16 %v457
      %v979 = vunpack.c.l.b16 %v458
      %v980 = vunpack.c.l.b16 %v459
      %v981 = vunpack.c.l.b16 %v460
      %v982 = vunpack.c.l.b16 %v461
      %v983 = vunpack.c.l.b16 %v462
      %v984 = vunpack.c.l.b16 %v463
      %v985 = vunpack.c.l.b16 %v464
      %v986 = vunpack.c.l.b16 %v465
      %v987 = vunpack.c.l.b16 %v466
      %v988 = vunpack.c.l.b16 %v467
      %v989 = vunpack.c.l.b16 %v468
      %v990 = vunpack.c.l.b16 %v469
      %v991 = vunpack.c.l.b16 %v470
      %v992 = vunpack.c.l.b16 %v471
      %v993 = vunpack.c.l.b16 %v472
      %v994 = vunpack.c.l.b16 %v473
      %v995 = vunpack.c.l.b16 %v474
      %v996 = vunpack.c.l.b16 %v475
      %v997 = vunpack.c.l.b16 %v476
      %v998 = vunpack.c.l.b16 %v477
      %v999 = vunpack.c.l.b16 %v478
      %v1000 = vunpack.c.l.b16 %v479
      %v1001 = vunpack.c.l.b16 %v480
      %v1002 = vunpack.c.l.b16 %v481
      %v1003 = vpack.c.b16 %v748, %v747
      %v1004 = vpack.c.b16 %v750, %v749
      %v1005 = vpack.c.b16 %v752, %v751
      %v1006 = vpack.c.b16 %v754, %v753
      %v1007 = vpack.c.b16 %v756, %v755
      %v1008 = vpack.c.b16 %v758, %v757
      %v1009 = vpack.c.b16 %v760, %v759
      %v1010 = vpack.c.b16 %v762, %v761
      %v1011 = vpack.c.b16 %v764, %v763
      %v1012 = vpack.c.b16 %v766, %v765
      %v1013 = vpack.c.b16 %v768, %v767
      %v1014 = vpack.c.b16 %v770, %v769
      %v1015 = vpack.c.b16 %v772, %v771
      %v1016 = vpack.c.b16 %v774, %v773
      %v1017 = vpack.c.b16 %v776, %v775
      %v1018 = vpack.c.b16 %v778, %v777
      %v1019 = vpack.c.b16 %v780, %v779
      %v1020 = vpack.c.b16 %v782, %v781
      %v1021 = vpack.c.b16 %v784, %v783
      %v1022 = vpack.c.b16 %v786, %v785
      %v1023 = vpack.c.b16 %v788, %v787
      %v1024 = vpack.c.b16 %v790, %v789
      %v1025 = vpack.c.b16 %v792, %v791
      %v1026 = vpack.c.b16 %v794, %v793
      %v1027 = vpack.c.b16 %v796, %v795
      %v1028 = vpack.c.b16 %v798, %v797
      %v1029 = vpack.c.b16 %v800, %v799
      %v1030 = vpack.c.b16 %v802, %v801
      %v1031 = vpack.c.b16 %v804, %v803
      %v1032 = vpack.c.b16 %v806, %v805
      %v1033 = vpack.c.b16 %v808, %v807
      %v1034 = vpack.c.b16 %v810, %v809
      %v1035 = vpack.c.b16 %v812, %v811
      %v1036 = vpack.c.b16 %v814, %v813
      %v1037 = vpack.c.b16 %v816, %v815
      %v1038 = vpack.c.b16 %v818, %v817
      %v1039 = vpack.c.b16 %v820, %v819
      %v1040 = vpack.c.b16 %v822, %v821
      %v1041 = vpack.c.b16 %v824, %v823
      %v1042 = vpack.c.b16 %v826, %v825
      %v1043 = vpack.c.b16 %v828, %v827
      %v1044 = vpack.c.b16 %v830, %v829
      %v1045 = vpack.c.b16 %v832, %v831
      %v1046 = vpack.c.b16 %v834, %v833
      %v1047 = vpack.c.b16 %v836, %v835
      %v1048 = vpack.c.b16 %v838, %v837
      %v1049 = vpack.c.b16 %v840, %v839
      %v1050 = vpack.c.b16 %v842, %v841
      %v1051 = vpack.c.b16 %v844, %v843
      %v1052 = vpack.c.b16 %v846, %v845
      %v1053 = vpack.c.b16 %v848, %v847
      %v1054 = vpack.c.b16 %v850, %v849
      %v1055 = vpack.c.b16 %v852, %v851
      %v1056 = vpack.c.b16 %v854, %v853
      %v1057 = vpack.c.b16 %v856, %v855
      %v1058 = vpack.c.b16 %v858, %v857
      %v1059 = vpack.c.b16 %v860, %v859
      %v1060 = vpack.c.b16 %v862, %v861
      %v1061 = vpack.c.b16 %v864, %v863
      %v1062 = vpack.c.b16 %v866, %v865
      %v1063 = vpack.c.b16 %v868, %v867
      %v1064 = vpack.c.b16 %v870, %v869
      %v1065 = vpack.c.b16 %v872, %v871
      %v1066 = vpack.c.b16 %v874, %v873
      %v1067 = vpack.c.b16 %v876, %v875
      %v1068 = vpack.c.b16 %v878, %v877
      %v1069 = vpack.c.b16 %v880, %v879
      %v1070 = vpack.c.b16 %v882, %v881
      %v1071 = vpack.c.b16 %v884, %v883
      %v1072 = vpack.c.b16 %v886, %v885
      %v1073 = vpack.c.b16 %v888, %v887
      %v1074 = vpack.c.b16 %v890, %v889
      %v1075 = vpack.c.b16 %v892, %v891
      %v1076 = vpack.c.b16 %v894, %v893
      %v1077 = vpack.c.b16 %v896, %v895
      %v1078 = vpack.c.b16 %v898, %v897
      %v1079 = vpack.c.b16 %v900, %v899
      %v1080 = vpack.c.b16 %v902, %v901
      %v1081 = vpack.c.b16 %v904, %v903
      %v1082 = vpack.c.b16 %v906, %v905
      %v1083 = vpack.c.b16 %v908, %v907
      %v1084 = vpack.c.b16 %v910, %v909
      %v1085 = vpack.c.b16 %v912, %v911
      %v1086 = vpack.c.b16 %v914, %v913
      %v1087 = vpack.c.b16 %v916, %v915
      %v1088 = vpack.c.b16 %v918, %v917
      %v1089 = vpack.c.b16 %v920, %v919
      %v1090 = vpack.c.b16 %v922, %v921
      %v1091 = vpack.c.b16 %v924, %v923
      %v1092 = vpack.c.b16 %v926, %v925
      %v1093 = vpack.c.b16 %v928, %v927
      %v1094 = vpack.c.b16 %v930, %v929
      %v1095 = vpack.c.b16 %v932, %v931
      %v1096 = vpack.c.b16 %v934, %v933
      %v1097 = vpack.c.b16 %v936, %v935
      %v1098 = vpack.c.b16 %v938, %v937
      %v1099 = vpack.c.b16 %v940, %v939
      %v1100 = vpack.c.b16 %v942, %v941
      %v1101 = vpack.c.b16 %v944, %v943
      %v1102 = vpack.c.b16 %v946, %v945
      %v1103 = vpack.c.b16 %v948, %v947
      %v1104 = vpack.c.b16 %v950, %v949
      %v1105 = vpack.c.b16 %v952, %v951
      %v1106 = vpack.c.b16 %v954, %v953
      %v1107 = vpack.c.b16 %v956, %v955
      %v1108 = vpack.c.b16 %v958, %v957
      %v1109 = vpack.c.b16 %v960, %v959
      %v1110 = vpack.c.b16 %v962, %v961
      %v1111 = vpack.c.b16 %v964, %v963
      %v1112 = vpack.c.b16 %v966, %v965
      %v1113 = vpack.c.b16 %v968, %v967
      %v1114 = vpack.c.b16 %v970, %v969
      %v1115 = vpack.c.b16 %v972, %v971
      %v1116 = vpack.c.b16 %v974, %v973
      %v1117 = vpack.c.b16 %v976, %v975
      %v1118 = vpack.c.b16 %v978, %v977
      %v1119 = vpack.c.b16 %v980, %v979
      %v1120 = vpack.c.b16 %v982, %v981
      %v1121 = vpack.c.b16 %v984, %v983
      %v1122 = vpack.c.b16 %v986, %v985
      %v1123 = vpack.c.b16 %v988, %v987
      %v1124 = vpack.c.b16 %v990, %v989
      %v1125 = vpack.c.b16 %v992, %v991
      %v1126 = vpack.c.b16 %v994, %v993
      %v1127 = vpack.c.b16 %v996, %v995
      %v1128 = vpack.c.b16 %v998, %v997
      %v1129 = vpack.c.b16 %v1000, %v999
      %v1130 = vpack.c.b16 %v1002, %v1001
      %v1133 = vunpack.c.l.b16 %v482
      %v1134 = vunpack.c.l.b16 %v483
      %v1135 = vpack.c.b16 %v1134, %v1133
      %vm1137 = vcmask 130048
      %v1139 = vsel %vm1137, %v1003, 0
      %v1142 = vsel %vm1137, %v1004, 0
      %v1145 = vsel %vm1137, %v1005, 0
      %v1148 = vsel %vm1137, %v1006, 0
      %v1151 = vsel %vm1137, %v1007, 0
      %v1154 = vsel %vm1137, %v1008, 0
      %v1157 = vsel %vm1137, %v1009, 0
      %v1160 = vsel %vm1137, %v1010, 0
      %v1163 = vsel %vm1137, %v1011, 0
      %v1166 = vsel %vm1137, %v1012, 0
      %v1169 = vsel %vm1137, %v1013, 0
      %v1172 = vsel %vm1137, %v1014, 0
      %v1175 = vsel %vm1137, %v1015, 0
      %v1178 = vsel %vm1137, %v1016, 0
      %v1181 = vsel %vm1137, %v1017, 0
      %v1184 = vsel %vm1137, %v1018, 0
      %v1187 = vsel %vm1137, %v1019, 0
      %v1190 = vsel %vm1137, %v1020, 0
      %v1193 = vsel %vm1137, %v1021, 0
      %v1196 = vsel %vm1137, %v1022, 0
      %v1199 = vsel %vm1137, %v1023, 0
      %v1202 = vsel %vm1137, %v1024, 0
      %v1205 = vsel %vm1137, %v1025, 0
      %v1208 = vsel %vm1137, %v1026, 0
      %v1211 = vsel %vm1137, %v1027, 0
      %v1214 = vsel %vm1137, %v1028, 0
      %v1217 = vsel %vm1137, %v1029, 0
      %v1220 = vsel %vm1137, %v1030, 0
      %v1223 = vsel %vm1137, %v1031, 0
      %v1226 = vsel %vm1137, %v1032, 0
      %v1229 = vsel %vm1137, %v1033, 0
      %v1232 = vsel %vm1137, %v1034, 0
      %v1235 = vsel %vm1137, %v1035, 0
      %v1238 = vsel %vm1137, %v1036, 0
      %v1241 = vsel %vm1137, %v1037, 0
      %v1244 = vsel %vm1137, %v1038, 0
      %v1247 = vsel %vm1137, %v1039, 0
      %v1250 = vsel %vm1137, %v1040, 0
      %v1253 = vsel %vm1137, %v1041, 0
      %v1256 = vsel %vm1137, %v1042, 0
      %v1259 = vsel %vm1137, %v1043, 0
      %v1262 = vsel %vm1137, %v1044, 0
      %v1265 = vsel %vm1137, %v1045, 0
      %v1268 = vsel %vm1137, %v1046, 0
      %v1271 = vsel %vm1137, %v1047, 0
      %v1274 = vsel %vm1137, %v1048, 0
      %v1277 = vsel %vm1137, %v1049, 0
      %v1280 = vsel %vm1137, %v1050, 0
      %v1283 = vsel %vm1137, %v1051, 0
      %v1286 = vsel %vm1137, %v1052, 0
      %v1289 = vsel %vm1137, %v1053, 0
      %v1292 = vsel %vm1137, %v1054, 0
      %v1295 = vsel %vm1137, %v1055, 0
      %v1298 = vsel %vm1137, %v1056, 0
      %v1301 = vsel %vm1137, %v1057, 0
      %v1304 = vsel %vm1137, %v1058, 0
      %v1307 = vsel %vm1137, %v1059, 0
      %v1310 = vsel %vm1137, %v1060, 0
      %v1313 = vsel %vm1137, %v1061, 0
      %v1316 = vsel %vm1137, %v1062, 0
      %v1319 = vsel %vm1137, %v1063, 0
      %v1322 = vsel %vm1137, %v1064, 0
      %v1325 = vsel %vm1137, %v1065, 0
      %v1328 = vsel %vm1137, %v1066, 0
      %v1331 = vsel %vm1137, %v1067, 0
      %v1334 = vsel %vm1137, %v1068, 0
      %v1337 = vsel %vm1137, %v1069, 0
      %v1340 = vsel %vm1137, %v1070, 0
      %v1343 = vsel %vm1137, %v1071, 0
      %v1346 = vsel %vm1137, %v1072, 0
      %v1349 = vsel %vm1137, %v1073, 0
      %v1352 = vsel %vm1137, %v1074, 0
      %v1355 = vsel %vm1137, %v1075, 0
      %v1358 = vsel %vm1137, %v1076, 0
      %v1361 = vsel %vm1137, %v1077, 0
      %v1364 = vsel %vm1137, %v1078, 0
      %v1367 = vsel %vm1137, %v1079, 0
      %v1370 = vsel %vm1137, %v1080, 0
      %v1373 = vsel %vm1137, %v1081, 0
      %v1376 = vsel %vm1137, %v1082, 0
      %v1379 = vsel %vm1137, %v1083, 0
      %v1382 = vsel %vm1137, %v1084, 0
      %v1385 = vsel %vm1137, %v1085, 0
      %v1388 = vsel %vm1137, %v1086, 0
      %v1391 = vsel %vm1137, %v1087, 0
      %v1394 = vsel %vm1137, %v1088, 0
      %v1397 = vsel %vm1137, %v1089, 0
      %v1400 = vsel %vm1137, %v1090, 0
      %v1403 = vsel %vm1137, %v1091, 0
      %v1406 = vsel %vm1137, %v1092, 0
      %v1409 = vsel %vm1137, %v1093, 0
      %v1412 = vsel %vm1137, %v1094, 0
      %v1415 = vsel %vm1137, %v1095, 0
      %v1418 = vsel %vm1137, %v1096, 0
      %v1421 = vsel %vm1137, %v1097, 0
      %v1424 = vsel %vm1137, %v1098, 0
      %v1427 = vsel %vm1137, %v1099, 0
      %v1430 = vsel %vm1137, %v1100, 0
      %v1433 = vsel %vm1137, %v1101, 0
      %v1436 = vsel %vm1137, %v1102, 0
      %v1439 = vsel %vm1137, %v1103, 0
      %v1442 = vsel %vm1137, %v1104, 0
      %v1445 = vsel %vm1137, %v1105, 0
      %v1448 = vsel %vm1137, %v1106, 0
      %v1451 = vsel %vm1137, %v1107, 0
      %v1454 = vsel %vm1137, %v1108, 0
      %v1457 = vsel %vm1137, %v1109, 0
      %v1460 = vsel %vm1137, %v1110, 0
      %v1463 = vsel %vm1137, %v1111, 0
      %v1466 = vsel %vm1137, %v1112, 0
      %v1469 = vsel %vm1137, %v1113, 0
      %v1472 = vsel %vm1137, %v1114, 0
      %v1475 = vsel %vm1137, %v1115, 0
      %v1478 = vsel %vm1137, %v1116, 0
      %v1481 = vsel %vm1137, %v1117, 0
      %v1484 = vsel %vm1137, %v1118, 0
      %v1487 = vsel %vm1137, %v1119, 0
      %v1490 = vsel %vm1137, %v1120, 0
      %v1493 = vsel %vm1137, %v1121, 0
      %v1496 = vsel %vm1137, %v1122, 0
      %v1499 = vsel %vm1137, %v1123, 0
      %v1502 = vsel %vm1137, %v1124, 0
      %v1505 = vsel %vm1137, %v1125, 0
      %v1508 = vsel %vm1137, %v1126, 0
      %v1511 = vsel %vm1137, %v1127, 0
      %v1514 = vsel %vm1137, %v1128, 0
      %v1517 = vsel %vm1137, %v1129, 0
      %v1520 = vsel %vm1137, %v1130, 0
      %1522 = vmatprep.subr.bf16.mxu0 0
      %1523 = vmatpush1.bf16.msra.mxu0 0
      %1524 = vmatprep.subr.bf16.mxu0 0
      %1525 = vmatpush1.bf16.msra.mxu0 0
      %1526 = vmatprep.subr.bf16.mxu0 0
      %1527 = vmatpush1.bf16.msra.mxu0 0
      %1528 = vmatprep.subr.bf16.mxu0 0
      %1529 = vmatpush1.bf16.msra.mxu0 0
      %1530 = vmatprep.subr.bf16.mxu0 0
      %1531 = vmatpush1.bf16.msra.mxu0 0
      %1532 = vmatprep.subr.bf16.mxu0 0
      %1533 = vmatpush1.bf16.msra.mxu0 0
      %1534 = vmatprep.subr.bf16.mxu0 0
      %1535 = vmatpush1.bf16.msra.mxu0 0
      %1536 = vmatprep.subr.bf16.mxu0 0
      %1537 = vmatpush1.bf16.msra.mxu0 %v1135
      %1538 = vmatprep.subr.bf16.mxu0 0
      %1539 = vmatpush2.bf16.msra.mxu0 0
      %1540 = vmatprep.subr.bf16.mxu0 0
      %1541 = vmatpush2.bf16.msra.mxu0 0
      %1542 = vmatprep.subr.bf16.mxu0 0
      %1543 = vmatpush2.bf16.msra.mxu0 0
      %1544 = vmatprep.subr.bf16.mxu0 0
      %1545 = vmatpush2.bf16.msra.mxu0 0
      %1546 = vmatprep.subr.bf16.mxu0 0
      %1547 = vmatpush2.bf16.msra.mxu0 0
      %1548 = vmatprep.subr.bf16.mxu0 0
      %1549 = vmatpush2.bf16.msra.mxu0 0
      %1550 = vmatprep.subr.bf16.mxu0 0
      %1551 = vmatpush2.bf16.msra.mxu0 0
      %1552 = vmatprep.subr.bf16.mxu0 0
      %1553 = vmatpush2.bf16.msra.mxu0 0
      %1554 = vmatprep.mubr.bf16.mxu0 0
      %1555 = vmatmul.mubr.bf16.gmra.mxu0 %v1139
      %v1556 = vpop.f32.mrf.mxu0
      %v1557 = vadd.f32 %v489, %v1556
      %v1558 = vpop.f32.mrf.mxu0
      %v1559 = vpop.f32.mrf.mxu0
      %v1560 = vadd.f32 %v489, %v1559
      %v1561 = vpop.f32.mrf.mxu0
      %1562 = vmatprep.mubr.bf16.mxu0 0
      %1563 = vmatmul.mubr.bf16.gmra.mxu0 %v1142
      %v1564 = vpop.f32.mrf.mxu0
      %v1565 = vadd.f32 %v489, %v1564
      %v1566 = vpop.f32.mrf.mxu0
      %v1567 = vpop.f32.mrf.mxu0
      %v1568 = vadd.f32 %v489, %v1567
      %v1569 = vpop.f32.mrf.mxu0
      %1570 = vmatprep.mubr.bf16.mxu0 0
      %1571 = vmatmul.mubr.bf16.gmra.mxu0 %v1145
      %v1572 = vpop.f32.mrf.mxu0
      %v1573 = vadd.f32 %v489, %v1572
      %v1574 = vpop.f32.mrf.mxu0
      %v1575 = vpop.f32.mrf.mxu0
      %v1576 = vadd.f32 %v489, %v1575
      %v1577 = vpop.f32.mrf.mxu0
      %1578 = vmatprep.mubr.bf16.mxu0 0
      %1579 = vmatmul.mubr.bf16.gmra.mxu0 %v1148
      %v1580 = vpop.f32.mrf.mxu0
      %v1581 = vadd.f32 %v489, %v1580
      %v1582 = vpop.f32.mrf.mxu0
      %v1583 = vpop.f32.mrf.mxu0
      %v1584 = vadd.f32 %v489, %v1583
      %v1585 = vpop.f32.mrf.mxu0
      %1586 = vmatprep.mubr.bf16.mxu0 0
      %1587 = vmatmul.mubr.bf16.gmra.mxu0 %v1151
      %v1588 = vpop.f32.mrf.mxu0
      %v1589 = vadd.f32 %v489, %v1588
      %v1590 = vpop.f32.mrf.mxu0
      %v1591 = vpop.f32.mrf.mxu0
      %v1592 = vadd.f32 %v489, %v1591
      %v1593 = vpop.f32.mrf.mxu0
      %1594 = vmatprep.mubr.bf16.mxu0 0
      %1595 = vmatmul.mubr.bf16.gmra.mxu0 %v1154
      %v1596 = vpop.f32.mrf.mxu0
      %v1597 = vadd.f32 %v489, %v1596
      %v1598 = vpop.f32.mrf.mxu0
      %v1599 = vpop.f32.mrf.mxu0
      %v1600 = vadd.f32 %v489, %v1599
      %v1601 = vpop.f32.mrf.mxu0
      %1602 = vmatprep.mubr.bf16.mxu0 0
      %1603 = vmatmul.mubr.bf16.gmra.mxu0 %v1157
      %v1604 = vpop.f32.mrf.mxu0
      %v1605 = vadd.f32 %v489, %v1604
      %v1606 = vpop.f32.mrf.mxu0
      %v1607 = vpop.f32.mrf.mxu0
      %v1608 = vadd.f32 %v489, %v1607
      %v1609 = vpop.f32.mrf.mxu0
      %1610 = vmatprep.mubr.bf16.mxu0 0
      %1611 = vmatmul.mubr.bf16.gmra.mxu0 %v1160
      %v1612 = vpop.f32.mrf.mxu0
      %v1613 = vadd.f32 %v489, %v1612
      %v1614 = vpop.f32.mrf.mxu0
      %v1615 = vpop.f32.mrf.mxu0
      %v1616 = vadd.f32 %v489, %v1615
      %v1617 = vpop.f32.mrf.mxu0
      %1618 = vmatprep.mubr.bf16.mxu0 0
      %1619 = vmatmul.mubr.bf16.gmra.mxu0 %v1163
      %v1620 = vpop.f32.mrf.mxu0
      %v1621 = vadd.f32 %v489, %v1620
      %v1622 = vpop.f32.mrf.mxu0
      %v1623 = vpop.f32.mrf.mxu0
      %v1624 = vadd.f32 %v489, %v1623
      %v1625 = vpop.f32.mrf.mxu0
      %1626 = vmatprep.mubr.bf16.mxu0 0
      %1627 = vmatmul.mubr.bf16.gmra.mxu0 %v1166
      %v1628 = vpop.f32.mrf.mxu0
      %v1629 = vadd.f32 %v489, %v1628
      %v1630 = vpop.f32.mrf.mxu0
      %v1631 = vpop.f32.mrf.mxu0
      %v1632 = vadd.f32 %v489, %v1631
      %v1633 = vpop.f32.mrf.mxu0
      %1634 = vmatprep.mubr.bf16.mxu0 0
      %1635 = vmatmul.mubr.bf16.gmra.mxu0 %v1169
      %v1636 = vpop.f32.mrf.mxu0
      %v1637 = vadd.f32 %v489, %v1636
      %v1638 = vpop.f32.mrf.mxu0
      %v1639 = vpop.f32.mrf.mxu0
      %v1640 = vadd.f32 %v489, %v1639
      %v1641 = vpop.f32.mrf.mxu0
      %1642 = vmatprep.mubr.bf16.mxu0 0
      %1643 = vmatmul.mubr.bf16.gmra.mxu0 %v1172
      %v1644 = vpop.f32.mrf.mxu0
      %v1645 = vadd.f32 %v489, %v1644
      %v1646 = vpop.f32.mrf.mxu0
      %v1647 = vpop.f32.mrf.mxu0
      %v1648 = vadd.f32 %v489, %v1647
      %v1649 = vpop.f32.mrf.mxu0
      %1650 = vmatprep.mubr.bf16.mxu0 0
      %1651 = vmatmul.mubr.bf16.gmra.mxu0 %v1175
      %v1652 = vpop.f32.mrf.mxu0
      %v1653 = vadd.f32 %v489, %v1652
      %v1654 = vpop.f32.mrf.mxu0
      %v1655 = vpop.f32.mrf.mxu0
      %v1656 = vadd.f32 %v489, %v1655
      %v1657 = vpop.f32.mrf.mxu0
      %1658 = vmatprep.mubr.bf16.mxu0 0
      %1659 = vmatmul.mubr.bf16.gmra.mxu0 %v1178
      %v1660 = vpop.f32.mrf.mxu0
      %v1661 = vadd.f32 %v489, %v1660
      %v1662 = vpop.f32.mrf.mxu0
      %v1663 = vpop.f32.mrf.mxu0
      %v1664 = vadd.f32 %v489, %v1663
      %v1665 = vpop.f32.mrf.mxu0
      %1666 = vmatprep.mubr.bf16.mxu0 0
      %1667 = vmatmul.mubr.bf16.gmra.mxu0 %v1181
      %v1668 = vpop.f32.mrf.mxu0
      %v1669 = vadd.f32 %v489, %v1668
      %v1670 = vpop.f32.mrf.mxu0
      %v1671 = vpop.f32.mrf.mxu0
      %v1672 = vadd.f32 %v489, %v1671
      %v1673 = vpop.f32.mrf.mxu0
      %1674 = vmatprep.mubr.bf16.mxu0 0
      %1675 = vmatmul.mubr.bf16.gmra.mxu0 %v1184
      %v1676 = vpop.f32.mrf.mxu0
      %v1677 = vadd.f32 %v489, %v1676
      %v1678 = vpop.f32.mrf.mxu0
      %v1679 = vpop.f32.mrf.mxu0
      %v1680 = vadd.f32 %v489, %v1679
      %v1681 = vpop.f32.mrf.mxu0
      %1682 = vmatprep.mubr.bf16.mxu0 0
      %1683 = vmatmul.mubr.bf16.gmra.mxu0 %v1187
      %v1684 = vpop.f32.mrf.mxu0
      %v1685 = vadd.f32 %v489, %v1684
      %v1686 = vpop.f32.mrf.mxu0
      %v1687 = vpop.f32.mrf.mxu0
      %v1688 = vadd.f32 %v489, %v1687
      %v1689 = vpop.f32.mrf.mxu0
      %1690 = vmatprep.mubr.bf16.mxu0 0
      %1691 = vmatmul.mubr.bf16.gmra.mxu0 %v1190
      %v1692 = vpop.f32.mrf.mxu0
      %v1693 = vadd.f32 %v489, %v1692
      %v1694 = vpop.f32.mrf.mxu0
      %v1695 = vpop.f32.mrf.mxu0
      %v1696 = vadd.f32 %v489, %v1695
      %v1697 = vpop.f32.mrf.mxu0
      %1698 = vmatprep.mubr.bf16.mxu0 0
      %1699 = vmatmul.mubr.bf16.gmra.mxu0 %v1193
      %v1700 = vpop.f32.mrf.mxu0
      %v1701 = vadd.f32 %v489, %v1700
      %v1702 = vpop.f32.mrf.mxu0
      %v1703 = vpop.f32.mrf.mxu0
      %v1704 = vadd.f32 %v489, %v1703
      %v1705 = vpop.f32.mrf.mxu0
      %1706 = vmatprep.mubr.bf16.mxu0 0
      %1707 = vmatmul.mubr.bf16.gmra.mxu0 %v1196
      %v1708 = vpop.f32.mrf.mxu0
      %v1709 = vadd.f32 %v489, %v1708
      %v1710 = vpop.f32.mrf.mxu0
      %v1711 = vpop.f32.mrf.mxu0
      %v1712 = vadd.f32 %v489, %v1711
      %v1713 = vpop.f32.mrf.mxu0
      %1714 = vmatprep.mubr.bf16.mxu0 0
      %1715 = vmatmul.mubr.bf16.gmra.mxu0 %v1199
      %v1716 = vpop.f32.mrf.mxu0
      %v1717 = vadd.f32 %v489, %v1716
      %v1718 = vpop.f32.mrf.mxu0
      %v1719 = vpop.f32.mrf.mxu0
      %v1720 = vadd.f32 %v489, %v1719
      %v1721 = vpop.f32.mrf.mxu0
      %1722 = vmatprep.mubr.bf16.mxu0 0
      %1723 = vmatmul.mubr.bf16.gmra.mxu0 %v1202
      %v1724 = vpop.f32.mrf.mxu0
      %v1725 = vadd.f32 %v489, %v1724
      %v1726 = vpop.f32.mrf.mxu0
      %v1727 = vpop.f32.mrf.mxu0
      %v1728 = vadd.f32 %v489, %v1727
      %v1729 = vpop.f32.mrf.mxu0
      %1730 = vmatprep.mubr.bf16.mxu0 0
      %1731 = vmatmul.mubr.bf16.gmra.mxu0 %v1205
      %v1732 = vpop.f32.mrf.mxu0
      %v1733 = vadd.f32 %v489, %v1732
      %v1734 = vpop.f32.mrf.mxu0
      %v1735 = vpop.f32.mrf.mxu0
      %v1736 = vadd.f32 %v489, %v1735
      %v1737 = vpop.f32.mrf.mxu0
      %1738 = vmatprep.mubr.bf16.mxu0 0
      %1739 = vmatmul.mubr.bf16.gmra.mxu0 %v1208
      %v1740 = vpop.f32.mrf.mxu0
      %v1741 = vadd.f32 %v489, %v1740
      %v1742 = vpop.f32.mrf.mxu0
      %v1743 = vpop.f32.mrf.mxu0
      %v1744 = vadd.f32 %v489, %v1743
      %v1745 = vpop.f32.mrf.mxu0
      %1746 = vmatprep.mubr.bf16.mxu0 0
      %1747 = vmatmul.mubr.bf16.gmra.mxu0 %v1211
      %v1748 = vpop.f32.mrf.mxu0
      %v1749 = vadd.f32 %v489, %v1748
      %v1750 = vpop.f32.mrf.mxu0
      %v1751 = vpop.f32.mrf.mxu0
      %v1752 = vadd.f32 %v489, %v1751
      %v1753 = vpop.f32.mrf.mxu0
      %1754 = vmatprep.mubr.bf16.mxu0 0
      %1755 = vmatmul.mubr.bf16.gmra.mxu0 %v1214
      %v1756 = vpop.f32.mrf.mxu0
      %v1757 = vadd.f32 %v489, %v1756
      %v1758 = vpop.f32.mrf.mxu0
      %v1759 = vpop.f32.mrf.mxu0
      %v1760 = vadd.f32 %v489, %v1759
      %v1761 = vpop.f32.mrf.mxu0
      %1762 = vmatprep.mubr.bf16.mxu0 0
      %1763 = vmatmul.mubr.bf16.gmra.mxu0 %v1217
      %v1764 = vpop.f32.mrf.mxu0
      %v1765 = vadd.f32 %v489, %v1764
      %v1766 = vpop.f32.mrf.mxu0
      %v1767 = vpop.f32.mrf.mxu0
      %v1768 = vadd.f32 %v489, %v1767
      %v1769 = vpop.f32.mrf.mxu0
      %1770 = vmatprep.mubr.bf16.mxu0 0
      %1771 = vmatmul.mubr.bf16.gmra.mxu0 %v1220
      %v1772 = vpop.f32.mrf.mxu0
      %v1773 = vadd.f32 %v489, %v1772
      %v1774 = vpop.f32.mrf.mxu0
      %v1775 = vpop.f32.mrf.mxu0
      %v1776 = vadd.f32 %v489, %v1775
      %v1777 = vpop.f32.mrf.mxu0
      %1778 = vmatprep.mubr.bf16.mxu0 0
      %1779 = vmatmul.mubr.bf16.gmra.mxu0 %v1223
      %v1780 = vpop.f32.mrf.mxu0
      %v1781 = vadd.f32 %v489, %v1780
      %v1782 = vpop.f32.mrf.mxu0
      %v1783 = vpop.f32.mrf.mxu0
      %v1784 = vadd.f32 %v489, %v1783
      %v1785 = vpop.f32.mrf.mxu0
      %1786 = vmatprep.mubr.bf16.mxu0 0
      %1787 = vmatmul.mubr.bf16.gmra.mxu0 %v1226
      %v1788 = vpop.f32.mrf.mxu0
      %v1789 = vadd.f32 %v489, %v1788
      %v1790 = vpop.f32.mrf.mxu0
      %v1791 = vpop.f32.mrf.mxu0
      %v1792 = vadd.f32 %v489, %v1791
      %v1793 = vpop.f32.mrf.mxu0
      %1794 = vmatprep.mubr.bf16.mxu0 0
      %1795 = vmatmul.mubr.bf16.gmra.mxu0 %v1229
      %v1796 = vpop.f32.mrf.mxu0
      %v1797 = vadd.f32 %v489, %v1796
      %v1798 = vpop.f32.mrf.mxu0
      %v1799 = vpop.f32.mrf.mxu0
      %v1800 = vadd.f32 %v489, %v1799
      %v1801 = vpop.f32.mrf.mxu0
      %1802 = vmatprep.mubr.bf16.mxu0 0
      %1803 = vmatmul.mubr.bf16.gmra.mxu0 %v1232
      %v1804 = vpop.f32.mrf.mxu0
      %v1805 = vadd.f32 %v489, %v1804
      %v1806 = vpop.f32.mrf.mxu0
      %v1807 = vpop.f32.mrf.mxu0
      %v1808 = vadd.f32 %v489, %v1807
      %v1809 = vpop.f32.mrf.mxu0
      %1810 = vmatprep.mubr.bf16.mxu0 0
      %1811 = vmatmul.mubr.bf16.gmra.mxu0 %v1235
      %v1812 = vpop.f32.mrf.mxu0
      %v1813 = vadd.f32 %v489, %v1812
      %v1814 = vpop.f32.mrf.mxu0
      %v1815 = vpop.f32.mrf.mxu0
      %v1816 = vadd.f32 %v489, %v1815
      %v1817 = vpop.f32.mrf.mxu0
      %1818 = vmatprep.mubr.bf16.mxu0 0
      %1819 = vmatmul.mubr.bf16.gmra.mxu0 %v1238
      %v1820 = vpop.f32.mrf.mxu0
      %v1821 = vadd.f32 %v489, %v1820
      %v1822 = vpop.f32.mrf.mxu0
      %v1823 = vpop.f32.mrf.mxu0
      %v1824 = vadd.f32 %v489, %v1823
      %v1825 = vpop.f32.mrf.mxu0
      %1826 = vmatprep.mubr.bf16.mxu0 0
      %1827 = vmatmul.mubr.bf16.gmra.mxu0 %v1241
      %v1828 = vpop.f32.mrf.mxu0
      %v1829 = vadd.f32 %v489, %v1828
      %v1830 = vpop.f32.mrf.mxu0
      %v1831 = vpop.f32.mrf.mxu0
      %v1832 = vadd.f32 %v489, %v1831
      %v1833 = vpop.f32.mrf.mxu0
      %1834 = vmatprep.mubr.bf16.mxu0 0
      %1835 = vmatmul.mubr.bf16.gmra.mxu0 %v1244
      %v1836 = vpop.f32.mrf.mxu0
      %v1837 = vadd.f32 %v489, %v1836
      %v1838 = vpop.f32.mrf.mxu0
      %v1839 = vpop.f32.mrf.mxu0
      %v1840 = vadd.f32 %v489, %v1839
      %v1841 = vpop.f32.mrf.mxu0
      %1842 = vmatprep.mubr.bf16.mxu0 0
      %1843 = vmatmul.mubr.bf16.gmra.mxu0 %v1247
      %v1844 = vpop.f32.mrf.mxu0
      %v1845 = vadd.f32 %v489, %v1844
      %v1846 = vpop.f32.mrf.mxu0
      %v1847 = vpop.f32.mrf.mxu0
      %v1848 = vadd.f32 %v489, %v1847
      %v1849 = vpop.f32.mrf.mxu0
      %1850 = vmatprep.mubr.bf16.mxu0 0
      %1851 = vmatmul.mubr.bf16.gmra.mxu0 %v1250
      %v1852 = vpop.f32.mrf.mxu0
      %v1853 = vadd.f32 %v489, %v1852
      %v1854 = vpop.f32.mrf.mxu0
      %v1855 = vpop.f32.mrf.mxu0
      %v1856 = vadd.f32 %v489, %v1855
      %v1857 = vpop.f32.mrf.mxu0
      %1858 = vmatprep.mubr.bf16.mxu0 0
      %1859 = vmatmul.mubr.bf16.gmra.mxu0 %v1253
      %v1860 = vpop.f32.mrf.mxu0
      %v1861 = vadd.f32 %v489, %v1860
      %v1862 = vpop.f32.mrf.mxu0
      %v1863 = vpop.f32.mrf.mxu0
      %v1864 = vadd.f32 %v489, %v1863
      %v1865 = vpop.f32.mrf.mxu0
      %1866 = vmatprep.mubr.bf16.mxu0 0
      %1867 = vmatmul.mubr.bf16.gmra.mxu0 %v1256
      %v1868 = vpop.f32.mrf.mxu0
      %v1869 = vadd.f32 %v489, %v1868
      %v1870 = vpop.f32.mrf.mxu0
      %v1871 = vpop.f32.mrf.mxu0
      %v1872 = vadd.f32 %v489, %v1871
      %v1873 = vpop.f32.mrf.mxu0
      %1874 = vmatprep.mubr.bf16.mxu0 0
      %1875 = vmatmul.mubr.bf16.gmra.mxu0 %v1259
      %v1876 = vpop.f32.mrf.mxu0
      %v1877 = vadd.f32 %v489, %v1876
      %v1878 = vpop.f32.mrf.mxu0
      %v1879 = vpop.f32.mrf.mxu0
      %v1880 = vadd.f32 %v489, %v1879
      %v1881 = vpop.f32.mrf.mxu0
      %1882 = vmatprep.mubr.bf16.mxu0 0
      %1883 = vmatmul.mubr.bf16.gmra.mxu0 %v1262
      %v1884 = vpop.f32.mrf.mxu0
      %v1885 = vadd.f32 %v489, %v1884
      %v1886 = vpop.f32.mrf.mxu0
      %v1887 = vpop.f32.mrf.mxu0
      %v1888 = vadd.f32 %v489, %v1887
      %v1889 = vpop.f32.mrf.mxu0
      %1890 = vmatprep.mubr.bf16.mxu0 0
      %1891 = vmatmul.mubr.bf16.gmra.mxu0 %v1265
      %v1892 = vpop.f32.mrf.mxu0
      %v1893 = vadd.f32 %v489, %v1892
      %v1894 = vpop.f32.mrf.mxu0
      %v1895 = vpop.f32.mrf.mxu0
      %v1896 = vadd.f32 %v489, %v1895
      %v1897 = vpop.f32.mrf.mxu0
      %1898 = vmatprep.mubr.bf16.mxu0 0
      %1899 = vmatmul.mubr.bf16.gmra.mxu0 %v1268
      %v1900 = vpop.f32.mrf.mxu0
      %v1901 = vadd.f32 %v489, %v1900
      %v1902 = vpop.f32.mrf.mxu0
      %v1903 = vpop.f32.mrf.mxu0
      %v1904 = vadd.f32 %v489, %v1903
      %v1905 = vpop.f32.mrf.mxu0
      %1906 = vmatprep.mubr.bf16.mxu0 0
      %1907 = vmatmul.mubr.bf16.gmra.mxu0 %v1271
      %v1908 = vpop.f32.mrf.mxu0
      %v1909 = vadd.f32 %v489, %v1908
      %v1910 = vpop.f32.mrf.mxu0
      %v1911 = vpop.f32.mrf.mxu0
      %v1912 = vadd.f32 %v489, %v1911
      %v1913 = vpop.f32.mrf.mxu0
      %1914 = vmatprep.mubr.bf16.mxu0 0
      %1915 = vmatmul.mubr.bf16.gmra.mxu0 %v1274
      %v1916 = vpop.f32.mrf.mxu0
      %v1917 = vadd.f32 %v489, %v1916
      %v1918 = vpop.f32.mrf.mxu0
      %v1919 = vpop.f32.mrf.mxu0
      %v1920 = vadd.f32 %v489, %v1919
      %v1921 = vpop.f32.mrf.mxu0
      %1922 = vmatprep.mubr.bf16.mxu0 0
      %1923 = vmatmul.mubr.bf16.gmra.mxu0 %v1277
      %v1924 = vpop.f32.mrf.mxu0
      %v1925 = vadd.f32 %v489, %v1924
      %v1926 = vpop.f32.mrf.mxu0
      %v1927 = vpop.f32.mrf.mxu0
      %v1928 = vadd.f32 %v489, %v1927
      %v1929 = vpop.f32.mrf.mxu0
      %1930 = vmatprep.mubr.bf16.mxu0 0
      %1931 = vmatmul.mubr.bf16.gmra.mxu0 %v1280
      %v1932 = vpop.f32.mrf.mxu0
      %v1933 = vadd.f32 %v489, %v1932
      %v1934 = vpop.f32.mrf.mxu0
      %v1935 = vpop.f32.mrf.mxu0
      %v1936 = vadd.f32 %v489, %v1935
      %v1937 = vpop.f32.mrf.mxu0
      %1938 = vmatprep.mubr.bf16.mxu0 0
      %1939 = vmatmul.mubr.bf16.gmra.mxu0 %v1283
      %v1940 = vpop.f32.mrf.mxu0
      %v1941 = vadd.f32 %v489, %v1940
      %v1942 = vpop.f32.mrf.mxu0
      %v1943 = vpop.f32.mrf.mxu0
      %v1944 = vadd.f32 %v489, %v1943
      %v1945 = vpop.f32.mrf.mxu0
      %1946 = vmatprep.mubr.bf16.mxu0 0
      %1947 = vmatmul.mubr.bf16.gmra.mxu0 %v1286
      %v1948 = vpop.f32.mrf.mxu0
      %v1949 = vadd.f32 %v489, %v1948
      %v1950 = vpop.f32.mrf.mxu0
      %v1951 = vpop.f32.mrf.mxu0
      %v1952 = vadd.f32 %v489, %v1951
      %v1953 = vpop.f32.mrf.mxu0
      %1954 = vmatprep.mubr.bf16.mxu0 0
      %1955 = vmatmul.mubr.bf16.gmra.mxu0 %v1289
      %v1956 = vpop.f32.mrf.mxu0
      %v1957 = vadd.f32 %v489, %v1956
      %v1958 = vpop.f32.mrf.mxu0
      %v1959 = vpop.f32.mrf.mxu0
      %v1960 = vadd.f32 %v489, %v1959
      %v1961 = vpop.f32.mrf.mxu0
      %1962 = vmatprep.mubr.bf16.mxu0 0
      %1963 = vmatmul.mubr.bf16.gmra.mxu0 %v1292
      %v1964 = vpop.f32.mrf.mxu0
      %v1965 = vadd.f32 %v489, %v1964
      %v1966 = vpop.f32.mrf.mxu0
      %v1967 = vpop.f32.mrf.mxu0
      %v1968 = vadd.f32 %v489, %v1967
      %v1969 = vpop.f32.mrf.mxu0
      %1970 = vmatprep.mubr.bf16.mxu0 0
      %1971 = vmatmul.mubr.bf16.gmra.mxu0 %v1295
      %v1972 = vpop.f32.mrf.mxu0
      %v1973 = vadd.f32 %v489, %v1972
      %v1974 = vpop.f32.mrf.mxu0
      %v1975 = vpop.f32.mrf.mxu0
      %v1976 = vadd.f32 %v489, %v1975
      %v1977 = vpop.f32.mrf.mxu0
      %1978 = vmatprep.mubr.bf16.mxu0 0
      %1979 = vmatmul.mubr.bf16.gmra.mxu0 %v1298
      %v1980 = vpop.f32.mrf.mxu0
      %v1981 = vadd.f32 %v489, %v1980
      %v1982 = vpop.f32.mrf.mxu0
      %v1983 = vpop.f32.mrf.mxu0
      %v1984 = vadd.f32 %v489, %v1983
      %v1985 = vpop.f32.mrf.mxu0
      %1986 = vmatprep.mubr.bf16.mxu0 0
      %1987 = vmatmul.mubr.bf16.gmra.mxu0 %v1301
      %v1988 = vpop.f32.mrf.mxu0
      %v1989 = vadd.f32 %v489, %v1988
      %v1990 = vpop.f32.mrf.mxu0
      %v1991 = vpop.f32.mrf.mxu0
      %v1992 = vadd.f32 %v489, %v1991
      %v1993 = vpop.f32.mrf.mxu0
      %1994 = vmatprep.mubr.bf16.mxu0 0
      %1995 = vmatmul.mubr.bf16.gmra.mxu0 %v1304
      %v1996 = vpop.f32.mrf.mxu0
      %v1997 = vadd.f32 %v489, %v1996
      %v1998 = vpop.f32.mrf.mxu0
      %v1999 = vpop.f32.mrf.mxu0
      %v2000 = vadd.f32 %v489, %v1999
      %v2001 = vpop.f32.mrf.mxu0
      %2002 = vmatprep.mubr.bf16.mxu0 0
      %2003 = vmatmul.mubr.bf16.gmra.mxu0 %v1307
      %v2004 = vpop.f32.mrf.mxu0
      %v2005 = vadd.f32 %v489, %v2004
      %v2006 = vpop.f32.mrf.mxu0
      %v2007 = vpop.f32.mrf.mxu0
      %v2008 = vadd.f32 %v489, %v2007
      %v2009 = vpop.f32.mrf.mxu0
      %2010 = vmatprep.mubr.bf16.mxu0 0
      %2011 = vmatmul.mubr.bf16.gmra.mxu0 %v1310
      %v2012 = vpop.f32.mrf.mxu0
      %v2013 = vadd.f32 %v489, %v2012
      %v2014 = vpop.f32.mrf.mxu0
      %v2015 = vpop.f32.mrf.mxu0
      %v2016 = vadd.f32 %v489, %v2015
      %v2017 = vpop.f32.mrf.mxu0
      %2018 = vmatprep.mubr.bf16.mxu0 0
      %2019 = vmatmul.mubr.bf16.gmra.mxu0 %v1313
      %v2020 = vpop.f32.mrf.mxu0
      %v2021 = vadd.f32 %v489, %v2020
      %v2022 = vpop.f32.mrf.mxu0
      %v2023 = vpop.f32.mrf.mxu0
      %v2024 = vadd.f32 %v489, %v2023
      %v2025 = vpop.f32.mrf.mxu0
      %2026 = vmatprep.mubr.bf16.mxu0 0
      %2027 = vmatmul.mubr.bf16.gmra.mxu0 %v1316
      %v2028 = vpop.f32.mrf.mxu0
      %v2029 = vadd.f32 %v489, %v2028
      %v2030 = vpop.f32.mrf.mxu0
      %v2031 = vpop.f32.mrf.mxu0
      %v2032 = vadd.f32 %v489, %v2031
      %v2033 = vpop.f32.mrf.mxu0
      %2034 = vmatprep.mubr.bf16.mxu0 0
      %2035 = vmatmul.mubr.bf16.gmra.mxu0 %v1319
      %v2036 = vpop.f32.mrf.mxu0
      %v2037 = vadd.f32 %v489, %v2036
      %v2038 = vpop.f32.mrf.mxu0
      %v2039 = vpop.f32.mrf.mxu0
      %v2040 = vadd.f32 %v489, %v2039
      %v2041 = vpop.f32.mrf.mxu0
      %2042 = vmatprep.mubr.bf16.mxu0 0
      %2043 = vmatmul.mubr.bf16.gmra.mxu0 %v1322
      %v2044 = vpop.f32.mrf.mxu0
      %v2045 = vadd.f32 %v489, %v2044
      %v2046 = vpop.f32.mrf.mxu0
      %v2047 = vpop.f32.mrf.mxu0
      %v2048 = vadd.f32 %v489, %v2047
      %v2049 = vpop.f32.mrf.mxu0
      %2050 = vmatprep.mubr.bf16.mxu0 0
      %2051 = vmatmul.mubr.bf16.gmra.mxu0 %v1325
      %v2052 = vpop.f32.mrf.mxu0
      %v2053 = vadd.f32 %v489, %v2052
      %v2054 = vpop.f32.mrf.mxu0
      %v2055 = vpop.f32.mrf.mxu0
      %v2056 = vadd.f32 %v489, %v2055
      %v2057 = vpop.f32.mrf.mxu0
      %2058 = vmatprep.mubr.bf16.mxu0 0
      %2059 = vmatmul.mubr.bf16.gmra.mxu0 %v1328
      %v2060 = vpop.f32.mrf.mxu0
      %v2061 = vadd.f32 %v489, %v2060
      %v2062 = vpop.f32.mrf.mxu0
      %v2063 = vpop.f32.mrf.mxu0
      %v2064 = vadd.f32 %v489, %v2063
      %v2065 = vpop.f32.mrf.mxu0
      %2066 = vmatprep.mubr.bf16.mxu0 0
      %2067 = vmatmul.mubr.bf16.gmra.mxu0 %v1331
      %v2068 = vpop.f32.mrf.mxu0
      %v2069 = vadd.f32 %v489, %v2068
      %v2070 = vpop.f32.mrf.mxu0
      %v2071 = vpop.f32.mrf.mxu0
      %v2072 = vadd.f32 %v489, %v2071
      %v2073 = vpop.f32.mrf.mxu0
      %2074 = vmatprep.mubr.bf16.mxu0 0
      %2075 = vmatmul.mubr.bf16.gmra.mxu0 %v1334
      %v2076 = vpop.f32.mrf.mxu0
      %v2077 = vadd.f32 %v489, %v2076
      %v2078 = vpop.f32.mrf.mxu0
      %v2079 = vpop.f32.mrf.mxu0
      %v2080 = vadd.f32 %v489, %v2079
      %v2081 = vpop.f32.mrf.mxu0
      %2082 = vmatprep.mubr.bf16.mxu0 0
      %2083 = vmatmul.mubr.bf16.gmra.mxu0 %v1337
      %v2084 = vpop.f32.mrf.mxu0
      %v2085 = vadd.f32 %v489, %v2084
      %v2086 = vpop.f32.mrf.mxu0
      %v2087 = vpop.f32.mrf.mxu0
      %v2088 = vadd.f32 %v489, %v2087
      %v2089 = vpop.f32.mrf.mxu0
      %2090 = vmatprep.mubr.bf16.mxu0 0
      %2091 = vmatmul.mubr.bf16.gmra.mxu0 %v1340
      %v2092 = vpop.f32.mrf.mxu0
      %v2093 = vadd.f32 %v489, %v2092
      %v2094 = vpop.f32.mrf.mxu0
      %v2095 = vpop.f32.mrf.mxu0
      %v2096 = vadd.f32 %v489, %v2095
      %v2097 = vpop.f32.mrf.mxu0
      %2098 = vmatprep.mubr.bf16.mxu0 0
      %2099 = vmatmul.mubr.bf16.gmra.mxu0 %v1343
      %v2100 = vpop.f32.mrf.mxu0
      %v2101 = vadd.f32 %v489, %v2100
      %v2102 = vpop.f32.mrf.mxu0
      %v2103 = vpop.f32.mrf.mxu0
      %v2104 = vadd.f32 %v489, %v2103
      %v2105 = vpop.f32.mrf.mxu0
      %2106 = vmatprep.mubr.bf16.mxu0 0
      %2107 = vmatmul.mubr.bf16.gmra.mxu0 %v1346
      %v2108 = vpop.f32.mrf.mxu0
      %v2109 = vadd.f32 %v489, %v2108
      %v2110 = vpop.f32.mrf.mxu0
      %v2111 = vpop.f32.mrf.mxu0
      %v2112 = vadd.f32 %v489, %v2111
      %v2113 = vpop.f32.mrf.mxu0
      %2114 = vmatprep.mubr.bf16.mxu0 0
      %2115 = vmatmul.mubr.bf16.gmra.mxu0 %v1349
      %v2116 = vpop.f32.mrf.mxu0
      %v2117 = vadd.f32 %v489, %v2116
      %v2118 = vpop.f32.mrf.mxu0
      %v2119 = vpop.f32.mrf.mxu0
      %v2120 = vadd.f32 %v489, %v2119
      %v2121 = vpop.f32.mrf.mxu0
      %2122 = vmatprep.mubr.bf16.mxu0 0
      %2123 = vmatmul.mubr.bf16.gmra.mxu0 %v1352
      %v2124 = vpop.f32.mrf.mxu0
      %v2125 = vadd.f32 %v489, %v2124
      %v2126 = vpop.f32.mrf.mxu0
      %v2127 = vpop.f32.mrf.mxu0
      %v2128 = vadd.f32 %v489, %v2127
      %v2129 = vpop.f32.mrf.mxu0
      %2130 = vmatprep.mubr.bf16.mxu0 0
      %2131 = vmatmul.mubr.bf16.gmra.mxu0 %v1355
      %v2132 = vpop.f32.mrf.mxu0
      %v2133 = vadd.f32 %v489, %v2132
      %v2134 = vpop.f32.mrf.mxu0
      %v2135 = vpop.f32.mrf.mxu0
      %v2136 = vadd.f32 %v489, %v2135
      %v2137 = vpop.f32.mrf.mxu0
      %2138 = vmatprep.mubr.bf16.mxu0 0
      %2139 = vmatmul.mubr.bf16.gmra.mxu0 %v1358
      %v2140 = vpop.f32.mrf.mxu0
      %v2141 = vadd.f32 %v489, %v2140
      %v2142 = vpop.f32.mrf.mxu0
      %v2143 = vpop.f32.mrf.mxu0
      %v2144 = vadd.f32 %v489, %v2143
      %v2145 = vpop.f32.mrf.mxu0
      %2146 = vmatprep.mubr.bf16.mxu0 0
      %2147 = vmatmul.mubr.bf16.gmra.mxu0 %v1361
      %v2148 = vpop.f32.mrf.mxu0
      %v2149 = vadd.f32 %v489, %v2148
      %v2150 = vpop.f32.mrf.mxu0
      %v2151 = vpop.f32.mrf.mxu0
      %v2152 = vadd.f32 %v489, %v2151
      %v2153 = vpop.f32.mrf.mxu0
      %2154 = vmatprep.mubr.bf16.mxu0 0
      %2155 = vmatmul.mubr.bf16.gmra.mxu0 %v1364
      %v2156 = vpop.f32.mrf.mxu0
      %v2157 = vadd.f32 %v489, %v2156
      %v2158 = vpop.f32.mrf.mxu0
      %v2159 = vpop.f32.mrf.mxu0
      %v2160 = vadd.f32 %v489, %v2159
      %v2161 = vpop.f32.mrf.mxu0
      %2162 = vmatprep.mubr.bf16.mxu0 0
      %2163 = vmatmul.mubr.bf16.gmra.mxu0 %v1367
      %v2164 = vpop.f32.mrf.mxu0
      %v2165 = vadd.f32 %v489, %v2164
      %v2166 = vpop.f32.mrf.mxu0
      %v2167 = vpop.f32.mrf.mxu0
      %v2168 = vadd.f32 %v489, %v2167
      %v2169 = vpop.f32.mrf.mxu0
      %2170 = vmatprep.mubr.bf16.mxu0 0
      %2171 = vmatmul.mubr.bf16.gmra.mxu0 %v1370
      %v2172 = vpop.f32.mrf.mxu0
      %v2173 = vadd.f32 %v489, %v2172
      %v2174 = vpop.f32.mrf.mxu0
      %v2175 = vpop.f32.mrf.mxu0
      %v2176 = vadd.f32 %v489, %v2175
      %v2177 = vpop.f32.mrf.mxu0
      %2178 = vmatprep.mubr.bf16.mxu0 0
      %2179 = vmatmul.mubr.bf16.gmra.mxu0 %v1373
      %v2180 = vpop.f32.mrf.mxu0
      %v2181 = vadd.f32 %v489, %v2180
      %v2182 = vpop.f32.mrf.mxu0
      %v2183 = vpop.f32.mrf.mxu0
      %v2184 = vadd.f32 %v489, %v2183
      %v2185 = vpop.f32.mrf.mxu0
      %2186 = vmatprep.mubr.bf16.mxu0 0
      %2187 = vmatmul.mubr.bf16.gmra.mxu0 %v1376
      %v2188 = vpop.f32.mrf.mxu0
      %v2189 = vadd.f32 %v489, %v2188
      %v2190 = vpop.f32.mrf.mxu0
      %v2191 = vpop.f32.mrf.mxu0
      %v2192 = vadd.f32 %v489, %v2191
      %v2193 = vpop.f32.mrf.mxu0
      %2194 = vmatprep.mubr.bf16.mxu0 0
      %2195 = vmatmul.mubr.bf16.gmra.mxu0 %v1379
      %v2196 = vpop.f32.mrf.mxu0
      %v2197 = vadd.f32 %v489, %v2196
      %v2198 = vpop.f32.mrf.mxu0
      %v2199 = vpop.f32.mrf.mxu0
      %v2200 = vadd.f32 %v489, %v2199
      %v2201 = vpop.f32.mrf.mxu0
      %2202 = vmatprep.mubr.bf16.mxu0 0
      %2203 = vmatmul.mubr.bf16.gmra.mxu0 %v1382
      %v2204 = vpop.f32.mrf.mxu0
      %v2205 = vadd.f32 %v489, %v2204
      %v2206 = vpop.f32.mrf.mxu0
      %v2207 = vpop.f32.mrf.mxu0
      %v2208 = vadd.f32 %v489, %v2207
      %v2209 = vpop.f32.mrf.mxu0
      %2210 = vmatprep.mubr.bf16.mxu0 0
      %2211 = vmatmul.mubr.bf16.gmra.mxu0 %v1385
      %v2212 = vpop.f32.mrf.mxu0
      %v2213 = vadd.f32 %v489, %v2212
      %v2214 = vpop.f32.mrf.mxu0
      %v2215 = vpop.f32.mrf.mxu0
      %v2216 = vadd.f32 %v489, %v2215
      %v2217 = vpop.f32.mrf.mxu0
      %2218 = vmatprep.mubr.bf16.mxu0 0
      %2219 = vmatmul.mubr.bf16.gmra.mxu0 %v1388
      %v2220 = vpop.f32.mrf.mxu0
      %v2221 = vadd.f32 %v489, %v2220
      %v2222 = vpop.f32.mrf.mxu0
      %v2223 = vpop.f32.mrf.mxu0
      %v2224 = vadd.f32 %v489, %v2223
      %v2225 = vpop.f32.mrf.mxu0
      %2226 = vmatprep.mubr.bf16.mxu0 0
      %2227 = vmatmul.mubr.bf16.gmra.mxu0 %v1391
      %v2228 = vpop.f32.mrf.mxu0
      %v2229 = vadd.f32 %v489, %v2228
      %v2230 = vpop.f32.mrf.mxu0
      %v2231 = vpop.f32.mrf.mxu0
      %v2232 = vadd.f32 %v489, %v2231
      %v2233 = vpop.f32.mrf.mxu0
      %2234 = vmatprep.mubr.bf16.mxu0 0
      %2235 = vmatmul.mubr.bf16.gmra.mxu0 %v1394
      %v2236 = vpop.f32.mrf.mxu0
      %v2237 = vadd.f32 %v489, %v2236
      %v2238 = vpop.f32.mrf.mxu0
      %v2239 = vpop.f32.mrf.mxu0
      %v2240 = vadd.f32 %v489, %v2239
      %v2241 = vpop.f32.mrf.mxu0
      %2242 = vmatprep.mubr.bf16.mxu0 0
      %2243 = vmatmul.mubr.bf16.gmra.mxu0 %v1397
      %v2244 = vpop.f32.mrf.mxu0
      %v2245 = vadd.f32 %v489, %v2244
      %v2246 = vpop.f32.mrf.mxu0
      %v2247 = vpop.f32.mrf.mxu0
      %v2248 = vadd.f32 %v489, %v2247
      %v2249 = vpop.f32.mrf.mxu0
      %2250 = vmatprep.mubr.bf16.mxu0 0
      %2251 = vmatmul.mubr.bf16.gmra.mxu0 %v1400
      %v2252 = vpop.f32.mrf.mxu0
      %v2253 = vadd.f32 %v489, %v2252
      %v2254 = vpop.f32.mrf.mxu0
      %v2255 = vpop.f32.mrf.mxu0
      %v2256 = vadd.f32 %v489, %v2255
      %v2257 = vpop.f32.mrf.mxu0
      %2258 = vmatprep.mubr.bf16.mxu0 0
      %2259 = vmatmul.mubr.bf16.gmra.mxu0 %v1403
      %v2260 = vpop.f32.mrf.mxu0
      %v2261 = vadd.f32 %v489, %v2260
      %v2262 = vpop.f32.mrf.mxu0
      %v2263 = vpop.f32.mrf.mxu0
      %v2264 = vadd.f32 %v489, %v2263
      %v2265 = vpop.f32.mrf.mxu0
      %2266 = vmatprep.mubr.bf16.mxu0 0
      %2267 = vmatmul.mubr.bf16.gmra.mxu0 %v1406
      %v2268 = vpop.f32.mrf.mxu0
      %v2269 = vadd.f32 %v489, %v2268
      %v2270 = vpop.f32.mrf.mxu0
      %v2271 = vpop.f32.mrf.mxu0
      %v2272 = vadd.f32 %v489, %v2271
      %v2273 = vpop.f32.mrf.mxu0
      %2274 = vmatprep.mubr.bf16.mxu0 0
      %2275 = vmatmul.mubr.bf16.gmra.mxu0 %v1409
      %v2276 = vpop.f32.mrf.mxu0
      %v2277 = vadd.f32 %v489, %v2276
      %v2278 = vpop.f32.mrf.mxu0
      %v2279 = vpop.f32.mrf.mxu0
      %v2280 = vadd.f32 %v489, %v2279
      %v2281 = vpop.f32.mrf.mxu0
      %2282 = vmatprep.mubr.bf16.mxu0 0
      %2283 = vmatmul.mubr.bf16.gmra.mxu0 %v1412
      %v2284 = vpop.f32.mrf.mxu0
      %v2285 = vadd.f32 %v489, %v2284
      %v2286 = vpop.f32.mrf.mxu0
      %v2287 = vpop.f32.mrf.mxu0
      %v2288 = vadd.f32 %v489, %v2287
      %v2289 = vpop.f32.mrf.mxu0
      %2290 = vmatprep.mubr.bf16.mxu0 0
      %2291 = vmatmul.mubr.bf16.gmra.mxu0 %v1415
      %v2292 = vpop.f32.mrf.mxu0
      %v2293 = vadd.f32 %v489, %v2292
      %v2294 = vpop.f32.mrf.mxu0
      %v2295 = vpop.f32.mrf.mxu0
      %v2296 = vadd.f32 %v489, %v2295
      %v2297 = vpop.f32.mrf.mxu0
      %2298 = vmatprep.mubr.bf16.mxu0 0
      %2299 = vmatmul.mubr.bf16.gmra.mxu0 %v1418
      %v2300 = vpop.f32.mrf.mxu0
      %v2301 = vadd.f32 %v489, %v2300
      %v2302 = vpop.f32.mrf.mxu0
      %v2303 = vpop.f32.mrf.mxu0
      %v2304 = vadd.f32 %v489, %v2303
      %v2305 = vpop.f32.mrf.mxu0
      %2306 = vmatprep.mubr.bf16.mxu0 0
      %2307 = vmatmul.mubr.bf16.gmra.mxu0 %v1421
      %v2308 = vpop.f32.mrf.mxu0
      %v2309 = vadd.f32 %v489, %v2308
      %v2310 = vpop.f32.mrf.mxu0
      %v2311 = vpop.f32.mrf.mxu0
      %v2312 = vadd.f32 %v489, %v2311
      %v2313 = vpop.f32.mrf.mxu0
      %2314 = vmatprep.mubr.bf16.mxu0 0
      %2315 = vmatmul.mubr.bf16.gmra.mxu0 %v1424
      %v2316 = vpop.f32.mrf.mxu0
      %v2317 = vadd.f32 %v489, %v2316
      %v2318 = vpop.f32.mrf.mxu0
      %v2319 = vpop.f32.mrf.mxu0
      %v2320 = vadd.f32 %v489, %v2319
      %v2321 = vpop.f32.mrf.mxu0
      %2322 = vmatprep.mubr.bf16.mxu0 0
      %2323 = vmatmul.mubr.bf16.gmra.mxu0 %v1427
      %v2324 = vpop.f32.mrf.mxu0
      %v2325 = vadd.f32 %v489, %v2324
      %v2326 = vpop.f32.mrf.mxu0
      %v2327 = vpop.f32.mrf.mxu0
      %v2328 = vadd.f32 %v489, %v2327
      %v2329 = vpop.f32.mrf.mxu0
      %2330 = vmatprep.mubr.bf16.mxu0 0
      %2331 = vmatmul.mubr.bf16.gmra.mxu0 %v1430
      %v2332 = vpop.f32.mrf.mxu0
      %v2333 = vadd.f32 %v489, %v2332
      %v2334 = vpop.f32.mrf.mxu0
      %v2335 = vpop.f32.mrf.mxu0
      %v2336 = vadd.f32 %v489, %v2335
      %v2337 = vpop.f32.mrf.mxu0
      %2338 = vmatprep.mubr.bf16.mxu0 0
      %2339 = vmatmul.mubr.bf16.gmra.mxu0 %v1433
      %v2340 = vpop.f32.mrf.mxu0
      %v2341 = vadd.f32 %v489, %v2340
      %v2342 = vpop.f32.mrf.mxu0
      %v2343 = vpop.f32.mrf.mxu0
      %v2344 = vadd.f32 %v489, %v2343
      %v2345 = vpop.f32.mrf.mxu0
      %2346 = vmatprep.mubr.bf16.mxu0 0
      %2347 = vmatmul.mubr.bf16.gmra.mxu0 %v1436
      %v2348 = vpop.f32.mrf.mxu0
      %v2349 = vadd.f32 %v489, %v2348
      %v2350 = vpop.f32.mrf.mxu0
      %v2351 = vpop.f32.mrf.mxu0
      %v2352 = vadd.f32 %v489, %v2351
      %v2353 = vpop.f32.mrf.mxu0
      %2354 = vmatprep.mubr.bf16.mxu0 0
      %2355 = vmatmul.mubr.bf16.gmra.mxu0 %v1439
      %v2356 = vpop.f32.mrf.mxu0
      %v2357 = vadd.f32 %v489, %v2356
      %v2358 = vpop.f32.mrf.mxu0
      %v2359 = vpop.f32.mrf.mxu0
      %v2360 = vadd.f32 %v489, %v2359
      %v2361 = vpop.f32.mrf.mxu0
      %2362 = vmatprep.mubr.bf16.mxu0 0
      %2363 = vmatmul.mubr.bf16.gmra.mxu0 %v1442
      %v2364 = vpop.f32.mrf.mxu0
      %v2365 = vadd.f32 %v489, %v2364
      %v2366 = vpop.f32.mrf.mxu0
      %v2367 = vpop.f32.mrf.mxu0
      %v2368 = vadd.f32 %v489, %v2367
      %v2369 = vpop.f32.mrf.mxu0
      %2370 = vmatprep.mubr.bf16.mxu0 0
      %2371 = vmatmul.mubr.bf16.gmra.mxu0 %v1445
      %v2372 = vpop.f32.mrf.mxu0
      %v2373 = vadd.f32 %v489, %v2372
      %v2374 = vpop.f32.mrf.mxu0
      %v2375 = vpop.f32.mrf.mxu0
      %v2376 = vadd.f32 %v489, %v2375
      %v2377 = vpop.f32.mrf.mxu0
      %2378 = vmatprep.mubr.bf16.mxu0 0
      %2379 = vmatmul.mubr.bf16.gmra.mxu0 %v1448
      %v2380 = vpop.f32.mrf.mxu0
      %v2381 = vadd.f32 %v489, %v2380
      %v2382 = vpop.f32.mrf.mxu0
      %v2383 = vpop.f32.mrf.mxu0
      %v2384 = vadd.f32 %v489, %v2383
      %v2385 = vpop.f32.mrf.mxu0
      %2386 = vmatprep.mubr.bf16.mxu0 0
      %2387 = vmatmul.mubr.bf16.gmra.mxu0 %v1451
      %v2388 = vpop.f32.mrf.mxu0
      %v2389 = vadd.f32 %v489, %v2388
      %v2390 = vpop.f32.mrf.mxu0
      %v2391 = vpop.f32.mrf.mxu0
      %v2392 = vadd.f32 %v489, %v2391
      %v2393 = vpop.f32.mrf.mxu0
      %2394 = vmatprep.mubr.bf16.mxu0 0
      %2395 = vmatmul.mubr.bf16.gmra.mxu0 %v1454
      %v2396 = vpop.f32.mrf.mxu0
      %v2397 = vadd.f32 %v489, %v2396
      %v2398 = vpop.f32.mrf.mxu0
      %v2399 = vpop.f32.mrf.mxu0
      %v2400 = vadd.f32 %v489, %v2399
      %v2401 = vpop.f32.mrf.mxu0
      %2402 = vmatprep.mubr.bf16.mxu0 0
      %2403 = vmatmul.mubr.bf16.gmra.mxu0 %v1457
      %v2404 = vpop.f32.mrf.mxu0
      %v2405 = vadd.f32 %v489, %v2404
      %v2406 = vpop.f32.mrf.mxu0
      %v2407 = vpop.f32.mrf.mxu0
      %v2408 = vadd.f32 %v489, %v2407
      %v2409 = vpop.f32.mrf.mxu0
      %2410 = vmatprep.mubr.bf16.mxu0 0
      %2411 = vmatmul.mubr.bf16.gmra.mxu0 %v1460
      %v2412 = vpop.f32.mrf.mxu0
      %v2413 = vadd.f32 %v489, %v2412
      %v2414 = vpop.f32.mrf.mxu0
      %v2415 = vpop.f32.mrf.mxu0
      %v2416 = vadd.f32 %v489, %v2415
      %v2417 = vpop.f32.mrf.mxu0
      %2418 = vmatprep.mubr.bf16.mxu0 0
      %2419 = vmatmul.mubr.bf16.gmra.mxu0 %v1463
      %v2420 = vpop.f32.mrf.mxu0
      %v2421 = vadd.f32 %v489, %v2420
      %v2422 = vpop.f32.mrf.mxu0
      %v2423 = vpop.f32.mrf.mxu0
      %v2424 = vadd.f32 %v489, %v2423
      %v2425 = vpop.f32.mrf.mxu0
      %2426 = vmatprep.mubr.bf16.mxu0 0
      %2427 = vmatmul.mubr.bf16.gmra.mxu0 %v1466
      %v2428 = vpop.f32.mrf.mxu0
      %v2429 = vadd.f32 %v489, %v2428
      %v2430 = vpop.f32.mrf.mxu0
      %v2431 = vpop.f32.mrf.mxu0
      %v2432 = vadd.f32 %v489, %v2431
      %v2433 = vpop.f32.mrf.mxu0
      %2434 = vmatprep.mubr.bf16.mxu0 0
      %2435 = vmatmul.mubr.bf16.gmra.mxu0 %v1469
      %v2436 = vpop.f32.mrf.mxu0
      %v2437 = vadd.f32 %v489, %v2436
      %v2438 = vpop.f32.mrf.mxu0
      %v2439 = vpop.f32.mrf.mxu0
      %v2440 = vadd.f32 %v489, %v2439
      %v2441 = vpop.f32.mrf.mxu0
      %2442 = vmatprep.mubr.bf16.mxu0 0
      %2443 = vmatmul.mubr.bf16.gmra.mxu0 %v1472
      %v2444 = vpop.f32.mrf.mxu0
      %v2445 = vadd.f32 %v489, %v2444
      %v2446 = vpop.f32.mrf.mxu0
      %v2447 = vpop.f32.mrf.mxu0
      %v2448 = vadd.f32 %v489, %v2447
      %v2449 = vpop.f32.mrf.mxu0
      %2450 = vmatprep.mubr.bf16.mxu0 0
      %2451 = vmatmul.mubr.bf16.gmra.mxu0 %v1475
      %v2452 = vpop.f32.mrf.mxu0
      %v2453 = vadd.f32 %v489, %v2452
      %v2454 = vpop.f32.mrf.mxu0
      %v2455 = vpop.f32.mrf.mxu0
      %v2456 = vadd.f32 %v489, %v2455
      %v2457 = vpop.f32.mrf.mxu0
      %2458 = vmatprep.mubr.bf16.mxu0 0
      %2459 = vmatmul.mubr.bf16.gmra.mxu0 %v1478
      %v2460 = vpop.f32.mrf.mxu0
      %v2461 = vadd.f32 %v489, %v2460
      %v2462 = vpop.f32.mrf.mxu0
      %v2463 = vpop.f32.mrf.mxu0
      %v2464 = vadd.f32 %v489, %v2463
      %v2465 = vpop.f32.mrf.mxu0
      %2466 = vmatprep.mubr.bf16.mxu0 0
      %2467 = vmatmul.mubr.bf16.gmra.mxu0 %v1481
      %v2468 = vpop.f32.mrf.mxu0
      %v2469 = vadd.f32 %v489, %v2468
      %v2470 = vpop.f32.mrf.mxu0
      %v2471 = vpop.f32.mrf.mxu0
      %v2472 = vadd.f32 %v489, %v2471
      %v2473 = vpop.f32.mrf.mxu0
      %2474 = vmatprep.mubr.bf16.mxu0 0
      %2475 = vmatmul.mubr.bf16.gmra.mxu0 %v1484
      %v2476 = vpop.f32.mrf.mxu0
      %v2477 = vadd.f32 %v489, %v2476
      %v2478 = vpop.f32.mrf.mxu0
      %v2479 = vpop.f32.mrf.mxu0
      %v2480 = vadd.f32 %v489, %v2479
      %v2481 = vpop.f32.mrf.mxu0
      %2482 = vmatprep.mubr.bf16.mxu0 0
      %2483 = vmatmul.mubr.bf16.gmra.mxu0 %v1487
      %v2484 = vpop.f32.mrf.mxu0
      %v2485 = vadd.f32 %v489, %v2484
      %v2486 = vpop.f32.mrf.mxu0
      %v2487 = vpop.f32.mrf.mxu0
      %v2488 = vadd.f32 %v489, %v2487
      %v2489 = vpop.f32.mrf.mxu0
      %2490 = vmatprep.mubr.bf16.mxu0 0
      %2491 = vmatmul.mubr.bf16.gmra.mxu0 %v1490
      %v2492 = vpop.f32.mrf.mxu0
      %v2493 = vadd.f32 %v489, %v2492
      %v2494 = vpop.f32.mrf.mxu0
      %v2495 = vpop.f32.mrf.mxu0
      %v2496 = vadd.f32 %v489, %v2495
      %v2497 = vpop.f32.mrf.mxu0
      %2498 = vmatprep.mubr.bf16.mxu0 0
      %2499 = vmatmul.mubr.bf16.gmra.mxu0 %v1493
      %v2500 = vpop.f32.mrf.mxu0
      %v2501 = vadd.f32 %v489, %v2500
      %v2502 = vpop.f32.mrf.mxu0
      %v2503 = vpop.f32.mrf.mxu0
      %v2504 = vadd.f32 %v489, %v2503
      %v2505 = vpop.f32.mrf.mxu0
      %2506 = vmatprep.mubr.bf16.mxu0 0
      %2507 = vmatmul.mubr.bf16.gmra.mxu0 %v1496
      %v2508 = vpop.f32.mrf.mxu0
      %v2509 = vadd.f32 %v489, %v2508
      %v2510 = vpop.f32.mrf.mxu0
      %v2511 = vpop.f32.mrf.mxu0
      %v2512 = vadd.f32 %v489, %v2511
      %v2513 = vpop.f32.mrf.mxu0
      %2514 = vmatprep.mubr.bf16.mxu0 0
      %2515 = vmatmul.mubr.bf16.gmra.mxu0 %v1499
      %v2516 = vpop.f32.mrf.mxu0
      %v2517 = vadd.f32 %v489, %v2516
      %v2518 = vpop.f32.mrf.mxu0
      %v2519 = vpop.f32.mrf.mxu0
      %v2520 = vadd.f32 %v489, %v2519
      %v2521 = vpop.f32.mrf.mxu0
      %2522 = vmatprep.mubr.bf16.mxu0 0
      %2523 = vmatmul.mubr.bf16.gmra.mxu0 %v1502
      %v2524 = vpop.f32.mrf.mxu0
      %v2525 = vadd.f32 %v489, %v2524
      %v2526 = vpop.f32.mrf.mxu0
      %v2527 = vpop.f32.mrf.mxu0
      %v2528 = vadd.f32 %v489, %v2527
      %v2529 = vpop.f32.mrf.mxu0
      %2530 = vmatprep.mubr.bf16.mxu0 0
      %2531 = vmatmul.mubr.bf16.gmra.mxu0 %v1505
      %v2532 = vpop.f32.mrf.mxu0
      %v2533 = vadd.f32 %v489, %v2532
      %v2534 = vpop.f32.mrf.mxu0
      %v2535 = vpop.f32.mrf.mxu0
      %v2536 = vadd.f32 %v489, %v2535
      %v2537 = vpop.f32.mrf.mxu0
      %2538 = vmatprep.mubr.bf16.mxu0 0
      %2539 = vmatmul.mubr.bf16.gmra.mxu0 %v1508
      %v2540 = vpop.f32.mrf.mxu0
      %v2541 = vadd.f32 %v489, %v2540
      %v2542 = vpop.f32.mrf.mxu0
      %v2543 = vpop.f32.mrf.mxu0
      %v2544 = vadd.f32 %v489, %v2543
      %v2545 = vpop.f32.mrf.mxu0
      %2546 = vmatprep.mubr.bf16.mxu0 0
      %2547 = vmatmul.mubr.bf16.gmra.mxu0 %v1511
      %v2548 = vpop.f32.mrf.mxu0
      %v2549 = vadd.f32 %v489, %v2548
      %v2550 = vpop.f32.mrf.mxu0
      %v2551 = vpop.f32.mrf.mxu0
      %v2552 = vadd.f32 %v489, %v2551
      %v2553 = vpop.f32.mrf.mxu0
      %2554 = vmatprep.mubr.bf16.mxu0 0
      %2555 = vmatmul.mubr.bf16.gmra.mxu0 %v1514
      %v2556 = vpop.f32.mrf.mxu0
      %v2557 = vadd.f32 %v489, %v2556
      %v2558 = vpop.f32.mrf.mxu0
      %v2559 = vpop.f32.mrf.mxu0
      %v2560 = vadd.f32 %v489, %v2559
      %v2561 = vpop.f32.mrf.mxu0
      %2562 = vmatprep.mubr.bf16.mxu0 0
      %2563 = vmatmul.mubr.bf16.gmra.mxu0 %v1517
      %v2564 = vpop.f32.mrf.mxu0
      %v2565 = vadd.f32 %v489, %v2564
      %v2566 = vpop.f32.mrf.mxu0
      %v2567 = vpop.f32.mrf.mxu0
      %v2568 = vadd.f32 %v489, %v2567
      %v2569 = vpop.f32.mrf.mxu0
      %2570 = vmatprep.mubr.bf16.mxu0 0
      %2571 = vmatmul.mubr.bf16.gmra.mxu0 %v1520
      %v2572 = vpop.f32.mrf.mxu0
      %v2573 = vadd.f32 %v489, %v2572
      %v2574 = vpop.f32.mrf.mxu0
      %v2575 = vpop.f32.mrf.mxu0
      %v2576 = vadd.f32 %v489, %v2575
      %v2577 = vpop.f32.mrf.mxu0
      %2578 = vdwg.mxu0
      %v2579 = vpack.c.bf16 %v1560, %v1557
      %v2580 = vpack.c.bf16 %v1568, %v1565
      %v2581 = vpack.c.bf16 %v1576, %v1573
      %v2582 = vpack.c.bf16 %v1584, %v1581
      %v2583 = vpack.c.bf16 %v1592, %v1589
      %v2584 = vpack.c.bf16 %v1600, %v1597
      %v2585 = vpack.c.bf16 %v1608, %v1605
      %v2586 = vpack.c.bf16 %v1616, %v1613
      %v2587 = vpack.c.bf16 %v1624, %v1621
      %v2588 = vpack.c.bf16 %v1632, %v1629
      %v2589 = vpack.c.bf16 %v1640, %v1637
      %v2590 = vpack.c.bf16 %v1648, %v1645
      %v2591 = vpack.c.bf16 %v1656, %v1653
      %v2592 = vpack.c.bf16 %v1664, %v1661
      %v2593 = vpack.c.bf16 %v1672, %v1669
      %v2594 = vpack.c.bf16 %v1680, %v1677
      %v2595 = vpack.c.bf16 %v1688, %v1685
      %v2596 = vpack.c.bf16 %v1696, %v1693
      %v2597 = vpack.c.bf16 %v1704, %v1701
      %v2598 = vpack.c.bf16 %v1712, %v1709
      %v2599 = vpack.c.bf16 %v1720, %v1717
      %v2600 = vpack.c.bf16 %v1728, %v1725
      %v2601 = vpack.c.bf16 %v1736, %v1733
      %v2602 = vpack.c.bf16 %v1744, %v1741
      %v2603 = vpack.c.bf16 %v1752, %v1749
      %v2604 = vpack.c.bf16 %v1760, %v1757
      %v2605 = vpack.c.bf16 %v1768, %v1765
      %v2606 = vpack.c.bf16 %v1776, %v1773
      %v2607 = vpack.c.bf16 %v1784, %v1781
      %v2608 = vpack.c.bf16 %v1792, %v1789
      %v2609 = vpack.c.bf16 %v1800, %v1797
      %v2610 = vpack.c.bf16 %v1808, %v1805
      %v2611 = vpack.c.bf16 %v1816, %v1813
      %v2612 = vpack.c.bf16 %v1824, %v1821
      %v2613 = vpack.c.bf16 %v1832, %v1829
      %v2614 = vpack.c.bf16 %v1840, %v1837
      %v2615 = vpack.c.bf16 %v1848, %v1845
      %v2616 = vpack.c.bf16 %v1856, %v1853
      %v2617 = vpack.c.bf16 %v1864, %v1861
      %v2618 = vpack.c.bf16 %v1872, %v1869
      %v2619 = vpack.c.bf16 %v1880, %v1877
      %v2620 = vpack.c.bf16 %v1888, %v1885
      %v2621 = vpack.c.bf16 %v1896, %v1893
      %v2622 = vpack.c.bf16 %v1904, %v1901
      %v2623 = vpack.c.bf16 %v1912, %v1909
      %v2624 = vpack.c.bf16 %v1920, %v1917
      %v2625 = vpack.c.bf16 %v1928, %v1925
      %v2626 = vpack.c.bf16 %v1936, %v1933
      %v2627 = vpack.c.bf16 %v1944, %v1941
      %v2628 = vpack.c.bf16 %v1952, %v1949
      %v2629 = vpack.c.bf16 %v1960, %v1957
      %v2630 = vpack.c.bf16 %v1968, %v1965
      %v2631 = vpack.c.bf16 %v1976, %v1973
      %v2632 = vpack.c.bf16 %v1984, %v1981
      %v2633 = vpack.c.bf16 %v1992, %v1989
      %v2634 = vpack.c.bf16 %v2000, %v1997
      %v2635 = vpack.c.bf16 %v2008, %v2005
      %v2636 = vpack.c.bf16 %v2016, %v2013
      %v2637 = vpack.c.bf16 %v2024, %v2021
      %v2638 = vpack.c.bf16 %v2032, %v2029
      %v2639 = vpack.c.bf16 %v2040, %v2037
      %v2640 = vpack.c.bf16 %v2048, %v2045
      %v2641 = vpack.c.bf16 %v2056, %v2053
      %v2642 = vpack.c.bf16 %v2064, %v2061
      %v2643 = vpack.c.bf16 %v2072, %v2069
      %v2644 = vpack.c.bf16 %v2080, %v2077
      %v2645 = vpack.c.bf16 %v2088, %v2085
      %v2646 = vpack.c.bf16 %v2096, %v2093
      %v2647 = vpack.c.bf16 %v2104, %v2101
      %v2648 = vpack.c.bf16 %v2112, %v2109
      %v2649 = vpack.c.bf16 %v2120, %v2117
      %v2650 = vpack.c.bf16 %v2128, %v2125
      %v2651 = vpack.c.bf16 %v2136, %v2133
      %v2652 = vpack.c.bf16 %v2144, %v2141
      %v2653 = vpack.c.bf16 %v2152, %v2149
      %v2654 = vpack.c.bf16 %v2160, %v2157
      %v2655 = vpack.c.bf16 %v2168, %v2165
      %v2656 = vpack.c.bf16 %v2176, %v2173
      %v2657 = vpack.c.bf16 %v2184, %v2181
      %v2658 = vpack.c.bf16 %v2192, %v2189
      %v2659 = vpack.c.bf16 %v2200, %v2197
      %v2660 = vpack.c.bf16 %v2208, %v2205
      %v2661 = vpack.c.bf16 %v2216, %v2213
      %v2662 = vpack.c.bf16 %v2224, %v2221
      %v2663 = vpack.c.bf16 %v2232, %v2229
      %v2664 = vpack.c.bf16 %v2240, %v2237
      %v2665 = vpack.c.bf16 %v2248, %v2245
      %v2666 = vpack.c.bf16 %v2256, %v2253
      %v2667 = vpack.c.bf16 %v2264, %v2261
      %v2668 = vpack.c.bf16 %v2272, %v2269
      %v2669 = vpack.c.bf16 %v2280, %v2277
      %v2670 = vpack.c.bf16 %v2288, %v2285
      %v2671 = vpack.c.bf16 %v2296, %v2293
      %v2672 = vpack.c.bf16 %v2304, %v2301
      %v2673 = vpack.c.bf16 %v2312, %v2309
      %v2674 = vpack.c.bf16 %v2320, %v2317
      %v2675 = vpack.c.bf16 %v2328, %v2325
      %v2676 = vpack.c.bf16 %v2336, %v2333
      %v2677 = vpack.c.bf16 %v2344, %v2341
      %v2678 = vpack.c.bf16 %v2352, %v2349
      %v2679 = vpack.c.bf16 %v2360, %v2357
      %v2680 = vpack.c.bf16 %v2368, %v2365
      %v2681 = vpack.c.bf16 %v2376, %v2373
      %v2682 = vpack.c.bf16 %v2384, %v2381
      %v2683 = vpack.c.bf16 %v2392, %v2389
      %v2684 = vpack.c.bf16 %v2400, %v2397
      %v2685 = vpack.c.bf16 %v2408, %v2405
      %v2686 = vpack.c.bf16 %v2416, %v2413
      %v2687 = vpack.c.bf16 %v2424, %v2421
      %v2688 = vpack.c.bf16 %v2432, %v2429
      %v2689 = vpack.c.bf16 %v2440, %v2437
      %v2690 = vpack.c.bf16 %v2448, %v2445
      %v2691 = vpack.c.bf16 %v2456, %v2453
      %v2692 = vpack.c.bf16 %v2464, %v2461
      %v2693 = vpack.c.bf16 %v2472, %v2469
      %v2694 = vpack.c.bf16 %v2480, %v2477
      %v2695 = vpack.c.bf16 %v2488, %v2485
      %v2696 = vpack.c.bf16 %v2496, %v2493
      %v2697 = vpack.c.bf16 %v2504, %v2501
      %v2698 = vpack.c.bf16 %v2512, %v2509
      %v2699 = vpack.c.bf16 %v2520, %v2517
      %v2700 = vpack.c.bf16 %v2528, %v2525
      %v2701 = vpack.c.bf16 %v2536, %v2533
      %v2702 = vpack.c.bf16 %v2544, %v2541
      %v2703 = vpack.c.bf16 %v2552, %v2549
      %v2704 = vpack.c.bf16 %v2560, %v2557
      %v2705 = vpack.c.bf16 %v2568, %v2565
      %v2706 = vpack.c.bf16 %v2576, %v2573
      %v2835 = vunpack.c.l.b16 %v2579
      %v2836 = vunpack.c.h.b16 %v2579
      %v2837 = vunpack.c.l.b16 %v2580
      %v2838 = vunpack.c.h.b16 %v2580
      %v2839 = vunpack.c.l.b16 %v2581
      %v2840 = vunpack.c.h.b16 %v2581
      %v2841 = vunpack.c.l.b16 %v2582
      %v2842 = vunpack.c.h.b16 %v2582
      %v2843 = vunpack.c.l.b16 %v2583
      %v2844 = vunpack.c.h.b16 %v2583
      %v2845 = vunpack.c.l.b16 %v2584
      %v2846 = vunpack.c.h.b16 %v2584
      %v2847 = vunpack.c.l.b16 %v2585
      %v2848 = vunpack.c.h.b16 %v2585
      %v2849 = vunpack.c.l.b16 %v2586
      %v2850 = vunpack.c.h.b16 %v2586
      %v2851 = vunpack.c.l.b16 %v2587
      %v2852 = vunpack.c.h.b16 %v2587
      %v2853 = vunpack.c.l.b16 %v2588
      %v2854 = vunpack.c.h.b16 %v2588
      %v2855 = vunpack.c.l.b16 %v2589
      %v2856 = vunpack.c.h.b16 %v2589
      %v2857 = vunpack.c.l.b16 %v2590
      %v2858 = vunpack.c.h.b16 %v2590
      %v2859 = vunpack.c.l.b16 %v2591
      %v2860 = vunpack.c.h.b16 %v2591
      %v2861 = vunpack.c.l.b16 %v2592
      %v2862 = vunpack.c.h.b16 %v2592
      %v2863 = vunpack.c.l.b16 %v2593
      %v2864 = vunpack.c.h.b16 %v2593
      %v2865 = vunpack.c.l.b16 %v2594
      %v2866 = vunpack.c.h.b16 %v2594
      %v2867 = vunpack.c.l.b16 %v2595
      %v2868 = vunpack.c.h.b16 %v2595
      %v2869 = vunpack.c.l.b16 %v2596
      %v2870 = vunpack.c.h.b16 %v2596
      %v2871 = vunpack.c.l.b16 %v2597
      %v2872 = vunpack.c.h.b16 %v2597
      %v2873 = vunpack.c.l.b16 %v2598
      %v2874 = vunpack.c.h.b16 %v2598
      %v2875 = vunpack.c.l.b16 %v2599
      %v2876 = vunpack.c.h.b16 %v2599
      %v2877 = vunpack.c.l.b16 %v2600
      %v2878 = vunpack.c.h.b16 %v2600
      %v2879 = vunpack.c.l.b16 %v2601
      %v2880 = vunpack.c.h.b16 %v2601
      %v2881 = vunpack.c.l.b16 %v2602
      %v2882 = vunpack.c.h.b16 %v2602
      %v2883 = vunpack.c.l.b16 %v2603
      %v2884 = vunpack.c.h.b16 %v2603
      %v2885 = vunpack.c.l.b16 %v2604
      %v2886 = vunpack.c.h.b16 %v2604
      %v2887 = vunpack.c.l.b16 %v2605
      %v2888 = vunpack.c.h.b16 %v2605
      %v2889 = vunpack.c.l.b16 %v2606
      %v2890 = vunpack.c.h.b16 %v2606
      %v2891 = vunpack.c.l.b16 %v2607
      %v2892 = vunpack.c.h.b16 %v2607
      %v2893 = vunpack.c.l.b16 %v2608
      %v2894 = vunpack.c.h.b16 %v2608
      %v2895 = vunpack.c.l.b16 %v2609
      %v2896 = vunpack.c.h.b16 %v2609
      %v2897 = vunpack.c.l.b16 %v2610
      %v2898 = vunpack.c.h.b16 %v2610
      %v2899 = vunpack.c.l.b16 %v2611
      %v2900 = vunpack.c.h.b16 %v2611
      %v2901 = vunpack.c.l.b16 %v2612
      %v2902 = vunpack.c.h.b16 %v2612
      %v2903 = vunpack.c.l.b16 %v2613
      %v2904 = vunpack.c.h.b16 %v2613
      %v2905 = vunpack.c.l.b16 %v2614
      %v2906 = vunpack.c.h.b16 %v2614
      %v2907 = vunpack.c.l.b16 %v2615
      %v2908 = vunpack.c.h.b16 %v2615
      %v2909 = vunpack.c.l.b16 %v2616
      %v2910 = vunpack.c.h.b16 %v2616
      %v2911 = vunpack.c.l.b16 %v2617
      %v2912 = vunpack.c.h.b16 %v2617
      %v2913 = vunpack.c.l.b16 %v2618
      %v2914 = vunpack.c.h.b16 %v2618
      %v2915 = vunpack.c.l.b16 %v2619
      %v2916 = vunpack.c.h.b16 %v2619
      %v2917 = vunpack.c.l.b16 %v2620
      %v2918 = vunpack.c.h.b16 %v2620
      %v2919 = vunpack.c.l.b16 %v2621
      %v2920 = vunpack.c.h.b16 %v2621
      %v2921 = vunpack.c.l.b16 %v2622
      %v2922 = vunpack.c.h.b16 %v2622
      %v2923 = vunpack.c.l.b16 %v2623
      %v2924 = vunpack.c.h.b16 %v2623
      %v2925 = vunpack.c.l.b16 %v2624
      %v2926 = vunpack.c.h.b16 %v2624
      %v2927 = vunpack.c.l.b16 %v2625
      %v2928 = vunpack.c.h.b16 %v2625
      %v2929 = vunpack.c.l.b16 %v2626
      %v2930 = vunpack.c.h.b16 %v2626
      %v2931 = vunpack.c.l.b16 %v2627
      %v2932 = vunpack.c.h.b16 %v2627
      %v2933 = vunpack.c.l.b16 %v2628
      %v2934 = vunpack.c.h.b16 %v2628
      %v2935 = vunpack.c.l.b16 %v2629
      %v2936 = vunpack.c.h.b16 %v2629
      %v2937 = vunpack.c.l.b16 %v2630
      %v2938 = vunpack.c.h.b16 %v2630
      %v2939 = vunpack.c.l.b16 %v2631
      %v2940 = vunpack.c.h.b16 %v2631
      %v2941 = vunpack.c.l.b16 %v2632
      %v2942 = vunpack.c.h.b16 %v2632
      %v2943 = vunpack.c.l.b16 %v2633
      %v2944 = vunpack.c.h.b16 %v2633
      %v2945 = vunpack.c.l.b16 %v2634
      %v2946 = vunpack.c.h.b16 %v2634
      %v2947 = vunpack.c.l.b16 %v2635
      %v2948 = vunpack.c.h.b16 %v2635
      %v2949 = vunpack.c.l.b16 %v2636
      %v2950 = vunpack.c.h.b16 %v2636
      %v2951 = vunpack.c.l.b16 %v2637
      %v2952 = vunpack.c.h.b16 %v2637
      %v2953 = vunpack.c.l.b16 %v2638
      %v2954 = vunpack.c.h.b16 %v2638
      %v2955 = vunpack.c.l.b16 %v2639
      %v2956 = vunpack.c.h.b16 %v2639
      %v2957 = vunpack.c.l.b16 %v2640
      %v2958 = vunpack.c.h.b16 %v2640
      %v2959 = vunpack.c.l.b16 %v2641
      %v2960 = vunpack.c.h.b16 %v2641
      %v2961 = vunpack.c.l.b16 %v2642
      %v2962 = vunpack.c.h.b16 %v2642
      %v2963 = vunpack.c.l.b16 %v2643
      %v2964 = vunpack.c.h.b16 %v2643
      %v2965 = vunpack.c.l.b16 %v2644
      %v2966 = vunpack.c.h.b16 %v2644
      %v2967 = vunpack.c.l.b16 %v2645
      %v2968 = vunpack.c.h.b16 %v2645
      %v2969 = vunpack.c.l.b16 %v2646
      %v2970 = vunpack.c.h.b16 %v2646
      %v2971 = vunpack.c.l.b16 %v2647
      %v2972 = vunpack.c.h.b16 %v2647
      %v2973 = vunpack.c.l.b16 %v2648
      %v2974 = vunpack.c.h.b16 %v2648
      %v2975 = vunpack.c.l.b16 %v2649
      %v2976 = vunpack.c.h.b16 %v2649
      %v2977 = vunpack.c.l.b16 %v2650
      %v2978 = vunpack.c.h.b16 %v2650
      %v2979 = vunpack.c.l.b16 %v2651
      %v2980 = vunpack.c.h.b16 %v2651
      %v2981 = vunpack.c.l.b16 %v2652
      %v2982 = vunpack.c.h.b16 %v2652
      %v2983 = vunpack.c.l.b16 %v2653
      %v2984 = vunpack.c.h.b16 %v2653
      %v2985 = vunpack.c.l.b16 %v2654
      %v2986 = vunpack.c.h.b16 %v2654
      %v2987 = vunpack.c.l.b16 %v2655
      %v2988 = vunpack.c.h.b16 %v2655
      %v2989 = vunpack.c.l.b16 %v2656
      %v2990 = vunpack.c.h.b16 %v2656
      %v2991 = vunpack.c.l.b16 %v2657
      %v2992 = vunpack.c.h.b16 %v2657
      %v2993 = vunpack.c.l.b16 %v2658
      %v2994 = vunpack.c.h.b16 %v2658
      %v2995 = vunpack.c.l.b16 %v2659
      %v2996 = vunpack.c.h.b16 %v2659
      %v2997 = vunpack.c.l.b16 %v2660
      %v2998 = vunpack.c.h.b16 %v2660
      %v2999 = vunpack.c.l.b16 %v2661
      %v3000 = vunpack.c.h.b16 %v2661
      %v3001 = vunpack.c.l.b16 %v2662
      %v3002 = vunpack.c.h.b16 %v2662
      %v3003 = vunpack.c.l.b16 %v2663
      %v3004 = vunpack.c.h.b16 %v2663
      %v3005 = vunpack.c.l.b16 %v2664
      %v3006 = vunpack.c.h.b16 %v2664
      %v3007 = vunpack.c.l.b16 %v2665
      %v3008 = vunpack.c.h.b16 %v2665
      %v3009 = vunpack.c.l.b16 %v2666
      %v3010 = vunpack.c.h.b16 %v2666
      %v3011 = vunpack.c.l.b16 %v2667
      %v3012 = vunpack.c.h.b16 %v2667
      %v3013 = vunpack.c.l.b16 %v2668
      %v3014 = vunpack.c.h.b16 %v2668
      %v3015 = vunpack.c.l.b16 %v2669
      %v3016 = vunpack.c.h.b16 %v2669
      %v3017 = vunpack.c.l.b16 %v2670
      %v3018 = vunpack.c.h.b16 %v2670
      %v3019 = vunpack.c.l.b16 %v2671
      %v3020 = vunpack.c.h.b16 %v2671
      %v3021 = vunpack.c.l.b16 %v2672
      %v3022 = vunpack.c.h.b16 %v2672
      %v3023 = vunpack.c.l.b16 %v2673
      %v3024 = vunpack.c.h.b16 %v2673
      %v3025 = vunpack.c.l.b16 %v2674
      %v3026 = vunpack.c.h.b16 %v2674
      %v3027 = vunpack.c.l.b16 %v2675
      %v3028 = vunpack.c.h.b16 %v2675
      %v3029 = vunpack.c.l.b16 %v2676
      %v3030 = vunpack.c.h.b16 %v2676
      %v3031 = vunpack.c.l.b16 %v2677
      %v3032 = vunpack.c.h.b16 %v2677
      %v3033 = vunpack.c.l.b16 %v2678
      %v3034 = vunpack.c.h.b16 %v2678
      %v3035 = vunpack.c.l.b16 %v2679
      %v3036 = vunpack.c.h.b16 %v2679
      %v3037 = vunpack.c.l.b16 %v2680
      %v3038 = vunpack.c.h.b16 %v2680
      %v3039 = vunpack.c.l.b16 %v2681
      %v3040 = vunpack.c.h.b16 %v2681
      %v3041 = vunpack.c.l.b16 %v2682
      %v3042 = vunpack.c.h.b16 %v2682
      %v3043 = vunpack.c.l.b16 %v2683
      %v3044 = vunpack.c.h.b16 %v2683
      %v3045 = vunpack.c.l.b16 %v2684
      %v3046 = vunpack.c.h.b16 %v2684
      %v3047 = vunpack.c.l.b16 %v2685
      %v3048 = vunpack.c.h.b16 %v2685
      %v3049 = vunpack.c.l.b16 %v2686
      %v3050 = vunpack.c.h.b16 %v2686
      %v3051 = vunpack.c.l.b16 %v2687
      %v3052 = vunpack.c.h.b16 %v2687
      %v3053 = vunpack.c.l.b16 %v2688
      %v3054 = vunpack.c.h.b16 %v2688
      %v3055 = vunpack.c.l.b16 %v2689
      %v3056 = vunpack.c.h.b16 %v2689
      %v3057 = vunpack.c.l.b16 %v2690
      %v3058 = vunpack.c.h.b16 %v2690
      %v3059 = vunpack.c.l.b16 %v2691
      %v3060 = vunpack.c.h.b16 %v2691
      %v3061 = vunpack.c.l.b16 %v2692
      %v3062 = vunpack.c.h.b16 %v2692
      %v3063 = vunpack.c.l.b16 %v2693
      %v3064 = vunpack.c.h.b16 %v2693
      %v3065 = vunpack.c.l.b16 %v2694
      %v3066 = vunpack.c.h.b16 %v2694
      %v3067 = vunpack.c.l.b16 %v2695
      %v3068 = vunpack.c.h.b16 %v2695
      %v3069 = vunpack.c.l.b16 %v2696
      %v3070 = vunpack.c.h.b16 %v2696
      %v3071 = vunpack.c.l.b16 %v2697
      %v3072 = vunpack.c.h.b16 %v2697
      %v3073 = vunpack.c.l.b16 %v2698
      %v3074 = vunpack.c.h.b16 %v2698
      %v3075 = vunpack.c.l.b16 %v2699
      %v3076 = vunpack.c.h.b16 %v2699
      %v3077 = vunpack.c.l.b16 %v2700
      %v3078 = vunpack.c.h.b16 %v2700
      %v3079 = vunpack.c.l.b16 %v2701
      %v3080 = vunpack.c.h.b16 %v2701
      %v3081 = vunpack.c.l.b16 %v2702
      %v3082 = vunpack.c.h.b16 %v2702
      %v3083 = vunpack.c.l.b16 %v2703
      %v3084 = vunpack.c.h.b16 %v2703
      %v3085 = vunpack.c.l.b16 %v2704
      %v3086 = vunpack.c.h.b16 %v2704
      %v3087 = vunpack.c.l.b16 %v2705
      %v3088 = vunpack.c.h.b16 %v2705
      %v3089 = vunpack.c.l.b16 %v2706
      %v3090 = vunpack.c.h.b16 %v2706
      %v3091 = vpack.c.b16 %v2835, %v2835
      %v3092 = vpack.c.b16 %v2836, %v2836
      %v3093 = vpack.c.b16 %v2837, %v2837
      %v3094 = vpack.c.b16 %v2838, %v2838
      %v3095 = vpack.c.b16 %v2839, %v2839
      %v3096 = vpack.c.b16 %v2840, %v2840
      %v3097 = vpack.c.b16 %v2841, %v2841
      %v3098 = vpack.c.b16 %v2842, %v2842
      %v3099 = vpack.c.b16 %v2843, %v2843
      %v3100 = vpack.c.b16 %v2844, %v2844
      %v3101 = vpack.c.b16 %v2845, %v2845
      %v3102 = vpack.c.b16 %v2846, %v2846
      %v3103 = vpack.c.b16 %v2847, %v2847
      %v3104 = vpack.c.b16 %v2848, %v2848
      %v3105 = vpack.c.b16 %v2849, %v2849
      %v3106 = vpack.c.b16 %v2850, %v2850
      %v3107 = vpack.c.b16 %v2851, %v2851
      %v3108 = vpack.c.b16 %v2852, %v2852
      %v3109 = vpack.c.b16 %v2853, %v2853
      %v3110 = vpack.c.b16 %v2854, %v2854
      %v3111 = vpack.c.b16 %v2855, %v2855
      %v3112 = vpack.c.b16 %v2856, %v2856
      %v3113 = vpack.c.b16 %v2857, %v2857
      %v3114 = vpack.c.b16 %v2858, %v2858
      %v3115 = vpack.c.b16 %v2859, %v2859
      %v3116 = vpack.c.b16 %v2860, %v2860
      %v3117 = vpack.c.b16 %v2861, %v2861
      %v3118 = vpack.c.b16 %v2862, %v2862
      %v3119 = vpack.c.b16 %v2863, %v2863
      %v3120 = vpack.c.b16 %v2864, %v2864
      %v3121 = vpack.c.b16 %v2865, %v2865
      %v3122 = vpack.c.b16 %v2866, %v2866
      %v3123 = vpack.c.b16 %v2867, %v2867
      %v3124 = vpack.c.b16 %v2868, %v2868
      %v3125 = vpack.c.b16 %v2869, %v2869
      %v3126 = vpack.c.b16 %v2870, %v2870
      %v3127 = vpack.c.b16 %v2871, %v2871
      %v3128 = vpack.c.b16 %v2872, %v2872
      %v3129 = vpack.c.b16 %v2873, %v2873
      %v3130 = vpack.c.b16 %v2874, %v2874
      %v3131 = vpack.c.b16 %v2875, %v2875
      %v3132 = vpack.c.b16 %v2876, %v2876
      %v3133 = vpack.c.b16 %v2877, %v2877
      %v3134 = vpack.c.b16 %v2878, %v2878
      %v3135 = vpack.c.b16 %v2879, %v2879
      %v3136 = vpack.c.b16 %v2880, %v2880
      %v3137 = vpack.c.b16 %v2881, %v2881
      %v3138 = vpack.c.b16 %v2882, %v2882
      %v3139 = vpack.c.b16 %v2883, %v2883
      %v3140 = vpack.c.b16 %v2884, %v2884
      %v3141 = vpack.c.b16 %v2885, %v2885
      %v3142 = vpack.c.b16 %v2886, %v2886
      %v3143 = vpack.c.b16 %v2887, %v2887
      %v3144 = vpack.c.b16 %v2888, %v2888
      %v3145 = vpack.c.b16 %v2889, %v2889
      %v3146 = vpack.c.b16 %v2890, %v2890
      %v3147 = vpack.c.b16 %v2891, %v2891
      %v3148 = vpack.c.b16 %v2892, %v2892
      %v3149 = vpack.c.b16 %v2893, %v2893
      %v3150 = vpack.c.b16 %v2894, %v2894
      %v3151 = vpack.c.b16 %v2895, %v2895
      %v3152 = vpack.c.b16 %v2896, %v2896
      %v3153 = vpack.c.b16 %v2897, %v2897
      %v3154 = vpack.c.b16 %v2898, %v2898
      %v3155 = vpack.c.b16 %v2899, %v2899
      %v3156 = vpack.c.b16 %v2900, %v2900
      %v3157 = vpack.c.b16 %v2901, %v2901
      %v3158 = vpack.c.b16 %v2902, %v2902
      %v3159 = vpack.c.b16 %v2903, %v2903
      %v3160 = vpack.c.b16 %v2904, %v2904
      %v3161 = vpack.c.b16 %v2905, %v2905
      %v3162 = vpack.c.b16 %v2906, %v2906
      %v3163 = vpack.c.b16 %v2907, %v2907
      %v3164 = vpack.c.b16 %v2908, %v2908
      %v3165 = vpack.c.b16 %v2909, %v2909
      %v3166 = vpack.c.b16 %v2910, %v2910
      %v3167 = vpack.c.b16 %v2911, %v2911
      %v3168 = vpack.c.b16 %v2912, %v2912
      %v3169 = vpack.c.b16 %v2913, %v2913
      %v3170 = vpack.c.b16 %v2914, %v2914
      %v3171 = vpack.c.b16 %v2915, %v2915
      %v3172 = vpack.c.b16 %v2916, %v2916
      %v3173 = vpack.c.b16 %v2917, %v2917
      %v3174 = vpack.c.b16 %v2918, %v2918
      %v3175 = vpack.c.b16 %v2919, %v2919
      %v3176 = vpack.c.b16 %v2920, %v2920
      %v3177 = vpack.c.b16 %v2921, %v2921
      %v3178 = vpack.c.b16 %v2922, %v2922
      %v3179 = vpack.c.b16 %v2923, %v2923
      %v3180 = vpack.c.b16 %v2924, %v2924
      %v3181 = vpack.c.b16 %v2925, %v2925
      %v3182 = vpack.c.b16 %v2926, %v2926
      %v3183 = vpack.c.b16 %v2927, %v2927
      %v3184 = vpack.c.b16 %v2928, %v2928
      %v3185 = vpack.c.b16 %v2929, %v2929
      %v3186 = vpack.c.b16 %v2930, %v2930
      %v3187 = vpack.c.b16 %v2931, %v2931
      %v3188 = vpack.c.b16 %v2932, %v2932
      %v3189 = vpack.c.b16 %v2933, %v2933
      %v3190 = vpack.c.b16 %v2934, %v2934
      %v3191 = vpack.c.b16 %v2935, %v2935
      %v3192 = vpack.c.b16 %v2936, %v2936
      %v3193 = vpack.c.b16 %v2937, %v2937
      %v3194 = vpack.c.b16 %v2938, %v2938
      %v3195 = vpack.c.b16 %v2939, %v2939
      %v3196 = vpack.c.b16 %v2940, %v2940
      %v3197 = vpack.c.b16 %v2941, %v2941
      %v3198 = vpack.c.b16 %v2942, %v2942
      %v3199 = vpack.c.b16 %v2943, %v2943
      %v3200 = vpack.c.b16 %v2944, %v2944
      %v3201 = vpack.c.b16 %v2945, %v2945
      %v3202 = vpack.c.b16 %v2946, %v2946
      %v3203 = vpack.c.b16 %v2947, %v2947
      %v3204 = vpack.c.b16 %v2948, %v2948
      %v3205 = vpack.c.b16 %v2949, %v2949
      %v3206 = vpack.c.b16 %v2950, %v2950
      %v3207 = vpack.c.b16 %v2951, %v2951
      %v3208 = vpack.c.b16 %v2952, %v2952
      %v3209 = vpack.c.b16 %v2953, %v2953
      %v3210 = vpack.c.b16 %v2954, %v2954
      %v3211 = vpack.c.b16 %v2955, %v2955
      %v3212 = vpack.c.b16 %v2956, %v2956
      %v3213 = vpack.c.b16 %v2957, %v2957
      %v3214 = vpack.c.b16 %v2958, %v2958
      %v3215 = vpack.c.b16 %v2959, %v2959
      %v3216 = vpack.c.b16 %v2960, %v2960
      %v3217 = vpack.c.b16 %v2961, %v2961
      %v3218 = vpack.c.b16 %v2962, %v2962
      %v3219 = vpack.c.b16 %v2963, %v2963
      %v3220 = vpack.c.b16 %v2964, %v2964
      %v3221 = vpack.c.b16 %v2965, %v2965
      %v3222 = vpack.c.b16 %v2966, %v2966
      %v3223 = vpack.c.b16 %v2967, %v2967
      %v3224 = vpack.c.b16 %v2968, %v2968
      %v3225 = vpack.c.b16 %v2969, %v2969
      %v3226 = vpack.c.b16 %v2970, %v2970
      %v3227 = vpack.c.b16 %v2971, %v2971
      %v3228 = vpack.c.b16 %v2972, %v2972
      %v3229 = vpack.c.b16 %v2973, %v2973
      %v3230 = vpack.c.b16 %v2974, %v2974
      %v3231 = vpack.c.b16 %v2975, %v2975
      %v3232 = vpack.c.b16 %v2976, %v2976
      %v3233 = vpack.c.b16 %v2977, %v2977
      %v3234 = vpack.c.b16 %v2978, %v2978
      %v3235 = vpack.c.b16 %v2979, %v2979
      %v3236 = vpack.c.b16 %v2980, %v2980
      %v3237 = vpack.c.b16 %v2981, %v2981
      %v3238 = vpack.c.b16 %v2982, %v2982
      %v3239 = vpack.c.b16 %v2983, %v2983
      %v3240 = vpack.c.b16 %v2984, %v2984
      %v3241 = vpack.c.b16 %v2985, %v2985
      %v3242 = vpack.c.b16 %v2986, %v2986
      %v3243 = vpack.c.b16 %v2987, %v2987
      %v3244 = vpack.c.b16 %v2988, %v2988
      %v3245 = vpack.c.b16 %v2989, %v2989
      %v3246 = vpack.c.b16 %v2990, %v2990
      %v3247 = vpack.c.b16 %v2991, %v2991
      %v3248 = vpack.c.b16 %v2992, %v2992
      %v3249 = vpack.c.b16 %v2993, %v2993
      %v3250 = vpack.c.b16 %v2994, %v2994
      %v3251 = vpack.c.b16 %v2995, %v2995
      %v3252 = vpack.c.b16 %v2996, %v2996
      %v3253 = vpack.c.b16 %v2997, %v2997
      %v3254 = vpack.c.b16 %v2998, %v2998
      %v3255 = vpack.c.b16 %v2999, %v2999
      %v3256 = vpack.c.b16 %v3000, %v3000
      %v3257 = vpack.c.b16 %v3001, %v3001
      %v3258 = vpack.c.b16 %v3002, %v3002
      %v3259 = vpack.c.b16 %v3003, %v3003
      %v3260 = vpack.c.b16 %v3004, %v3004
      %v3261 = vpack.c.b16 %v3005, %v3005
      %v3262 = vpack.c.b16 %v3006, %v3006
      %v3263 = vpack.c.b16 %v3007, %v3007
      %v3264 = vpack.c.b16 %v3008, %v3008
      %v3265 = vpack.c.b16 %v3009, %v3009
      %v3266 = vpack.c.b16 %v3010, %v3010
      %v3267 = vpack.c.b16 %v3011, %v3011
      %v3268 = vpack.c.b16 %v3012, %v3012
      %v3269 = vpack.c.b16 %v3013, %v3013
      %v3270 = vpack.c.b16 %v3014, %v3014
      %v3271 = vpack.c.b16 %v3015, %v3015
      %v3272 = vpack.c.b16 %v3016, %v3016
      %v3273 = vpack.c.b16 %v3017, %v3017
      %v3274 = vpack.c.b16 %v3018, %v3018
      %v3275 = vpack.c.b16 %v3019, %v3019
      %v3276 = vpack.c.b16 %v3020, %v3020
      %v3277 = vpack.c.b16 %v3021, %v3021
      %v3278 = vpack.c.b16 %v3022, %v3022
      %v3279 = vpack.c.b16 %v3023, %v3023
      %v3280 = vpack.c.b16 %v3024, %v3024
      %v3281 = vpack.c.b16 %v3025, %v3025
      %v3282 = vpack.c.b16 %v3026, %v3026
      %v3283 = vpack.c.b16 %v3027, %v3027
      %v3284 = vpack.c.b16 %v3028, %v3028
      %v3285 = vpack.c.b16 %v3029, %v3029
      %v3286 = vpack.c.b16 %v3030, %v3030
      %v3287 = vpack.c.b16 %v3031, %v3031
      %v3288 = vpack.c.b16 %v3032, %v3032
      %v3289 = vpack.c.b16 %v3033, %v3033
      %v3290 = vpack.c.b16 %v3034, %v3034
      %v3291 = vpack.c.b16 %v3035, %v3035
      %v3292 = vpack.c.b16 %v3036, %v3036
      %v3293 = vpack.c.b16 %v3037, %v3037
      %v3294 = vpack.c.b16 %v3038, %v3038
      %v3295 = vpack.c.b16 %v3039, %v3039
      %v3296 = vpack.c.b16 %v3040, %v3040
      %v3297 = vpack.c.b16 %v3041, %v3041
      %v3298 = vpack.c.b16 %v3042, %v3042
      %v3299 = vpack.c.b16 %v3043, %v3043
      %v3300 = vpack.c.b16 %v3044, %v3044
      %v3301 = vpack.c.b16 %v3045, %v3045
      %v3302 = vpack.c.b16 %v3046, %v3046
      %v3303 = vpack.c.b16 %v3047, %v3047
      %v3304 = vpack.c.b16 %v3048, %v3048
      %v3305 = vpack.c.b16 %v3049, %v3049
      %v3306 = vpack.c.b16 %v3050, %v3050
      %v3307 = vpack.c.b16 %v3051, %v3051
      %v3308 = vpack.c.b16 %v3052, %v3052
      %v3309 = vpack.c.b16 %v3053, %v3053
      %v3310 = vpack.c.b16 %v3054, %v3054
      %v3311 = vpack.c.b16 %v3055, %v3055
      %v3312 = vpack.c.b16 %v3056, %v3056
      %v3313 = vpack.c.b16 %v3057, %v3057
      %v3314 = vpack.c.b16 %v3058, %v3058
      %v3315 = vpack.c.b16 %v3059, %v3059
      %v3316 = vpack.c.b16 %v3060, %v3060
      %v3317 = vpack.c.b16 %v3061, %v3061
      %v3318 = vpack.c.b16 %v3062, %v3062
      %v3319 = vpack.c.b16 %v3063, %v3063
      %v3320 = vpack.c.b16 %v3064, %v3064
      %v3321 = vpack.c.b16 %v3065, %v3065
      %v3322 = vpack.c.b16 %v3066, %v3066
      %v3323 = vpack.c.b16 %v3067, %v3067
      %v3324 = vpack.c.b16 %v3068, %v3068
      %v3325 = vpack.c.b16 %v3069, %v3069
      %v3326 = vpack.c.b16 %v3070, %v3070
      %v3327 = vpack.c.b16 %v3071, %v3071
      %v3328 = vpack.c.b16 %v3072, %v3072
      %v3329 = vpack.c.b16 %v3073, %v3073
      %v3330 = vpack.c.b16 %v3074, %v3074
      %v3331 = vpack.c.b16 %v3075, %v3075
      %v3332 = vpack.c.b16 %v3076, %v3076
      %v3333 = vpack.c.b16 %v3077, %v3077
      %v3334 = vpack.c.b16 %v3078, %v3078
      %v3335 = vpack.c.b16 %v3079, %v3079
      %v3336 = vpack.c.b16 %v3080, %v3080
      %v3337 = vpack.c.b16 %v3081, %v3081
      %v3338 = vpack.c.b16 %v3082, %v3082
      %v3339 = vpack.c.b16 %v3083, %v3083
      %v3340 = vpack.c.b16 %v3084, %v3084
      %v3341 = vpack.c.b16 %v3085, %v3085
      %v3342 = vpack.c.b16 %v3086, %v3086
      %v3343 = vpack.c.b16 %v3087, %v3087
      %v3344 = vpack.c.b16 %v3088, %v3088
      %v3345 = vpack.c.b16 %v3089, %v3089
      %v3346 = vpack.c.b16 %v3090, %v3090
      %3603 = vst [vmem:[%s223] sm:$0xf] %v3091
      %3604 = vst [vmem:[%s223 + $0x4] sm:$0xf] %v3092
      %3605 = vst [vmem:[%s223 + $0x8] sm:$0xf] %v3093
      %3606 = vst [vmem:[%s223 + $0xc] sm:$0xf] %v3094
      %3607 = vst [vmem:[%s223 + $0x10] sm:$0xf] %v3095
      %3608 = vst [vmem:[%s223 + $0x14] sm:$0xf] %v3096
      %3609 = vst [vmem:[%s223 + $0x18] sm:$0xf] %v3097
      %3610 = vst [vmem:[%s223 + $0x1c] sm:$0xf] %v3098
      %3611 = vst [vmem:[%s223 + $0x20] sm:$0xf] %v3099
      %3612 = vst [vmem:[%s223 + $0x24] sm:$0xf] %v3100
      %3613 = vst [vmem:[%s223 + $0x28] sm:$0xf] %v3101
      %3614 = vst [vmem:[%s223 + $0x2c] sm:$0xf] %v3102
      %3615 = vst [vmem:[%s223 + $0x30] sm:$0xf] %v3103
      %3616 = vst [vmem:[%s223 + $0x34] sm:$0xf] %v3104
      %3617 = vst [vmem:[%s223 + $0x38] sm:$0xf] %v3105
      %3618 = vst [vmem:[%s223 + $0x3c] sm:$0xf] %v3106
      %3619 = vst [vmem:[%s223 + $0x40] sm:$0xf] %v3107
      %3620 = vst [vmem:[%s223 + $0x44] sm:$0xf] %v3108
      %3621 = vst [vmem:[%s223 + $0x48] sm:$0xf] %v3109
      %3622 = vst [vmem:[%s223 + $0x4c] sm:$0xf] %v3110
      %3623 = vst [vmem:[%s223 + $0x50] sm:$0xf] %v3111
      %3624 = vst [vmem:[%s223 + $0x54] sm:$0xf] %v3112
      %3625 = vst [vmem:[%s223 + $0x58] sm:$0xf] %v3113
      %3626 = vst [vmem:[%s223 + $0x5c] sm:$0xf] %v3114
      %3627 = vst [vmem:[%s223 + $0x60] sm:$0xf] %v3115
      %3628 = vst [vmem:[%s223 + $0x64] sm:$0xf] %v3116
      %3629 = vst [vmem:[%s223 + $0x68] sm:$0xf] %v3117
      %3630 = vst [vmem:[%s223 + $0x6c] sm:$0xf] %v3118
      %3631 = vst [vmem:[%s223 + $0x70] sm:$0xf] %v3119
      %3632 = vst [vmem:[%s223 + $0x74] sm:$0xf] %v3120
      %3633 = vst [vmem:[%s223 + $0x78] sm:$0xf] %v3121
      %3634 = vst [vmem:[%s223 + $0x7c] sm:$0xf] %v3122
      %3635 = vst [vmem:[%s223 + $0x80] sm:$0xf] %v3123
      %3636 = vst [vmem:[%s223 + $0x84] sm:$0xf] %v3124
      %3637 = vst [vmem:[%s223 + $0x88] sm:$0xf] %v3125
      %3638 = vst [vmem:[%s223 + $0x8c] sm:$0xf] %v3126
      %3639 = vst [vmem:[%s223 + $0x90] sm:$0xf] %v3127
      %3640 = vst [vmem:[%s223 + $0x94] sm:$0xf] %v3128
      %3641 = vst [vmem:[%s223 + $0x98] sm:$0xf] %v3129
      %3642 = vst [vmem:[%s223 + $0x9c] sm:$0xf] %v3130
      %3643 = vst [vmem:[%s223 + $0xa0] sm:$0xf] %v3131
      %3644 = vst [vmem:[%s223 + $0xa4] sm:$0xf] %v3132
      %3645 = vst [vmem:[%s223 + $0xa8] sm:$0xf] %v3133
      %3646 = vst [vmem:[%s223 + $0xac] sm:$0xf] %v3134
      %3647 = vst [vmem:[%s223 + $0xb0] sm:$0xf] %v3135
      %3648 = vst [vmem:[%s223 + $0xb4] sm:$0xf] %v3136
      %3649 = vst [vmem:[%s223 + $0xb8] sm:$0xf] %v3137
      %3650 = vst [vmem:[%s223 + $0xbc] sm:$0xf] %v3138
      %3651 = vst [vmem:[%s223 + $0xc0] sm:$0xf] %v3139
      %3652 = vst [vmem:[%s223 + $0xc4] sm:$0xf] %v3140
      %3653 = vst [vmem:[%s223 + $0xc8] sm:$0xf] %v3141
      %3654 = vst [vmem:[%s223 + $0xcc] sm:$0xf] %v3142
      %3655 = vst [vmem:[%s223 + $0xd0] sm:$0xf] %v3143
      %3656 = vst [vmem:[%s223 + $0xd4] sm:$0xf] %v3144
      %3657 = vst [vmem:[%s223 + $0xd8] sm:$0xf] %v3145
      %3658 = vst [vmem:[%s223 + $0xdc] sm:$0xf] %v3146
      %3659 = vst [vmem:[%s223 + $0xe0] sm:$0xf] %v3147
      %3660 = vst [vmem:[%s223 + $0xe4] sm:$0xf] %v3148
      %3661 = vst [vmem:[%s223 + $0xe8] sm:$0xf] %v3149
      %3662 = vst [vmem:[%s223 + $0xec] sm:$0xf] %v3150
      %3663 = vst [vmem:[%s223 + $0xf0] sm:$0xf] %v3151
      %3664 = vst [vmem:[%s223 + $0xf4] sm:$0xf] %v3152
      %3665 = vst [vmem:[%s223 + $0xf8] sm:$0xf] %v3153
      %3666 = vst [vmem:[%s223 + $0xfc] sm:$0xf] %v3154
      %3667 = vst [vmem:[%s223 + $0x100] sm:$0xf] %v3155
      %3668 = vst [vmem:[%s223 + $0x104] sm:$0xf] %v3156
      %3669 = vst [vmem:[%s223 + $0x108] sm:$0xf] %v3157
      %3670 = vst [vmem:[%s223 + $0x10c] sm:$0xf] %v3158
      %3671 = vst [vmem:[%s223 + $0x110] sm:$0xf] %v3159
      %3672 = vst [vmem:[%s223 + $0x114] sm:$0xf] %v3160
      %3673 = vst [vmem:[%s223 + $0x118] sm:$0xf] %v3161
      %3674 = vst [vmem:[%s223 + $0x11c] sm:$0xf] %v3162
      %3675 = vst [vmem:[%s223 + $0x120] sm:$0xf] %v3163
      %3676 = vst [vmem:[%s223 + $0x124] sm:$0xf] %v3164
      %3677 = vst [vmem:[%s223 + $0x128] sm:$0xf] %v3165
      %3678 = vst [vmem:[%s223 + $0x12c] sm:$0xf] %v3166
      %3679 = vst [vmem:[%s223 + $0x130] sm:$0xf] %v3167
      %3680 = vst [vmem:[%s223 + $0x134] sm:$0xf] %v3168
      %3681 = vst [vmem:[%s223 + $0x138] sm:$0xf] %v3169
      %3682 = vst [vmem:[%s223 + $0x13c] sm:$0xf] %v3170
      %3683 = vst [vmem:[%s223 + $0x140] sm:$0xf] %v3171
      %3684 = vst [vmem:[%s223 + $0x144] sm:$0xf] %v3172
      %3685 = vst [vmem:[%s223 + $0x148] sm:$0xf] %v3173
      %3686 = vst [vmem:[%s223 + $0x14c] sm:$0xf] %v3174
      %3687 = vst [vmem:[%s223 + $0x150] sm:$0xf] %v3175
      %3688 = vst [vmem:[%s223 + $0x154] sm:$0xf] %v3176
      %3689 = vst [vmem:[%s223 + $0x158] sm:$0xf] %v3177
      %3690 = vst [vmem:[%s223 + $0x15c] sm:$0xf] %v3178
      %3691 = vst [vmem:[%s223 + $0x160] sm:$0xf] %v3179
      %3692 = vst [vmem:[%s223 + $0x164] sm:$0xf] %v3180
      %3693 = vst [vmem:[%s223 + $0x168] sm:$0xf] %v3181
      %3694 = vst [vmem:[%s223 + $0x16c] sm:$0xf] %v3182
      %3695 = vst [vmem:[%s223 + $0x170] sm:$0xf] %v3183
      %3696 = vst [vmem:[%s223 + $0x174] sm:$0xf] %v3184
      %3697 = vst [vmem:[%s223 + $0x178] sm:$0xf] %v3185
      %3698 = vst [vmem:[%s223 + $0x17c] sm:$0xf] %v3186
      %3699 = vst [vmem:[%s223 + $0x180] sm:$0xf] %v3187
      %3700 = vst [vmem:[%s223 + $0x184] sm:$0xf] %v3188
      %3701 = vst [vmem:[%s223 + $0x188] sm:$0xf] %v3189
      %3702 = vst [vmem:[%s223 + $0x18c] sm:$0xf] %v3190
      %3703 = vst [vmem:[%s223 + $0x190] sm:$0xf] %v3191
      %3704 = vst [vmem:[%s223 + $0x194] sm:$0xf] %v3192
      %3705 = vst [vmem:[%s223 + $0x198] sm:$0xf] %v3193
      %3706 = vst [vmem:[%s223 + $0x19c] sm:$0xf] %v3194
      %3707 = vst [vmem:[%s223 + $0x1a0] sm:$0xf] %v3195
      %3708 = vst [vmem:[%s223 + $0x1a4] sm:$0xf] %v3196
      %3709 = vst [vmem:[%s223 + $0x1a8] sm:$0xf] %v3197
      %3710 = vst [vmem:[%s223 + $0x1ac] sm:$0xf] %v3198
      %3711 = vst [vmem:[%s223 + $0x1b0] sm:$0xf] %v3199
      %3712 = vst [vmem:[%s223 + $0x1b4] sm:$0xf] %v3200
      %3713 = vst [vmem:[%s223 + $0x1b8] sm:$0xf] %v3201
      %3714 = vst [vmem:[%s223 + $0x1bc] sm:$0xf] %v3202
      %3715 = vst [vmem:[%s223 + $0x1c0] sm:$0xf] %v3203
      %3716 = vst [vmem:[%s223 + $0x1c4] sm:$0xf] %v3204
      %3717 = vst [vmem:[%s223 + $0x1c8] sm:$0xf] %v3205
      %3718 = vst [vmem:[%s223 + $0x1cc] sm:$0xf] %v3206
      %3719 = vst [vmem:[%s223 + $0x1d0] sm:$0xf] %v3207
      %3720 = vst [vmem:[%s223 + $0x1d4] sm:$0xf] %v3208
      %3721 = vst [vmem:[%s223 + $0x1d8] sm:$0xf] %v3209
      %3722 = vst [vmem:[%s223 + $0x1dc] sm:$0xf] %v3210
      %3723 = vst [vmem:[%s223 + $0x1e0] sm:$0xf] %v3211
      %3724 = vst [vmem:[%s223 + $0x1e4] sm:$0xf] %v3212
      %3725 = vst [vmem:[%s223 + $0x1e8] sm:$0xf] %v3213
      %3726 = vst [vmem:[%s223 + $0x1ec] sm:$0xf] %v3214
      %3727 = vst [vmem:[%s223 + $0x1f0] sm:$0xf] %v3215
      %3728 = vst [vmem:[%s223 + $0x1f4] sm:$0xf] %v3216
      %3729 = vst [vmem:[%s223 + $0x1f8] sm:$0xf] %v3217
      %3730 = vst [vmem:[%s223 + $0x1fc] sm:$0xf] %v3218
      %3731 = vst [vmem:[%s223 + $0x200] sm:$0xf] %v3219
      %3732 = vst [vmem:[%s223 + $0x204] sm:$0xf] %v3220
      %3733 = vst [vmem:[%s223 + $0x208] sm:$0xf] %v3221
      %3734 = vst [vmem:[%s223 + $0x20c] sm:$0xf] %v3222
      %3735 = vst [vmem:[%s223 + $0x210] sm:$0xf] %v3223
      %3736 = vst [vmem:[%s223 + $0x214] sm:$0xf] %v3224
      %3737 = vst [vmem:[%s223 + $0x218] sm:$0xf] %v3225
      %3738 = vst [vmem:[%s223 + $0x21c] sm:$0xf] %v3226
      %3739 = vst [vmem:[%s223 + $0x220] sm:$0xf] %v3227
      %3740 = vst [vmem:[%s223 + $0x224] sm:$0xf] %v3228
      %3741 = vst [vmem:[%s223 + $0x228] sm:$0xf] %v3229
      %3742 = vst [vmem:[%s223 + $0x22c] sm:$0xf] %v3230
      %3743 = vst [vmem:[%s223 + $0x230] sm:$0xf] %v3231
      %3744 = vst [vmem:[%s223 + $0x234] sm:$0xf] %v3232
      %3745 = vst [vmem:[%s223 + $0x238] sm:$0xf] %v3233
      %3746 = vst [vmem:[%s223 + $0x23c] sm:$0xf] %v3234
      %3747 = vst [vmem:[%s223 + $0x240] sm:$0xf] %v3235
      %3748 = vst [vmem:[%s223 + $0x244] sm:$0xf] %v3236
      %3749 = vst [vmem:[%s223 + $0x248] sm:$0xf] %v3237
      %3750 = vst [vmem:[%s223 + $0x24c] sm:$0xf] %v3238
      %3751 = vst [vmem:[%s223 + $0x250] sm:$0xf] %v3239
      %3752 = vst [vmem:[%s223 + $0x254] sm:$0xf] %v3240
      %3753 = vst [vmem:[%s223 + $0x258] sm:$0xf] %v3241
      %3754 = vst [vmem:[%s223 + $0x25c] sm:$0xf] %v3242
      %3755 = vst [vmem:[%s223 + $0x260] sm:$0xf] %v3243
      %3756 = vst [vmem:[%s223 + $0x264] sm:$0xf] %v3244
      %3757 = vst [vmem:[%s223 + $0x268] sm:$0xf] %v3245
      %3758 = vst [vmem:[%s223 + $0x26c] sm:$0xf] %v3246
      %3759 = vst [vmem:[%s223 + $0x270] sm:$0xf] %v3247
      %3760 = vst [vmem:[%s223 + $0x274] sm:$0xf] %v3248
      %3761 = vst [vmem:[%s223 + $0x278] sm:$0xf] %v3249
      %3762 = vst [vmem:[%s223 + $0x27c] sm:$0xf] %v3250
      %3763 = vst [vmem:[%s223 + $0x280] sm:$0xf] %v3251
      %3764 = vst [vmem:[%s223 + $0x284] sm:$0xf] %v3252
      %3765 = vst [vmem:[%s223 + $0x288] sm:$0xf] %v3253
      %3766 = vst [vmem:[%s223 + $0x28c] sm:$0xf] %v3254
      %3767 = vst [vmem:[%s223 + $0x290] sm:$0xf] %v3255
      %3768 = vst [vmem:[%s223 + $0x294] sm:$0xf] %v3256
      %3769 = vst [vmem:[%s223 + $0x298] sm:$0xf] %v3257
      %3770 = vst [vmem:[%s223 + $0x29c] sm:$0xf] %v3258
      %3771 = vst [vmem:[%s223 + $0x2a0] sm:$0xf] %v3259
      %3772 = vst [vmem:[%s223 + $0x2a4] sm:$0xf] %v3260
      %3773 = vst [vmem:[%s223 + $0x2a8] sm:$0xf] %v3261
      %3774 = vst [vmem:[%s223 + $0x2ac] sm:$0xf] %v3262
      %3775 = vst [vmem:[%s223 + $0x2b0] sm:$0xf] %v3263
      %3776 = vst [vmem:[%s223 + $0x2b4] sm:$0xf] %v3264
      %3777 = vst [vmem:[%s223 + $0x2b8] sm:$0xf] %v3265
      %3778 = vst [vmem:[%s223 + $0x2bc] sm:$0xf] %v3266
      %3779 = vst [vmem:[%s223 + $0x2c0] sm:$0xf] %v3267
      %3780 = vst [vmem:[%s223 + $0x2c4] sm:$0xf] %v3268
      %3781 = vst [vmem:[%s223 + $0x2c8] sm:$0xf] %v3269
      %3782 = vst [vmem:[%s223 + $0x2cc] sm:$0xf] %v3270
      %3783 = vst [vmem:[%s223 + $0x2d0] sm:$0xf] %v3271
      %3784 = vst [vmem:[%s223 + $0x2d4] sm:$0xf] %v3272
      %3785 = vst [vmem:[%s223 + $0x2d8] sm:$0xf] %v3273
      %3786 = vst [vmem:[%s223 + $0x2dc] sm:$0xf] %v3274
      %3787 = vst [vmem:[%s223 + $0x2e0] sm:$0xf] %v3275
      %3788 = vst [vmem:[%s223 + $0x2e4] sm:$0xf] %v3276
      %3789 = vst [vmem:[%s223 + $0x2e8] sm:$0xf] %v3277
      %3790 = vst [vmem:[%s223 + $0x2ec] sm:$0xf] %v3278
      %3791 = vst [vmem:[%s223 + $0x2f0] sm:$0xf] %v3279
      %3792 = vst [vmem:[%s223 + $0x2f4] sm:$0xf] %v3280
      %3793 = vst [vmem:[%s223 + $0x2f8] sm:$0xf] %v3281
      %3794 = vst [vmem:[%s223 + $0x2fc] sm:$0xf] %v3282
      %3795 = vst [vmem:[%s223 + $0x300] sm:$0xf] %v3283
      %3796 = vst [vmem:[%s223 + $0x304] sm:$0xf] %v3284
      %3797 = vst [vmem:[%s223 + $0x308] sm:$0xf] %v3285
      %3798 = vst [vmem:[%s223 + $0x30c] sm:$0xf] %v3286
      %3799 = vst [vmem:[%s223 + $0x310] sm:$0xf] %v3287
      %3800 = vst [vmem:[%s223 + $0x314] sm:$0xf] %v3288
      %3801 = vst [vmem:[%s223 + $0x318] sm:$0xf] %v3289
      %3802 = vst [vmem:[%s223 + $0x31c] sm:$0xf] %v3290
      %3803 = vst [vmem:[%s223 + $0x320] sm:$0xf] %v3291
      %3804 = vst [vmem:[%s223 + $0x324] sm:$0xf] %v3292
      %3805 = vst [vmem:[%s223 + $0x328] sm:$0xf] %v3293
      %3806 = vst [vmem:[%s223 + $0x32c] sm:$0xf] %v3294
      %3807 = vst [vmem:[%s223 + $0x330] sm:$0xf] %v3295
      %3808 = vst [vmem:[%s223 + $0x334] sm:$0xf] %v3296
      %3809 = vst [vmem:[%s223 + $0x338] sm:$0xf] %v3297
      %3810 = vst [vmem:[%s223 + $0x33c] sm:$0xf] %v3298
      %3811 = vst [vmem:[%s223 + $0x340] sm:$0xf] %v3299
      %3812 = vst [vmem:[%s223 + $0x344] sm:$0xf] %v3300
      %3813 = vst [vmem:[%s223 + $0x348] sm:$0xf] %v3301
      %3814 = vst [vmem:[%s223 + $0x34c] sm:$0xf] %v3302
      %3815 = vst [vmem:[%s223 + $0x350] sm:$0xf] %v3303
      %3816 = vst [vmem:[%s223 + $0x354] sm:$0xf] %v3304
      %3817 = vst [vmem:[%s223 + $0x358] sm:$0xf] %v3305
      %3818 = vst [vmem:[%s223 + $0x35c] sm:$0xf] %v3306
      %3819 = vst [vmem:[%s223 + $0x360] sm:$0xf] %v3307
      %3820 = vst [vmem:[%s223 + $0x364] sm:$0xf] %v3308
      %3821 = vst [vmem:[%s223 + $0x368] sm:$0xf] %v3309
      %3822 = vst [vmem:[%s223 + $0x36c] sm:$0xf] %v3310
      %3823 = vst [vmem:[%s223 + $0x370] sm:$0xf] %v3311
      %3824 = vst [vmem:[%s223 + $0x374] sm:$0xf] %v3312
      %3825 = vst [vmem:[%s223 + $0x378] sm:$0xf] %v3313
      %3826 = vst [vmem:[%s223 + $0x37c] sm:$0xf] %v3314
      %3827 = vst [vmem:[%s223 + $0x380] sm:$0xf] %v3315
      %3828 = vst [vmem:[%s223 + $0x384] sm:$0xf] %v3316
      %3829 = vst [vmem:[%s223 + $0x388] sm:$0xf] %v3317
      %3830 = vst [vmem:[%s223 + $0x38c] sm:$0xf] %v3318
      %3831 = vst [vmem:[%s223 + $0x390] sm:$0xf] %v3319
      %3832 = vst [vmem:[%s223 + $0x394] sm:$0xf] %v3320
      %3833 = vst [vmem:[%s223 + $0x398] sm:$0xf] %v3321
      %3834 = vst [vmem:[%s223 + $0x39c] sm:$0xf] %v3322
      %3835 = vst [vmem:[%s223 + $0x3a0] sm:$0xf] %v3323
      %3836 = vst [vmem:[%s223 + $0x3a4] sm:$0xf] %v3324
      %3837 = vst [vmem:[%s223 + $0x3a8] sm:$0xf] %v3325
      %3838 = vst [vmem:[%s223 + $0x3ac] sm:$0xf] %v3326
      %3839 = vst [vmem:[%s223 + $0x3b0] sm:$0xf] %v3327
      %3840 = vst [vmem:[%s223 + $0x3b4] sm:$0xf] %v3328
      %3841 = vst [vmem:[%s223 + $0x3b8] sm:$0xf] %v3329
      %3842 = vst [vmem:[%s223 + $0x3bc] sm:$0xf] %v3330
      %3843 = vst [vmem:[%s223 + $0x3c0] sm:$0xf] %v3331
      %3844 = vst [vmem:[%s223 + $0x3c4] sm:$0xf] %v3332
      %3845 = vst [vmem:[%s223 + $0x3c8] sm:$0xf] %v3333
      %3846 = vst [vmem:[%s223 + $0x3cc] sm:$0xf] %v3334
      %3847 = vst [vmem:[%s223 + $0x3d0] sm:$0xf] %v3335
      %3848 = vst [vmem:[%s223 + $0x3d4] sm:$0xf] %v3336
      %3849 = vst [vmem:[%s223 + $0x3d8] sm:$0xf] %v3337
      %3850 = vst [vmem:[%s223 + $0x3dc] sm:$0xf] %v3338
      %3851 = vst [vmem:[%s223 + $0x3e0] sm:$0xf] %v3339
      %3852 = vst [vmem:[%s223 + $0x3e4] sm:$0xf] %v3340
      %3853 = vst [vmem:[%s223 + $0x3e8] sm:$0xf] %v3341
      %3854 = vst [vmem:[%s223 + $0x3ec] sm:$0xf] %v3342
      %3855 = vst [vmem:[%s223 + $0x3f0] sm:$0xf] %v3343
      %3856 = vst [vmem:[%s223 + $0x3f4] sm:$0xf] %v3344
      %3857 = vst [vmem:[%s223 + $0x3f8] sm:$0xf] %v3345
      %3858 = vst [vmem:[%s223 + $0x3fc] sm:$0xf] %v3346
      %s3859 = smul.u32 256, %s18
      %p3860 = scmp.lt.s32.totalorder %s3859, 1023
      %s3861 = scalar_select %p3860, %s3859, 1023
      %p3862 = scmp.lt.s32.totalorder %s19, 0
      %s3863 = scalar_select %p3862, %s19, 0
      %s3864 = sadd.s32 %s3863, %s3861
      %s3865 = smul.addr %s3864, 4
      %s3866 = scalar_lea.vmem %s3, %s3865
      // Predicated region
      $region33: #{texture_generator_forward.9} parent=31 // pred_check
        %p3867 = pneg %p124
      $region34: #{texture_generator_forward.9} parent=31 // pred_check_branch
        %3869 = sbr.rel (%p3867) target = $region36
      $region35: #{texture_generator_forward.9} parent=31 // pred_region
        %s3870 = smul.u32 256, %s18
      $region36: #{texture_generator_forward.9} parent=31 // pred_fallthru
        _
    $region32: #{texture_generator_forward.9} parent=5 // pred_fallthru
      _
    %p3871 = scmp.le.s32.totalorder 2, %s9
    // Predicated region
    $region37: #{texture_generator_forward.9} parent=5 // pred_check
      %p3872 = pneg %p3871
    $region38: #{texture_generator_forward.9} parent=5 // pred_check_branch
      %3874 = sbr.rel (%p3872) target = $region40
    $region39: #{texture_generator_forward.9} parent=5 // pred_region
      %s3875 = ssub.s32 %s9, 2
      // Predicated region
      $region41: #{texture_generator_forward.9} parent=39 // pred_check
        %p3876 = pneg %p130
      $region42: #{texture_generator_forward.9} parent=39 // pred_check_branch
        %3878 = sbr.rel (%p3876) target = $region44
      $region43: #{texture_generator_forward.9} parent=39 // pred_region
        %s3879 = smul.u32 256, %s20
        %p3880 = scmp.lt.s32.totalorder %s3879, 1023
        %s3881 = scalar_select %p3880, %s3879, 1023
        %p3882 = scmp.lt.s32.totalorder %s21, 0
        %s3883 = scalar_select %p3882, %s21, 0
        %s3884 = sadd.s32 %s3883, %s3881
        %s3885 = smul.addr %s3884, 4
        %s3886 = scalar_lea.vmem %s3, %s3885
      $region44: #{texture_generator_forward.9} parent=39 // pred_fallthru
        _
    $region40: #{texture_generator_forward.9} parent=5 // pred_fallthru
      _
  $region6: #{texture_generator_forward.9} parent=0 // loop_footer
    %s13 = sadd.s32 1, %s9
  $region7: #{texture_generator_forward.9} parent=0 // loop_footer_branch
    %8 = sbr.rel target = $region3
  $region8: #{texture_generator_forward.9} parent=0 // loop_exit
    _

</llo_original>
